<compile_context>
chip_gen: v6e
topology: v6e:2x2x1
jax: 0.10.0
libtpu: 0.0.40
codegen_flags: <defaults>
</compile_context>

<pallas_src>
import math
from functools import partial

import numpy as np
import jax
import jax.numpy as jnp
from jax.experimental import pallas as pl
from jax.experimental.pallas import tpu as pltpu

# ----------------------------- model config (small) -----------------------------
IMG_SIZE   = 16
PATCH      = 4
IN_CHANS   = 3
EMBED      = 32
DEPTH      = 2
NUM_HEADS  = 4
DEC_EMBED  = 32
DEC_DEPTH  = 2
DEC_HEADS  = 4
MLP_RATIO  = 4.0
LN_EPS     = 1e-5                      # nn.LayerNorm default eps
NUM_PATCHES = (IMG_SIZE // PATCH) ** 2 # 16
PRED_DIM   = PATCH * PATCH * IN_CHANS  # 48
KP         = IN_CHANS * PATCH * PATCH  # 48 (patch vector length, conv order)
LANE_PAD   = 128                       # lane-dense output width


def _round_up(x, m):
    return ((x + m - 1) // m) * m


# ----------------------------- sincos pos embed (numpy, deterministic) ----------
def _get_1d_sincos(embed_dim, pos):
    omega = np.arange(embed_dim // 2, dtype=np.float64) / (embed_dim / 2.0)
    omega = 1.0 / 10000 ** omega
    out = np.einsum("m,d->md", pos.reshape(-1), omega)
    return np.concatenate([np.sin(out), np.cos(out)], axis=1)


def get_2d_sincos_pos_embed(embed_dim, grid_size, cls_token=False):
    grid_h = np.arange(grid_size, dtype=np.float64)
    grid_w = np.arange(grid_size, dtype=np.float64)
    grid = np.meshgrid(grid_w, grid_h)          # w first (matches MAE reference)
    grid = np.stack(grid, axis=0).reshape([2, 1, grid_size, grid_size])
    emb_h = _get_1d_sincos(embed_dim // 2, grid[0])
    emb_w = _get_1d_sincos(embed_dim // 2, grid[1])
    pos = np.concatenate([emb_h, emb_w], axis=1)
    if cls_token:
        pos = np.concatenate([np.zeros([1, embed_dim]), pos], axis=0)
    return pos.astype(np.float32)


# ----------------------------- in-kernel helpers ---------------------------------
def _ln(x, g, b):
    mu = jnp.mean(x, axis=-1, keepdims=True)
    xc = x - mu
    var = jnp.mean(xc * xc, axis=-1, keepdims=True)
    return xc * jax.lax.rsqrt(var + LN_EPS) * g + b


def _mha(h, wqkv, bqkv, wo, bo, *, num_heads, batch, seq, real_seq):
    """Multi-head self-attention on a dense (batch*seq, D) slab.

    One fused qkv matmul (bf16 on MXU, f32 accum); heads gathered onto a single
    (H*B) leading batch axis with H static lane slices + one sublane concat +
    leading-dim reshapes (no per-(batch,head) Python stacks); single batched
    einsum per attention stage; one (M, D) @ (D, D) output projection.
    Padded key positions (>= real_seq) are masked additively in the softmax.
    """
    M, D = h.shape
    dh = D // num_heads
    scale = dh ** -0.5

    qkv = jnp.dot(h.astype(jnp.bfloat16), wqkv,
                  preferred_element_type=jnp.float32) + bqkv           # (M, 3D) f32

    def heads(off):
        # H static lane slices -> sublane concat (H*M, dh) -> (H*B, S, dh)
        cols = jnp.concatenate(
            [qkv[:, off + hd * dh: off + (hd + 1) * dh] for hd in range(num_heads)],
            axis=0)
        return cols.reshape(num_heads * batch, seq, dh).astype(jnp.bfloat16)

    q, k, v = heads(0), heads(D), heads(2 * D)

    s = jnp.einsum("nqd,nkd->nqk", q, k,
                   preferred_element_type=jnp.float32) * scale         # (H*B, S, S)
    if real_seq < seq:  # additive key-padding mask for the padded key slots
        kpos = jax.lax.broadcasted_iota(jnp.int32, (1, 1, seq), 2)
        s = s + jnp.where(kpos < real_seq, 0.0, -1e9)
    s = s - jnp.max(s, axis=-1, keepdims=True)
    p = jnp.exp(s)
    p = p * pl.reciprocal(jnp.sum(p, axis=-1, keepdims=True), approx=True)
    o = jnp.einsum("nqk,nkd->nqd", p.astype(jnp.bfloat16), v,
                   preferred_element_type=jnp.float32)                 # (H*B, S, dh)

    # back to (M, D): heads concatenated on lanes
    o = o.reshape(num_heads, M, dh)
    attn = jnp.concatenate([o[hd] for hd in range(num_heads)], axis=-1)  # (M, D)
    return jnp.dot(attn.astype(jnp.bfloat16), wo,
                   preferred_element_type=jnp.float32) + bo


def _block_body(x, g1, b1, wqkv, bqkv, wo, bo, g2, b2, w1, bm1, w2, bm2,
                *, num_heads, batch, seq, real_seq):
    """Pre-norm transformer block on a dense (batch*seq, D) slab."""
    x = x + _mha(_ln(x, g1, b1), wqkv, bqkv, wo, bo,
                 num_heads=num_heads, batch=batch, seq=seq, real_seq=real_seq)
    h = _ln(x, g2, b2)
    m = jnp.dot(h.astype(jnp.bfloat16), w1, preferred_element_type=jnp.float32) + bm1
    m = 0.5 * m * (1.0 + jax.lax.erf(m * (1.0 / math.sqrt(2.0))))  # exact GELU
    m = jnp.dot(m.astype(jnp.bfloat16), w2, preferred_element_type=jnp.float32) + bm2
    return x + m


# ----------------------------- fused stack kernels --------------------------------
def _encoder_stack_kernel(tok_ref, add_ref, wp_ref,
                          g1_ref, be1_ref, wqkv_ref, bqkv_ref, wo_ref, bo_ref,
                          g2_ref, be2_ref, w1_ref, b1_ref, w2_ref, b2_ref,
                          ng_ref, nb_ref, wd_ref, bd_ref,
                          o_ref, x_sc,
                          *, num_heads, batch, seq, real_seq):
    d = pl.program_id(0)

    # depth step 0: patch embedding folded in (cls/pad rows have zero patches;
    # the additive term carries cls+pos for row 0, pos+patch-bias for kept rows,
    # and zeros for pad rows)
    @pl.when(d == 0)
    def _():
        x_sc[...] = (jnp.dot(tok_ref[...].astype(jnp.bfloat16), wp_ref[...],
                             preferred_element_type=jnp.float32) + add_ref[...])

    x = _block_body(x_sc[...],
                    g1_ref[0], be1_ref[0], wqkv_ref[0], bqkv_ref[0],
                    wo_ref[0], bo_ref[0], g2_ref[0], be2_ref[0],
                    w1_ref[0], b1_ref[0], w2_ref[0], b2_ref[0],
                    num_heads=num_heads, batch=batch, seq=seq, real_seq=real_seq)
    x_sc[...] = x

    # last depth step: final encoder LayerNorm + decoder_embed linear folded in;
    # output is a lane-dense (M, 128) slab (weights zero-padded on lanes).
    @pl.when(d == pl.num_programs(0) - 1)
    def _():
        xn = _ln(x, ng_ref[...], nb_ref[...])
        o_ref[...] = (jnp.dot(xn.astype(jnp.bfloat16), wd_ref[...],
                              preferred_element_type=jnp.float32) + bd_ref[...])


def _decoder_stack_kernel(x_ref, tgt_ref, msk_ref,
                          g1_ref, be1_ref, wqkv_ref, bqkv_ref, wo_ref, bo_ref,
                          g2_ref, be2_ref, w1_ref, b1_ref, w2_ref, b2_ref,
                          ng_ref, nb_ref, wpred_ref, bpred_ref,
                          pred_ref, loss_ref, x_sc,
                          *, num_heads, batch, seq, real_seq):
    d = pl.program_id(0)

    @pl.when(d == 0)
    def _():
        x_sc[...] = x_ref[...]

    x = _block_body(x_sc[...],
                    g1_ref[0], be1_ref[0], wqkv_ref[0], bqkv_ref[0],
                    wo_ref[0], bo_ref[0], g2_ref[0], be2_ref[0],
                    w1_ref[0], b1_ref[0], w2_ref[0], b2_ref[0],
                    num_heads=num_heads, batch=batch, seq=seq, real_seq=real_seq)
    x_sc[...] = x

    # last depth step: decoder LayerNorm + prediction head + fused masked MSE.
    @pl.when(d == pl.num_programs(0) - 1)
    def _():
        xn = _ln(x, ng_ref[...], nb_ref[...])
        pred = (jnp.dot(xn.astype(jnp.bfloat16), wpred_ref[...],
                        preferred_element_type=jnp.float32) + bpred_ref[...])  # (M,128)
        pred_ref[...] = pred
        # lanes >= PRED_DIM of both pred and target are exactly zero (zero-padded
        # weights / target), so summing over all 128 lanes and dividing by
        # PRED_DIM reproduces the per-patch mean.
        dlt = pred - tgt_ref[...]
        per_row = jnp.sum(dlt * dlt, axis=-1, keepdims=True) * (1.0 / PRED_DIM)
        m = msk_ref[...]                                # (M, 1): 0 for cls/pad rows
        loss_ref[0, 0] = jnp.sum(per_row * m) / jnp.sum(m)


# ----------------------------- stack wrappers --------------------------------------
def _const_spec(shape):
    return pl.BlockSpec(shape, lambda d: (0, 0))


def _depth_spec(shape):
    return pl.BlockSpec((1,) + tuple(shape), lambda d: (d, 0, 0))


def _block_specs(dim, hidden):
    return [
        _depth_spec((1, dim)), _depth_spec((1, dim)),            # ln1 gamma/beta
        _depth_spec((dim, 3 * dim)), _depth_spec((1, 3 * dim)),  # qkv
        _depth_spec((dim, dim)), _depth_spec((1, dim)),          # attn proj
        _depth_spec((1, dim)), _depth_spec((1, dim)),            # ln2 gamma/beta
        _depth_spec((dim, hidden)), _depth_spec((1, hidden)),    # mlp fc1
        _depth_spec((hidden, dim)), _depth_spec((1, dim)),       # mlp fc2
    ]


def _block_args(blk):
    return (blk["ln1_g"], blk["ln1_b"], blk["wqkv"], blk["bqkv"], blk["wo"],
            blk["bo"], blk["ln2_g"], blk["ln2_b"], blk["w1"], blk["b1"],
            blk["w2"], blk["b2"])


def encoder_stack(tok2d, add2d, params, *, batch, seq, real_seq):
    """(B*Sp, KP) patches + (B*Sp, D) additive -> (B*Sp, 128) dec-embedded latent."""
    M = tok2d.shape[0]
    D = EMBED
    eb = params["enc_blocks"]
    depth = eb["wqkv"].shape[0]
    hidden = eb["w1"].shape[-1]

    in_specs = ([_const_spec((M, KP)), _const_spec((M, D)), _const_spec((KP, D))]
                + _block_specs(D, hidden)
                + [_const_spec((1, D)), _const_spec((1, D)),
                   _const_spec((D, LANE_PAD)), _const_spec((1, LANE_PAD))])

    kernel = partial(_encoder_stack_kernel, num_heads=NUM_HEADS,
                     batch=batch, seq=seq, real_seq=real_seq)
    return pl.pallas_call(
        kernel,
        grid=(depth,),
        out_shape=jax.ShapeDtypeStruct((M, LANE_PAD), jnp.float32),
        in_specs=in_specs,
        out_specs=pl.BlockSpec((M, LANE_PAD), lambda d: (0, 0)),
        scratch_shapes=[pltpu.VMEM((M, D), jnp.float32)],
        compiler_params=pltpu.CompilerParams(dimension_semantics=("arbitrary",)),
    )(tok2d, add2d, params["w_patch"],
      *_block_args(eb),
      params["norm_g"], params["norm_b"],
      params["w_dec_embed"], params["b_dec_embed"])


def decoder_stack(x2d, tgt2d, msk2d, params, *, batch, seq, real_seq):
    """(B*Sp, Dd) tokens -> ((B*Sp, 128) lane-dense predictions, (1,1) loss)."""
    M, D = x2d.shape
    db = params["dec_blocks"]
    depth = db["wqkv"].shape[0]
    hidden = db["w1"].shape[-1]

    in_specs = ([_const_spec((M, D)), _const_spec((M, LANE_PAD)), _const_spec((M, 1))]
                + _block_specs(D, hidden)
                + [_const_spec((1, D)), _const_spec((1, D)),
                   _const_spec((D, LANE_PAD)), _const_spec((1, LANE_PAD))])

    kernel = partial(_decoder_stack_kernel, num_heads=DEC_HEADS,
                     batch=batch, seq=seq, real_seq=real_seq)
    return pl.pallas_call(
        kernel,
        grid=(depth,),
        out_shape=(jax.ShapeDtypeStruct((M, LANE_PAD), jnp.float32),
                   jax.ShapeDtypeStruct((1, 1), jnp.float32)),
        in_specs=in_specs,
        out_specs=(pl.BlockSpec((M, LANE_PAD), lambda d: (0, 0)),
                   pl.BlockSpec((1, 1), lambda d: (0, 0),
                                memory_space=pltpu.MemorySpace.SMEM)),
        scratch_shapes=[pltpu.VMEM((M, D), jnp.float32)],
        compiler_params=pltpu.CompilerParams(dimension_semantics=("arbitrary",)),
    )(x2d, tgt2d, msk2d,
      *_block_args(db),
      params["dec_norm_g"], params["dec_norm_b"],
      params["w_pred"], params["b_pred"])


# ----------------------------- glue: patch extraction -------------------------------
def extract_patches_conv_order(imgs, p):
    """NCHW -> (B, L, C*p*p), (c, i, j) flatten order (matches Conv2d weight layout)."""
    B, C, H, W = imgs.shape
    h, w = H // p, W // p
    x = imgs.reshape(B, C, h, p, w, p)
    x = jnp.transpose(x, (0, 2, 4, 1, 3, 5))    # b h w c p q
    return x.reshape(B, h * w, C * p * p)


def patchify(imgs, p):
    """Reference MAE patchify: NCHW -> (B, L, p*p*C) with (p, q, c) order (loss target)."""
    B, C, H, W = imgs.shape
    h, w = H // p, W // p
    x = imgs.reshape(B, C, h, p, w, p)
    x = jnp.transpose(x, (0, 2, 4, 3, 5, 1))    # n h w p q c
    return x.reshape(B, h * w, p * p * C)


# ----------------------------- parameter init (deterministic) -----------------------
def xavier(key, fan_in, fan_out):
    lim = math.sqrt(6.0 / (fan_in + fan_out))
    return jax.random.uniform(key, (fan_in, fan_out), jnp.float32, -lim, lim)


def init_block_stack(key, depth, dim, mlp_ratio):
    hidden = int(dim * mlp_ratio)
    keys = jax.random.split(key, depth)

    def one(k):
        kk = jax.random.split(k, 4)
        return dict(
            ln1_g=jnp.ones((1, dim), jnp.float32), ln1_b=jnp.zeros((1, dim), jnp.float32),
            wqkv=xavier(kk[0], dim, 3 * dim).astype(jnp.bfloat16),
            bqkv=jnp.zeros((1, 3 * dim), jnp.float32),
            wo=xavier(kk[1], dim, dim).astype(jnp.bfloat16),
            bo=jnp.zeros((1, dim), jnp.float32),
            ln2_g=jnp.ones((1, dim), jnp.float32), ln2_b=jnp.zeros((1, dim), jnp.float32),
            w1=xavier(kk[2], dim, hidden).astype(jnp.bfloat16),
            b1=jnp.zeros((1, hidden), jnp.float32),
            w2=xavier(kk[3], hidden, dim).astype(jnp.bfloat16),
            b2=jnp.zeros((1, dim), jnp.float32),
        )

    blocks = [one(keys[i]) for i in range(depth)]
    # stack along a leading depth axis -> indexed by the grid depth axis in-kernel
    return {name: jnp.stack([b[name] for b in blocks], axis=0) for name in blocks[0]}


def _lane_pad_weight(w, pad_to):
    out = jnp.zeros((w.shape[0], pad_to), jnp.float32).at[:, :w.shape[1]].set(w)
    return out.astype(jnp.bfloat16)


def init_params(key):
    keys = jax.random.split(key, 8)
    grid_size = IMG_SIZE // PATCH
    return dict(
        w_patch=xavier(keys[0], KP, EMBED).astype(jnp.bfloat16),
        b_patch=jnp.zeros((EMBED,), jnp.float32),
        cls_token=0.02 * jax.random.normal(keys[1], (1, 1, EMBED), jnp.float32),
        pos_embed=jnp.asarray(
            get_2d_sincos_pos_embed(EMBED, grid_size, cls_token=True))[None],
        enc_blocks=init_block_stack(keys[2], DEPTH, EMBED, MLP_RATIO),
        norm_g=jnp.ones((1, EMBED), jnp.float32),
        norm_b=jnp.zeros((1, EMBED), jnp.float32),
        # decoder (projection weights zero-padded on lanes to 128 for dense stores)
        w_dec_embed=_lane_pad_weight(xavier(keys[3], EMBED, DEC_EMBED), LANE_PAD),
        b_dec_embed=jnp.zeros((1, LANE_PAD), jnp.float32),
        mask_token=0.02 * jax.random.normal(keys[4], (1, 1, DEC_EMBED), jnp.float32),
        decoder_pos_embed=jnp.asarray(
            get_2d_sincos_pos_embed(DEC_EMBED, grid_size, cls_token=True))[None],
        dec_blocks=init_block_stack(keys[5], DEC_DEPTH, DEC_EMBED, MLP_RATIO),
        dec_norm_g=jnp.ones((1, DEC_EMBED), jnp.float32),
        dec_norm_b=jnp.zeros((1, DEC_EMBED), jnp.float32),
        w_pred=_lane_pad_weight(xavier(keys[6], DEC_EMBED, PRED_DIM), LANE_PAD),
        b_pred=jnp.zeros((1, LANE_PAD), jnp.float32),
    )


# ----------------------------- MAE forward ------------------------------------------
def random_masking_indices(rng, B, L, mask_ratio):
    len_keep = int(L * (1 - mask_ratio))
    noise = jax.random.uniform(rng, (B, L))
    ids_shuffle = jnp.argsort(noise, axis=1)
    ids_restore = jnp.argsort(ids_shuffle, axis=1)
    ids_keep = ids_shuffle[:, :len_keep]
    mask = jnp.ones((B, L), jnp.float32).at[:, :len_keep].set(0.0)
    mask = jnp.take_along_axis(mask, ids_restore, axis=1)
    return ids_keep, ids_restore, mask, len_keep


def mae_forward(imgs, params, mask_ratio=0.75, channel_mask_ratio=0.2, *, rng):
    # NOTE: ChannelAttention is instantiated in the PyTorch __init__ but never
    # invoked inside forward_encoder, so it is intentionally omitted here.
    B = imgs.shape[0]
    L = NUM_PATCHES

    # ---------------- encoder glue: masking indices + gathered inputs --------------
    patches_conv = extract_patches_conv_order(imgs, PATCH)          # (B, L, KP)
    ids_keep, ids_restore, mask, len_keep = random_masking_indices(
        rng, B, L, mask_ratio)
    patches_kept = jnp.take_along_axis(
        patches_conv,
        jnp.broadcast_to(ids_keep[:, :, None], (B, len_keep, KP)), axis=1)
    pos_tok = params["pos_embed"][0, 1:, :]                         # (L, D)
    pos_kept = jnp.take(pos_tok, ids_keep, axis=0)                  # (B, len_keep, D)
    S = len_keep + 1                                                # +cls
    S_pad = _round_up(S, 8)                                         # sublane-aligned

    # row 0 (cls): zero patches, additive = cls_token + pos[0]
    # rows 1..S-1 (kept tokens): raw patches, additive = pos_kept + patch-embed bias
    # rows S.. (pad): all zeros (masked out of attention inside the kernel)
    tok = jnp.concatenate(
        [jnp.zeros((B, 1, KP), jnp.float32), patches_kept], axis=1)   # (B, S, KP)
    cls_add = params["cls_token"] + params["pos_embed"][:, :1, :]     # (1, 1, D)
    add = jnp.concatenate(
        [jnp.broadcast_to(cls_add, (B, 1, EMBED)),
         pos_kept + params["b_patch"][None, None, :]], axis=1)        # (B, S, D)
    tok = jnp.pad(tok, ((0, 0), (0, S_pad - S), (0, 0)))
    add = jnp.pad(add, ((0, 0), (0, S_pad - S), (0, 0)))

    latent_pad = encoder_stack(tok.reshape(B * S_pad, KP),
                               add.reshape(B * S_pad, EMBED),
                               params, batch=B, seq=S_pad, real_seq=S)
    latent_dec = latent_pad.reshape(B, S_pad, LANE_PAD)[:, :S, :DEC_EMBED]

    # ---------------- decoder glue: mask tokens + un-shuffle + pos ------------------
    # TODO(synk): fuse this un-shuffle gather into the decoder pallas_call via
    # scalar-prefetched ids_restore to make encoder->decoder->loss one call.
    mask_tokens = jnp.broadcast_to(params["mask_token"], (B, L + 1 - S, DEC_EMBED))
    x_ = jnp.concatenate([latent_dec[:, 1:, :], mask_tokens], axis=1)  # (B, L, Dd)
    x_ = jnp.take_along_axis(
        x_, jnp.broadcast_to(ids_restore[:, :, None], (B, L, DEC_EMBED)), axis=1)
    xd = jnp.concatenate([latent_dec[:, :1, :], x_], axis=1)           # (B, L+1, Dd)
    xd = xd + params["decoder_pos_embed"]

    Sd = L + 1
    Sd_pad = _round_up(Sd, 8)
    xd = jnp.pad(xd, ((0, 0), (0, Sd_pad - Sd), (0, 0)))               # (B, Sd_pad, Dd)

    # ---------------- loss inputs (row-aligned with the decoder slab) ---------------
    target = patchify(imgs, PATCH)                                     # (B, L, 48)
    tgt_rows = jnp.zeros((B, Sd_pad, LANE_PAD), jnp.float32)
    tgt_rows = tgt_rows.at[:, 1:1 + L, :PRED_DIM].set(target)
    msk_rows = jnp.zeros((B, Sd_pad), jnp.float32)
    msk_rows = msk_rows.at[:, 1:1 + L].set(mask)

    pred_pad, loss = decoder_stack(xd.reshape(B * Sd_pad, DEC_EMBED),
                                   tgt_rows.reshape(B * Sd_pad, LANE_PAD),
                                   msk_rows.reshape(B * Sd_pad, 1),
                                   params, batch=B, seq=Sd_pad, real_seq=Sd)
    pred = pred_pad.reshape(B, Sd_pad, LANE_PAD)[:, 1:1 + L, :PRED_DIM]  # drop cls/pad
    return loss[0, 0], pred, mask


# ----------------------------- main -------------------------------------------------
if __name__ == "__main__":
    root = jax.random.PRNGKey(0)
    pkey, xkey, mkey = jax.random.split(root, 3)
    params = init_params(pkey)
    imgs = jax.random.normal(xkey, (2, IN_CHANS, IMG_SIZE, IMG_SIZE), jnp.float32)

    fwd = jax.jit(lambda im, pr, key: mae_forward(im, pr, 0.75, rng=key))
    loss, pred, mask = fwd(imgs, params, mkey)
    jax.block_until_ready((loss, pred, mask))

    assert pred.shape == (2, NUM_PATCHES, PRED_DIM)
    assert mask.shape == (2, NUM_PATCHES)
    assert bool(jnp.isfinite(loss))
    print("KERNEL_OK")
</pallas_src>

<mosaic_0001>
module attributes {stable_mosaic.version = 11 : i64} {
  func.func @_encoder_stack_kernel(%arg0: i32, %arg1: memref<16x48xf32, #tpu.memory_space<vmem>>, %arg2: memref<16x32xf32, #tpu.memory_space<vmem>>, %arg3: memref<48x32xbf16, #tpu.memory_space<vmem>>, %arg4: memref<1x1x32xf32, #tpu.memory_space<vmem>>, %arg5: memref<1x1x32xf32, #tpu.memory_space<vmem>>, %arg6: memref<1x32x96xbf16, #tpu.memory_space<vmem>>, %arg7: memref<1x1x96xf32, #tpu.memory_space<vmem>>, %arg8: memref<1x32x32xbf16, #tpu.memory_space<vmem>>, %arg9: memref<1x1x32xf32, #tpu.memory_space<vmem>>, %arg10: memref<1x1x32xf32, #tpu.memory_space<vmem>>, %arg11: memref<1x1x32xf32, #tpu.memory_space<vmem>>, %arg12: memref<1x32x128xbf16, #tpu.memory_space<vmem>>, %arg13: memref<1x1x128xf32, #tpu.memory_space<vmem>>, %arg14: memref<1x128x32xbf16, #tpu.memory_space<vmem>>, %arg15: memref<1x1x32xf32, #tpu.memory_space<vmem>>, %arg16: memref<1x32xf32, #tpu.memory_space<vmem>>, %arg17: memref<1x32xf32, #tpu.memory_space<vmem>>, %arg18: memref<32x128xbf16, #tpu.memory_space<vmem>>, %arg19: memref<1x128xf32, #tpu.memory_space<vmem>>, %arg20: memref<16x128xf32, #tpu.memory_space<vmem>>, %arg21: memref<16x32xf32, #tpu.memory_space<vmem>>) attributes {dimension_semantics = [#tpu.dimension_semantics<arbitrary>], iteration_bounds = array<i64: 2>, scalar_prefetch = 0 : i64, scratch_operands = 1 : i64, tpu.core_type = #tpu.core_type<tc>, window_params = [{pipeline_mode = #tpu.pipeline_mode<synchronous>, transform_indices = @transform_0, window_bounds = array<i64: 16, 48>}, {pipeline_mode = #tpu.pipeline_mode<synchronous>, transform_indices = @transform_1, window_bounds = array<i64: 16, 32>}, {pipeline_mode = #tpu.pipeline_mode<synchronous>, transform_indices = @transform_2, window_bounds = array<i64: 48, 32>}, {transform_indices = @transform_3, window_bounds = array<i64: 1, 1, 32>}, {transform_indices = @transform_4, window_bounds = array<i64: 1, 1, 32>}, {transform_indices = @transform_5, window_bounds = array<i64: 1, 32, 96>}, {transform_indices = @transform_6, window_bounds = array<i64: 1, 1, 96>}, {transform_indices = @transform_7, window_bounds = array<i64: 1, 32, 32>}, {transform_indices = @transform_8, window_bounds = array<i64: 1, 1, 32>}, {transform_indices = @transform_9, window_bounds = array<i64: 1, 1, 32>}, {transform_indices = @transform_10, window_bounds = array<i64: 1, 1, 32>}, {transform_indices = @transform_11, window_bounds = array<i64: 1, 32, 128>}, {transform_indices = @transform_12, window_bounds = array<i64: 1, 1, 128>}, {transform_indices = @transform_13, window_bounds = array<i64: 1, 128, 32>}, {transform_indices = @transform_14, window_bounds = array<i64: 1, 1, 32>}, {pipeline_mode = #tpu.pipeline_mode<synchronous>, transform_indices = @transform_15, window_bounds = array<i64: 1, 32>}, {pipeline_mode = #tpu.pipeline_mode<synchronous>, transform_indices = @transform_16, window_bounds = array<i64: 1, 32>}, {pipeline_mode = #tpu.pipeline_mode<synchronous>, transform_indices = @transform_17, window_bounds = array<i64: 32, 128>}, {pipeline_mode = #tpu.pipeline_mode<synchronous>, transform_indices = @transform_18, window_bounds = array<i64: 1, 128>}, {pipeline_mode = #tpu.pipeline_mode<synchronous>, transform_indices = @transform_19, window_bounds = array<i64: 16, 128>}]} {
    %c0_i32 = arith.constant 0 : i32
    %0 = arith.cmpi eq, %arg0, %c0_i32 : i32
    %1 = arith.extui %0 : i1 to i32
    %c0_i32_0 = arith.constant 0 : i32
    %2 = arith.cmpi ne, %1, %c0_i32_0 : i32
    scf.if %2 {
      %c0_64 = arith.constant 0 : index
      %c0_65 = arith.constant 0 : index
      %152 = vector.load %arg1[%c0_64, %c0_65] : memref<16x48xf32, #tpu.memory_space<vmem>>, vector<16x48xf32>
      %153 = arith.truncf %152 : vector<16x48xf32> to vector<16x48xbf16>
      %c0_66 = arith.constant 0 : index
      %c0_67 = arith.constant 0 : index
      %154 = vector.load %arg3[%c0_66, %c0_67] : memref<48x32xbf16, #tpu.memory_space<vmem>>, vector<48x32xbf16>
      %cst_68 = arith.constant dense<0.000000e+00> : vector<16x32xf32>
      %155 = tpu.matmul %153, %154, %cst_68 {dimension_numbers = #tpu.dot_dimension_numbers<[1], [0], [0], [1], [0, 0, 1, 1], [], []>} : vector<16x48xbf16>, vector<48x32xbf16>, vector<16x32xf32> -> vector<16x32xf32>
      %c0_69 = arith.constant 0 : index
      %c0_70 = arith.constant 0 : index
      %156 = vector.load %arg2[%c0_69, %c0_70] : memref<16x32xf32, #tpu.memory_space<vmem>>, vector<16x32xf32>
      %157 = arith.addf %155, %156 : vector<16x32xf32>
      %c0_71 = arith.constant 0 : index
      %c0_72 = arith.constant 0 : index
      %158 = vector.load %arg21[%c0_71, %c0_72] : memref<16x32xf32, #tpu.memory_space<vmem>>, vector<16x32xf32>
      tpu.vector_store %arg21[%c0_71, %c0_72], %157 {strides = array<i32>} : memref<16x32xf32, #tpu.memory_space<vmem>>, vector<16x32xf32>,
    } else {
    }
    %c0 = arith.constant 0 : index
    %c0_1 = arith.constant 0 : index
    %3 = vector.load %arg21[%c0, %c0_1] : memref<16x32xf32, #tpu.memory_space<vmem>>, vector<16x32xf32>
    %c0_2 = arith.constant 0 : index
    %c0_3 = arith.constant 0 : index
    %c0_4 = arith.constant 0 : index
    %4 = vector.load %arg4[%c0_2, %c0_3, %c0_4] : memref<1x1x32xf32, #tpu.memory_space<vmem>>, vector<1x1x32xf32>
    %5 = vector.shape_cast %4 : vector<1x1x32xf32> to vector<1x32xf32>
    %c0_5 = arith.constant 0 : index
    %c0_6 = arith.constant 0 : index
    %c0_7 = arith.constant 0 : index
    %6 = vector.load %arg5[%c0_5, %c0_6, %c0_7] : memref<1x1x32xf32, #tpu.memory_space<vmem>>, vector<1x1x32xf32>
    %7 = vector.shape_cast %6 : vector<1x1x32xf32> to vector<1x32xf32>
    %c0_8 = arith.constant 0 : index
    %c0_9 = arith.constant 0 : index
    %c0_10 = arith.constant 0 : index
    %8 = vector.load %arg6[%c0_8, %c0_9, %c0_10] : memref<1x32x96xbf16, #tpu.memory_space<vmem>>, vector<1x32x96xbf16>
    %9 = vector.shape_cast %8 : vector<1x32x96xbf16> to vector<32x96xbf16>
    %c0_11 = arith.constant 0 : index
    %c0_12 = arith.constant 0 : index
    %c0_13 = arith.constant 0 : index
    %10 = vector.load %arg7[%c0_11, %c0_12, %c0_13] : memref<1x1x96xf32, #tpu.memory_space<vmem>>, vector<1x1x96xf32>
    %11 = vector.shape_cast %10 : vector<1x1x96xf32> to vector<1x96xf32>
    %c0_14 = arith.constant 0 : index
    %c0_15 = arith.constant 0 : index
    %c0_16 = arith.constant 0 : index
    %12 = vector.load %arg8[%c0_14, %c0_15, %c0_16] : memref<1x32x32xbf16, #tpu.memory_space<vmem>>, vector<1x32x32xbf16>
    %13 = vector.shape_cast %12 : vector<1x32x32xbf16> to vector<32x32xbf16>
    %c0_17 = arith.constant 0 : index
    %c0_18 = arith.constant 0 : index
    %c0_19 = arith.constant 0 : index
    %14 = vector.load %arg9[%c0_17, %c0_18, %c0_19] : memref<1x1x32xf32, #tpu.memory_space<vmem>>, vector<1x1x32xf32>
    %15 = vector.shape_cast %14 : vector<1x1x32xf32> to vector<1x32xf32>
    %c0_20 = arith.constant 0 : index
    %c0_21 = arith.constant 0 : index
    %c0_22 = arith.constant 0 : index
    %16 = vector.load %arg10[%c0_20, %c0_21, %c0_22] : memref<1x1x32xf32, #tpu.memory_space<vmem>>, vector<1x1x32xf32>
    %17 = vector.shape_cast %16 : vector<1x1x32xf32> to vector<1x32xf32>
    %c0_23 = arith.constant 0 : index
    %c0_24 = arith.constant 0 : index
    %c0_25 = arith.constant 0 : index
    %18 = vector.load %arg11[%c0_23, %c0_24, %c0_25] : memref<1x1x32xf32, #tpu.memory_space<vmem>>, vector<1x1x32xf32>
    %19 = vector.shape_cast %18 : vector<1x1x32xf32> to vector<1x32xf32>
    %c0_26 = arith.constant 0 : index
    %c0_27 = arith.constant 0 : index
    %c0_28 = arith.constant 0 : index
    %20 = vector.load %arg12[%c0_26, %c0_27, %c0_28] : memref<1x32x128xbf16, #tpu.memory_space<vmem>>, vector<1x32x128xbf16>
    %21 = vector.shape_cast %20 : vector<1x32x128xbf16> to vector<32x128xbf16>
    %c0_29 = arith.constant 0 : index
    %c0_30 = arith.constant 0 : index
    %c0_31 = arith.constant 0 : index
    %22 = vector.load %arg13[%c0_29, %c0_30, %c0_31] : memref<1x1x128xf32, #tpu.memory_space<vmem>>, vector<1x1x128xf32>
    %23 = vector.shape_cast %22 : vector<1x1x128xf32> to vector<1x128xf32>
    %c0_32 = arith.constant 0 : index
    %c0_33 = arith.constant 0 : index
    %c0_34 = arith.constant 0 : index
    %24 = vector.load %arg14[%c0_32, %c0_33, %c0_34] : memref<1x128x32xbf16, #tpu.memory_space<vmem>>, vector<1x128x32xbf16>
    %25 = vector.shape_cast %24 : vector<1x128x32xbf16> to vector<128x32xbf16>
    %c0_35 = arith.constant 0 : index
    %c0_36 = arith.constant 0 : index
    %c0_37 = arith.constant 0 : index
    %26 = vector.load %arg15[%c0_35, %c0_36, %c0_37] : memref<1x1x32xf32, #tpu.memory_space<vmem>>, vector<1x1x32xf32>
    %27 = vector.shape_cast %26 : vector<1x1x32xf32> to vector<1x32xf32>
    %cst = arith.constant dense<0.000000e+00> : vector<16xf32>
    %28 = vector.multi_reduction <add>, %3, %cst [1] : vector<16x32xf32> to vector<16xf32>
    %29 = vector.shape_cast %28 : vector<16xf32> to vector<16x1xf32>
    %cst_38 = arith.constant 3.200000e+01 : f32
    %30 = vector.broadcast %cst_38 : f32 to vector<16x1xf32>
    %31 = arith.divf %29, %30 : vector<16x1xf32>
    %32 = vector.broadcast %31 : vector<16x1xf32> to vector<16x32xf32>
    %33 = arith.subf %3, %32 : vector<16x32xf32>
    %34 = arith.mulf %33, %33 : vector<16x32xf32>
    %cst_39 = arith.constant dense<0.000000e+00> : vector<16xf32>
    %35 = vector.multi_reduction <add>, %34, %cst_39 [1] : vector<16x32xf32> to vector<16xf32>
    %36 = vector.shape_cast %35 : vector<16xf32> to vector<16x1xf32>
    %cst_40 = arith.constant 3.200000e+01 : f32
    %37 = vector.broadcast %cst_40 : f32 to vector<16x1xf32>
    %38 = arith.divf %36, %37 : vector<16x1xf32>
    %cst_41 = arith.constant 9.99999974E-6 : f32
    %39 = vector.broadcast %cst_41 : f32 to vector<16x1xf32>
    %40 = arith.addf %38, %39 : vector<16x1xf32>
    %41 = math.rsqrt %40 : vector<16x1xf32>
    %42 = vector.broadcast %41 : vector<16x1xf32> to vector<16x32xf32>
    %43 = arith.mulf %33, %42 : vector<16x32xf32>
    %44 = vector.broadcast %5 : vector<1x32xf32> to vector<16x32xf32>
    %45 = arith.mulf %43, %44 : vector<16x32xf32>
    %46 = vector.broadcast %7 : vector<1x32xf32> to vector<16x32xf32>
    %47 = arith.addf %45, %46 : vector<16x32xf32>
    %48 = arith.truncf %47 : vector<16x32xf32> to vector<16x32xbf16>
    %cst_42 = arith.constant dense<0.000000e+00> : vector<16x96xf32>
    %49 = tpu.matmul %48, %9, %cst_42 {dimension_numbers = #tpu.dot_dimension_numbers<[1], [0], [0], [1], [0, 0, 1, 1], [], []>} : vector<16x32xbf16>, vector<32x96xbf16>, vector<16x96xf32> -> vector<16x96xf32>
    %50 = vector.broadcast %11 : vector<1x96xf32> to vector<16x96xf32>
    %51 = arith.addf %49, %50 : vector<16x96xf32>
    %52 = vector.extract_strided_slice %51 {offsets = [0, 0], sizes = [16, 8], strides = [1, 1]} : vector<16x96xf32> to vector<16x8xf32>
    %53 = vector.extract_strided_slice %51 {offsets = [0, 8], sizes = [16, 8], strides = [1, 1]} : vector<16x96xf32> to vector<16x8xf32>
    %54 = vector.extract_strided_slice %51 {offsets = [0, 16], sizes = [16, 8], strides = [1, 1]} : vector<16x96xf32> to vector<16x8xf32>
    %55 = vector.extract_strided_slice %51 {offsets = [0, 24], sizes = [16, 8], strides = [1, 1]} : vector<16x96xf32> to vector<16x8xf32>
    %56 = tpu.concatenate %52, %53, %54, %55 in 0 : vector<16x8xf32>, vector<16x8xf32>, vector<16x8xf32>, vector<16x8xf32> -> vector<64x8xf32>
    %57 = vector.shape_cast %56 : vector<64x8xf32> to vector<8x8x8xf32>
    %58 = arith.truncf %57 : vector<8x8x8xf32> to vector<8x8x8xbf16>
    %59 = vector.extract_strided_slice %51 {offsets = [0, 32], sizes = [16, 8], strides = [1, 1]} : vector<16x96xf32> to vector<16x8xf32>
    %60 = vector.extract_strided_slice %51 {offsets = [0, 40], sizes = [16, 8], strides = [1, 1]} : vector<16x96xf32> to vector<16x8xf32>
    %61 = vector.extract_strided_slice %51 {offsets = [0, 48], sizes = [16, 8], strides = [1, 1]} : vector<16x96xf32> to vector<16x8xf32>
    %62 = vector.extract_strided_slice %51 {offsets = [0, 56], sizes = [16, 8], strides = [1, 1]} : vector<16x96xf32> to vector<16x8xf32>
    %63 = tpu.concatenate %59, %60, %61, %62 in 0 : vector<16x8xf32>, vector<16x8xf32>, vector<16x8xf32>, vector<16x8xf32> -> vector<64x8xf32>
    %64 = vector.shape_cast %63 : vector<64x8xf32> to vector<8x8x8xf32>
    %65 = arith.truncf %64 : vector<8x8x8xf32> to vector<8x8x8xbf16>
    %66 = vector.extract_strided_slice %51 {offsets = [0, 64], sizes = [16, 8], strides = [1, 1]} : vector<16x96xf32> to vector<16x8xf32>
    %67 = vector.extract_strided_slice %51 {offsets = [0, 72], sizes = [16, 8], strides = [1, 1]} : vector<16x96xf32> to vector<16x8xf32>
    %68 = vector.extract_strided_slice %51 {offsets = [0, 80], sizes = [16, 8], strides = [1, 1]} : vector<16x96xf32> to vector<16x8xf32>
    %69 = vector.extract_strided_slice %51 {offsets = [0, 88], sizes = [16, 8], strides = [1, 1]} : vector<16x96xf32> to vector<16x8xf32>
    %70 = tpu.concatenate %66, %67, %68, %69 in 0 : vector<16x8xf32>, vector<16x8xf32>, vector<16x8xf32>, vector<16x8xf32> -> vector<64x8xf32>
    %71 = vector.shape_cast %70 : vector<64x8xf32> to vector<8x8x8xf32>
    %72 = arith.truncf %71 : vector<8x8x8xf32> to vector<8x8x8xbf16>
    "tpu.trace_start"() <{level = 10 : i32, message = "nqd,nkd->nqk"}> : () -> ()
    %cst_43 = arith.constant dense<0.000000e+00> : vector<8x8x8xf32>
    %73 = tpu.matmul %58, %65, %cst_43 {dimension_numbers = #tpu.dot_dimension_numbers<[2], [2], [1], [1], [0, 0, 0, 1, 1, 1], [0], [0]>} : vector<8x8x8xbf16>, vector<8x8x8xbf16>, vector<8x8x8xf32> -> vector<8x8x8xf32>
    "tpu.trace_stop"() : () -> ()
    %cst_44 = arith.constant 0.353553385 : f32
    %74 = vector.broadcast %cst_44 : f32 to vector<8x8x8xf32>
    %75 = arith.mulf %73, %74 : vector<8x8x8xf32>
    %76 = tpu.iota {dimensions = array<i32: 2>} : vector<1x1x8xi32>
    %c5_i32 = arith.constant 5 : i32
    %77 = vector.broadcast %c5_i32 : i32 to vector<1x1x8xi32>
    %78 = arith.cmpi slt, %76, %77 : vector<1x1x8xi32>
    %cst_45 = arith.constant 0.000000e+00 : f32
    %cst_46 = arith.constant -1.000000e+09 : f32
    %79 = vector.broadcast %cst_45 : f32 to vector<1x1x8xf32>
    %80 = vector.broadcast %cst_46 : f32 to vector<1x1x8xf32>
    %81 = arith.select %78, %79, %80 : vector<1x1x8xi1>, vector<1x1x8xf32>
    %82 = vector.broadcast %81 : vector<1x1x8xf32> to vector<8x8x8xf32>
    %83 = arith.addf %75, %82 : vector<8x8x8xf32>
    %cst_47 = arith.constant dense<0xFF800000> : vector<8x8xf32>
    %84 = vector.multi_reduction <maximumf>, %83, %cst_47 [2] : vector<8x8x8xf32> to vector<8x8xf32>
    %85 = vector.shape_cast %84 : vector<8x8xf32> to vector<8x8x1xf32>
    %86 = vector.broadcast %85 : vector<8x8x1xf32> to vector<8x8x8xf32>
    %87 = arith.subf %83, %86 : vector<8x8x8xf32>
    %88 = math.exp %87 : vector<8x8x8xf32>
    %cst_48 = arith.constant dense<0.000000e+00> : vector<8x8xf32>
    %89 = vector.multi_reduction <add>, %88, %cst_48 [2] : vector<8x8x8xf32> to vector<8x8xf32>
    %90 = vector.shape_cast %89 : vector<8x8xf32> to vector<8x8x1xf32>
    %91 = tpu.reciprocal %90 {approx = true} : vector<8x8x1xf32> -> vector<8x8x1xf32>
    %92 = vector.broadcast %91 : vector<8x8x1xf32> to vector<8x8x8xf32>
    %93 = arith.mulf %88, %92 : vector<8x8x8xf32>
    %94 = arith.truncf %93 : vector<8x8x8xf32> to vector<8x8x8xbf16>
    "tpu.trace_start"() <{level = 10 : i32, message = "nqk,nkd->nqd"}> : () -> ()
    %cst_49 = arith.constant dense<0.000000e+00> : vector<8x8x8xf32>
    %95 = tpu.matmul %94, %72, %cst_49 {dimension_numbers = #tpu.dot_dimension_numbers<[2], [1], [1], [2], [0, 0, 0, 1, 1, 2], [0], [0]>} : vector<8x8x8xbf16>, vector<8x8x8xbf16>, vector<8x8x8xf32> -> vector<8x8x8xf32>
    "tpu.trace_stop"() : () -> ()
    %96 = vector.shape_cast %95 : vector<8x8x8xf32> to vector<4x16x8xf32>
    %97 = vector.extract_strided_slice %96 {offsets = [0, 0, 0], sizes = [1, 16, 8], strides = [1, 1, 1]} : vector<4x16x8xf32> to vector<1x16x8xf32>
    %98 = vector.shape_cast %97 : vector<1x16x8xf32> to vector<16x8xf32>
    %99 = vector.extract_strided_slice %96 {offsets = [1, 0, 0], sizes = [1, 16, 8], strides = [1, 1, 1]} : vector<4x16x8xf32> to vector<1x16x8xf32>
    %100 = vector.shape_cast %99 : vector<1x16x8xf32> to vector<16x8xf32>
    %101 = vector.extract_strided_slice %96 {offsets = [2, 0, 0], sizes = [1, 16, 8], strides = [1, 1, 1]} : vector<4x16x8xf32> to vector<1x16x8xf32>
    %102 = vector.shape_cast %101 : vector<1x16x8xf32> to vector<16x8xf32>
    %103 = vector.extract_strided_slice %96 {offsets = [3, 0, 0], sizes = [1, 16, 8], strides = [1, 1, 1]} : vector<4x16x8xf32> to vector<1x16x8xf32>
    %104 = vector.shape_cast %103 : vector<1x16x8xf32> to vector<16x8xf32>
    %105 = tpu.concatenate %98, %100, %102, %104 in 1 : vector<16x8xf32>, vector<16x8xf32>, vector<16x8xf32>, vector<16x8xf32> -> vector<16x32xf32>
    %106 = arith.truncf %105 : vector<16x32xf32> to vector<16x32xbf16>
    %cst_50 = arith.constant dense<0.000000e+00> : vector<16x32xf32>
    %107 = tpu.matmul %106, %13, %cst_50 {dimension_numbers = #tpu.dot_dimension_numbers<[1], [0], [0], [1], [0, 0, 1, 1], [], []>} : vector<16x32xbf16>, vector<32x32xbf16>, vector<16x32xf32> -> vector<16x32xf32>
    %108 = vector.broadcast %15 : vector<1x32xf32> to vector<16x32xf32>
    %109 = arith.addf %107, %108 : vector<16x32xf32>
    %110 = arith.addf %3, %109 : vector<16x32xf32>
    %cst_51 = arith.constant dense<0.000000e+00> : vector<16xf32>
    %111 = vector.multi_reduction <add>, %110, %cst_51 [1] : vector<16x32xf32> to vector<16xf32>
    %112 = vector.shape_cast %111 : vector<16xf32> to vector<16x1xf32>
    %cst_52 = arith.constant 3.200000e+01 : f32
    %113 = vector.broadcast %cst_52 : f32 to vector<16x1xf32>
    %114 = arith.divf %112, %113 : vector<16x1xf32>
    %115 = vector.broadcast %114 : vector<16x1xf32> to vector<16x32xf32>
    %116 = arith.subf %110, %115 : vector<16x32xf32>
    %117 = arith.mulf %116, %116 : vector<16x32xf32>
    %cst_53 = arith.constant dense<0.000000e+00> : vector<16xf32>
    %118 = vector.multi_reduction <add>, %117, %cst_53 [1] : vector<16x32xf32> to vector<16xf32>
    %119 = vector.shape_cast %118 : vector<16xf32> to vector<16x1xf32>
    %cst_54 = arith.constant 3.200000e+01 : f32
    %120 = vector.broadcast %cst_54 : f32 to vector<16x1xf32>
    %121 = arith.divf %119, %120 : vector<16x1xf32>
    %cst_55 = arith.constant 9.99999974E-6 : f32
    %122 = vector.broadcast %cst_55 : f32 to vector<16x1xf32>
    %123 = arith.addf %121, %122 : vector<16x1xf32>
    %124 = math.rsqrt %123 : vector<16x1xf32>
    %125 = vector.broadcast %124 : vector<16x1xf32> to vector<16x32xf32>
    %126 = arith.mulf %116, %125 : vector<16x32xf32>
    %127 = vector.broadcast %17 : vector<1x32xf32> to vector<16x32xf32>
    %128 = arith.mulf %126, %127 : vector<16x32xf32>
    %129 = vector.broadcast %19 : vector<1x32xf32> to vector<16x32xf32>
    %130 = arith.addf %128, %129 : vector<16x32xf32>
    %131 = arith.truncf %130 : vector<16x32xf32> to vector<16x32xbf16>
    %cst_56 = arith.constant dense<0.000000e+00> : vector<16x128xf32>
    %132 = tpu.matmul %131, %21, %cst_56 {dimension_numbers = #tpu.dot_dimension_numbers<[1], [0], [0], [1], [0, 0, 1, 1], [], []>} : vector<16x32xbf16>, vector<32x128xbf16>, vector<16x128xf32> -> vector<16x128xf32>
    %133 = vector.broadcast %23 : vector<1x128xf32> to vector<16x128xf32>
    %134 = arith.addf %132, %133 : vector<16x128xf32>
    %cst_57 = arith.constant 5.000000e-01 : f32
    %135 = vector.broadcast %cst_57 : f32 to vector<16x128xf32>
    %136 = arith.mulf %135, %134 : vector<16x128xf32>
    %cst_58 = arith.constant 0.707106769 : f32
    %137 = vector.broadcast %cst_58 : f32 to vector<16x128xf32>
    %138 = arith.mulf %134, %137 : vector<16x128xf32>
    %139 = math.erf %138 : vector<16x128xf32>
    %cst_59 = arith.constant 1.000000e+00 : f32
    %140 = vector.broadcast %cst_59 : f32 to vector<16x128xf32>
    %141 = arith.addf %140, %139 : vector<16x128xf32>
    %142 = arith.mulf %136, %141 : vector<16x128xf32>
    %143 = arith.truncf %142 : vector<16x128xf32> to vector<16x128xbf16>
    %cst_60 = arith.constant dense<0.000000e+00> : vector<16x32xf32>
    %144 = tpu.matmul %143, %25, %cst_60 {dimension_numbers = #tpu.dot_dimension_numbers<[1], [0], [0], [1], [0, 0, 1, 1], [], []>} : vector<16x128xbf16>, vector<128x32xbf16>, vector<16x32xf32> -> vector<16x32xf32>
    %145 = vector.broadcast %27 : vector<1x32xf32> to vector<16x32xf32>
    %146 = arith.addf %144, %145 : vector<16x32xf32>
    %147 = arith.addf %110, %146 : vector<16x32xf32>
    %c0_61 = arith.constant 0 : index
    %c0_62 = arith.constant 0 : index
    %148 = vector.load %arg21[%c0_61, %c0_62] : memref<16x32xf32, #tpu.memory_space<vmem>>, vector<16x32xf32>
    tpu.vector_store %arg21[%c0_61, %c0_62], %147 {strides = array<i32>} : memref<16x32xf32, #tpu.memory_space<vmem>>, vector<16x32xf32>,
    %c1_i32 = arith.constant 1 : i32
    %149 = arith.cmpi eq, %arg0, %c1_i32 : i32
    %150 = arith.extui %149 : i1 to i32
    %c0_i32_63 = arith.constant 0 : i32
    %151 = arith.cmpi ne, %150, %c0_i32_63 : i32
    scf.if %151 {
      %c0_64 = arith.constant 0 : index
      %c0_65 = arith.constant 0 : index
      %152 = vector.load %arg16[%c0_64, %c0_65] : memref<1x32xf32, #tpu.memory_space<vmem>>, vector<1x32xf32>
      %c0_66 = arith.constant 0 : index
      %c0_67 = arith.constant 0 : index
      %153 = vector.load %arg17[%c0_66, %c0_67] : memref<1x32xf32, #tpu.memory_space<vmem>>, vector<1x32xf32>
      %cst_68 = arith.constant dense<0.000000e+00> : vector<16xf32>
      %154 = vector.multi_reduction <add>, %147, %cst_68 [1] : vector<16x32xf32> to vector<16xf32>
      %155 = vector.shape_cast %154 : vector<16xf32> to vector<16x1xf32>
      %cst_69 = arith.constant 3.200000e+01 : f32
      %156 = vector.broadcast %cst_69 : f32 to vector<16x1xf32>
      %157 = arith.divf %155, %156 : vector<16x1xf32>
      %158 = vector.broadcast %157 : vector<16x1xf32> to vector<16x32xf32>
      %159 = arith.subf %147, %158 : vector<16x32xf32>
      %160 = arith.mulf %159, %159 : vector<16x32xf32>
      %cst_70 = arith.constant dense<0.000000e+00> : vector<16xf32>
      %161 = vector.multi_reduction <add>, %160, %cst_70 [1] : vector<16x32xf32> to vector<16xf32>
      %162 = vector.shape_cast %161 : vector<16xf32> to vector<16x1xf32>
      %cst_71 = arith.constant 3.200000e+01 : f32
      %163 = vector.broadcast %cst_71 : f32 to vector<16x1xf32>
      %164 = arith.divf %162, %163 : vector<16x1xf32>
      %cst_72 = arith.constant 9.99999974E-6 : f32
      %165 = vector.broadcast %cst_72 : f32 to vector<16x1xf32>
      %166 = arith.addf %164, %165 : vector<16x1xf32>
      %167 = math.rsqrt %166 : vector<16x1xf32>
      %168 = vector.broadcast %167 : vector<16x1xf32> to vector<16x32xf32>
      %169 = arith.mulf %159, %168 : vector<16x32xf32>
      %170 = vector.broadcast %152 : vector<1x32xf32> to vector<16x32xf32>
      %171 = arith.mulf %169, %170 : vector<16x32xf32>
      %172 = vector.broadcast %153 : vector<1x32xf32> to vector<16x32xf32>
      %173 = arith.addf %171, %172 : vector<16x32xf32>
      %174 = arith.truncf %173 : vector<16x32xf32> to vector<16x32xbf16>
      %c0_73 = arith.constant 0 : index
      %c0_74 = arith.constant 0 : index
      %175 = vector.load %arg18[%c0_73, %c0_74] : memref<32x128xbf16, #tpu.memory_space<vmem>>, vector<32x128xbf16>
      %cst_75 = arith.constant dense<0.000000e+00> : vector<16x128xf32>
      %176 = tpu.matmul %174, %175, %cst_75 {dimension_numbers = #tpu.dot_dimension_numbers<[1], [0], [0], [1], [0, 0, 1, 1], [], []>} : vector<16x32xbf16>, vector<32x128xbf16>, vector<16x128xf32> -> vector<16x128xf32>
      %c0_76 = arith.constant 0 : index
      %c0_77 = arith.constant 0 : index
      %177 = vector.load %arg19[%c0_76, %c0_77] : memref<1x128xf32, #tpu.memory_space<vmem>>, vector<1x128xf32>
      %178 = vector.broadcast %177 : vector<1x128xf32> to vector<16x128xf32>
      %179 = arith.addf %176, %178 : vector<16x128xf32>
      %c0_78 = arith.constant 0 : index
      %c0_79 = arith.constant 0 : index
      %180 = vector.load %arg20[%c0_78, %c0_79] : memref<16x128xf32, #tpu.memory_space<vmem>>, vector<16x128xf32>
      tpu.vector_store %arg20[%c0_78, %c0_79], %179 {strides = array<i32>} : memref<16x128xf32, #tpu.memory_space<vmem>>, vector<16x128xf32>,
    } else {
    }
    return
  }
  func.func @transform_0(%arg0: i32) -> (i32, i32) {
    %c0_i32 = arith.constant 0 : i32
    %c0_i32_0 = arith.constant 0 : i32
    %c0_i32_1 = arith.constant 0 : i32
    return %c0_i32, %c0_i32_0 : i32, i32
  }
  func.func @transform_1(%arg0: i32) -> (i32, i32) {
    %c0_i32 = arith.constant 0 : i32
    %c0_i32_0 = arith.constant 0 : i32
    %c0_i32_1 = arith.constant 0 : i32
    return %c0_i32, %c0_i32_0 : i32, i32
  }
  func.func @transform_2(%arg0: i32) -> (i32, i32) {
    %c0_i32 = arith.constant 0 : i32
    %c0_i32_0 = arith.constant 0 : i32
    %c0_i32_1 = arith.constant 0 : i32
    return %c0_i32, %c0_i32_0 : i32, i32
  }
  func.func @transform_3(%arg0: i32) -> (i32, i32, i32) {
    %c0_i32 = arith.constant 0 : i32
    %c0_i32_0 = arith.constant 0 : i32
    %c0_i32_1 = arith.constant 0 : i32
    return %arg0, %c0_i32, %c0_i32_0 : i32, i32, i32
  }
  func.func @transform_4(%arg0: i32) -> (i32, i32, i32) {
    %c0_i32 = arith.constant 0 : i32
    %c0_i32_0 = arith.constant 0 : i32
    %c0_i32_1 = arith.constant 0 : i32
    return %arg0, %c0_i32, %c0_i32_0 : i32, i32, i32
  }
  func.func @transform_5(%arg0: i32) -> (i32, i32, i32) {
    %c0_i32 = arith.constant 0 : i32
    %c0_i32_0 = arith.constant 0 : i32
    %c0_i32_1 = arith.constant 0 : i32
    return %arg0, %c0_i32, %c0_i32_0 : i32, i32, i32
  }
  func.func @transform_6(%arg0: i32) -> (i32, i32, i32) {
    %c0_i32 = arith.constant 0 : i32
    %c0_i32_0 = arith.constant 0 : i32
    %c0_i32_1 = arith.constant 0 : i32
    return %arg0, %c0_i32, %c0_i32_0 : i32, i32, i32
  }
  func.func @transform_7(%arg0: i32) -> (i32, i32, i32) {
    %c0_i32 = arith.constant 0 : i32
    %c0_i32_0 = arith.constant 0 : i32
    %c0_i32_1 = arith.constant 0 : i32
    return %arg0, %c0_i32, %c0_i32_0 : i32, i32, i32
  }
  func.func @transform_8(%arg0: i32) -> (i32, i32, i32) {
    %c0_i32 = arith.constant 0 : i32
    %c0_i32_0 = arith.constant 0 : i32
    %c0_i32_1 = arith.constant 0 : i32
    return %arg0, %c0_i32, %c0_i32_0 : i32, i32, i32
  }
  func.func @transform_9(%arg0: i32) -> (i32, i32, i32) {
    %c0_i32 = arith.constant 0 : i32
    %c0_i32_0 = arith.constant 0 : i32
    %c0_i32_1 = arith.constant 0 : i32
    return %arg0, %c0_i32, %c0_i32_0 : i32, i32, i32
  }
  func.func @transform_10(%arg0: i32) -> (i32, i32, i32) {
    %c0_i32 = arith.constant 0 : i32
    %c0_i32_0 = arith.constant 0 : i32
    %c0_i32_1 = arith.constant 0 : i32
    return %arg0, %c0_i32, %c0_i32_0 : i32, i32, i32
  }
  func.func @transform_11(%arg0: i32) -> (i32, i32, i32) {
    %c0_i32 = arith.constant 0 : i32
    %c0_i32_0 = arith.constant 0 : i32
    %c0_i32_1 = arith.constant 0 : i32
    return %arg0, %c0_i32, %c0_i32_0 : i32, i32, i32
  }
  func.func @transform_12(%arg0: i32) -> (i32, i32, i32) {
    %c0_i32 = arith.constant 0 : i32
    %c0_i32_0 = arith.constant 0 : i32
    %c0_i32_1 = arith.constant 0 : i32
    return %arg0, %c0_i32, %c0_i32_0 : i32, i32, i32
  }
  func.func @transform_13(%arg0: i32) -> (i32, i32, i32) {
    %c0_i32 = arith.constant 0 : i32
    %c0_i32_0 = arith.constant 0 : i32
    %c0_i32_1 = arith.constant 0 : i32
    return %arg0, %c0_i32, %c0_i32_0 : i32, i32, i32
  }
  func.func @transform_14(%arg0: i32) -> (i32, i32, i32) {
    %c0_i32 = arith.constant 0 : i32
    %c0_i32_0 = arith.constant 0 : i32
    %c0_i32_1 = arith.constant 0 : i32
    return %arg0, %c0_i32, %c0_i32_0 : i32, i32, i32
  }
  func.func @transform_15(%arg0: i32) -> (i32, i32) {
    %c0_i32 = arith.constant 0 : i32
    %c0_i32_0 = arith.constant 0 : i32
    %c0_i32_1 = arith.constant 0 : i32
    return %c0_i32, %c0_i32_0 : i32, i32
  }
  func.func @transform_16(%arg0: i32) -> (i32, i32) {
    %c0_i32 = arith.constant 0 : i32
    %c0_i32_0 = arith.constant 0 : i32
    %c0_i32_1 = arith.constant 0 : i32
    return %c0_i32, %c0_i32_0 : i32, i32
  }
  func.func @transform_17(%arg0: i32) -> (i32, i32) {
    %c0_i32 = arith.constant 0 : i32
    %c0_i32_0 = arith.constant 0 : i32
    %c0_i32_1 = arith.constant 0 : i32
    return %c0_i32, %c0_i32_0 : i32, i32
  }
  func.func @transform_18(%arg0: i32) -> (i32, i32) {
    %c0_i32 = arith.constant 0 : i32
    %c0_i32_0 = arith.constant 0 : i32
    %c0_i32_1 = arith.constant 0 : i32
    return %c0_i32, %c0_i32_0 : i32, i32
  }
  func.func @transform_19(%arg0: i32) -> (i32, i32) {
    %c0_i32 = arith.constant 0 : i32
    %c0_i32_0 = arith.constant 0 : i32
    %c0_i32_1 = arith.constant 0 : i32
    return %c0_i32, %c0_i32_0 : i32, i32
  }
}

module attributes {stable_mosaic.version = 11 : i64} {
  func.func @_decoder_stack_kernel(%arg0: i32, %arg1: memref<48x32xf32, #tpu.memory_space<vmem>>, %arg2: memref<48x128xf32, #tpu.memory_space<vmem>>, %arg3: memref<48x1xf32, #tpu.memory_space<vmem>>, %arg4: memref<1x1x32xf32, #tpu.memory_space<vmem>>, %arg5: memref<1x1x32xf32, #tpu.memory_space<vmem>>, %arg6: memref<1x32x96xbf16, #tpu.memory_space<vmem>>, %arg7: memref<1x1x96xf32, #tpu.memory_space<vmem>>, %arg8: memref<1x32x32xbf16, #tpu.memory_space<vmem>>, %arg9: memref<1x1x32xf32, #tpu.memory_space<vmem>>, %arg10: memref<1x1x32xf32, #tpu.memory_space<vmem>>, %arg11: memref<1x1x32xf32, #tpu.memory_space<vmem>>, %arg12: memref<1x32x128xbf16, #tpu.memory_space<vmem>>, %arg13: memref<1x1x128xf32, #tpu.memory_space<vmem>>, %arg14: memref<1x128x32xbf16, #tpu.memory_space<vmem>>, %arg15: memref<1x1x32xf32, #tpu.memory_space<vmem>>, %arg16: memref<1x32xf32, #tpu.memory_space<vmem>>, %arg17: memref<1x32xf32, #tpu.memory_space<vmem>>, %arg18: memref<32x128xbf16, #tpu.memory_space<vmem>>, %arg19: memref<1x128xf32, #tpu.memory_space<vmem>>, %arg20: memref<48x128xf32, #tpu.memory_space<vmem>>, %arg21: memref<1x1xf32, #tpu.memory_space<smem>>, %arg22: memref<48x32xf32, #tpu.memory_space<vmem>>) attributes {dimension_semantics = [#tpu.dimension_semantics<arbitrary>], iteration_bounds = array<i64: 2>, scalar_prefetch = 0 : i64, scratch_operands = 1 : i64, tpu.core_type = #tpu.core_type<tc>, window_params = [{pipeline_mode = #tpu.pipeline_mode<synchronous>, transform_indices = @transform_0, window_bounds = array<i64: 48, 32>}, {pipeline_mode = #tpu.pipeline_mode<synchronous>, transform_indices = @transform_1, window_bounds = array<i64: 48, 128>}, {pipeline_mode = #tpu.pipeline_mode<synchronous>, transform_indices = @transform_2, window_bounds = array<i64: 48, 1>}, {transform_indices = @transform_3, window_bounds = array<i64: 1, 1, 32>}, {transform_indices = @transform_4, window_bounds = array<i64: 1, 1, 32>}, {transform_indices = @transform_5, window_bounds = array<i64: 1, 32, 96>}, {transform_indices = @transform_6, window_bounds = array<i64: 1, 1, 96>}, {transform_indices = @transform_7, window_bounds = array<i64: 1, 32, 32>}, {transform_indices = @transform_8, window_bounds = array<i64: 1, 1, 32>}, {transform_indices = @transform_9, window_bounds = array<i64: 1, 1, 32>}, {transform_indices = @transform_10, window_bounds = array<i64: 1, 1, 32>}, {transform_indices = @transform_11, window_bounds = array<i64: 1, 32, 128>}, {transform_indices = @transform_12, window_bounds = array<i64: 1, 1, 128>}, {transform_indices = @transform_13, window_bounds = array<i64: 1, 128, 32>}, {transform_indices = @transform_14, window_bounds = array<i64: 1, 1, 32>}, {pipeline_mode = #tpu.pipeline_mode<synchronous>, transform_indices = @transform_15, window_bounds = array<i64: 1, 32>}, {pipeline_mode = #tpu.pipeline_mode<synchronous>, transform_indices = @transform_16, window_bounds = array<i64: 1, 32>}, {pipeline_mode = #tpu.pipeline_mode<synchronous>, transform_indices = @transform_17, window_bounds = array<i64: 32, 128>}, {pipeline_mode = #tpu.pipeline_mode<synchronous>, transform_indices = @transform_18, window_bounds = array<i64: 1, 128>}, {pipeline_mode = #tpu.pipeline_mode<synchronous>, transform_indices = @transform_19, window_bounds = array<i64: 48, 128>}, {transform_indices = @transform_20, window_bounds = array<i64: 1, 1>}]} {
    %c0_i32 = arith.constant 0 : i32
    %0 = arith.cmpi eq, %arg0, %c0_i32 : i32
    %1 = arith.extui %0 : i1 to i32
    %c0_i32_0 = arith.constant 0 : i32
    %2 = arith.cmpi ne, %1, %c0_i32_0 : i32
    scf.if %2 {
      %c0_64 = arith.constant 0 : index
      %c0_65 = arith.constant 0 : index
      %152 = vector.load %arg1[%c0_64, %c0_65] : memref<48x32xf32, #tpu.memory_space<vmem>>, vector<48x32xf32>
      %c0_66 = arith.constant 0 : index
      %c0_67 = arith.constant 0 : index
      %153 = vector.load %arg22[%c0_66, %c0_67] : memref<48x32xf32, #tpu.memory_space<vmem>>, vector<48x32xf32>
      tpu.vector_store %arg22[%c0_66, %c0_67], %152 {strides = array<i32>} : memref<48x32xf32, #tpu.memory_space<vmem>>, vector<48x32xf32>,
    } else {
    }
    %c0 = arith.constant 0 : index
    %c0_1 = arith.constant 0 : index
    %3 = vector.load %arg22[%c0, %c0_1] : memref<48x32xf32, #tpu.memory_space<vmem>>, vector<48x32xf32>
    %c0_2 = arith.constant 0 : index
    %c0_3 = arith.constant 0 : index
    %c0_4 = arith.constant 0 : index
    %4 = vector.load %arg4[%c0_2, %c0_3, %c0_4] : memref<1x1x32xf32, #tpu.memory_space<vmem>>, vector<1x1x32xf32>
    %5 = vector.shape_cast %4 : vector<1x1x32xf32> to vector<1x32xf32>
    %c0_5 = arith.constant 0 : index
    %c0_6 = arith.constant 0 : index
    %c0_7 = arith.constant 0 : index
    %6 = vector.load %arg5[%c0_5, %c0_6, %c0_7] : memref<1x1x32xf32, #tpu.memory_space<vmem>>, vector<1x1x32xf32>
    %7 = vector.shape_cast %6 : vector<1x1x32xf32> to vector<1x32xf32>
    %c0_8 = arith.constant 0 : index
    %c0_9 = arith.constant 0 : index
    %c0_10 = arith.constant 0 : index
    %8 = vector.load %arg6[%c0_8, %c0_9, %c0_10] : memref<1x32x96xbf16, #tpu.memory_space<vmem>>, vector<1x32x96xbf16>
    %9 = vector.shape_cast %8 : vector<1x32x96xbf16> to vector<32x96xbf16>
    %c0_11 = arith.constant 0 : index
    %c0_12 = arith.constant 0 : index
    %c0_13 = arith.constant 0 : index
    %10 = vector.load %arg7[%c0_11, %c0_12, %c0_13] : memref<1x1x96xf32, #tpu.memory_space<vmem>>, vector<1x1x96xf32>
    %11 = vector.shape_cast %10 : vector<1x1x96xf32> to vector<1x96xf32>
    %c0_14 = arith.constant 0 : index
    %c0_15 = arith.constant 0 : index
    %c0_16 = arith.constant 0 : index
    %12 = vector.load %arg8[%c0_14, %c0_15, %c0_16] : memref<1x32x32xbf16, #tpu.memory_space<vmem>>, vector<1x32x32xbf16>
    %13 = vector.shape_cast %12 : vector<1x32x32xbf16> to vector<32x32xbf16>
    %c0_17 = arith.constant 0 : index
    %c0_18 = arith.constant 0 : index
    %c0_19 = arith.constant 0 : index
    %14 = vector.load %arg9[%c0_17, %c0_18, %c0_19] : memref<1x1x32xf32, #tpu.memory_space<vmem>>, vector<1x1x32xf32>
    %15 = vector.shape_cast %14 : vector<1x1x32xf32> to vector<1x32xf32>
    %c0_20 = arith.constant 0 : index
    %c0_21 = arith.constant 0 : index
    %c0_22 = arith.constant 0 : index
    %16 = vector.load %arg10[%c0_20, %c0_21, %c0_22] : memref<1x1x32xf32, #tpu.memory_space<vmem>>, vector<1x1x32xf32>
    %17 = vector.shape_cast %16 : vector<1x1x32xf32> to vector<1x32xf32>
    %c0_23 = arith.constant 0 : index
    %c0_24 = arith.constant 0 : index
    %c0_25 = arith.constant 0 : index
    %18 = vector.load %arg11[%c0_23, %c0_24, %c0_25] : memref<1x1x32xf32, #tpu.memory_space<vmem>>, vector<1x1x32xf32>
    %19 = vector.shape_cast %18 : vector<1x1x32xf32> to vector<1x32xf32>
    %c0_26 = arith.constant 0 : index
    %c0_27 = arith.constant 0 : index
    %c0_28 = arith.constant 0 : index
    %20 = vector.load %arg12[%c0_26, %c0_27, %c0_28] : memref<1x32x128xbf16, #tpu.memory_space<vmem>>, vector<1x32x128xbf16>
    %21 = vector.shape_cast %20 : vector<1x32x128xbf16> to vector<32x128xbf16>
    %c0_29 = arith.constant 0 : index
    %c0_30 = arith.constant 0 : index
    %c0_31 = arith.constant 0 : index
    %22 = vector.load %arg13[%c0_29, %c0_30, %c0_31] : memref<1x1x128xf32, #tpu.memory_space<vmem>>, vector<1x1x128xf32>
    %23 = vector.shape_cast %22 : vector<1x1x128xf32> to vector<1x128xf32>
    %c0_32 = arith.constant 0 : index
    %c0_33 = arith.constant 0 : index
    %c0_34 = arith.constant 0 : index
    %24 = vector.load %arg14[%c0_32, %c0_33, %c0_34] : memref<1x128x32xbf16, #tpu.memory_space<vmem>>, vector<1x128x32xbf16>
    %25 = vector.shape_cast %24 : vector<1x128x32xbf16> to vector<128x32xbf16>
    %c0_35 = arith.constant 0 : index
    %c0_36 = arith.constant 0 : index
    %c0_37 = arith.constant 0 : index
    %26 = vector.load %arg15[%c0_35, %c0_36, %c0_37] : memref<1x1x32xf32, #tpu.memory_space<vmem>>, vector<1x1x32xf32>
    %27 = vector.shape_cast %26 : vector<1x1x32xf32> to vector<1x32xf32>
    %cst = arith.constant dense<0.000000e+00> : vector<48xf32>
    %28 = vector.multi_reduction <add>, %3, %cst [1] : vector<48x32xf32> to vector<48xf32>
    %29 = vector.shape_cast %28 : vector<48xf32> to vector<48x1xf32>
    %cst_38 = arith.constant 3.200000e+01 : f32
    %30 = vector.broadcast %cst_38 : f32 to vector<48x1xf32>
    %31 = arith.divf %29, %30 : vector<48x1xf32>
    %32 = vector.broadcast %31 : vector<48x1xf32> to vector<48x32xf32>
    %33 = arith.subf %3, %32 : vector<48x32xf32>
    %34 = arith.mulf %33, %33 : vector<48x32xf32>
    %cst_39 = arith.constant dense<0.000000e+00> : vector<48xf32>
    %35 = vector.multi_reduction <add>, %34, %cst_39 [1] : vector<48x32xf32> to vector<48xf32>
    %36 = vector.shape_cast %35 : vector<48xf32> to vector<48x1xf32>
    %cst_40 = arith.constant 3.200000e+01 : f32
    %37 = vector.broadcast %cst_40 : f32 to vector<48x1xf32>
    %38 = arith.divf %36, %37 : vector<48x1xf32>
    %cst_41 = arith.constant 9.99999974E-6 : f32
    %39 = vector.broadcast %cst_41 : f32 to vector<48x1xf32>
    %40 = arith.addf %38, %39 : vector<48x1xf32>
    %41 = math.rsqrt %40 : vector<48x1xf32>
    %42 = vector.broadcast %41 : vector<48x1xf32> to vector<48x32xf32>
    %43 = arith.mulf %33, %42 : vector<48x32xf32>
    %44 = vector.broadcast %5 : vector<1x32xf32> to vector<48x32xf32>
    %45 = arith.mulf %43, %44 : vector<48x32xf32>
    %46 = vector.broadcast %7 : vector<1x32xf32> to vector<48x32xf32>
    %47 = arith.addf %45, %46 : vector<48x32xf32>
    %48 = arith.truncf %47 : vector<48x32xf32> to vector<48x32xbf16>
    %cst_42 = arith.constant dense<0.000000e+00> : vector<48x96xf32>
    %49 = tpu.matmul %48, %9, %cst_42 {dimension_numbers = #tpu.dot_dimension_numbers<[1], [0], [0], [1], [0, 0, 1, 1], [], []>} : vector<48x32xbf16>, vector<32x96xbf16>, vector<48x96xf32> -> vector<48x96xf32>
    %50 = vector.broadcast %11 : vector<1x96xf32> to vector<48x96xf32>
    %51 = arith.addf %49, %50 : vector<48x96xf32>
    %52 = vector.extract_strided_slice %51 {offsets = [0, 0], sizes = [48, 8], strides = [1, 1]} : vector<48x96xf32> to vector<48x8xf32>
    %53 = vector.extract_strided_slice %51 {offsets = [0, 8], sizes = [48, 8], strides = [1, 1]} : vector<48x96xf32> to vector<48x8xf32>
    %54 = vector.extract_strided_slice %51 {offsets = [0, 16], sizes = [48, 8], strides = [1, 1]} : vector<48x96xf32> to vector<48x8xf32>
    %55 = vector.extract_strided_slice %51 {offsets = [0, 24], sizes = [48, 8], strides = [1, 1]} : vector<48x96xf32> to vector<48x8xf32>
    %56 = tpu.concatenate %52, %53, %54, %55 in 0 : vector<48x8xf32>, vector<48x8xf32>, vector<48x8xf32>, vector<48x8xf32> -> vector<192x8xf32>
    %57 = vector.shape_cast %56 : vector<192x8xf32> to vector<8x24x8xf32>
    %58 = arith.truncf %57 : vector<8x24x8xf32> to vector<8x24x8xbf16>
    %59 = vector.extract_strided_slice %51 {offsets = [0, 32], sizes = [48, 8], strides = [1, 1]} : vector<48x96xf32> to vector<48x8xf32>
    %60 = vector.extract_strided_slice %51 {offsets = [0, 40], sizes = [48, 8], strides = [1, 1]} : vector<48x96xf32> to vector<48x8xf32>
    %61 = vector.extract_strided_slice %51 {offsets = [0, 48], sizes = [48, 8], strides = [1, 1]} : vector<48x96xf32> to vector<48x8xf32>
    %62 = vector.extract_strided_slice %51 {offsets = [0, 56], sizes = [48, 8], strides = [1, 1]} : vector<48x96xf32> to vector<48x8xf32>
    %63 = tpu.concatenate %59, %60, %61, %62 in 0 : vector<48x8xf32>, vector<48x8xf32>, vector<48x8xf32>, vector<48x8xf32> -> vector<192x8xf32>
    %64 = vector.shape_cast %63 : vector<192x8xf32> to vector<8x24x8xf32>
    %65 = arith.truncf %64 : vector<8x24x8xf32> to vector<8x24x8xbf16>
    %66 = vector.extract_strided_slice %51 {offsets = [0, 64], sizes = [48, 8], strides = [1, 1]} : vector<48x96xf32> to vector<48x8xf32>
    %67 = vector.extract_strided_slice %51 {offsets = [0, 72], sizes = [48, 8], strides = [1, 1]} : vector<48x96xf32> to vector<48x8xf32>
    %68 = vector.extract_strided_slice %51 {offsets = [0, 80], sizes = [48, 8], strides = [1, 1]} : vector<48x96xf32> to vector<48x8xf32>
    %69 = vector.extract_strided_slice %51 {offsets = [0, 88], sizes = [48, 8], strides = [1, 1]} : vector<48x96xf32> to vector<48x8xf32>
    %70 = tpu.concatenate %66, %67, %68, %69 in 0 : vector<48x8xf32>, vector<48x8xf32>, vector<48x8xf32>, vector<48x8xf32> -> vector<192x8xf32>
    %71 = vector.shape_cast %70 : vector<192x8xf32> to vector<8x24x8xf32>
    %72 = arith.truncf %71 : vector<8x24x8xf32> to vector<8x24x8xbf16>
    "tpu.trace_start"() <{level = 10 : i32, message = "nqd,nkd->nqk"}> : () -> ()
    %cst_43 = arith.constant dense<0.000000e+00> : vector<8x24x24xf32>
    %73 = tpu.matmul %58, %65, %cst_43 {dimension_numbers = #tpu.dot_dimension_numbers<[2], [2], [1], [1], [0, 0, 0, 1, 1, 1], [0], [0]>} : vector<8x24x8xbf16>, vector<8x24x8xbf16>, vector<8x24x24xf32> -> vector<8x24x24xf32>
    "tpu.trace_stop"() : () -> ()
    %cst_44 = arith.constant 0.353553385 : f32
    %74 = vector.broadcast %cst_44 : f32 to vector<8x24x24xf32>
    %75 = arith.mulf %73, %74 : vector<8x24x24xf32>
    %76 = tpu.iota {dimensions = array<i32: 2>} : vector<1x1x24xi32>
    %c17_i32 = arith.constant 17 : i32
    %77 = vector.broadcast %c17_i32 : i32 to vector<1x1x24xi32>
    %78 = arith.cmpi slt, %76, %77 : vector<1x1x24xi32>
    %cst_45 = arith.constant 0.000000e+00 : f32
    %cst_46 = arith.constant -1.000000e+09 : f32
    %79 = vector.broadcast %cst_45 : f32 to vector<1x1x24xf32>
    %80 = vector.broadcast %cst_46 : f32 to vector<1x1x24xf32>
    %81 = arith.select %78, %79, %80 : vector<1x1x24xi1>, vector<1x1x24xf32>
    %82 = vector.broadcast %81 : vector<1x1x24xf32> to vector<8x24x24xf32>
    %83 = arith.addf %75, %82 : vector<8x24x24xf32>
    %cst_47 = arith.constant dense<0xFF800000> : vector<8x24xf32>
    %84 = vector.multi_reduction <maximumf>, %83, %cst_47 [2] : vector<8x24x24xf32> to vector<8x24xf32>
    %85 = vector.shape_cast %84 : vector<8x24xf32> to vector<8x24x1xf32>
    %86 = vector.broadcast %85 : vector<8x24x1xf32> to vector<8x24x24xf32>
    %87 = arith.subf %83, %86 : vector<8x24x24xf32>
    %88 = math.exp %87 : vector<8x24x24xf32>
    %cst_48 = arith.constant dense<0.000000e+00> : vector<8x24xf32>
    %89 = vector.multi_reduction <add>, %88, %cst_48 [2] : vector<8x24x24xf32> to vector<8x24xf32>
    %90 = vector.shape_cast %89 : vector<8x24xf32> to vector<8x24x1xf32>
    %91 = tpu.reciprocal %90 {approx = true} : vector<8x24x1xf32> -> vector<8x24x1xf32>
    %92 = vector.broadcast %91 : vector<8x24x1xf32> to vector<8x24x24xf32>
    %93 = arith.mulf %88, %92 : vector<8x24x24xf32>
    %94 = arith.truncf %93 : vector<8x24x24xf32> to vector<8x24x24xbf16>
    "tpu.trace_start"() <{level = 10 : i32, message = "nqk,nkd->nqd"}> : () -> ()
    %cst_49 = arith.constant dense<0.000000e+00> : vector<8x24x8xf32>
    %95 = tpu.matmul %94, %72, %cst_49 {dimension_numbers = #tpu.dot_dimension_numbers<[2], [1], [1], [2], [0, 0, 0, 1, 1, 2], [0], [0]>} : vector<8x24x24xbf16>, vector<8x24x8xbf16>, vector<8x24x8xf32> -> vector<8x24x8xf32>
    "tpu.trace_stop"() : () -> ()
    %96 = vector.shape_cast %95 : vector<8x24x8xf32> to vector<4x48x8xf32>
    %97 = vector.extract_strided_slice %96 {offsets = [0, 0, 0], sizes = [1, 48, 8], strides = [1, 1, 1]} : vector<4x48x8xf32> to vector<1x48x8xf32>
    %98 = vector.shape_cast %97 : vector<1x48x8xf32> to vector<48x8xf32>
    %99 = vector.extract_strided_slice %96 {offsets = [1, 0, 0], sizes = [1, 48, 8], strides = [1, 1, 1]} : vector<4x48x8xf32> to vector<1x48x8xf32>
    %100 = vector.shape_cast %99 : vector<1x48x8xf32> to vector<48x8xf32>
    %101 = vector.extract_strided_slice %96 {offsets = [2, 0, 0], sizes = [1, 48, 8], strides = [1, 1, 1]} : vector<4x48x8xf32> to vector<1x48x8xf32>
    %102 = vector.shape_cast %101 : vector<1x48x8xf32> to vector<48x8xf32>
    %103 = vector.extract_strided_slice %96 {offsets = [3, 0, 0], sizes = [1, 48, 8], strides = [1, 1, 1]} : vector<4x48x8xf32> to vector<1x48x8xf32>
    %104 = vector.shape_cast %103 : vector<1x48x8xf32> to vector<48x8xf32>
    %105 = tpu.concatenate %98, %100, %102, %104 in 1 : vector<48x8xf32>, vector<48x8xf32>, vector<48x8xf32>, vector<48x8xf32> -> vector<48x32xf32>
    %106 = arith.truncf %105 : vector<48x32xf32> to vector<48x32xbf16>
    %cst_50 = arith.constant dense<0.000000e+00> : vector<48x32xf32>
    %107 = tpu.matmul %106, %13, %cst_50 {dimension_numbers = #tpu.dot_dimension_numbers<[1], [0], [0], [1], [0, 0, 1, 1], [], []>} : vector<48x32xbf16>, vector<32x32xbf16>, vector<48x32xf32> -> vector<48x32xf32>
    %108 = vector.broadcast %15 : vector<1x32xf32> to vector<48x32xf32>
    %109 = arith.addf %107, %108 : vector<48x32xf32>
    %110 = arith.addf %3, %109 : vector<48x32xf32>
    %cst_51 = arith.constant dense<0.000000e+00> : vector<48xf32>
    %111 = vector.multi_reduction <add>, %110, %cst_51 [1] : vector<48x32xf32> to vector<48xf32>
    %112 = vector.shape_cast %111 : vector<48xf32> to vector<48x1xf32>
    %cst_52 = arith.constant 3.200000e+01 : f32
    %113 = vector.broadcast %cst_52 : f32 to vector<48x1xf32>
    %114 = arith.divf %112, %113 : vector<48x1xf32>
    %115 = vector.broadcast %114 : vector<48x1xf32> to vector<48x32xf32>
    %116 = arith.subf %110, %115 : vector<48x32xf32>
    %117 = arith.mulf %116, %116 : vector<48x32xf32>
    %cst_53 = arith.constant dense<0.000000e+00> : vector<48xf32>
    %118 = vector.multi_reduction <add>, %117, %cst_53 [1] : vector<48x32xf32> to vector<48xf32>
    %119 = vector.shape_cast %118 : vector<48xf32> to vector<48x1xf32>
    %cst_54 = arith.constant 3.200000e+01 : f32
    %120 = vector.broadcast %cst_54 : f32 to vector<48x1xf32>
    %121 = arith.divf %119, %120 : vector<48x1xf32>
    %cst_55 = arith.constant 9.99999974E-6 : f32
    %122 = vector.broadcast %cst_55 : f32 to vector<48x1xf32>
    %123 = arith.addf %121, %122 : vector<48x1xf32>
    %124 = math.rsqrt %123 : vector<48x1xf32>
    %125 = vector.broadcast %124 : vector<48x1xf32> to vector<48x32xf32>
    %126 = arith.mulf %116, %125 : vector<48x32xf32>
    %127 = vector.broadcast %17 : vector<1x32xf32> to vector<48x32xf32>
    %128 = arith.mulf %126, %127 : vector<48x32xf32>
    %129 = vector.broadcast %19 : vector<1x32xf32> to vector<48x32xf32>
    %130 = arith.addf %128, %129 : vector<48x32xf32>
    %131 = arith.truncf %130 : vector<48x32xf32> to vector<48x32xbf16>
    %cst_56 = arith.constant dense<0.000000e+00> : vector<48x128xf32>
    %132 = tpu.matmul %131, %21, %cst_56 {dimension_numbers = #tpu.dot_dimension_numbers<[1], [0], [0], [1], [0, 0, 1, 1], [], []>} : vector<48x32xbf16>, vector<32x128xbf16>, vector<48x128xf32> -> vector<48x128xf32>
    %133 = vector.broadcast %23 : vector<1x128xf32> to vector<48x128xf32>
    %134 = arith.addf %132, %133 : vector<48x128xf32>
    %cst_57 = arith.constant 5.000000e-01 : f32
    %135 = vector.broadcast %cst_57 : f32 to vector<48x128xf32>
    %136 = arith.mulf %135, %134 : vector<48x128xf32>
    %cst_58 = arith.constant 0.707106769 : f32
    %137 = vector.broadcast %cst_58 : f32 to vector<48x128xf32>
    %138 = arith.mulf %134, %137 : vector<48x128xf32>
    %139 = math.erf %138 : vector<48x128xf32>
    %cst_59 = arith.constant 1.000000e+00 : f32
    %140 = vector.broadcast %cst_59 : f32 to vector<48x128xf32>
    %141 = arith.addf %140, %139 : vector<48x128xf32>
    %142 = arith.mulf %136, %141 : vector<48x128xf32>
    %143 = arith.truncf %142 : vector<48x128xf32> to vector<48x128xbf16>
    %cst_60 = arith.constant dense<0.000000e+00> : vector<48x32xf32>
    %144 = tpu.matmul %143, %25, %cst_60 {dimension_numbers = #tpu.dot_dimension_numbers<[1], [0], [0], [1], [0, 0, 1, 1], [], []>} : vector<48x128xbf16>, vector<128x32xbf16>, vector<48x32xf32> -> vector<48x32xf32>
    %145 = vector.broadcast %27 : vector<1x32xf32> to vector<48x32xf32>
    %146 = arith.addf %144, %145 : vector<48x32xf32>
    %147 = arith.addf %110, %146 : vector<48x32xf32>
    %c0_61 = arith.constant 0 : index
    %c0_62 = arith.constant 0 : index
    %148 = vector.load %arg22[%c0_61, %c0_62] : memref<48x32xf32, #tpu.memory_space<vmem>>, vector<48x32xf32>
    tpu.vector_store %arg22[%c0_61, %c0_62], %147 {strides = array<i32>} : memref<48x32xf32, #tpu.memory_space<vmem>>, vector<48x32xf32>,
    %c1_i32 = arith.constant 1 : i32
    %149 = arith.cmpi eq, %arg0, %c1_i32 : i32
    %150 = arith.extui %149 : i1 to i32
    %c0_i32_63 = arith.constant 0 : i32
    %151 = arith.cmpi ne, %150, %c0_i32_63 : i32
    scf.if %151 {
      %c0_64 = arith.constant 0 : index
      %c0_65 = arith.constant 0 : index
      %152 = vector.load %arg16[%c0_64, %c0_65] : memref<1x32xf32, #tpu.memory_space<vmem>>, vector<1x32xf32>
      %c0_66 = arith.constant 0 : index
      %c0_67 = arith.constant 0 : index
      %153 = vector.load %arg17[%c0_66, %c0_67] : memref<1x32xf32, #tpu.memory_space<vmem>>, vector<1x32xf32>
      %cst_68 = arith.constant dense<0.000000e+00> : vector<48xf32>
      %154 = vector.multi_reduction <add>, %147, %cst_68 [1] : vector<48x32xf32> to vector<48xf32>
      %155 = vector.shape_cast %154 : vector<48xf32> to vector<48x1xf32>
      %cst_69 = arith.constant 3.200000e+01 : f32
      %156 = vector.broadcast %cst_69 : f32 to vector<48x1xf32>
      %157 = arith.divf %155, %156 : vector<48x1xf32>
      %158 = vector.broadcast %157 : vector<48x1xf32> to vector<48x32xf32>
      %159 = arith.subf %147, %158 : vector<48x32xf32>
      %160 = arith.mulf %159, %159 : vector<48x32xf32>
      %cst_70 = arith.constant dense<0.000000e+00> : vector<48xf32>
      %161 = vector.multi_reduction <add>, %160, %cst_70 [1] : vector<48x32xf32> to vector<48xf32>
      %162 = vector.shape_cast %161 : vector<48xf32> to vector<48x1xf32>
      %cst_71 = arith.constant 3.200000e+01 : f32
      %163 = vector.broadcast %cst_71 : f32 to vector<48x1xf32>
      %164 = arith.divf %162, %163 : vector<48x1xf32>
      %cst_72 = arith.constant 9.99999974E-6 : f32
      %165 = vector.broadcast %cst_72 : f32 to vector<48x1xf32>
      %166 = arith.addf %164, %165 : vector<48x1xf32>
      %167 = math.rsqrt %166 : vector<48x1xf32>
      %168 = vector.broadcast %167 : vector<48x1xf32> to vector<48x32xf32>
      %169 = arith.mulf %159, %168 : vector<48x32xf32>
      %170 = vector.broadcast %152 : vector<1x32xf32> to vector<48x32xf32>
      %171 = arith.mulf %169, %170 : vector<48x32xf32>
      %172 = vector.broadcast %153 : vector<1x32xf32> to vector<48x32xf32>
      %173 = arith.addf %171, %172 : vector<48x32xf32>
      %174 = arith.truncf %173 : vector<48x32xf32> to vector<48x32xbf16>
      %c0_73 = arith.constant 0 : index
      %c0_74 = arith.constant 0 : index
      %175 = vector.load %arg18[%c0_73, %c0_74] : memref<32x128xbf16, #tpu.memory_space<vmem>>, vector<32x128xbf16>
      %cst_75 = arith.constant dense<0.000000e+00> : vector<48x128xf32>
      %176 = tpu.matmul %174, %175, %cst_75 {dimension_numbers = #tpu.dot_dimension_numbers<[1], [0], [0], [1], [0, 0, 1, 1], [], []>} : vector<48x32xbf16>, vector<32x128xbf16>, vector<48x128xf32> -> vector<48x128xf32>
      %c0_76 = arith.constant 0 : index
      %c0_77 = arith.constant 0 : index
      %177 = vector.load %arg19[%c0_76, %c0_77] : memref<1x128xf32, #tpu.memory_space<vmem>>, vector<1x128xf32>
      %178 = vector.broadcast %177 : vector<1x128xf32> to vector<48x128xf32>
      %179 = arith.addf %176, %178 : vector<48x128xf32>
      %c0_78 = arith.constant 0 : index
      %c0_79 = arith.constant 0 : index
      %180 = vector.load %arg20[%c0_78, %c0_79] : memref<48x128xf32, #tpu.memory_space<vmem>>, vector<48x128xf32>
      tpu.vector_store %arg20[%c0_78, %c0_79], %179 {strides = array<i32>} : memref<48x128xf32, #tpu.memory_space<vmem>>, vector<48x128xf32>,
      %c0_80 = arith.constant 0 : index
      %c0_81 = arith.constant 0 : index
      %181 = vector.load %arg2[%c0_80, %c0_81] : memref<48x128xf32, #tpu.memory_space<vmem>>, vector<48x128xf32>
      %182 = arith.subf %179, %181 : vector<48x128xf32>
      %183 = arith.mulf %182, %182 : vector<48x128xf32>
      %cst_82 = arith.constant dense<0.000000e+00> : vector<48xf32>
      %184 = vector.multi_reduction <add>, %183, %cst_82 [1] : vector<48x128xf32> to vector<48xf32>
      %185 = vector.shape_cast %184 : vector<48xf32> to vector<48x1xf32>
      %cst_83 = arith.constant 0.020833334 : f32
      %186 = vector.broadcast %cst_83 : f32 to vector<48x1xf32>
      %187 = arith.mulf %185, %186 : vector<48x1xf32>
      %c0_84 = arith.constant 0 : index
      %c0_85 = arith.constant 0 : index
      %188 = vector.load %arg3[%c0_84, %c0_85] : memref<48x1xf32, #tpu.memory_space<vmem>>, vector<48x1xf32>
      %189 = arith.mulf %187, %188 : vector<48x1xf32>
      %190 = vector.shape_cast %189 : vector<48x1xf32> to vector<1x48x1xf32>
      %cst_86 = arith.constant dense<0.000000e+00> : vector<1xf32>
      %191 = vector.multi_reduction <add>, %190, %cst_86 [1, 2] : vector<1x48x1xf32> to vector<1xf32>
      %192 = vector.shape_cast %191 : vector<1xf32> to vector<1x1x1xf32>
      %193 = vector.extract %192[0, 0, 0] : f32 from vector<1x1x1xf32>
      %194 = vector.shape_cast %188 : vector<48x1xf32> to vector<1x48x1xf32>
      %cst_87 = arith.constant dense<0.000000e+00> : vector<1xf32>
      %195 = vector.multi_reduction <add>, %194, %cst_87 [1, 2] : vector<1x48x1xf32> to vector<1xf32>
      %196 = vector.shape_cast %195 : vector<1xf32> to vector<1x1x1xf32>
      %197 = vector.extract %196[0, 0, 0] : f32 from vector<1x1x1xf32>
      %198 = arith.divf %193, %197 : f32
      %c0_88 = arith.constant 0 : index
      %c0_89 = arith.constant 0 : index
      %199 = memref.load %arg21[%c0_88, %c0_89] : memref<1x1xf32, #tpu.memory_space<smem>>
      memref.store %198, %arg21[%c0_88, %c0_89] : memref<1x1xf32, #tpu.memory_space<smem>>
    } else {
    }
    return
  }
  func.func @transform_0(%arg0: i32) -> (i32, i32) {
    %c0_i32 = arith.constant 0 : i32
    %c0_i32_0 = arith.constant 0 : i32
    %c0_i32_1 = arith.constant 0 : i32
    return %c0_i32, %c0_i32_0 : i32, i32
  }
  func.func @transform_1(%arg0: i32) -> (i32, i32) {
    %c0_i32 = arith.constant 0 : i32
    %c0_i32_0 = arith.constant 0 : i32
    %c0_i32_1 = arith.constant 0 : i32
    return %c0_i32, %c0_i32_0 : i32, i32
  }
  func.func @transform_2(%arg0: i32) -> (i32, i32) {
    %c0_i32 = arith.constant 0 : i32
    %c0_i32_0 = arith.constant 0 : i32
    %c0_i32_1 = arith.constant 0 : i32
    return %c0_i32, %c0_i32_0 : i32, i32
  }
  func.func @transform_3(%arg0: i32) -> (i32, i32, i32) {
    %c0_i32 = arith.constant 0 : i32
    %c0_i32_0 = arith.constant 0 : i32
    %c0_i32_1 = arith.constant 0 : i32
    return %arg0, %c0_i32, %c0_i32_0 : i32, i32, i32
  }
  func.func @transform_4(%arg0: i32) -> (i32, i32, i32) {
    %c0_i32 = arith.constant 0 : i32
    %c0_i32_0 = arith.constant 0 : i32
    %c0_i32_1 = arith.constant 0 : i32
    return %arg0, %c0_i32, %c0_i32_0 : i32, i32, i32
  }
  func.func @transform_5(%arg0: i32) -> (i32, i32, i32) {
    %c0_i32 = arith.constant 0 : i32
    %c0_i32_0 = arith.constant 0 : i32
    %c0_i32_1 = arith.constant 0 : i32
    return %arg0, %c0_i32, %c0_i32_0 : i32, i32, i32
  }
  func.func @transform_6(%arg0: i32) -> (i32, i32, i32) {
    %c0_i32 = arith.constant 0 : i32
    %c0_i32_0 = arith.constant 0 : i32
    %c0_i32_1 = arith.constant 0 : i32
    return %arg0, %c0_i32, %c0_i32_0 : i32, i32, i32
  }
  func.func @transform_7(%arg0: i32) -> (i32, i32, i32) {
    %c0_i32 = arith.constant 0 : i32
    %c0_i32_0 = arith.constant 0 : i32
    %c0_i32_1 = arith.constant 0 : i32
    return %arg0, %c0_i32, %c0_i32_0 : i32, i32, i32
  }
  func.func @transform_8(%arg0: i32) -> (i32, i32, i32) {
    %c0_i32 = arith.constant 0 : i32
    %c0_i32_0 = arith.constant 0 : i32
    %c0_i32_1 = arith.constant 0 : i32
    return %arg0, %c0_i32, %c0_i32_0 : i32, i32, i32
  }
  func.func @transform_9(%arg0: i32) -> (i32, i32, i32) {
    %c0_i32 = arith.constant 0 : i32
    %c0_i32_0 = arith.constant 0 : i32
    %c0_i32_1 = arith.constant 0 : i32
    return %arg0, %c0_i32, %c0_i32_0 : i32, i32, i32
  }
  func.func @transform_10(%arg0: i32) -> (i32, i32, i32) {
    %c0_i32 = arith.constant 0 : i32
    %c0_i32_0 = arith.constant 0 : i32
    %c0_i32_1 = arith.constant 0 : i32
    return %arg0, %c0_i32, %c0_i32_0 : i32, i32, i32
  }
  func.func @transform_11(%arg0: i32) -> (i32, i32, i32) {
    %c0_i32 = arith.constant 0 : i32
    %c0_i32_0 = arith.constant 0 : i32
    %c0_i32_1 = arith.constant 0 : i32
    return %arg0, %c0_i32, %c0_i32_0 : i32, i32, i32
  }
  func.func @transform_12(%arg0: i32) -> (i32, i32, i32) {
    %c0_i32 = arith.constant 0 : i32
    %c0_i32_0 = arith.constant 0 : i32
    %c0_i32_1 = arith.constant 0 : i32
    return %arg0, %c0_i32, %c0_i32_0 : i32, i32, i32
  }
  func.func @transform_13(%arg0: i32) -> (i32, i32, i32) {
    %c0_i32 = arith.constant 0 : i32
    %c0_i32_0 = arith.constant 0 : i32
    %c0_i32_1 = arith.constant 0 : i32
    return %arg0, %c0_i32, %c0_i32_0 : i32, i32, i32
  }
  func.func @transform_14(%arg0: i32) -> (i32, i32, i32) {
    %c0_i32 = arith.constant 0 : i32
    %c0_i32_0 = arith.constant 0 : i32
    %c0_i32_1 = arith.constant 0 : i32
    return %arg0, %c0_i32, %c0_i32_0 : i32, i32, i32
  }
  func.func @transform_15(%arg0: i32) -> (i32, i32) {
    %c0_i32 = arith.constant 0 : i32
    %c0_i32_0 = arith.constant 0 : i32
    %c0_i32_1 = arith.constant 0 : i32
    return %c0_i32, %c0_i32_0 : i32, i32
  }
  func.func @transform_16(%arg0: i32) -> (i32, i32) {
    %c0_i32 = arith.constant 0 : i32
    %c0_i32_0 = arith.constant 0 : i32
    %c0_i32_1 = arith.constant 0 : i32
    return %c0_i32, %c0_i32_0 : i32, i32
  }
  func.func @transform_17(%arg0: i32) -> (i32, i32) {
    %c0_i32 = arith.constant 0 : i32
    %c0_i32_0 = arith.constant 0 : i32
    %c0_i32_1 = arith.constant 0 : i32
    return %c0_i32, %c0_i32_0 : i32, i32
  }
  func.func @transform_18(%arg0: i32) -> (i32, i32) {
    %c0_i32 = arith.constant 0 : i32
    %c0_i32_0 = arith.constant 0 : i32
    %c0_i32_1 = arith.constant 0 : i32
    return %c0_i32, %c0_i32_0 : i32, i32
  }
  func.func @transform_19(%arg0: i32) -> (i32, i32) {
    %c0_i32 = arith.constant 0 : i32
    %c0_i32_0 = arith.constant 0 : i32
    %c0_i32_1 = arith.constant 0 : i32
    return %c0_i32, %c0_i32_0 : i32, i32
  }
  func.func @transform_20(%arg0: i32) -> (i32, i32) {
    %c0_i32 = arith.constant 0 : i32
    %c0_i32_0 = arith.constant 0 : i32
    %c0_i32_1 = arith.constant 0 : i32
    return %c0_i32, %c0_i32_0 : i32, i32
  }
}

</mosaic_0001>

<llo_original>
// kernel: _lambda_.2
$region0: #{_lambda_.2}
  #allocation0 [shape = 'u32[]', space=smem, size = 0x4, offset = 0x4, fixed_abs, tag = 'smem constant byte address 0x4 - core index']
  #allocation1 [shape = 'u32[144,128]{1,0:T(1,128)}', space=vmem, size = 0x12000, scoped, tag = 'internal scratch']
  #allocation2 [shape = 'f32[16,32]{1,0:T(8,128)}', space=vmem, size = 0x2000, scoped, tag = 'scratch operand']
  %s0 = inlined_call_operand.vmem [shape: f32[16,48], index: 0, kind: input, shape index: {}]
  %s1 = inlined_call_operand.vmem [shape: f32[16,32], index: 1, kind: input, shape index: {}]
  %s2 = inlined_call_operand.vmem [shape: bf16[48,32], index: 2, kind: input, shape index: {}]
  %s3 = inlined_call_operand.vmem [shape: f32[2,1,32], index: 3, kind: input, shape index: {}]
  %s4 = inlined_call_operand.vmem [shape: f32[2,1,32], index: 4, kind: input, shape index: {}]
  %s5 = inlined_call_operand.vmem [shape: bf16[2,32,96], index: 5, kind: input, shape index: {}]
  %s6 = inlined_call_operand.vmem [shape: f32[2,1,96], index: 6, kind: input, shape index: {}]
  %s7 = inlined_call_operand.vmem [shape: bf16[2,32,32], index: 7, kind: input, shape index: {}]
  %s8 = inlined_call_operand.vmem [shape: f32[2,1,32], index: 8, kind: input, shape index: {}]
  %s9 = inlined_call_operand.vmem [shape: f32[2,1,32], index: 9, kind: input, shape index: {}]
  %s10 = inlined_call_operand.vmem [shape: f32[2,1,32], index: 10, kind: input, shape index: {}]
  %s11 = inlined_call_operand.vmem [shape: bf16[2,32,128], index: 11, kind: input, shape index: {}]
  %s12 = inlined_call_operand.vmem [shape: f32[2,1,128], index: 12, kind: input, shape index: {}]
  %s13 = inlined_call_operand.vmem [shape: bf16[2,128,32], index: 13, kind: input, shape index: {}]
  %s14 = inlined_call_operand.vmem [shape: f32[2,1,32], index: 14, kind: input, shape index: {}]
  %s15 = inlined_call_operand.vmem [shape: f32[1,32], index: 15, kind: input, shape index: {}]
  %s16 = inlined_call_operand.vmem [shape: f32[1,32], index: 16, kind: input, shape index: {}]
  %s17 = inlined_call_operand.vmem [shape: bf16[32,128], index: 17, kind: input, shape index: {}]
  %s18 = inlined_call_operand.vmem [shape: f32[1,128], index: 18, kind: input, shape index: {}]
  %s19 = inlined_call_operand.vmem [shape: f32[16,128], index: 19, kind: output, shape index: {}]
  %s20 = sld [smem:[#allocation0]]
  $region117: #{_lambda_.2} parent=0
    _
  %s22 = ssub.s32 1, %s20
  %s23 = scalar_select 0, %s22, %s20
  loop: start=0, step=1, limit=4
  $region2: #{_lambda_.2} parent=0 // loop_pre_header
    _
  $region3: #{_lambda_.2} parent=0 // loop_header
    %s25 = sphi 0, %s29
    %p26 = scmp.ge.s32.totalorder %s25, 4
    %s33 = sphi 0, %s33
    %s35 = sphi 0, %s33
    %s36 = sphi 0, %s35
    %s50 = sphi 0, %s36
    %s54 = sphi 0, %s54
    %s56 = sphi 0, %s54
    %s57 = sphi 0, %s56
    %s71 = sphi 0, %s57
    %s75 = sphi 0, %s75
    %s77 = sphi 0, %s75
    %s78 = sphi 0, %s77
    %s92 = sphi 0, %s78
    %s98 = sphi 0, %s100
    %s101 = sphi 0, %s98
    %s102 = sphi 0, %s101
    %s118 = sphi 0, %s102
    %s124 = sphi 0, %s126
    %s127 = sphi 0, %s124
    %s128 = sphi 0, %s127
    %s144 = sphi 0, %s128
    %s150 = sphi 0, %s152
    %s153 = sphi 0, %s150
    %s154 = sphi 0, %s153
    %s170 = sphi 0, %s154
    %s176 = sphi 0, %s178
    %s179 = sphi 0, %s176
    %s180 = sphi 0, %s179
    %s196 = sphi 0, %s180
    %s202 = sphi 0, %s204
    %s205 = sphi 0, %s202
    %s206 = sphi 0, %s205
    %s222 = sphi 0, %s206
    %s228 = sphi 0, %s230
    %s231 = sphi 0, %s228
    %s232 = sphi 0, %s231
    %s248 = sphi 0, %s232
    %s254 = sphi 0, %s256
    %s257 = sphi 0, %s254
    %s258 = sphi 0, %s257
    %s274 = sphi 0, %s258
    %s280 = sphi 0, %s282
    %s283 = sphi 0, %s280
    %s284 = sphi 0, %s283
    %s300 = sphi 0, %s284
    %s306 = sphi 0, %s308
    %s309 = sphi 0, %s306
    %s310 = sphi 0, %s309
    %s326 = sphi 0, %s310
    %s332 = sphi 0, %s334
    %s335 = sphi 0, %s332
    %s336 = sphi 0, %s335
    %s352 = sphi 0, %s336
    %s358 = sphi 0, %s360
    %s361 = sphi 0, %s358
    %s362 = sphi 0, %s361
    %s378 = sphi 0, %s362
    %s384 = sphi 0, %s386
    %s387 = sphi 0, %s384
    %s388 = sphi 0, %s387
    %s404 = sphi 0, %s388
    %s408 = sphi 0, %s408
    %s410 = sphi 0, %s408
    %s411 = sphi 0, %s410
    %s425 = sphi 0, %s411
    %s429 = sphi 0, %s429
    %s431 = sphi 0, %s429
    %s432 = sphi 0, %s431
    %s446 = sphi 0, %s432
    %s450 = sphi 0, %s450
    %s452 = sphi 0, %s450
    %s453 = sphi 0, %s452
    %s467 = sphi 0, %s453
    %s471 = sphi 0, %s471
    %s473 = sphi 0, %s471
    %s474 = sphi 0, %s473
    %s488 = sphi 0, %s474
    %s492 = sphi 0, %s492
    %s494 = sphi 0, %s492
    %s495 = sphi 0, %s494
    %s509 = sphi 0, %s495
  $region4: #{_lambda_.2} parent=0 // loop_header_branch
    %28 = sbr.rel (%p26) target = $region8
  $region5: #{_lambda_.2} parent=0 // loop_body
    %s30 = ssub.s32 %s25, 1
    %s31 = ssub.s32 %s25, 2
    %s32 = sadd.s32 %s25, 1
    %s34 = sadd.s32 %s33, 1
    %p37 = scmp.eq.s32.totalorder %s25, 1
    %p38 = scmp.ne.s32.totalorder %s33, %s35
    %p39 = scmp.eq.s32.totalorder %s25, 0
    %p40 = por %p38, %p39
    %p41 = scmp.ne.s32.totalorder %s33, %s35
    %p42 = scmp.eq.s32.totalorder %s30, 1
    %p43 = por %p41, %p42
    %p44 = scmp.ne.s32.totalorder %s35, %s36
    %p45 = scmp.eq.s32.totalorder %s30, 0
    %p46 = por %p44, %p45
    %p47 = scmp.ne.s32.totalorder %s35, %s36
    %p48 = scmp.eq.s32.totalorder %s31, 1
    %p49 = por %p47, %p48
    %p51 = scmp.ne.s32.totalorder %s36, %s50
    %p52 = scmp.eq.s32.totalorder %s31, 0
    %p53 = por %p51, %p52
    %s55 = sadd.s32 %s54, 1
    %p58 = scmp.eq.s32.totalorder %s25, 1
    %p59 = scmp.ne.s32.totalorder %s54, %s56
    %p60 = scmp.eq.s32.totalorder %s25, 0
    %p61 = por %p59, %p60
    %p62 = scmp.ne.s32.totalorder %s54, %s56
    %p63 = scmp.eq.s32.totalorder %s30, 1
    %p64 = por %p62, %p63
    %p65 = scmp.ne.s32.totalorder %s56, %s57
    %p66 = scmp.eq.s32.totalorder %s30, 0
    %p67 = por %p65, %p66
    %p68 = scmp.ne.s32.totalorder %s56, %s57
    %p69 = scmp.eq.s32.totalorder %s31, 1
    %p70 = por %p68, %p69
    %p72 = scmp.ne.s32.totalorder %s57, %s71
    %p73 = scmp.eq.s32.totalorder %s31, 0
    %p74 = por %p72, %p73
    %s76 = sadd.s32 %s75, 1
    %p79 = scmp.eq.s32.totalorder %s25, 1
    %p80 = scmp.ne.s32.totalorder %s75, %s77
    %p81 = scmp.eq.s32.totalorder %s25, 0
    %p82 = por %p80, %p81
    %p83 = scmp.ne.s32.totalorder %s75, %s77
    %p84 = scmp.eq.s32.totalorder %s30, 1
    %p85 = por %p83, %p84
    %p86 = scmp.ne.s32.totalorder %s77, %s78
    %p87 = scmp.eq.s32.totalorder %s30, 0
    %p88 = por %p86, %p87
    %p89 = scmp.ne.s32.totalorder %s77, %s78
    %p90 = scmp.eq.s32.totalorder %s31, 1
    %p91 = por %p89, %p90
    %p93 = scmp.ne.s32.totalorder %s78, %s92
    %p94 = scmp.eq.s32.totalorder %s31, 0
    %p95 = por %p93, %p94
    %s96 = ssub.s32 %s25, %s32
    %p97 = scmp.eq.s32.totalorder %s96, 0
    %s99 = sadd.s32 %s98, 1
    %s100 = scalar_select %p97, %s98, %s99
    %p103 = pneg %p97
    %p104 = scmp.eq.s32.totalorder %s25, 1
    %p105 = por %p103, %p104
    %p106 = scmp.ne.s32.totalorder %s98, %s101
    %p107 = scmp.eq.s32.totalorder %s25, 0
    %p108 = por %p106, %p107
    %p109 = scmp.ne.s32.totalorder %s98, %s101
    %p110 = scmp.eq.s32.totalorder %s30, 1
    %p111 = por %p109, %p110
    %p112 = scmp.ne.s32.totalorder %s101, %s102
    %p113 = scmp.eq.s32.totalorder %s30, 0
    %p114 = por %p112, %p113
    %p115 = scmp.ne.s32.totalorder %s101, %s102
    %p116 = scmp.eq.s32.totalorder %s31, 1
    %p117 = por %p115, %p116
    %p119 = scmp.ne.s32.totalorder %s102, %s118
    %p120 = scmp.eq.s32.totalorder %s31, 0
    %p121 = por %p119, %p120
    %s122 = ssub.s32 %s25, %s32
    %p123 = scmp.eq.s32.totalorder %s122, 0
    %s125 = sadd.s32 %s124, 1
    %s126 = scalar_select %p123, %s124, %s125
    %p129 = pneg %p123
    %p130 = scmp.eq.s32.totalorder %s25, 1
    %p131 = por %p129, %p130
    %p132 = scmp.ne.s32.totalorder %s124, %s127
    %p133 = scmp.eq.s32.totalorder %s25, 0
    %p134 = por %p132, %p133
    %p135 = scmp.ne.s32.totalorder %s124, %s127
    %p136 = scmp.eq.s32.totalorder %s30, 1
    %p137 = por %p135, %p136
    %p138 = scmp.ne.s32.totalorder %s127, %s128
    %p139 = scmp.eq.s32.totalorder %s30, 0
    %p140 = por %p138, %p139
    %p141 = scmp.ne.s32.totalorder %s127, %s128
    %p142 = scmp.eq.s32.totalorder %s31, 1
    %p143 = por %p141, %p142
    %p145 = scmp.ne.s32.totalorder %s128, %s144
    %p146 = scmp.eq.s32.totalorder %s31, 0
    %p147 = por %p145, %p146
    %s148 = ssub.s32 %s25, %s32
    %p149 = scmp.eq.s32.totalorder %s148, 0
    %s151 = sadd.s32 %s150, 1
    %s152 = scalar_select %p149, %s150, %s151
    %p155 = pneg %p149
    %p156 = scmp.eq.s32.totalorder %s25, 1
    %p157 = por %p155, %p156
    %p158 = scmp.ne.s32.totalorder %s150, %s153
    %p159 = scmp.eq.s32.totalorder %s25, 0
    %p160 = por %p158, %p159
    %p161 = scmp.ne.s32.totalorder %s150, %s153
    %p162 = scmp.eq.s32.totalorder %s30, 1
    %p163 = por %p161, %p162
    %p164 = scmp.ne.s32.totalorder %s153, %s154
    %p165 = scmp.eq.s32.totalorder %s30, 0
    %p166 = por %p164, %p165
    %p167 = scmp.ne.s32.totalorder %s153, %s154
    %p168 = scmp.eq.s32.totalorder %s31, 1
    %p169 = por %p167, %p168
    %p171 = scmp.ne.s32.totalorder %s154, %s170
    %p172 = scmp.eq.s32.totalorder %s31, 0
    %p173 = por %p171, %p172
    %s174 = ssub.s32 %s25, %s32
    %p175 = scmp.eq.s32.totalorder %s174, 0
    %s177 = sadd.s32 %s176, 1
    %s178 = scalar_select %p175, %s176, %s177
    %p181 = pneg %p175
    %p182 = scmp.eq.s32.totalorder %s25, 1
    %p183 = por %p181, %p182
    %p184 = scmp.ne.s32.totalorder %s176, %s179
    %p185 = scmp.eq.s32.totalorder %s25, 0
    %p186 = por %p184, %p185
    %p187 = scmp.ne.s32.totalorder %s176, %s179
    %p188 = scmp.eq.s32.totalorder %s30, 1
    %p189 = por %p187, %p188
    %p190 = scmp.ne.s32.totalorder %s179, %s180
    %p191 = scmp.eq.s32.totalorder %s30, 0
    %p192 = por %p190, %p191
    %p193 = scmp.ne.s32.totalorder %s179, %s180
    %p194 = scmp.eq.s32.totalorder %s31, 1
    %p195 = por %p193, %p194
    %p197 = scmp.ne.s32.totalorder %s180, %s196
    %p198 = scmp.eq.s32.totalorder %s31, 0
    %p199 = por %p197, %p198
    %s200 = ssub.s32 %s25, %s32
    %p201 = scmp.eq.s32.totalorder %s200, 0
    %s203 = sadd.s32 %s202, 1
    %s204 = scalar_select %p201, %s202, %s203
    %p207 = pneg %p201
    %p208 = scmp.eq.s32.totalorder %s25, 1
    %p209 = por %p207, %p208
    %p210 = scmp.ne.s32.totalorder %s202, %s205
    %p211 = scmp.eq.s32.totalorder %s25, 0
    %p212 = por %p210, %p211
    %p213 = scmp.ne.s32.totalorder %s202, %s205
    %p214 = scmp.eq.s32.totalorder %s30, 1
    %p215 = por %p213, %p214
    %p216 = scmp.ne.s32.totalorder %s205, %s206
    %p217 = scmp.eq.s32.totalorder %s30, 0
    %p218 = por %p216, %p217
    %p219 = scmp.ne.s32.totalorder %s205, %s206
    %p220 = scmp.eq.s32.totalorder %s31, 1
    %p221 = por %p219, %p220
    %p223 = scmp.ne.s32.totalorder %s206, %s222
    %p224 = scmp.eq.s32.totalorder %s31, 0
    %p225 = por %p223, %p224
    %s226 = ssub.s32 %s25, %s32
    %p227 = scmp.eq.s32.totalorder %s226, 0
    %s229 = sadd.s32 %s228, 1
    %s230 = scalar_select %p227, %s228, %s229
    %p233 = pneg %p227
    %p234 = scmp.eq.s32.totalorder %s25, 1
    %p235 = por %p233, %p234
    %p236 = scmp.ne.s32.totalorder %s228, %s231
    %p237 = scmp.eq.s32.totalorder %s25, 0
    %p238 = por %p236, %p237
    %p239 = scmp.ne.s32.totalorder %s228, %s231
    %p240 = scmp.eq.s32.totalorder %s30, 1
    %p241 = por %p239, %p240
    %p242 = scmp.ne.s32.totalorder %s231, %s232
    %p243 = scmp.eq.s32.totalorder %s30, 0
    %p244 = por %p242, %p243
    %p245 = scmp.ne.s32.totalorder %s231, %s232
    %p246 = scmp.eq.s32.totalorder %s31, 1
    %p247 = por %p245, %p246
    %p249 = scmp.ne.s32.totalorder %s232, %s248
    %p250 = scmp.eq.s32.totalorder %s31, 0
    %p251 = por %p249, %p250
    %s252 = ssub.s32 %s25, %s32
    %p253 = scmp.eq.s32.totalorder %s252, 0
    %s255 = sadd.s32 %s254, 1
    %s256 = scalar_select %p253, %s254, %s255
    %p259 = pneg %p253
    %p260 = scmp.eq.s32.totalorder %s25, 1
    %p261 = por %p259, %p260
    %p262 = scmp.ne.s32.totalorder %s254, %s257
    %p263 = scmp.eq.s32.totalorder %s25, 0
    %p264 = por %p262, %p263
    %p265 = scmp.ne.s32.totalorder %s254, %s257
    %p266 = scmp.eq.s32.totalorder %s30, 1
    %p267 = por %p265, %p266
    %p268 = scmp.ne.s32.totalorder %s257, %s258
    %p269 = scmp.eq.s32.totalorder %s30, 0
    %p270 = por %p268, %p269
    %p271 = scmp.ne.s32.totalorder %s257, %s258
    %p272 = scmp.eq.s32.totalorder %s31, 1
    %p273 = por %p271, %p272
    %p275 = scmp.ne.s32.totalorder %s258, %s274
    %p276 = scmp.eq.s32.totalorder %s31, 0
    %p277 = por %p275, %p276
    %s278 = ssub.s32 %s25, %s32
    %p279 = scmp.eq.s32.totalorder %s278, 0
    %s281 = sadd.s32 %s280, 1
    %s282 = scalar_select %p279, %s280, %s281
    %p285 = pneg %p279
    %p286 = scmp.eq.s32.totalorder %s25, 1
    %p287 = por %p285, %p286
    %p288 = scmp.ne.s32.totalorder %s280, %s283
    %p289 = scmp.eq.s32.totalorder %s25, 0
    %p290 = por %p288, %p289
    %p291 = scmp.ne.s32.totalorder %s280, %s283
    %p292 = scmp.eq.s32.totalorder %s30, 1
    %p293 = por %p291, %p292
    %p294 = scmp.ne.s32.totalorder %s283, %s284
    %p295 = scmp.eq.s32.totalorder %s30, 0
    %p296 = por %p294, %p295
    %p297 = scmp.ne.s32.totalorder %s283, %s284
    %p298 = scmp.eq.s32.totalorder %s31, 1
    %p299 = por %p297, %p298
    %p301 = scmp.ne.s32.totalorder %s284, %s300
    %p302 = scmp.eq.s32.totalorder %s31, 0
    %p303 = por %p301, %p302
    %s304 = ssub.s32 %s25, %s32
    %p305 = scmp.eq.s32.totalorder %s304, 0
    %s307 = sadd.s32 %s306, 1
    %s308 = scalar_select %p305, %s306, %s307
    %p311 = pneg %p305
    %p312 = scmp.eq.s32.totalorder %s25, 1
    %p313 = por %p311, %p312
    %p314 = scmp.ne.s32.totalorder %s306, %s309
    %p315 = scmp.eq.s32.totalorder %s25, 0
    %p316 = por %p314, %p315
    %p317 = scmp.ne.s32.totalorder %s306, %s309
    %p318 = scmp.eq.s32.totalorder %s30, 1
    %p319 = por %p317, %p318
    %p320 = scmp.ne.s32.totalorder %s309, %s310
    %p321 = scmp.eq.s32.totalorder %s30, 0
    %p322 = por %p320, %p321
    %p323 = scmp.ne.s32.totalorder %s309, %s310
    %p324 = scmp.eq.s32.totalorder %s31, 1
    %p325 = por %p323, %p324
    %p327 = scmp.ne.s32.totalorder %s310, %s326
    %p328 = scmp.eq.s32.totalorder %s31, 0
    %p329 = por %p327, %p328
    %s330 = ssub.s32 %s25, %s32
    %p331 = scmp.eq.s32.totalorder %s330, 0
    %s333 = sadd.s32 %s332, 1
    %s334 = scalar_select %p331, %s332, %s333
    %p337 = pneg %p331
    %p338 = scmp.eq.s32.totalorder %s25, 1
    %p339 = por %p337, %p338
    %p340 = scmp.ne.s32.totalorder %s332, %s335
    %p341 = scmp.eq.s32.totalorder %s25, 0
    %p342 = por %p340, %p341
    %p343 = scmp.ne.s32.totalorder %s332, %s335
    %p344 = scmp.eq.s32.totalorder %s30, 1
    %p345 = por %p343, %p344
    %p346 = scmp.ne.s32.totalorder %s335, %s336
    %p347 = scmp.eq.s32.totalorder %s30, 0
    %p348 = por %p346, %p347
    %p349 = scmp.ne.s32.totalorder %s335, %s336
    %p350 = scmp.eq.s32.totalorder %s31, 1
    %p351 = por %p349, %p350
    %p353 = scmp.ne.s32.totalorder %s336, %s352
    %p354 = scmp.eq.s32.totalorder %s31, 0
    %p355 = por %p353, %p354
    %s356 = ssub.s32 %s25, %s32
    %p357 = scmp.eq.s32.totalorder %s356, 0
    %s359 = sadd.s32 %s358, 1
    %s360 = scalar_select %p357, %s358, %s359
    %p363 = pneg %p357
    %p364 = scmp.eq.s32.totalorder %s25, 1
    %p365 = por %p363, %p364
    %p366 = scmp.ne.s32.totalorder %s358, %s361
    %p367 = scmp.eq.s32.totalorder %s25, 0
    %p368 = por %p366, %p367
    %p369 = scmp.ne.s32.totalorder %s358, %s361
    %p370 = scmp.eq.s32.totalorder %s30, 1
    %p371 = por %p369, %p370
    %p372 = scmp.ne.s32.totalorder %s361, %s362
    %p373 = scmp.eq.s32.totalorder %s30, 0
    %p374 = por %p372, %p373
    %p375 = scmp.ne.s32.totalorder %s361, %s362
    %p376 = scmp.eq.s32.totalorder %s31, 1
    %p377 = por %p375, %p376
    %p379 = scmp.ne.s32.totalorder %s362, %s378
    %p380 = scmp.eq.s32.totalorder %s31, 0
    %p381 = por %p379, %p380
    %s382 = ssub.s32 %s25, %s32
    %p383 = scmp.eq.s32.totalorder %s382, 0
    %s385 = sadd.s32 %s384, 1
    %s386 = scalar_select %p383, %s384, %s385
    %p389 = pneg %p383
    %p390 = scmp.eq.s32.totalorder %s25, 1
    %p391 = por %p389, %p390
    %p392 = scmp.ne.s32.totalorder %s384, %s387
    %p393 = scmp.eq.s32.totalorder %s25, 0
    %p394 = por %p392, %p393
    %p395 = scmp.ne.s32.totalorder %s384, %s387
    %p396 = scmp.eq.s32.totalorder %s30, 1
    %p397 = por %p395, %p396
    %p398 = scmp.ne.s32.totalorder %s387, %s388
    %p399 = scmp.eq.s32.totalorder %s30, 0
    %p400 = por %p398, %p399
    %p401 = scmp.ne.s32.totalorder %s387, %s388
    %p402 = scmp.eq.s32.totalorder %s31, 1
    %p403 = por %p401, %p402
    %p405 = scmp.ne.s32.totalorder %s388, %s404
    %p406 = scmp.eq.s32.totalorder %s31, 0
    %p407 = por %p405, %p406
    %s409 = sadd.s32 %s408, 1
    %p412 = scmp.eq.s32.totalorder %s25, 1
    %p413 = scmp.ne.s32.totalorder %s408, %s410
    %p414 = scmp.eq.s32.totalorder %s25, 0
    %p415 = por %p413, %p414
    %p416 = scmp.ne.s32.totalorder %s408, %s410
    %p417 = scmp.eq.s32.totalorder %s30, 1
    %p418 = por %p416, %p417
    %p419 = scmp.ne.s32.totalorder %s410, %s411
    %p420 = scmp.eq.s32.totalorder %s30, 0
    %p421 = por %p419, %p420
    %p422 = scmp.ne.s32.totalorder %s410, %s411
    %p423 = scmp.eq.s32.totalorder %s31, 1
    %p424 = por %p422, %p423
    %p426 = scmp.ne.s32.totalorder %s411, %s425
    %p427 = scmp.eq.s32.totalorder %s31, 0
    %p428 = por %p426, %p427
    %s430 = sadd.s32 %s429, 1
    %p433 = scmp.eq.s32.totalorder %s25, 1
    %p434 = scmp.ne.s32.totalorder %s429, %s431
    %p435 = scmp.eq.s32.totalorder %s25, 0
    %p436 = por %p434, %p435
    %p437 = scmp.ne.s32.totalorder %s429, %s431
    %p438 = scmp.eq.s32.totalorder %s30, 1
    %p439 = por %p437, %p438
    %p440 = scmp.ne.s32.totalorder %s431, %s432
    %p441 = scmp.eq.s32.totalorder %s30, 0
    %p442 = por %p440, %p441
    %p443 = scmp.ne.s32.totalorder %s431, %s432
    %p444 = scmp.eq.s32.totalorder %s31, 1
    %p445 = por %p443, %p444
    %p447 = scmp.ne.s32.totalorder %s432, %s446
    %p448 = scmp.eq.s32.totalorder %s31, 0
    %p449 = por %p447, %p448
    %s451 = sadd.s32 %s450, 1
    %p454 = scmp.eq.s32.totalorder %s25, 1
    %p455 = scmp.ne.s32.totalorder %s450, %s452
    %p456 = scmp.eq.s32.totalorder %s25, 0
    %p457 = por %p455, %p456
    %p458 = scmp.ne.s32.totalorder %s450, %s452
    %p459 = scmp.eq.s32.totalorder %s30, 1
    %p460 = por %p458, %p459
    %p461 = scmp.ne.s32.totalorder %s452, %s453
    %p462 = scmp.eq.s32.totalorder %s30, 0
    %p463 = por %p461, %p462
    %p464 = scmp.ne.s32.totalorder %s452, %s453
    %p465 = scmp.eq.s32.totalorder %s31, 1
    %p466 = por %p464, %p465
    %p468 = scmp.ne.s32.totalorder %s453, %s467
    %p469 = scmp.eq.s32.totalorder %s31, 0
    %p470 = por %p468, %p469
    %s472 = sadd.s32 %s471, 1
    %p475 = scmp.eq.s32.totalorder %s25, 1
    %p476 = scmp.ne.s32.totalorder %s471, %s473
    %p477 = scmp.eq.s32.totalorder %s25, 0
    %p478 = por %p476, %p477
    %p479 = scmp.ne.s32.totalorder %s471, %s473
    %p480 = scmp.eq.s32.totalorder %s30, 1
    %p481 = por %p479, %p480
    %p482 = scmp.ne.s32.totalorder %s473, %s474
    %p483 = scmp.eq.s32.totalorder %s30, 0
    %p484 = por %p482, %p483
    %p485 = scmp.ne.s32.totalorder %s473, %s474
    %p486 = scmp.eq.s32.totalorder %s31, 1
    %p487 = por %p485, %p486
    %p489 = scmp.ne.s32.totalorder %s474, %s488
    %p490 = scmp.eq.s32.totalorder %s31, 0
    %p491 = por %p489, %p490
    %s493 = sadd.s32 %s492, 1
    %p496 = scmp.eq.s32.totalorder %s25, 1
    %p497 = scmp.ne.s32.totalorder %s492, %s494
    %p498 = scmp.eq.s32.totalorder %s25, 0
    %p499 = por %p497, %p498
    %p500 = scmp.ne.s32.totalorder %s492, %s494
    %p501 = scmp.eq.s32.totalorder %s30, 1
    %p502 = por %p500, %p501
    %p503 = scmp.ne.s32.totalorder %s494, %s495
    %p504 = scmp.eq.s32.totalorder %s30, 0
    %p505 = por %p503, %p504
    %p506 = scmp.ne.s32.totalorder %s494, %s495
    %p507 = scmp.eq.s32.totalorder %s31, 1
    %p508 = por %p506, %p507
    %p510 = scmp.ne.s32.totalorder %s495, %s509
    %p511 = scmp.eq.s32.totalorder %s31, 0
    %p512 = por %p510, %p511
    %p513 = scmp.le.s32.totalorder 1, %s25
    %p514 = scmp.lt.s32.totalorder %s25, 3
    %p515 = pnand %p513, %p514
    %p516 = pneg %p515
    // Predicated region
    $region9: #{_lambda_.2} parent=5 // pred_check
      _
    $region10: #{_lambda_.2} parent=5 // pred_check_branch
      %518 = sbr.rel (%p515) target = $region12
    $region11: #{_lambda_.2} parent=5 // pred_region
      %s519 = ssub.s32 %s25, 1
      // Predicated region
      $region13: #{_lambda_.2} parent=11 // pred_check
        %p520 = pneg %p46
      $region14: #{_lambda_.2} parent=11 // pred_check_branch
        %522 = sbr.rel (%p520) target = $region16
      $region15: #{_lambda_.2} parent=11 // pred_region
        _
      $region16: #{_lambda_.2} parent=11 // pred_fallthru
        _
      // Predicated region
      $region17: #{_lambda_.2} parent=11 // pred_check
        %p523 = pneg %p67
      $region18: #{_lambda_.2} parent=11 // pred_check_branch
        %525 = sbr.rel (%p523) target = $region20
      $region19: #{_lambda_.2} parent=11 // pred_region
        _
      $region20: #{_lambda_.2} parent=11 // pred_fallthru
        _
      // Predicated region
      $region21: #{_lambda_.2} parent=11 // pred_check
        %p526 = pneg %p88
      $region22: #{_lambda_.2} parent=11 // pred_check_branch
        %528 = sbr.rel (%p526) target = $region24
      $region23: #{_lambda_.2} parent=11 // pred_region
        _
      $region24: #{_lambda_.2} parent=11 // pred_fallthru
        _
      // Predicated region
      $region25: #{_lambda_.2} parent=11 // pred_check
        %p529 = pneg %p421
      $region26: #{_lambda_.2} parent=11 // pred_check_branch
        %531 = sbr.rel (%p529) target = $region28
      $region27: #{_lambda_.2} parent=11 // pred_region
        _
      $region28: #{_lambda_.2} parent=11 // pred_fallthru
        _
      // Predicated region
      $region29: #{_lambda_.2} parent=11 // pred_check
        %p532 = pneg %p442
      $region30: #{_lambda_.2} parent=11 // pred_check_branch
        %534 = sbr.rel (%p532) target = $region32
      $region31: #{_lambda_.2} parent=11 // pred_region
        _
      $region32: #{_lambda_.2} parent=11 // pred_fallthru
        _
      // Predicated region
      $region33: #{_lambda_.2} parent=11 // pred_check
        %p535 = pneg %p463
      $region34: #{_lambda_.2} parent=11 // pred_check_branch
        %537 = sbr.rel (%p535) target = $region36
      $region35: #{_lambda_.2} parent=11 // pred_region
        _
      $region36: #{_lambda_.2} parent=11 // pred_fallthru
        _
      // Predicated region
      $region37: #{_lambda_.2} parent=11 // pred_check
        %p538 = pneg %p484
      $region38: #{_lambda_.2} parent=11 // pred_check_branch
        %540 = sbr.rel (%p538) target = $region40
      $region39: #{_lambda_.2} parent=11 // pred_region
        _
      $region40: #{_lambda_.2} parent=11 // pred_fallthru
        _
    $region12: #{_lambda_.2} parent=5 // pred_fallthru
      _
    %p541 = scmp.lt.s32.totalorder %s25, 2
    // Predicated region
    $region41: #{_lambda_.2} parent=5 // pred_check
      %p542 = pneg %p541
    $region42: #{_lambda_.2} parent=5 // pred_check_branch
      %544 = sbr.rel (%p542) target = $region44
    $region43: #{_lambda_.2} parent=5 // pred_region
      // Predicated region
      $region45: #{_lambda_.2} parent=43 // pred_check
        %p545 = pneg %p108
      $region46: #{_lambda_.2} parent=43 // pred_check_branch
        %547 = sbr.rel (%p545) target = $region48
      $region47: #{_lambda_.2} parent=43 // pred_region
        %p548 = scmp.lt.s32.totalorder %s25, 1
        %s549 = scalar_select %p548, %s25, 1
        %s550 = scalar_lea.vmem %s3, %s549
      $region48: #{_lambda_.2} parent=43 // pred_fallthru
        _
      // Predicated region
      $region49: #{_lambda_.2} parent=43 // pred_check
        %p551 = pneg %p134
      $region50: #{_lambda_.2} parent=43 // pred_check_branch
        %553 = sbr.rel (%p551) target = $region52
      $region51: #{_lambda_.2} parent=43 // pred_region
        %p554 = scmp.lt.s32.totalorder %s25, 1
        %s555 = scalar_select %p554, %s25, 1
        %s556 = scalar_lea.vmem %s4, %s555
      $region52: #{_lambda_.2} parent=43 // pred_fallthru
        _
      // Predicated region
      $region53: #{_lambda_.2} parent=43 // pred_check
        %p557 = pneg %p160
      $region54: #{_lambda_.2} parent=43 // pred_check_branch
        %559 = sbr.rel (%p557) target = $region56
      $region55: #{_lambda_.2} parent=43 // pred_region
        %p560 = scmp.lt.s32.totalorder %s25, 1
        %s561 = scalar_select %p560, %s25, 1
        %s562 = smul.addr %s561, 4
        %s563 = smul.addr %s562, 4
        %s564 = scalar_lea.vmem %s5, %s563
      $region56: #{_lambda_.2} parent=43 // pred_fallthru
        _
      // Predicated region
      $region57: #{_lambda_.2} parent=43 // pred_check
        %p565 = pneg %p186
      $region58: #{_lambda_.2} parent=43 // pred_check_branch
        %567 = sbr.rel (%p565) target = $region60
      $region59: #{_lambda_.2} parent=43 // pred_region
        %p568 = scmp.lt.s32.totalorder %s25, 1
        %s569 = scalar_select %p568, %s25, 1
        %s570 = scalar_lea.vmem %s6, %s569
      $region60: #{_lambda_.2} parent=43 // pred_fallthru
        _
      // Predicated region
      $region61: #{_lambda_.2} parent=43 // pred_check
        %p571 = pneg %p212
      $region62: #{_lambda_.2} parent=43 // pred_check_branch
        %573 = sbr.rel (%p571) target = $region64
      $region63: #{_lambda_.2} parent=43 // pred_region
        %p574 = scmp.lt.s32.totalorder %s25, 1
        %s575 = scalar_select %p574, %s25, 1
        %s576 = smul.addr %s575, 4
        %s577 = smul.addr %s576, 4
        %s578 = scalar_lea.vmem %s7, %s577
      $region64: #{_lambda_.2} parent=43 // pred_fallthru
        _
      // Predicated region
      $region65: #{_lambda_.2} parent=43 // pred_check
        %p579 = pneg %p238
      $region66: #{_lambda_.2} parent=43 // pred_check_branch
        %581 = sbr.rel (%p579) target = $region68
      $region67: #{_lambda_.2} parent=43 // pred_region
        %p582 = scmp.lt.s32.totalorder %s25, 1
        %s583 = scalar_select %p582, %s25, 1
        %s584 = scalar_lea.vmem %s8, %s583
      $region68: #{_lambda_.2} parent=43 // pred_fallthru
        _
      // Predicated region
      $region69: #{_lambda_.2} parent=43 // pred_check
        %p585 = pneg %p264
      $region70: #{_lambda_.2} parent=43 // pred_check_branch
        %587 = sbr.rel (%p585) target = $region72
      $region71: #{_lambda_.2} parent=43 // pred_region
        %p588 = scmp.lt.s32.totalorder %s25, 1
        %s589 = scalar_select %p588, %s25, 1
        %s590 = scalar_lea.vmem %s9, %s589
      $region72: #{_lambda_.2} parent=43 // pred_fallthru
        _
      // Predicated region
      $region73: #{_lambda_.2} parent=43 // pred_check
        %p591 = pneg %p290
      $region74: #{_lambda_.2} parent=43 // pred_check_branch
        %593 = sbr.rel (%p591) target = $region76
      $region75: #{_lambda_.2} parent=43 // pred_region
        %p594 = scmp.lt.s32.totalorder %s25, 1
        %s595 = scalar_select %p594, %s25, 1
        %s596 = scalar_lea.vmem %s10, %s595
      $region76: #{_lambda_.2} parent=43 // pred_fallthru
        _
      // Predicated region
      $region77: #{_lambda_.2} parent=43 // pred_check
        %p597 = pneg %p316
      $region78: #{_lambda_.2} parent=43 // pred_check_branch
        %599 = sbr.rel (%p597) target = $region80
      $region79: #{_lambda_.2} parent=43 // pred_region
        %p600 = scmp.lt.s32.totalorder %s25, 1
        %s601 = scalar_select %p600, %s25, 1
        %s602 = smul.addr %s601, 4
        %s603 = smul.addr %s602, 4
        %s604 = scalar_lea.vmem %s11, %s603
      $region80: #{_lambda_.2} parent=43 // pred_fallthru
        _
      // Predicated region
      $region81: #{_lambda_.2} parent=43 // pred_check
        %p605 = pneg %p342
      $region82: #{_lambda_.2} parent=43 // pred_check_branch
        %607 = sbr.rel (%p605) target = $region84
      $region83: #{_lambda_.2} parent=43 // pred_region
        %p608 = scmp.lt.s32.totalorder %s25, 1
        %s609 = scalar_select %p608, %s25, 1
        %s610 = scalar_lea.vmem %s12, %s609
      $region84: #{_lambda_.2} parent=43 // pred_fallthru
        _
      // Predicated region
      $region85: #{_lambda_.2} parent=43 // pred_check
        %p611 = pneg %p368
      $region86: #{_lambda_.2} parent=43 // pred_check_branch
        %613 = sbr.rel (%p611) target = $region88
      $region87: #{_lambda_.2} parent=43 // pred_region
        %p614 = scmp.lt.s32.totalorder %s25, 1
        %s615 = scalar_select %p614, %s25, 1
        %s616 = smul.addr %s615, 16
        %s617 = smul.addr %s616, 4
        %s618 = scalar_lea.vmem %s13, %s617
      $region88: #{_lambda_.2} parent=43 // pred_fallthru
        _
      // Predicated region
      $region89: #{_lambda_.2} parent=43 // pred_check
        %p619 = pneg %p394
      $region90: #{_lambda_.2} parent=43 // pred_check_branch
        %621 = sbr.rel (%p619) target = $region92
      $region91: #{_lambda_.2} parent=43 // pred_region
        %p622 = scmp.lt.s32.totalorder %s25, 1
        %s623 = scalar_select %p622, %s25, 1
        %s624 = scalar_lea.vmem %s14, %s623
      $region92: #{_lambda_.2} parent=43 // pred_fallthru
        _
    $region44: #{_lambda_.2} parent=5 // pred_fallthru
      _
    %p625 = scmp.le.s32.totalorder 1, %s25
    %p626 = scmp.lt.s32.totalorder %s25, 3
    %p627 = pnand %p625, %p626
    %p628 = pneg %p627
    // Predicated region
    $region93: #{_lambda_.2} parent=5 // pred_check
      _
    $region94: #{_lambda_.2} parent=5 // pred_check_branch
      %630 = sbr.rel (%p627) target = $region96
    $region95: #{_lambda_.2} parent=5 // pred_region
      %s631 = ssub.s32 %s25, 1
      %p632 = pneg %p46
      %p633 = pneg %p43
      %p634 = pneg %p67
      %p635 = pneg %p64
      %p636 = pneg %p88
      %p637 = pneg %p85
      %p638 = scmp.lt.s32.totalorder %s30, 1
      %s639 = scalar_select %p638, %s30, 1
      %s640 = scalar_lea.vmem %s3, %s639
      %p641 = pneg %p114
      %p642 = pneg %p111
      %p643 = scmp.lt.s32.totalorder %s30, 1
      %s644 = scalar_select %p643, %s30, 1
      %s645 = scalar_lea.vmem %s4, %s644
      %p646 = pneg %p140
      %p647 = pneg %p137
      %p648 = scmp.lt.s32.totalorder %s30, 1
      %s649 = scalar_select %p648, %s30, 1
      %s650 = smul.addr %s649, 4
      %s651 = smul.addr %s650, 4
      %s652 = scalar_lea.vmem %s5, %s651
      %p653 = pneg %p166
      %p654 = pneg %p163
      %p655 = scmp.lt.s32.totalorder %s30, 1
      %s656 = scalar_select %p655, %s30, 1
      %s657 = scalar_lea.vmem %s6, %s656
      %p658 = pneg %p192
      %p659 = pneg %p189
      %p660 = scmp.lt.s32.totalorder %s30, 1
      %s661 = scalar_select %p660, %s30, 1
      %s662 = smul.addr %s661, 4
      %s663 = smul.addr %s662, 4
      %s664 = scalar_lea.vmem %s7, %s663
      %p665 = pneg %p218
      %p666 = pneg %p215
      %p667 = scmp.lt.s32.totalorder %s30, 1
      %s668 = scalar_select %p667, %s30, 1
      %s669 = scalar_lea.vmem %s8, %s668
      %p670 = pneg %p244
      %p671 = pneg %p241
      %p672 = scmp.lt.s32.totalorder %s30, 1
      %s673 = scalar_select %p672, %s30, 1
      %s674 = scalar_lea.vmem %s9, %s673
      %p675 = pneg %p270
      %p676 = pneg %p267
      %p677 = scmp.lt.s32.totalorder %s30, 1
      %s678 = scalar_select %p677, %s30, 1
      %s679 = scalar_lea.vmem %s10, %s678
      %p680 = pneg %p296
      %p681 = pneg %p293
      %p682 = scmp.lt.s32.totalorder %s30, 1
      %s683 = scalar_select %p682, %s30, 1
      %s684 = smul.addr %s683, 4
      %s685 = smul.addr %s684, 4
      %s686 = scalar_lea.vmem %s11, %s685
      %p687 = pneg %p322
      %p688 = pneg %p319
      %p689 = scmp.lt.s32.totalorder %s30, 1
      %s690 = scalar_select %p689, %s30, 1
      %s691 = scalar_lea.vmem %s12, %s690
      %p692 = pneg %p348
      %p693 = pneg %p345
      %p694 = scmp.lt.s32.totalorder %s30, 1
      %s695 = scalar_select %p694, %s30, 1
      %s696 = smul.addr %s695, 16
      %s697 = smul.addr %s696, 4
      %s698 = scalar_lea.vmem %s13, %s697
      %p699 = pneg %p374
      %p700 = pneg %p371
      %p701 = scmp.lt.s32.totalorder %s30, 1
      %s702 = scalar_select %p701, %s30, 1
      %s703 = scalar_lea.vmem %s14, %s702
      %p704 = pneg %p400
      %p705 = pneg %p397
      %p706 = pneg %p421
      %p707 = pneg %p418
      %p708 = pneg %p442
      %p709 = pneg %p439
      %p710 = pneg %p463
      %p711 = pneg %p460
      %p712 = pneg %p484
      %p713 = pneg %p481
      %p714 = pneg %p505
      %p715 = pneg %p502
      %p716 = scmp.lt.s32.totalorder %s30, 1
      %s717 = scalar_select %p716, %s30, 1
      %s718 = scalar_lea.vmem %s3, %s717
      %p719 = scmp.lt.s32.totalorder %s30, 1
      %s720 = scalar_select %p719, %s30, 1
      %s721 = scalar_lea.vmem %s4, %s720
      %p722 = scmp.lt.s32.totalorder %s30, 1
      %s723 = scalar_select %p722, %s30, 1
      %s724 = smul.addr %s723, 4
      %s725 = smul.addr %s724, 4
      %s726 = scalar_lea.vmem %s5, %s725
      %p727 = scmp.lt.s32.totalorder %s30, 1
      %s728 = scalar_select %p727, %s30, 1
      %s729 = scalar_lea.vmem %s6, %s728
      %p730 = scmp.lt.s32.totalorder %s30, 1
      %s731 = scalar_select %p730, %s30, 1
      %s732 = smul.addr %s731, 4
      %s733 = smul.addr %s732, 4
      %s734 = scalar_lea.vmem %s7, %s733
      %p735 = scmp.lt.s32.totalorder %s30, 1
      %s736 = scalar_select %p735, %s30, 1
      %s737 = scalar_lea.vmem %s8, %s736
      %p738 = scmp.lt.s32.totalorder %s30, 1
      %s739 = scalar_select %p738, %s30, 1
      %s740 = scalar_lea.vmem %s9, %s739
      %p741 = scmp.lt.s32.totalorder %s30, 1
      %s742 = scalar_select %p741, %s30, 1
      %s743 = scalar_lea.vmem %s10, %s742
      %p744 = scmp.lt.s32.totalorder %s30, 1
      %s745 = scalar_select %p744, %s30, 1
      %s746 = smul.addr %s745, 4
      %s747 = smul.addr %s746, 4
      %s748 = scalar_lea.vmem %s11, %s747
      %p749 = scmp.lt.s32.totalorder %s30, 1
      %s750 = scalar_select %p749, %s30, 1
      %s751 = scalar_lea.vmem %s12, %s750
      %p752 = scmp.lt.s32.totalorder %s30, 1
      %s753 = scalar_select %p752, %s30, 1
      %s754 = smul.addr %s753, 16
      %s755 = smul.addr %s754, 4
      %s756 = scalar_lea.vmem %s13, %s755
      %p757 = scmp.lt.s32.totalorder %s30, 1
      %s758 = scalar_select %p757, %s30, 1
      %s759 = scalar_lea.vmem %s14, %s758
      %p761 = scmp.eq.s32.totalorder %s30, 0
      // Predicated region
      $region97: #{_lambda_.2} parent=95 // pred_check
        %p762 = pneg %p761
      $region98: #{_lambda_.2} parent=95 // pred_check_branch
        %764 = sbr.rel (%p762) target = $region100
      $region99: #{_lambda_.2} parent=95 // pred_region
        %v765 = vld [vmem:[%s0] sm:$0xff]
        %v766 = vld [vmem:[%s0 + $0x8] sm:$0xff]
        %v767 = vpack.c.bf16 %v766, %v765
        %v768 = vld [vmem:[%s2] sm:$0xf]
        %v769 = vld [vmem:[%s2 + $0x4] sm:$0xf]
        %v770 = vld [vmem:[%s2 + $0x8] sm:$0xf]
        %v771 = vld [vmem:[%s2 + $0xc] sm:$0xf]
        %v772 = vld [vmem:[%s2 + $0x10] sm:$0xf]
        %v773 = vld [vmem:[%s2 + $0x14] sm:$0xf]
        %v774 = vld [vmem:[%s1] sm:$0xff]
        %v775 = vld [vmem:[%s1 + $0x8] sm:$0xff]
        %v782 = vunpack.c.l.b16 %v768
        %v783 = vunpack.c.l.b16 %v769
        %v784 = vunpack.c.l.b16 %v770
        %v785 = vunpack.c.l.b16 %v771
        %v786 = vunpack.c.l.b16 %v772
        %v787 = vunpack.c.l.b16 %v773
        %v788 = vpack.c.b16 %v783, %v782
        %v789 = vpack.c.b16 %v785, %v784
        %v790 = vpack.c.b16 %v787, %v786
        %vm794 = vcmask 392192
        %v796 = vsel %vm794, %v767, 0
        %798 = vmatprep.subr.bf16.mxu0 0
        %799 = vmatpush1.bf16.msra.mxu0 0
        %800 = vmatprep.subr.bf16.mxu0 0
        %801 = vmatpush1.bf16.msra.mxu0 0
        %802 = vmatprep.subr.bf16.mxu0 0
        %803 = vmatpush1.bf16.msra.mxu0 0
        %804 = vmatprep.subr.bf16.mxu0 0
        %805 = vmatpush1.bf16.msra.mxu0 0
        %806 = vmatprep.subr.bf16.mxu0 0
        %807 = vmatpush1.bf16.msra.mxu0 0
        %808 = vmatprep.subr.bf16.mxu0 0
        %809 = vmatpush1.bf16.msra.mxu0 %v790
        %810 = vmatprep.subr.bf16.mxu0 0
        %811 = vmatpush1.bf16.msra.mxu0 %v789
        %812 = vmatprep.subr.bf16.mxu0 0
        %813 = vmatpush1.bf16.msra.mxu0 %v788
        %814 = vmatprep.subr.bf16.mxu0 0
        %815 = vmatpush2.bf16.msra.mxu0 0
        %816 = vmatprep.subr.bf16.mxu0 0
        %817 = vmatpush2.bf16.msra.mxu0 0
        %818 = vmatprep.subr.bf16.mxu0 0
        %819 = vmatpush2.bf16.msra.mxu0 0
        %820 = vmatprep.subr.bf16.mxu0 0
        %821 = vmatpush2.bf16.msra.mxu0 0
        %822 = vmatprep.subr.bf16.mxu0 0
        %823 = vmatpush2.bf16.msra.mxu0 0
        %824 = vmatprep.subr.bf16.mxu0 0
        %825 = vmatpush2.bf16.msra.mxu0 0
        %826 = vmatprep.subr.bf16.mxu0 0
        %827 = vmatpush2.bf16.msra.mxu0 0
        %828 = vmatprep.subr.bf16.mxu0 0
        %829 = vmatpush2.bf16.msra.mxu0 0
        %830 = vmatprep.mubr.bf16.mxu0 0
        %831 = vmatmul.mubr.bf16.gmra.mxu0 %v796
        %v832 = vpop.f32.mrf.mxu0
        %v833 = vadd.f32 %v774, %v832
        %v834 = vpop.f32.mrf.mxu0
        %v835 = vpop.f32.mrf.mxu0
        %v836 = vadd.f32 %v775, %v835
        %v837 = vpop.f32.mrf.mxu0
        %838 = vdwg.mxu0
        %vm839 = vcmask 261120
        %840 = vst.msk [vmem:[#allocation2] sm:$0xff] %vm839, %v833
        %841 = vst.msk [vmem:[#allocation2 + $0x8] sm:$0xff] %vm839, %v836
      $region100: #{_lambda_.2} parent=95 // pred_fallthru
        _
      %v842 = vld [vmem:[#allocation2] sm:$0xff]
      %v843 = vld [vmem:[#allocation2 + $0x8] sm:$0xff]
      %v844 = vld [vmem:[%s718] sm:$0x1]
      %v845 = vld [vmem:[%s721] sm:$0x1]
      %v846 = vld [vmem:[%s726] sm:$0xf]
      %v847 = vld [vmem:[%s726 + $0x4] sm:$0xf]
      %v848 = vld [vmem:[%s726 + $0x8] sm:$0xf]
      %v849 = vld [vmem:[%s726 + $0xc] sm:$0xf]
      %v850 = vld [vmem:[%s729] sm:$0x1]
      %v851 = vld [vmem:[%s734] sm:$0xf]
      %v852 = vld [vmem:[%s734 + $0x4] sm:$0xf]
      %v853 = vld [vmem:[%s734 + $0x8] sm:$0xf]
      %v854 = vld [vmem:[%s734 + $0xc] sm:$0xf]
      %v855 = vld [vmem:[%s737] sm:$0x1]
      %v856 = vld [vmem:[%s740] sm:$0x1]
      %v857 = vld [vmem:[%s743] sm:$0x1]
      %v858 = vld [vmem:[%s748] sm:$0xf]
      %v859 = vld [vmem:[%s748 + $0x4] sm:$0xf]
      %v860 = vld [vmem:[%s748 + $0x8] sm:$0xf]
      %v861 = vld [vmem:[%s748 + $0xc] sm:$0xf]
      %v862 = vld [vmem:[%s751] sm:$0x1]
      %v863 = vld [vmem:[%s756] sm:$0xf]
      %v864 = vld [vmem:[%s756 + $0x4] sm:$0xf]
      %v865 = vld [vmem:[%s756 + $0x8] sm:$0xf]
      %v866 = vld [vmem:[%s756 + $0xc] sm:$0xf]
      %v867 = vld [vmem:[%s756 + $0x10] sm:$0xf]
      %v868 = vld [vmem:[%s756 + $0x14] sm:$0xf]
      %v869 = vld [vmem:[%s756 + $0x18] sm:$0xf]
      %v870 = vld [vmem:[%s756 + $0x1c] sm:$0xf]
      %v871 = vld [vmem:[%s756 + $0x20] sm:$0xf]
      %v872 = vld [vmem:[%s756 + $0x24] sm:$0xf]
      %v873 = vld [vmem:[%s756 + $0x28] sm:$0xf]
      %v874 = vld [vmem:[%s756 + $0x2c] sm:$0xf]
      %v875 = vld [vmem:[%s756 + $0x30] sm:$0xf]
      %v876 = vld [vmem:[%s756 + $0x34] sm:$0xf]
      %v877 = vld [vmem:[%s756 + $0x38] sm:$0xf]
      %v878 = vld [vmem:[%s756 + $0x3c] sm:$0xf]
      %v879 = vld [vmem:[%s759] sm:$0x1]
      %vm880 = vcmask 261120
      %v881 = vsel %vm880, %v842, 0.0
      %882 = vadd.xlane.f32.xlu0 %v881
      %v883 = vpop.xlane.xlu0 %882
      %v884 = vsel %vm880, %v843, 0.0
      %885 = vadd.xlane.f32.xlu0 %v884
      %v886 = vpop.xlane.xlu0 %885
      %v887 = vrcp.pop 32.0
      %v888 = vmul.f32 %v883, %v887
      %v889 = vmul.f32 %v886, %v887
      %v890 = vsub.f32 %v842, %v888
      %v891 = vsub.f32 %v843, %v889
      %v892 = vmul.f32 %v890, %v890
      %v893 = vmul.f32 %v891, %v891
      %v894 = vsel %vm880, %v892, 0.0
      %895 = vadd.xlane.f32.xlu0 %v894
      %v896 = vpop.xlane.xlu0 %895
      %v897 = vsel %vm880, %v893, 0.0
      %898 = vadd.xlane.f32.xlu0 %v897
      %v899 = vpop.xlane.xlu0 %898
      %v900 = vmul.f32 %v896, %v887
      %v901 = vmul.f32 %v899, %v887
      %v902 = vadd.f32 %v900, 1e-05
      %v903 = vadd.f32 %v901, 1e-05
      %v904 = vrsqrt.pop %v902
      %v905 = vrsqrt.pop %v903
      %v906 = vmul.f32 %v890, %v904
      %v907 = vmul.f32 %v891, %v905
      %v909 = vlaneseq
      %v910 = vshrl.u32 %v909, 7
      %v911 = vsub.s32 0, %v910
      %v912 = vrot.slane %v844, %v911
      %v914 = vmul.f32 %v906, %v912
      %v915 = vmul.f32 %v907, %v912
      %v917 = vlaneseq
      %v918 = vshrl.u32 %v917, 7
      %v919 = vsub.s32 0, %v918
      %v920 = vrot.slane %v845, %v919
      %v922 = vadd.f32 %v914, %v920
      %v923 = vadd.f32 %v915, %v920
      %v924 = vpack.c.bf16 %v923, %v922
      %v926 = vlaneseq
      %v927 = vshrl.u32 %v926, 7
      %v928 = vsub.s32 0, %v927
      %v929 = vrot.slane %v850, %v928
      %v935 = vunpack.c.l.b16 %v846
      %v936 = vunpack.c.l.b16 %v847
      %v937 = vunpack.c.l.b16 %v848
      %v938 = vunpack.c.l.b16 %v849
      %v939 = vpack.c.b16 %v936, %v935
      %v940 = vpack.c.b16 %v938, %v937
      %v944 = vsel %vm880, %v924, 0
      %946 = vmatprep.subr.bf16.mxu0 0
      %947 = vmatpush1.bf16.msra.mxu0 0
      %948 = vmatprep.subr.bf16.mxu0 0
      %949 = vmatpush1.bf16.msra.mxu0 0
      %950 = vmatprep.subr.bf16.mxu0 0
      %951 = vmatpush1.bf16.msra.mxu0 0
      %952 = vmatprep.subr.bf16.mxu0 0
      %953 = vmatpush1.bf16.msra.mxu0 0
      %954 = vmatprep.subr.bf16.mxu0 0
      %955 = vmatpush1.bf16.msra.mxu0 0
      %956 = vmatprep.subr.bf16.mxu0 0
      %957 = vmatpush1.bf16.msra.mxu0 0
      %958 = vmatprep.subr.bf16.mxu0 0
      %959 = vmatpush1.bf16.msra.mxu0 %v940
      %960 = vmatprep.subr.bf16.mxu0 0
      %961 = vmatpush1.bf16.msra.mxu0 %v939
      %962 = vmatprep.subr.bf16.mxu0 0
      %963 = vmatpush2.bf16.msra.mxu0 0
      %964 = vmatprep.subr.bf16.mxu0 0
      %965 = vmatpush2.bf16.msra.mxu0 0
      %966 = vmatprep.subr.bf16.mxu0 0
      %967 = vmatpush2.bf16.msra.mxu0 0
      %968 = vmatprep.subr.bf16.mxu0 0
      %969 = vmatpush2.bf16.msra.mxu0 0
      %970 = vmatprep.subr.bf16.mxu0 0
      %971 = vmatpush2.bf16.msra.mxu0 0
      %972 = vmatprep.subr.bf16.mxu0 0
      %973 = vmatpush2.bf16.msra.mxu0 0
      %974 = vmatprep.subr.bf16.mxu0 0
      %975 = vmatpush2.bf16.msra.mxu0 0
      %976 = vmatprep.subr.bf16.mxu0 0
      %977 = vmatpush2.bf16.msra.mxu0 0
      %978 = vmatprep.mubr.bf16.mxu0 0
      %979 = vmatmul.mubr.bf16.gmra.mxu0 %v944
      %v980 = vpop.f32.mrf.mxu0
      %v981 = vadd.f32 %v929, %v980
      %v982 = vpop.f32.mrf.mxu0
      %v983 = vpop.f32.mrf.mxu0
      %v984 = vadd.f32 %v929, %v983
      %v985 = vpop.f32.mrf.mxu0
      %986 = vdwg.mxu0
      %989 = vrot.lane.b32.xlu0 %v981, 120
      %v990 = vpop.permute.xlu0 %989
      %991 = vrot.lane.b32.xlu0 %v984, 120
      %v992 = vpop.permute.xlu0 %991
      %995 = vrot.lane.b32.xlu0 %v981, 112
      %v996 = vpop.permute.xlu0 %995
      %997 = vrot.lane.b32.xlu0 %v984, 112
      %v998 = vpop.permute.xlu0 %997
      %1001 = vrot.lane.b32.xlu0 %v981, 104
      %v1002 = vpop.permute.xlu0 %1001
      %1003 = vrot.lane.b32.xlu0 %v984, 104
      %v1004 = vpop.permute.xlu0 %1003
      %v1007 = vpack.c.bf16 %v981, %v981
      %v1008 = vpack.c.bf16 %v984, %v984
      %v1009 = vpack.c.bf16 %v990, %v990
      %v1010 = vpack.c.bf16 %v992, %v992
      %v1011 = vpack.c.bf16 %v996, %v996
      %v1012 = vpack.c.bf16 %v998, %v998
      %v1013 = vpack.c.bf16 %v1002, %v1002
      %v1014 = vpack.c.bf16 %v1004, %v1004
      %1016 = vrot.lane.b32.xlu0 %v1007, 96
      %v1017 = vpop.permute.xlu0 %1016
      %vm1018 = vcmask 64512
      %v1020 = vsel %vm1018, %v1007, 0
      %v1023 = vsel %vm1018, %v1017, 0
      %1025 = vmatprep.subr.bf16.mxu0 0
      %1026 = vmatpush1.bf16.xpose.msra.mxu0 0
      %1027 = vmatprep.subr.bf16.mxu0 0
      %1028 = vmatpush1.bf16.xpose.msra.mxu0 0
      %1029 = vmatprep.subr.bf16.mxu0 0
      %1030 = vmatpush1.bf16.xpose.msra.mxu0 0
      %1031 = vmatprep.subr.bf16.mxu0 0
      %1032 = vmatpush1.bf16.xpose.msra.mxu0 0
      %1033 = vmatprep.subr.bf16.mxu0 0
      %1034 = vmatpush1.bf16.xpose.msra.mxu0 0
      %1035 = vmatprep.subr.bf16.mxu0 0
      %1036 = vmatpush1.bf16.xpose.msra.mxu0 0
      %1037 = vmatprep.subr.bf16.mxu0 0
      %1038 = vmatpush1.bf16.xpose.msra.mxu0 0
      %1039 = vmatprep.subr.bf16.mxu0 0
      %1040 = vmatpush1.bf16.xpose.msra.mxu0 %v1023
      %1041 = vmatprep.subr.bf16.mxu0 0
      %1042 = vmatpush2.bf16.xpose.msra.mxu0 0
      %1043 = vmatprep.subr.bf16.mxu0 0
      %1044 = vmatpush2.bf16.xpose.msra.mxu0 0
      %1045 = vmatprep.subr.bf16.mxu0 0
      %1046 = vmatpush2.bf16.xpose.msra.mxu0 0
      %1047 = vmatprep.subr.bf16.mxu0 0
      %1048 = vmatpush2.bf16.xpose.msra.mxu0 0
      %1049 = vmatprep.subr.bf16.mxu0 0
      %1050 = vmatpush2.bf16.xpose.msra.mxu0 0
      %1051 = vmatprep.subr.bf16.mxu0 0
      %1052 = vmatpush2.bf16.xpose.msra.mxu0 0
      %1053 = vmatprep.subr.bf16.mxu0 0
      %1054 = vmatpush2.bf16.xpose.msra.mxu0 0
      %1055 = vmatprep.subr.bf16.mxu0 0
      %1056 = vmatpush2.bf16.xpose.msra.mxu0 0
      %1057 = vmatprep.mubr.bf16.mxu0 0
      %1058 = vmatmul.mubr.bf16.gmra.mxu0 %v1020
      %v1059 = vpop.f32.mrf.mxu0
      %v1060 = vadd.f32 0.0, %v1059
      %v1061 = vpop.f32.mrf.mxu0
      %v1062 = vpop.f32.mrf.mxu0
      %v1063 = vpop.f32.mrf.mxu0
      %1064 = vdwg.mxu0
      %1066 = vrot.lane.b32.xlu0 %v1008, 96
      %v1067 = vpop.permute.xlu0 %1066
      %v1069 = vsel %vm1018, %v1008, 0
      %v1072 = vsel %vm1018, %v1067, 0
      %1074 = vmatprep.subr.bf16.mxu0 0
      %1075 = vmatpush1.bf16.xpose.msra.mxu0 0
      %1076 = vmatprep.subr.bf16.mxu0 0
      %1077 = vmatpush1.bf16.xpose.msra.mxu0 0
      %1078 = vmatprep.subr.bf16.mxu0 0
      %1079 = vmatpush1.bf16.xpose.msra.mxu0 0
      %1080 = vmatprep.subr.bf16.mxu0 0
      %1081 = vmatpush1.bf16.xpose.msra.mxu0 0
      %1082 = vmatprep.subr.bf16.mxu0 0
      %1083 = vmatpush1.bf16.xpose.msra.mxu0 0
      %1084 = vmatprep.subr.bf16.mxu0 0
      %1085 = vmatpush1.bf16.xpose.msra.mxu0 0
      %1086 = vmatprep.subr.bf16.mxu0 0
      %1087 = vmatpush1.bf16.xpose.msra.mxu0 0
      %1088 = vmatprep.subr.bf16.mxu0 0
      %1089 = vmatpush1.bf16.xpose.msra.mxu0 %v1072
      %1090 = vmatprep.subr.bf16.mxu0 0
      %1091 = vmatpush2.bf16.xpose.msra.mxu0 0
      %1092 = vmatprep.subr.bf16.mxu0 0
      %1093 = vmatpush2.bf16.xpose.msra.mxu0 0
      %1094 = vmatprep.subr.bf16.mxu0 0
      %1095 = vmatpush2.bf16.xpose.msra.mxu0 0
      %1096 = vmatprep.subr.bf16.mxu0 0
      %1097 = vmatpush2.bf16.xpose.msra.mxu0 0
      %1098 = vmatprep.subr.bf16.mxu0 0
      %1099 = vmatpush2.bf16.xpose.msra.mxu0 0
      %1100 = vmatprep.subr.bf16.mxu0 0
      %1101 = vmatpush2.bf16.xpose.msra.mxu0 0
      %1102 = vmatprep.subr.bf16.mxu0 0
      %1103 = vmatpush2.bf16.xpose.msra.mxu0 0
      %1104 = vmatprep.subr.bf16.mxu0 0
      %1105 = vmatpush2.bf16.xpose.msra.mxu0 0
      %1106 = vmatprep.mubr.bf16.mxu0 0
      %1107 = vmatmul.mubr.bf16.gmra.mxu0 %v1069
      %v1108 = vpop.f32.mrf.mxu0
      %v1109 = vadd.f32 0.0, %v1108
      %v1110 = vpop.f32.mrf.mxu0
      %v1111 = vpop.f32.mrf.mxu0
      %v1112 = vpop.f32.mrf.mxu0
      %1113 = vdwg.mxu0
      %1115 = vrot.lane.b32.xlu0 %v1009, 96
      %v1116 = vpop.permute.xlu0 %1115
      %v1118 = vsel %vm1018, %v1009, 0
      %v1121 = vsel %vm1018, %v1116, 0
      %1123 = vmatprep.subr.bf16.mxu0 0
      %1124 = vmatpush1.bf16.xpose.msra.mxu0 0
      %1125 = vmatprep.subr.bf16.mxu0 0
      %1126 = vmatpush1.bf16.xpose.msra.mxu0 0
      %1127 = vmatprep.subr.bf16.mxu0 0
      %1128 = vmatpush1.bf16.xpose.msra.mxu0 0
      %1129 = vmatprep.subr.bf16.mxu0 0
      %1130 = vmatpush1.bf16.xpose.msra.mxu0 0
      %1131 = vmatprep.subr.bf16.mxu0 0
      %1132 = vmatpush1.bf16.xpose.msra.mxu0 0
      %1133 = vmatprep.subr.bf16.mxu0 0
      %1134 = vmatpush1.bf16.xpose.msra.mxu0 0
      %1135 = vmatprep.subr.bf16.mxu0 0
      %1136 = vmatpush1.bf16.xpose.msra.mxu0 0
      %1137 = vmatprep.subr.bf16.mxu0 0
      %1138 = vmatpush1.bf16.xpose.msra.mxu0 %v1121
      %1139 = vmatprep.subr.bf16.mxu0 0
      %1140 = vmatpush2.bf16.xpose.msra.mxu0 0
      %1141 = vmatprep.subr.bf16.mxu0 0
      %1142 = vmatpush2.bf16.xpose.msra.mxu0 0
      %1143 = vmatprep.subr.bf16.mxu0 0
      %1144 = vmatpush2.bf16.xpose.msra.mxu0 0
      %1145 = vmatprep.subr.bf16.mxu0 0
      %1146 = vmatpush2.bf16.xpose.msra.mxu0 0
      %1147 = vmatprep.subr.bf16.mxu0 0
      %1148 = vmatpush2.bf16.xpose.msra.mxu0 0
      %1149 = vmatprep.subr.bf16.mxu0 0
      %1150 = vmatpush2.bf16.xpose.msra.mxu0 0
      %1151 = vmatprep.subr.bf16.mxu0 0
      %1152 = vmatpush2.bf16.xpose.msra.mxu0 0
      %1153 = vmatprep.subr.bf16.mxu0 0
      %1154 = vmatpush2.bf16.xpose.msra.mxu0 0
      %1155 = vmatprep.mubr.bf16.mxu0 0
      %1156 = vmatmul.mubr.bf16.gmra.mxu0 %v1118
      %v1157 = vpop.f32.mrf.mxu0
      %v1158 = vadd.f32 0.0, %v1157
      %v1159 = vpop.f32.mrf.mxu0
      %v1160 = vpop.f32.mrf.mxu0
      %v1161 = vpop.f32.mrf.mxu0
      %1162 = vdwg.mxu0
      %1164 = vrot.lane.b32.xlu0 %v1010, 96
      %v1165 = vpop.permute.xlu0 %1164
      %v1167 = vsel %vm1018, %v1010, 0
      %v1170 = vsel %vm1018, %v1165, 0
      %1172 = vmatprep.subr.bf16.mxu0 0
      %1173 = vmatpush1.bf16.xpose.msra.mxu0 0
      %1174 = vmatprep.subr.bf16.mxu0 0
      %1175 = vmatpush1.bf16.xpose.msra.mxu0 0
      %1176 = vmatprep.subr.bf16.mxu0 0
      %1177 = vmatpush1.bf16.xpose.msra.mxu0 0
      %1178 = vmatprep.subr.bf16.mxu0 0
      %1179 = vmatpush1.bf16.xpose.msra.mxu0 0
      %1180 = vmatprep.subr.bf16.mxu0 0
      %1181 = vmatpush1.bf16.xpose.msra.mxu0 0
      %1182 = vmatprep.subr.bf16.mxu0 0
      %1183 = vmatpush1.bf16.xpose.msra.mxu0 0
      %1184 = vmatprep.subr.bf16.mxu0 0
      %1185 = vmatpush1.bf16.xpose.msra.mxu0 0
      %1186 = vmatprep.subr.bf16.mxu0 0
      %1187 = vmatpush1.bf16.xpose.msra.mxu0 %v1170
      %1188 = vmatprep.subr.bf16.mxu0 0
      %1189 = vmatpush2.bf16.xpose.msra.mxu0 0
      %1190 = vmatprep.subr.bf16.mxu0 0
      %1191 = vmatpush2.bf16.xpose.msra.mxu0 0
      %1192 = vmatprep.subr.bf16.mxu0 0
      %1193 = vmatpush2.bf16.xpose.msra.mxu0 0
      %1194 = vmatprep.subr.bf16.mxu0 0
      %1195 = vmatpush2.bf16.xpose.msra.mxu0 0
      %1196 = vmatprep.subr.bf16.mxu0 0
      %1197 = vmatpush2.bf16.xpose.msra.mxu0 0
      %1198 = vmatprep.subr.bf16.mxu0 0
      %1199 = vmatpush2.bf16.xpose.msra.mxu0 0
      %1200 = vmatprep.subr.bf16.mxu0 0
      %1201 = vmatpush2.bf16.xpose.msra.mxu0 0
      %1202 = vmatprep.subr.bf16.mxu0 0
      %1203 = vmatpush2.bf16.xpose.msra.mxu0 0
      %1204 = vmatprep.mubr.bf16.mxu0 0
      %1205 = vmatmul.mubr.bf16.gmra.mxu0 %v1167
      %v1206 = vpop.f32.mrf.mxu0
      %v1207 = vadd.f32 0.0, %v1206
      %v1208 = vpop.f32.mrf.mxu0
      %v1209 = vpop.f32.mrf.mxu0
      %v1210 = vpop.f32.mrf.mxu0
      %1211 = vdwg.mxu0
      %1213 = vrot.lane.b32.xlu0 %v1011, 96
      %v1214 = vpop.permute.xlu0 %1213
      %v1216 = vsel %vm1018, %v1011, 0
      %v1219 = vsel %vm1018, %v1214, 0
      %1221 = vmatprep.subr.bf16.mxu0 0
      %1222 = vmatpush1.bf16.xpose.msra.mxu0 0
      %1223 = vmatprep.subr.bf16.mxu0 0
      %1224 = vmatpush1.bf16.xpose.msra.mxu0 0
      %1225 = vmatprep.subr.bf16.mxu0 0
      %1226 = vmatpush1.bf16.xpose.msra.mxu0 0
      %1227 = vmatprep.subr.bf16.mxu0 0
      %1228 = vmatpush1.bf16.xpose.msra.mxu0 0
      %1229 = vmatprep.subr.bf16.mxu0 0
      %1230 = vmatpush1.bf16.xpose.msra.mxu0 0
      %1231 = vmatprep.subr.bf16.mxu0 0
      %1232 = vmatpush1.bf16.xpose.msra.mxu0 0
      %1233 = vmatprep.subr.bf16.mxu0 0
      %1234 = vmatpush1.bf16.xpose.msra.mxu0 0
      %1235 = vmatprep.subr.bf16.mxu0 0
      %1236 = vmatpush1.bf16.xpose.msra.mxu0 %v1219
      %1237 = vmatprep.subr.bf16.mxu0 0
      %1238 = vmatpush2.bf16.xpose.msra.mxu0 0
      %1239 = vmatprep.subr.bf16.mxu0 0
      %1240 = vmatpush2.bf16.xpose.msra.mxu0 0
      %1241 = vmatprep.subr.bf16.mxu0 0
      %1242 = vmatpush2.bf16.xpose.msra.mxu0 0
      %1243 = vmatprep.subr.bf16.mxu0 0
      %1244 = vmatpush2.bf16.xpose.msra.mxu0 0
      %1245 = vmatprep.subr.bf16.mxu0 0
      %1246 = vmatpush2.bf16.xpose.msra.mxu0 0
      %1247 = vmatprep.subr.bf16.mxu0 0
      %1248 = vmatpush2.bf16.xpose.msra.mxu0 0
      %1249 = vmatprep.subr.bf16.mxu0 0
      %1250 = vmatpush2.bf16.xpose.msra.mxu0 0
      %1251 = vmatprep.subr.bf16.mxu0 0
      %1252 = vmatpush2.bf16.xpose.msra.mxu0 0
      %1253 = vmatprep.mubr.bf16.mxu0 0
      %1254 = vmatmul.mubr.bf16.gmra.mxu0 %v1216
      %v1255 = vpop.f32.mrf.mxu0
      %v1256 = vadd.f32 0.0, %v1255
      %v1257 = vpop.f32.mrf.mxu0
      %v1258 = vpop.f32.mrf.mxu0
      %v1259 = vpop.f32.mrf.mxu0
      %1260 = vdwg.mxu0
      %1262 = vrot.lane.b32.xlu0 %v1012, 96
      %v1263 = vpop.permute.xlu0 %1262
      %v1265 = vsel %vm1018, %v1012, 0
      %v1268 = vsel %vm1018, %v1263, 0
      %1270 = vmatprep.subr.bf16.mxu0 0
      %1271 = vmatpush1.bf16.xpose.msra.mxu0 0
      %1272 = vmatprep.subr.bf16.mxu0 0
      %1273 = vmatpush1.bf16.xpose.msra.mxu0 0
      %1274 = vmatprep.subr.bf16.mxu0 0
      %1275 = vmatpush1.bf16.xpose.msra.mxu0 0
      %1276 = vmatprep.subr.bf16.mxu0 0
      %1277 = vmatpush1.bf16.xpose.msra.mxu0 0
      %1278 = vmatprep.subr.bf16.mxu0 0
      %1279 = vmatpush1.bf16.xpose.msra.mxu0 0
      %1280 = vmatprep.subr.bf16.mxu0 0
      %1281 = vmatpush1.bf16.xpose.msra.mxu0 0
      %1282 = vmatprep.subr.bf16.mxu0 0
      %1283 = vmatpush1.bf16.xpose.msra.mxu0 0
      %1284 = vmatprep.subr.bf16.mxu0 0
      %1285 = vmatpush1.bf16.xpose.msra.mxu0 %v1268
      %1286 = vmatprep.subr.bf16.mxu0 0
      %1287 = vmatpush2.bf16.xpose.msra.mxu0 0
      %1288 = vmatprep.subr.bf16.mxu0 0
      %1289 = vmatpush2.bf16.xpose.msra.mxu0 0
      %1290 = vmatprep.subr.bf16.mxu0 0
      %1291 = vmatpush2.bf16.xpose.msra.mxu0 0
      %1292 = vmatprep.subr.bf16.mxu0 0
      %1293 = vmatpush2.bf16.xpose.msra.mxu0 0
      %1294 = vmatprep.subr.bf16.mxu0 0
      %1295 = vmatpush2.bf16.xpose.msra.mxu0 0
      %1296 = vmatprep.subr.bf16.mxu0 0
      %1297 = vmatpush2.bf16.xpose.msra.mxu0 0
      %1298 = vmatprep.subr.bf16.mxu0 0
      %1299 = vmatpush2.bf16.xpose.msra.mxu0 0
      %1300 = vmatprep.subr.bf16.mxu0 0
      %1301 = vmatpush2.bf16.xpose.msra.mxu0 0
      %1302 = vmatprep.mubr.bf16.mxu0 0
      %1303 = vmatmul.mubr.bf16.gmra.mxu0 %v1265
      %v1304 = vpop.f32.mrf.mxu0
      %v1305 = vadd.f32 0.0, %v1304
      %v1306 = vpop.f32.mrf.mxu0
      %v1307 = vpop.f32.mrf.mxu0
      %v1308 = vpop.f32.mrf.mxu0
      %1309 = vdwg.mxu0
      %1311 = vrot.lane.b32.xlu0 %v1013, 96
      %v1312 = vpop.permute.xlu0 %1311
      %v1314 = vsel %vm1018, %v1013, 0
      %v1317 = vsel %vm1018, %v1312, 0
      %1319 = vmatprep.subr.bf16.mxu0 0
      %1320 = vmatpush1.bf16.xpose.msra.mxu0 0
      %1321 = vmatprep.subr.bf16.mxu0 0
      %1322 = vmatpush1.bf16.xpose.msra.mxu0 0
      %1323 = vmatprep.subr.bf16.mxu0 0
      %1324 = vmatpush1.bf16.xpose.msra.mxu0 0
      %1325 = vmatprep.subr.bf16.mxu0 0
      %1326 = vmatpush1.bf16.xpose.msra.mxu0 0
      %1327 = vmatprep.subr.bf16.mxu0 0
      %1328 = vmatpush1.bf16.xpose.msra.mxu0 0
      %1329 = vmatprep.subr.bf16.mxu0 0
      %1330 = vmatpush1.bf16.xpose.msra.mxu0 0
      %1331 = vmatprep.subr.bf16.mxu0 0
      %1332 = vmatpush1.bf16.xpose.msra.mxu0 0
      %1333 = vmatprep.subr.bf16.mxu0 0
      %1334 = vmatpush1.bf16.xpose.msra.mxu0 %v1317
      %1335 = vmatprep.subr.bf16.mxu0 0
      %1336 = vmatpush2.bf16.xpose.msra.mxu0 0
      %1337 = vmatprep.subr.bf16.mxu0 0
      %1338 = vmatpush2.bf16.xpose.msra.mxu0 0
      %1339 = vmatprep.subr.bf16.mxu0 0
      %1340 = vmatpush2.bf16.xpose.msra.mxu0 0
      %1341 = vmatprep.subr.bf16.mxu0 0
      %1342 = vmatpush2.bf16.xpose.msra.mxu0 0
      %1343 = vmatprep.subr.bf16.mxu0 0
      %1344 = vmatpush2.bf16.xpose.msra.mxu0 0
      %1345 = vmatprep.subr.bf16.mxu0 0
      %1346 = vmatpush2.bf16.xpose.msra.mxu0 0
      %1347 = vmatprep.subr.bf16.mxu0 0
      %1348 = vmatpush2.bf16.xpose.msra.mxu0 0
      %1349 = vmatprep.subr.bf16.mxu0 0
      %1350 = vmatpush2.bf16.xpose.msra.mxu0 0
      %1351 = vmatprep.mubr.bf16.mxu0 0
      %1352 = vmatmul.mubr.bf16.gmra.mxu0 %v1314
      %v1353 = vpop.f32.mrf.mxu0
      %v1354 = vadd.f32 0.0, %v1353
      %v1355 = vpop.f32.mrf.mxu0
      %v1356 = vpop.f32.mrf.mxu0
      %v1357 = vpop.f32.mrf.mxu0
      %1358 = vdwg.mxu0
      %1360 = vrot.lane.b32.xlu0 %v1014, 96
      %v1361 = vpop.permute.xlu0 %1360
      %v1363 = vsel %vm1018, %v1014, 0
      %v1366 = vsel %vm1018, %v1361, 0
      %1368 = vmatprep.subr.bf16.mxu0 0
      %1369 = vmatpush1.bf16.xpose.msra.mxu0 0
      %1370 = vmatprep.subr.bf16.mxu0 0
      %1371 = vmatpush1.bf16.xpose.msra.mxu0 0
      %1372 = vmatprep.subr.bf16.mxu0 0
      %1373 = vmatpush1.bf16.xpose.msra.mxu0 0
      %1374 = vmatprep.subr.bf16.mxu0 0
      %1375 = vmatpush1.bf16.xpose.msra.mxu0 0
      %1376 = vmatprep.subr.bf16.mxu0 0
      %1377 = vmatpush1.bf16.xpose.msra.mxu0 0
      %1378 = vmatprep.subr.bf16.mxu0 0
      %1379 = vmatpush1.bf16.xpose.msra.mxu0 0
      %1380 = vmatprep.subr.bf16.mxu0 0
      %1381 = vmatpush1.bf16.xpose.msra.mxu0 0
      %1382 = vmatprep.subr.bf16.mxu0 0
      %1383 = vmatpush1.bf16.xpose.msra.mxu0 %v1366
      %1384 = vmatprep.subr.bf16.mxu0 0
      %1385 = vmatpush2.bf16.xpose.msra.mxu0 0
      %1386 = vmatprep.subr.bf16.mxu0 0
      %1387 = vmatpush2.bf16.xpose.msra.mxu0 0
      %1388 = vmatprep.subr.bf16.mxu0 0
      %1389 = vmatpush2.bf16.xpose.msra.mxu0 0
      %1390 = vmatprep.subr.bf16.mxu0 0
      %1391 = vmatpush2.bf16.xpose.msra.mxu0 0
      %1392 = vmatprep.subr.bf16.mxu0 0
      %1393 = vmatpush2.bf16.xpose.msra.mxu0 0
      %1394 = vmatprep.subr.bf16.mxu0 0
      %1395 = vmatpush2.bf16.xpose.msra.mxu0 0
      %1396 = vmatprep.subr.bf16.mxu0 0
      %1397 = vmatpush2.bf16.xpose.msra.mxu0 0
      %1398 = vmatprep.subr.bf16.mxu0 0
      %1399 = vmatpush2.bf16.xpose.msra.mxu0 0
      %1400 = vmatprep.mubr.bf16.mxu0 0
      %1401 = vmatmul.mubr.bf16.gmra.mxu0 %v1363
      %v1402 = vpop.f32.mrf.mxu0
      %v1403 = vadd.f32 0.0, %v1402
      %v1404 = vpop.f32.mrf.mxu0
      %v1405 = vpop.f32.mrf.mxu0
      %v1406 = vpop.f32.mrf.mxu0
      %1407 = vdwg.mxu0
      %v1408 = vmul.f32 %v1060, 0.35355338
      %v1409 = vmul.f32 %v1109, 0.35355338
      %v1410 = vmul.f32 %v1158, 0.35355338
      %v1411 = vmul.f32 %v1207, 0.35355338
      %v1412 = vmul.f32 %v1256, 0.35355338
      %v1413 = vmul.f32 %v1305, 0.35355338
      %v1414 = vmul.f32 %v1354, 0.35355338
      %v1415 = vmul.f32 %v1403, 0.35355338
      %v1416 = vlaneseq
      %v1417 = vand.u32 %v1416, 127
      %vm1418 = vcmp.lt.s32.totalorder %v1417, 5
      %v1419 = vsel %vm1418, 0.0, -1e+09
      %v1420 = vadd.f32 %v1408, %v1419
      %v1421 = vadd.f32 %v1409, %v1419
      %v1422 = vadd.f32 %v1410, %v1419
      %v1423 = vadd.f32 %v1411, %v1419
      %v1424 = vadd.f32 %v1412, %v1419
      %v1425 = vadd.f32 %v1413, %v1419
      %v1426 = vadd.f32 %v1414, %v1419
      %v1427 = vadd.f32 %v1415, %v1419
      %v1428 = vsel %vm1018, %v1420, -inf
      %1429 = vmax.xlane.f32.xlu0 %v1428
      %v1430 = vpop.xlane.xlu0 %1429
      %v1431 = vsel %vm1018, %v1421, -inf
      %1432 = vmax.xlane.f32.xlu0 %v1431
      %v1433 = vpop.xlane.xlu0 %1432
      %v1434 = vsel %vm1018, %v1422, -inf
      %1435 = vmax.xlane.f32.xlu0 %v1434
      %v1436 = vpop.xlane.xlu0 %1435
      %v1437 = vsel %vm1018, %v1423, -inf
      %1438 = vmax.xlane.f32.xlu0 %v1437
      %v1439 = vpop.xlane.xlu0 %1438
      %v1440 = vsel %vm1018, %v1424, -inf
      %1441 = vmax.xlane.f32.xlu0 %v1440
      %v1442 = vpop.xlane.xlu0 %1441
      %v1443 = vsel %vm1018, %v1425, -inf
      %1444 = vmax.xlane.f32.xlu0 %v1443
      %v1445 = vpop.xlane.xlu0 %1444
      %v1446 = vsel %vm1018, %v1426, -inf
      %1447 = vmax.xlane.f32.xlu0 %v1446
      %v1448 = vpop.xlane.xlu0 %1447
      %v1449 = vsel %vm1018, %v1427, -inf
      %1450 = vmax.xlane.f32.xlu0 %v1449
      %v1451 = vpop.xlane.xlu0 %1450
      %v1452 = vsub.f32 %v1420, %v1430
      %v1453 = vsub.f32 %v1421, %v1433
      %v1454 = vsub.f32 %v1422, %v1436
      %v1455 = vsub.f32 %v1423, %v1439
      %v1456 = vsub.f32 %v1424, %v1442
      %v1457 = vsub.f32 %v1425, %v1445
      %v1458 = vsub.f32 %v1426, %v1448
      %v1459 = vsub.f32 %v1427, %v1451
      %v1460 = vmul.f32 %v1452, 1.442695
      %v1461 = vpow.pop %v1460
      %v1462 = vmul.f32 %v1453, 1.442695
      %v1463 = vpow.pop %v1462
      %v1464 = vmul.f32 %v1454, 1.442695
      %v1465 = vpow.pop %v1464
      %v1466 = vmul.f32 %v1455, 1.442695
      %v1467 = vpow.pop %v1466
      %v1468 = vmul.f32 %v1456, 1.442695
      %v1469 = vpow.pop %v1468
      %v1470 = vmul.f32 %v1457, 1.442695
      %v1471 = vpow.pop %v1470
      %v1472 = vmul.f32 %v1458, 1.442695
      %v1473 = vpow.pop %v1472
      %v1474 = vmul.f32 %v1459, 1.442695
      %v1475 = vpow.pop %v1474
      %v1476 = vsel %vm1018, %v1461, 0.0
      %1477 = vadd.xlane.f32.xlu0 %v1476
      %v1478 = vpop.xlane.xlu0 %1477
      %v1479 = vsel %vm1018, %v1463, 0.0
      %1480 = vadd.xlane.f32.xlu0 %v1479
      %v1481 = vpop.xlane.xlu0 %1480
      %v1482 = vsel %vm1018, %v1465, 0.0
      %1483 = vadd.xlane.f32.xlu0 %v1482
      %v1484 = vpop.xlane.xlu0 %1483
      %v1485 = vsel %vm1018, %v1467, 0.0
      %1486 = vadd.xlane.f32.xlu0 %v1485
      %v1487 = vpop.xlane.xlu0 %1486
      %v1488 = vsel %vm1018, %v1469, 0.0
      %1489 = vadd.xlane.f32.xlu0 %v1488
      %v1490 = vpop.xlane.xlu0 %1489
      %v1491 = vsel %vm1018, %v1471, 0.0
      %1492 = vadd.xlane.f32.xlu0 %v1491
      %v1493 = vpop.xlane.xlu0 %1492
      %v1494 = vsel %vm1018, %v1473, 0.0
      %1495 = vadd.xlane.f32.xlu0 %v1494
      %v1496 = vpop.xlane.xlu0 %1495
      %v1497 = vsel %vm1018, %v1475, 0.0
      %1498 = vadd.xlane.f32.xlu0 %v1497
      %v1499 = vpop.xlane.xlu0 %1498
      %v1500 = vrcp.pop %v1478
      %v1501 = vrcp.pop %v1481
      %v1502 = vrcp.pop %v1484
      %v1503 = vrcp.pop %v1487
      %v1504 = vrcp.pop %v1490
      %v1505 = vrcp.pop %v1493
      %v1506 = vrcp.pop %v1496
      %v1507 = vrcp.pop %v1499
      %v1508 = vmul.f32 %v1461, %v1500
      %v1509 = vmul.f32 %v1463, %v1501
      %v1510 = vmul.f32 %v1465, %v1502
      %v1511 = vmul.f32 %v1467, %v1503
      %v1512 = vmul.f32 %v1469, %v1504
      %v1513 = vmul.f32 %v1471, %v1505
      %v1514 = vmul.f32 %v1473, %v1506
      %v1515 = vmul.f32 %v1475, %v1507
      %v1516 = vpack.c.bf16 %v1508, %v1508
      %v1517 = vpack.c.bf16 %v1509, %v1509
      %v1518 = vpack.c.bf16 %v1510, %v1510
      %v1519 = vpack.c.bf16 %v1511, %v1511
      %v1520 = vpack.c.bf16 %v1512, %v1512
      %v1521 = vpack.c.bf16 %v1513, %v1513
      %v1522 = vpack.c.bf16 %v1514, %v1514
      %v1523 = vpack.c.bf16 %v1515, %v1515
      %1524 = vrot.lane.b32.xlu0 %v1007, 64
      %v1525 = vpop.permute.xlu0 %1524
      %v1527 = vsel %vm1018, %v1516, 0
      %vm1529 = vcmask 1043456
      %v1531 = vsel %vm1529, %v1525, 0
      %1533 = vmatprep.subr.bf16.mxu0 0
      %1534 = vmatpush1.bf16.msra.mxu0 0
      %1535 = vmatprep.subr.bf16.mxu0 0
      %1536 = vmatpush1.bf16.msra.mxu0 0
      %1537 = vmatprep.subr.bf16.mxu0 0
      %1538 = vmatpush1.bf16.msra.mxu0 0
      %1539 = vmatprep.subr.bf16.mxu0 0
      %1540 = vmatpush1.bf16.msra.mxu0 0
      %1541 = vmatprep.subr.bf16.mxu0 0
      %1542 = vmatpush1.bf16.msra.mxu0 0
      %1543 = vmatprep.subr.bf16.mxu0 0
      %1544 = vmatpush1.bf16.msra.mxu0 0
      %1545 = vmatprep.subr.bf16.mxu0 0
      %1546 = vmatpush1.bf16.msra.mxu0 0
      %1547 = vmatprep.subr.bf16.mxu0 0
      %1548 = vmatpush1.bf16.msra.mxu0 %v1531
      %1549 = vmatprep.subr.bf16.mxu0 0
      %1550 = vmatpush2.bf16.msra.mxu0 0
      %1551 = vmatprep.subr.bf16.mxu0 0
      %1552 = vmatpush2.bf16.msra.mxu0 0
      %1553 = vmatprep.subr.bf16.mxu0 0
      %1554 = vmatpush2.bf16.msra.mxu0 0
      %1555 = vmatprep.subr.bf16.mxu0 0
      %1556 = vmatpush2.bf16.msra.mxu0 0
      %1557 = vmatprep.subr.bf16.mxu0 0
      %1558 = vmatpush2.bf16.msra.mxu0 0
      %1559 = vmatprep.subr.bf16.mxu0 0
      %1560 = vmatpush2.bf16.msra.mxu0 0
      %1561 = vmatprep.subr.bf16.mxu0 0
      %1562 = vmatpush2.bf16.msra.mxu0 0
      %1563 = vmatprep.subr.bf16.mxu0 0
      %1564 = vmatpush2.bf16.msra.mxu0 0
      %1565 = vmatprep.mubr.bf16.mxu0 0
      %1566 = vmatmul.mubr.bf16.gmra.mxu0 %v1527
      %v1567 = vpop.f32.mrf.mxu0
      %v1568 = vadd.f32 0.0, %v1567
      %v1569 = vpop.f32.mrf.mxu0
      %v1570 = vpop.f32.mrf.mxu0
      %v1571 = vpop.f32.mrf.mxu0
      %1572 = vdwg.mxu0
      %1573 = vrot.lane.b32.xlu0 %v1008, 64
      %v1574 = vpop.permute.xlu0 %1573
      %v1576 = vsel %vm1018, %v1517, 0
      %v1579 = vsel %vm1529, %v1574, 0
      %1581 = vmatprep.subr.bf16.mxu0 0
      %1582 = vmatpush1.bf16.msra.mxu0 0
      %1583 = vmatprep.subr.bf16.mxu0 0
      %1584 = vmatpush1.bf16.msra.mxu0 0
      %1585 = vmatprep.subr.bf16.mxu0 0
      %1586 = vmatpush1.bf16.msra.mxu0 0
      %1587 = vmatprep.subr.bf16.mxu0 0
      %1588 = vmatpush1.bf16.msra.mxu0 0
      %1589 = vmatprep.subr.bf16.mxu0 0
      %1590 = vmatpush1.bf16.msra.mxu0 0
      %1591 = vmatprep.subr.bf16.mxu0 0
      %1592 = vmatpush1.bf16.msra.mxu0 0
      %1593 = vmatprep.subr.bf16.mxu0 0
      %1594 = vmatpush1.bf16.msra.mxu0 0
      %1595 = vmatprep.subr.bf16.mxu0 0
      %1596 = vmatpush1.bf16.msra.mxu0 %v1579
      %1597 = vmatprep.subr.bf16.mxu0 0
      %1598 = vmatpush2.bf16.msra.mxu0 0
      %1599 = vmatprep.subr.bf16.mxu0 0
      %1600 = vmatpush2.bf16.msra.mxu0 0
      %1601 = vmatprep.subr.bf16.mxu0 0
      %1602 = vmatpush2.bf16.msra.mxu0 0
      %1603 = vmatprep.subr.bf16.mxu0 0
      %1604 = vmatpush2.bf16.msra.mxu0 0
      %1605 = vmatprep.subr.bf16.mxu0 0
      %1606 = vmatpush2.bf16.msra.mxu0 0
      %1607 = vmatprep.subr.bf16.mxu0 0
      %1608 = vmatpush2.bf16.msra.mxu0 0
      %1609 = vmatprep.subr.bf16.mxu0 0
      %1610 = vmatpush2.bf16.msra.mxu0 0
      %1611 = vmatprep.subr.bf16.mxu0 0
      %1612 = vmatpush2.bf16.msra.mxu0 0
      %1613 = vmatprep.mubr.bf16.mxu0 0
      %1614 = vmatmul.mubr.bf16.gmra.mxu0 %v1576
      %v1615 = vpop.f32.mrf.mxu0
      %v1616 = vadd.f32 0.0, %v1615
      %v1617 = vpop.f32.mrf.mxu0
      %v1618 = vpop.f32.mrf.mxu0
      %v1619 = vpop.f32.mrf.mxu0
      %1620 = vdwg.mxu0
      %1621 = vrot.lane.b32.xlu0 %v1009, 64
      %v1622 = vpop.permute.xlu0 %1621
      %v1624 = vsel %vm1018, %v1518, 0
      %v1627 = vsel %vm1529, %v1622, 0
      %1629 = vmatprep.subr.bf16.mxu0 0
      %1630 = vmatpush1.bf16.msra.mxu0 0
      %1631 = vmatprep.subr.bf16.mxu0 0
      %1632 = vmatpush1.bf16.msra.mxu0 0
      %1633 = vmatprep.subr.bf16.mxu0 0
      %1634 = vmatpush1.bf16.msra.mxu0 0
      %1635 = vmatprep.subr.bf16.mxu0 0
      %1636 = vmatpush1.bf16.msra.mxu0 0
      %1637 = vmatprep.subr.bf16.mxu0 0
      %1638 = vmatpush1.bf16.msra.mxu0 0
      %1639 = vmatprep.subr.bf16.mxu0 0
      %1640 = vmatpush1.bf16.msra.mxu0 0
      %1641 = vmatprep.subr.bf16.mxu0 0
      %1642 = vmatpush1.bf16.msra.mxu0 0
      %1643 = vmatprep.subr.bf16.mxu0 0
      %1644 = vmatpush1.bf16.msra.mxu0 %v1627
      %1645 = vmatprep.subr.bf16.mxu0 0
      %1646 = vmatpush2.bf16.msra.mxu0 0
      %1647 = vmatprep.subr.bf16.mxu0 0
      %1648 = vmatpush2.bf16.msra.mxu0 0
      %1649 = vmatprep.subr.bf16.mxu0 0
      %1650 = vmatpush2.bf16.msra.mxu0 0
      %1651 = vmatprep.subr.bf16.mxu0 0
      %1652 = vmatpush2.bf16.msra.mxu0 0
      %1653 = vmatprep.subr.bf16.mxu0 0
      %1654 = vmatpush2.bf16.msra.mxu0 0
      %1655 = vmatprep.subr.bf16.mxu0 0
      %1656 = vmatpush2.bf16.msra.mxu0 0
      %1657 = vmatprep.subr.bf16.mxu0 0
      %1658 = vmatpush2.bf16.msra.mxu0 0
      %1659 = vmatprep.subr.bf16.mxu0 0
      %1660 = vmatpush2.bf16.msra.mxu0 0
      %1661 = vmatprep.mubr.bf16.mxu0 0
      %1662 = vmatmul.mubr.bf16.gmra.mxu0 %v1624
      %v1663 = vpop.f32.mrf.mxu0
      %v1664 = vadd.f32 0.0, %v1663
      %v1665 = vpop.f32.mrf.mxu0
      %v1666 = vpop.f32.mrf.mxu0
      %v1667 = vpop.f32.mrf.mxu0
      %1668 = vdwg.mxu0
      %1669 = vrot.lane.b32.xlu0 %v1010, 64
      %v1670 = vpop.permute.xlu0 %1669
      %v1672 = vsel %vm1018, %v1519, 0
      %v1675 = vsel %vm1529, %v1670, 0
      %1677 = vmatprep.subr.bf16.mxu0 0
      %1678 = vmatpush1.bf16.msra.mxu0 0
      %1679 = vmatprep.subr.bf16.mxu0 0
      %1680 = vmatpush1.bf16.msra.mxu0 0
      %1681 = vmatprep.subr.bf16.mxu0 0
      %1682 = vmatpush1.bf16.msra.mxu0 0
      %1683 = vmatprep.subr.bf16.mxu0 0
      %1684 = vmatpush1.bf16.msra.mxu0 0
      %1685 = vmatprep.subr.bf16.mxu0 0
      %1686 = vmatpush1.bf16.msra.mxu0 0
      %1687 = vmatprep.subr.bf16.mxu0 0
      %1688 = vmatpush1.bf16.msra.mxu0 0
      %1689 = vmatprep.subr.bf16.mxu0 0
      %1690 = vmatpush1.bf16.msra.mxu0 0
      %1691 = vmatprep.subr.bf16.mxu0 0
      %1692 = vmatpush1.bf16.msra.mxu0 %v1675
      %1693 = vmatprep.subr.bf16.mxu0 0
      %1694 = vmatpush2.bf16.msra.mxu0 0
      %1695 = vmatprep.subr.bf16.mxu0 0
      %1696 = vmatpush2.bf16.msra.mxu0 0
      %1697 = vmatprep.subr.bf16.mxu0 0
      %1698 = vmatpush2.bf16.msra.mxu0 0
      %1699 = vmatprep.subr.bf16.mxu0 0
      %1700 = vmatpush2.bf16.msra.mxu0 0
      %1701 = vmatprep.subr.bf16.mxu0 0
      %1702 = vmatpush2.bf16.msra.mxu0 0
      %1703 = vmatprep.subr.bf16.mxu0 0
      %1704 = vmatpush2.bf16.msra.mxu0 0
      %1705 = vmatprep.subr.bf16.mxu0 0
      %1706 = vmatpush2.bf16.msra.mxu0 0
      %1707 = vmatprep.subr.bf16.mxu0 0
      %1708 = vmatpush2.bf16.msra.mxu0 0
      %1709 = vmatprep.mubr.bf16.mxu0 0
      %1710 = vmatmul.mubr.bf16.gmra.mxu0 %v1672
      %v1711 = vpop.f32.mrf.mxu0
      %v1712 = vadd.f32 0.0, %v1711
      %v1713 = vpop.f32.mrf.mxu0
      %v1714 = vpop.f32.mrf.mxu0
      %v1715 = vpop.f32.mrf.mxu0
      %1716 = vdwg.mxu0
      %1717 = vrot.lane.b32.xlu0 %v1011, 64
      %v1718 = vpop.permute.xlu0 %1717
      %v1720 = vsel %vm1018, %v1520, 0
      %v1723 = vsel %vm1529, %v1718, 0
      %1725 = vmatprep.subr.bf16.mxu0 0
      %1726 = vmatpush1.bf16.msra.mxu0 0
      %1727 = vmatprep.subr.bf16.mxu0 0
      %1728 = vmatpush1.bf16.msra.mxu0 0
      %1729 = vmatprep.subr.bf16.mxu0 0
      %1730 = vmatpush1.bf16.msra.mxu0 0
      %1731 = vmatprep.subr.bf16.mxu0 0
      %1732 = vmatpush1.bf16.msra.mxu0 0
      %1733 = vmatprep.subr.bf16.mxu0 0
      %1734 = vmatpush1.bf16.msra.mxu0 0
      %1735 = vmatprep.subr.bf16.mxu0 0
      %1736 = vmatpush1.bf16.msra.mxu0 0
      %1737 = vmatprep.subr.bf16.mxu0 0
      %1738 = vmatpush1.bf16.msra.mxu0 0
      %1739 = vmatprep.subr.bf16.mxu0 0
      %1740 = vmatpush1.bf16.msra.mxu0 %v1723
      %1741 = vmatprep.subr.bf16.mxu0 0
      %1742 = vmatpush2.bf16.msra.mxu0 0
      %1743 = vmatprep.subr.bf16.mxu0 0
      %1744 = vmatpush2.bf16.msra.mxu0 0
      %1745 = vmatprep.subr.bf16.mxu0 0
      %1746 = vmatpush2.bf16.msra.mxu0 0
      %1747 = vmatprep.subr.bf16.mxu0 0
      %1748 = vmatpush2.bf16.msra.mxu0 0
      %1749 = vmatprep.subr.bf16.mxu0 0
      %1750 = vmatpush2.bf16.msra.mxu0 0
      %1751 = vmatprep.subr.bf16.mxu0 0
      %1752 = vmatpush2.bf16.msra.mxu0 0
      %1753 = vmatprep.subr.bf16.mxu0 0
      %1754 = vmatpush2.bf16.msra.mxu0 0
      %1755 = vmatprep.subr.bf16.mxu0 0
      %1756 = vmatpush2.bf16.msra.mxu0 0
      %1757 = vmatprep.mubr.bf16.mxu0 0
      %1758 = vmatmul.mubr.bf16.gmra.mxu0 %v1720
      %v1759 = vpop.f32.mrf.mxu0
      %v1760 = vadd.f32 0.0, %v1759
      %v1761 = vpop.f32.mrf.mxu0
      %v1762 = vpop.f32.mrf.mxu0
      %v1763 = vpop.f32.mrf.mxu0
      %1764 = vdwg.mxu0
      %1765 = vrot.lane.b32.xlu0 %v1012, 64
      %v1766 = vpop.permute.xlu0 %1765
      %v1768 = vsel %vm1018, %v1521, 0
      %v1771 = vsel %vm1529, %v1766, 0
      %1773 = vmatprep.subr.bf16.mxu0 0
      %1774 = vmatpush1.bf16.msra.mxu0 0
      %1775 = vmatprep.subr.bf16.mxu0 0
      %1776 = vmatpush1.bf16.msra.mxu0 0
      %1777 = vmatprep.subr.bf16.mxu0 0
      %1778 = vmatpush1.bf16.msra.mxu0 0
      %1779 = vmatprep.subr.bf16.mxu0 0
      %1780 = vmatpush1.bf16.msra.mxu0 0
      %1781 = vmatprep.subr.bf16.mxu0 0
      %1782 = vmatpush1.bf16.msra.mxu0 0
      %1783 = vmatprep.subr.bf16.mxu0 0
      %1784 = vmatpush1.bf16.msra.mxu0 0
      %1785 = vmatprep.subr.bf16.mxu0 0
      %1786 = vmatpush1.bf16.msra.mxu0 0
      %1787 = vmatprep.subr.bf16.mxu0 0
      %1788 = vmatpush1.bf16.msra.mxu0 %v1771
      %1789 = vmatprep.subr.bf16.mxu0 0
      %1790 = vmatpush2.bf16.msra.mxu0 0
      %1791 = vmatprep.subr.bf16.mxu0 0
      %1792 = vmatpush2.bf16.msra.mxu0 0
      %1793 = vmatprep.subr.bf16.mxu0 0
      %1794 = vmatpush2.bf16.msra.mxu0 0
      %1795 = vmatprep.subr.bf16.mxu0 0
      %1796 = vmatpush2.bf16.msra.mxu0 0
      %1797 = vmatprep.subr.bf16.mxu0 0
      %1798 = vmatpush2.bf16.msra.mxu0 0
      %1799 = vmatprep.subr.bf16.mxu0 0
      %1800 = vmatpush2.bf16.msra.mxu0 0
      %1801 = vmatprep.subr.bf16.mxu0 0
      %1802 = vmatpush2.bf16.msra.mxu0 0
      %1803 = vmatprep.subr.bf16.mxu0 0
      %1804 = vmatpush2.bf16.msra.mxu0 0
      %1805 = vmatprep.mubr.bf16.mxu0 0
      %1806 = vmatmul.mubr.bf16.gmra.mxu0 %v1768
      %v1807 = vpop.f32.mrf.mxu0
      %v1808 = vadd.f32 0.0, %v1807
      %v1809 = vpop.f32.mrf.mxu0
      %v1810 = vpop.f32.mrf.mxu0
      %v1811 = vpop.f32.mrf.mxu0
      %1812 = vdwg.mxu0
      %1813 = vrot.lane.b32.xlu0 %v1013, 64
      %v1814 = vpop.permute.xlu0 %1813
      %v1816 = vsel %vm1018, %v1522, 0
      %v1819 = vsel %vm1529, %v1814, 0
      %1821 = vmatprep.subr.bf16.mxu0 0
      %1822 = vmatpush1.bf16.msra.mxu0 0
      %1823 = vmatprep.subr.bf16.mxu0 0
      %1824 = vmatpush1.bf16.msra.mxu0 0
      %1825 = vmatprep.subr.bf16.mxu0 0
      %1826 = vmatpush1.bf16.msra.mxu0 0
      %1827 = vmatprep.subr.bf16.mxu0 0
      %1828 = vmatpush1.bf16.msra.mxu0 0
      %1829 = vmatprep.subr.bf16.mxu0 0
      %1830 = vmatpush1.bf16.msra.mxu0 0
      %1831 = vmatprep.subr.bf16.mxu0 0
      %1832 = vmatpush1.bf16.msra.mxu0 0
      %1833 = vmatprep.subr.bf16.mxu0 0
      %1834 = vmatpush1.bf16.msra.mxu0 0
      %1835 = vmatprep.subr.bf16.mxu0 0
      %1836 = vmatpush1.bf16.msra.mxu0 %v1819
      %1837 = vmatprep.subr.bf16.mxu0 0
      %1838 = vmatpush2.bf16.msra.mxu0 0
      %1839 = vmatprep.subr.bf16.mxu0 0
      %1840 = vmatpush2.bf16.msra.mxu0 0
      %1841 = vmatprep.subr.bf16.mxu0 0
      %1842 = vmatpush2.bf16.msra.mxu0 0
      %1843 = vmatprep.subr.bf16.mxu0 0
      %1844 = vmatpush2.bf16.msra.mxu0 0
      %1845 = vmatprep.subr.bf16.mxu0 0
      %1846 = vmatpush2.bf16.msra.mxu0 0
      %1847 = vmatprep.subr.bf16.mxu0 0
      %1848 = vmatpush2.bf16.msra.mxu0 0
      %1849 = vmatprep.subr.bf16.mxu0 0
      %1850 = vmatpush2.bf16.msra.mxu0 0
      %1851 = vmatprep.subr.bf16.mxu0 0
      %1852 = vmatpush2.bf16.msra.mxu0 0
      %1853 = vmatprep.mubr.bf16.mxu0 0
      %1854 = vmatmul.mubr.bf16.gmra.mxu0 %v1816
      %v1855 = vpop.f32.mrf.mxu0
      %v1856 = vadd.f32 0.0, %v1855
      %v1857 = vpop.f32.mrf.mxu0
      %v1858 = vpop.f32.mrf.mxu0
      %v1859 = vpop.f32.mrf.mxu0
      %1860 = vdwg.mxu0
      %1861 = vrot.lane.b32.xlu0 %v1014, 64
      %v1862 = vpop.permute.xlu0 %1861
      %v1864 = vsel %vm1018, %v1523, 0
      %v1867 = vsel %vm1529, %v1862, 0
      %1869 = vmatprep.subr.bf16.mxu0 0
      %1870 = vmatpush1.bf16.msra.mxu0 0
      %1871 = vmatprep.subr.bf16.mxu0 0
      %1872 = vmatpush1.bf16.msra.mxu0 0
      %1873 = vmatprep.subr.bf16.mxu0 0
      %1874 = vmatpush1.bf16.msra.mxu0 0
      %1875 = vmatprep.subr.bf16.mxu0 0
      %1876 = vmatpush1.bf16.msra.mxu0 0
      %1877 = vmatprep.subr.bf16.mxu0 0
      %1878 = vmatpush1.bf16.msra.mxu0 0
      %1879 = vmatprep.subr.bf16.mxu0 0
      %1880 = vmatpush1.bf16.msra.mxu0 0
      %1881 = vmatprep.subr.bf16.mxu0 0
      %1882 = vmatpush1.bf16.msra.mxu0 0
      %1883 = vmatprep.subr.bf16.mxu0 0
      %1884 = vmatpush1.bf16.msra.mxu0 %v1867
      %1885 = vmatprep.subr.bf16.mxu0 0
      %1886 = vmatpush2.bf16.msra.mxu0 0
      %1887 = vmatprep.subr.bf16.mxu0 0
      %1888 = vmatpush2.bf16.msra.mxu0 0
      %1889 = vmatprep.subr.bf16.mxu0 0
      %1890 = vmatpush2.bf16.msra.mxu0 0
      %1891 = vmatprep.subr.bf16.mxu0 0
      %1892 = vmatpush2.bf16.msra.mxu0 0
      %1893 = vmatprep.subr.bf16.mxu0 0
      %1894 = vmatpush2.bf16.msra.mxu0 0
      %1895 = vmatprep.subr.bf16.mxu0 0
      %1896 = vmatpush2.bf16.msra.mxu0 0
      %1897 = vmatprep.subr.bf16.mxu0 0
      %1898 = vmatpush2.bf16.msra.mxu0 0
      %1899 = vmatprep.subr.bf16.mxu0 0
      %1900 = vmatpush2.bf16.msra.mxu0 0
      %1901 = vmatprep.mubr.bf16.mxu0 0
      %1902 = vmatmul.mubr.bf16.gmra.mxu0 %v1864
      %v1903 = vpop.f32.mrf.mxu0
      %v1904 = vadd.f32 0.0, %v1903
      %v1905 = vpop.f32.mrf.mxu0
      %v1906 = vpop.f32.mrf.mxu0
      %v1907 = vpop.f32.mrf.mxu0
      %1908 = vdwg.mxu0
      %1911 = vrot.lane.b32.xlu0 %v1664, 8
      %v1912 = vpop.permute.xlu0 %1911
      %1913 = vrot.lane.b32.xlu0 %v1712, 8
      %v1914 = vpop.permute.xlu0 %1913
      %1919 = vrot.lane.b32.xlu0 %v1760, 16
      %v1920 = vpop.permute.xlu0 %1919
      %1921 = vrot.lane.b32.xlu0 %v1808, 16
      %v1922 = vpop.permute.xlu0 %1921
      %1927 = vrot.lane.b32.xlu0 %v1856, 24
      %v1928 = vpop.permute.xlu0 %1927
      %1929 = vrot.lane.b32.xlu0 %v1904, 24
      %v1930 = vpop.permute.xlu0 %1929
      %v1933 = vsel %vm1018, %v1568, %v1912
      %v1934 = vsel %vm1018, %v1616, %v1914
      %vm1935 = vcmask 130048
      %v1936 = vsel %vm1935, %v1933, %v1920
      %v1937 = vsel %vm1935, %v1934, %v1922
      %vm1938 = vcmask 195584
      %v1939 = vsel %vm1938, %v1936, %v1928
      %v1940 = vsel %vm1938, %v1937, %v1930
      %v1941 = vpack.c.bf16 %v1940, %v1939
      %v1943 = vlaneseq
      %v1944 = vshrl.u32 %v1943, 7
      %v1945 = vsub.s32 0, %v1944
      %v1946 = vrot.slane %v855, %v1945
      %v1952 = vunpack.c.l.b16 %v851
      %v1953 = vunpack.c.l.b16 %v852
      %v1954 = vunpack.c.l.b16 %v853
      %v1955 = vunpack.c.l.b16 %v854
      %v1956 = vpack.c.b16 %v1953, %v1952
      %v1957 = vpack.c.b16 %v1955, %v1954
      %v1961 = vsel %vm880, %v1941, 0
      %1963 = vmatprep.subr.bf16.mxu0 0
      %1964 = vmatpush1.bf16.msra.mxu0 0
      %1965 = vmatprep.subr.bf16.mxu0 0
      %1966 = vmatpush1.bf16.msra.mxu0 0
      %1967 = vmatprep.subr.bf16.mxu0 0
      %1968 = vmatpush1.bf16.msra.mxu0 0
      %1969 = vmatprep.subr.bf16.mxu0 0
      %1970 = vmatpush1.bf16.msra.mxu0 0
      %1971 = vmatprep.subr.bf16.mxu0 0
      %1972 = vmatpush1.bf16.msra.mxu0 0
      %1973 = vmatprep.subr.bf16.mxu0 0
      %1974 = vmatpush1.bf16.msra.mxu0 0
      %1975 = vmatprep.subr.bf16.mxu0 0
      %1976 = vmatpush1.bf16.msra.mxu0 %v1957
      %1977 = vmatprep.subr.bf16.mxu0 0
      %1978 = vmatpush1.bf16.msra.mxu0 %v1956
      %1979 = vmatprep.subr.bf16.mxu0 0
      %1980 = vmatpush2.bf16.msra.mxu0 0
      %1981 = vmatprep.subr.bf16.mxu0 0
      %1982 = vmatpush2.bf16.msra.mxu0 0
      %1983 = vmatprep.subr.bf16.mxu0 0
      %1984 = vmatpush2.bf16.msra.mxu0 0
      %1985 = vmatprep.subr.bf16.mxu0 0
      %1986 = vmatpush2.bf16.msra.mxu0 0
      %1987 = vmatprep.subr.bf16.mxu0 0
      %1988 = vmatpush2.bf16.msra.mxu0 0
      %1989 = vmatprep.subr.bf16.mxu0 0
      %1990 = vmatpush2.bf16.msra.mxu0 0
      %1991 = vmatprep.subr.bf16.mxu0 0
      %1992 = vmatpush2.bf16.msra.mxu0 0
      %1993 = vmatprep.subr.bf16.mxu0 0
      %1994 = vmatpush2.bf16.msra.mxu0 0
      %1995 = vmatprep.mubr.bf16.mxu0 0
      %1996 = vmatmul.mubr.bf16.gmra.mxu0 %v1961
      %v1997 = vpop.f32.mrf.mxu0
      %v1998 = vadd.f32 %v1946, %v1997
      %v1999 = vpop.f32.mrf.mxu0
      %v2000 = vpop.f32.mrf.mxu0
      %v2001 = vadd.f32 %v1946, %v2000
      %v2002 = vpop.f32.mrf.mxu0
      %2003 = vdwg.mxu0
      %v2004 = vadd.f32 %v842, %v1998
      %v2005 = vadd.f32 %v843, %v2001
      %v2006 = vsel %vm880, %v2004, 0.0
      %2007 = vadd.xlane.f32.xlu0 %v2006
      %v2008 = vpop.xlane.xlu0 %2007
      %v2009 = vsel %vm880, %v2005, 0.0
      %2010 = vadd.xlane.f32.xlu0 %v2009
      %v2011 = vpop.xlane.xlu0 %2010
      %v2012 = vmul.f32 %v2008, %v887
      %v2013 = vmul.f32 %v2011, %v887
      %v2014 = vsub.f32 %v2004, %v2012
      %v2015 = vsub.f32 %v2005, %v2013
      %v2016 = vmul.f32 %v2014, %v2014
      %v2017 = vmul.f32 %v2015, %v2015
      %v2018 = vsel %vm880, %v2016, 0.0
      %2019 = vadd.xlane.f32.xlu0 %v2018
      %v2020 = vpop.xlane.xlu0 %2019
      %v2021 = vsel %vm880, %v2017, 0.0
      %2022 = vadd.xlane.f32.xlu0 %v2021
      %v2023 = vpop.xlane.xlu0 %2022
      %v2024 = vmul.f32 %v2020, %v887
      %v2025 = vmul.f32 %v2023, %v887
      %v2026 = vadd.f32 %v2024, 1e-05
      %v2027 = vadd.f32 %v2025, 1e-05
      %v2028 = vrsqrt.pop %v2026
      %v2029 = vrsqrt.pop %v2027
      %v2030 = vmul.f32 %v2014, %v2028
      %v2031 = vmul.f32 %v2015, %v2029
      %v2033 = vlaneseq
      %v2034 = vshrl.u32 %v2033, 7
      %v2035 = vsub.s32 0, %v2034
      %v2036 = vrot.slane %v856, %v2035
      %v2038 = vmul.f32 %v2030, %v2036
      %v2039 = vmul.f32 %v2031, %v2036
      %v2041 = vlaneseq
      %v2042 = vshrl.u32 %v2041, 7
      %v2043 = vsub.s32 0, %v2042
      %v2044 = vrot.slane %v857, %v2043
      %v2046 = vadd.f32 %v2038, %v2044
      %v2047 = vadd.f32 %v2039, %v2044
      %v2048 = vpack.c.bf16 %v2047, %v2046
      %v2050 = vlaneseq
      %v2051 = vshrl.u32 %v2050, 7
      %v2052 = vsub.s32 0, %v2051
      %v2053 = vrot.slane %v862, %v2052
      %v2059 = vunpack.c.l.b16 %v858
      %v2060 = vunpack.c.l.b16 %v859
      %v2061 = vunpack.c.l.b16 %v860
      %v2062 = vunpack.c.l.b16 %v861
      %v2063 = vpack.c.b16 %v2060, %v2059
      %v2064 = vpack.c.b16 %v2062, %v2061
      %v2068 = vsel %vm880, %v2048, 0
      %2070 = vmatprep.subr.bf16.mxu0 0
      %2071 = vmatpush1.bf16.msra.mxu0 0
      %2072 = vmatprep.subr.bf16.mxu0 0
      %2073 = vmatpush1.bf16.msra.mxu0 0
      %2074 = vmatprep.subr.bf16.mxu0 0
      %2075 = vmatpush1.bf16.msra.mxu0 0
      %2076 = vmatprep.subr.bf16.mxu0 0
      %2077 = vmatpush1.bf16.msra.mxu0 0
      %2078 = vmatprep.subr.bf16.mxu0 0
      %2079 = vmatpush1.bf16.msra.mxu0 0
      %2080 = vmatprep.subr.bf16.mxu0 0
      %2081 = vmatpush1.bf16.msra.mxu0 0
      %2082 = vmatprep.subr.bf16.mxu0 0
      %2083 = vmatpush1.bf16.msra.mxu0 %v2064
      %2084 = vmatprep.subr.bf16.mxu0 0
      %2085 = vmatpush1.bf16.msra.mxu0 %v2063
      %2086 = vmatprep.subr.bf16.mxu0 0
      %2087 = vmatpush2.bf16.msra.mxu0 0
      %2088 = vmatprep.subr.bf16.mxu0 0
      %2089 = vmatpush2.bf16.msra.mxu0 0
      %2090 = vmatprep.subr.bf16.mxu0 0
      %2091 = vmatpush2.bf16.msra.mxu0 0
      %2092 = vmatprep.subr.bf16.mxu0 0
      %2093 = vmatpush2.bf16.msra.mxu0 0
      %2094 = vmatprep.subr.bf16.mxu0 0
      %2095 = vmatpush2.bf16.msra.mxu0 0
      %2096 = vmatprep.subr.bf16.mxu0 0
      %2097 = vmatpush2.bf16.msra.mxu0 0
      %2098 = vmatprep.subr.bf16.mxu0 0
      %2099 = vmatpush2.bf16.msra.mxu0 0
      %2100 = vmatprep.subr.bf16.mxu0 0
      %2101 = vmatpush2.bf16.msra.mxu0 0
      %2102 = vmatprep.mubr.bf16.mxu0 0
      %2103 = vmatmul.mubr.bf16.gmra.mxu0 %v2068
      %v2104 = vpop.f32.mrf.mxu0
      %v2105 = vadd.f32 %v2053, %v2104
      %v2106 = vpop.f32.mrf.mxu0
      %v2107 = vpop.f32.mrf.mxu0
      %v2108 = vadd.f32 %v2053, %v2107
      %v2109 = vpop.f32.mrf.mxu0
      %2110 = vdwg.mxu0
      %v2111 = vmul.f32 %v2105, 0.5
      %v2112 = vmul.f32 %v2108, 0.5
      %v2113 = vmul.f32 %v2105, 0.70710677
      %v2114 = vmul.f32 %v2108, 0.70710677
      %v2115 = verf.f32.pop %v2113
      %v2116 = verf.f32.pop %v2114
      %v2117 = vadd.f32 %v2115, 1.0
      %v2118 = vadd.f32 %v2116, 1.0
      %v2119 = vmul.f32 %v2111, %v2117
      %v2120 = vmul.f32 %v2112, %v2118
      %v2121 = vpack.c.bf16 %v2120, %v2119
      %v2123 = vlaneseq
      %v2124 = vshrl.u32 %v2123, 7
      %v2125 = vsub.s32 0, %v2124
      %v2126 = vrot.slane %v879, %v2125
      %v2144 = vunpack.c.l.b16 %v863
      %v2145 = vunpack.c.l.b16 %v864
      %v2146 = vunpack.c.l.b16 %v865
      %v2147 = vunpack.c.l.b16 %v866
      %v2148 = vunpack.c.l.b16 %v867
      %v2149 = vunpack.c.l.b16 %v868
      %v2150 = vunpack.c.l.b16 %v869
      %v2151 = vunpack.c.l.b16 %v870
      %v2152 = vunpack.c.l.b16 %v871
      %v2153 = vunpack.c.l.b16 %v872
      %v2154 = vunpack.c.l.b16 %v873
      %v2155 = vunpack.c.l.b16 %v874
      %v2156 = vunpack.c.l.b16 %v875
      %v2157 = vunpack.c.l.b16 %v876
      %v2158 = vunpack.c.l.b16 %v877
      %v2159 = vunpack.c.l.b16 %v878
      %v2160 = vpack.c.b16 %v2145, %v2144
      %v2161 = vpack.c.b16 %v2147, %v2146
      %v2162 = vpack.c.b16 %v2149, %v2148
      %v2163 = vpack.c.b16 %v2151, %v2150
      %v2164 = vpack.c.b16 %v2153, %v2152
      %v2165 = vpack.c.b16 %v2155, %v2154
      %v2166 = vpack.c.b16 %v2157, %v2156
      %v2167 = vpack.c.b16 %v2159, %v2158
      %2176 = vmatprep.subr.bf16.mxu0 0
      %2177 = vmatpush1.bf16.msra.mxu0 %v2167
      %2178 = vmatprep.subr.bf16.mxu0 0
      %2179 = vmatpush1.bf16.msra.mxu0 %v2166
      %2180 = vmatprep.subr.bf16.mxu0 0
      %2181 = vmatpush1.bf16.msra.mxu0 %v2165
      %2182 = vmatprep.subr.bf16.mxu0 0
      %2183 = vmatpush1.bf16.msra.mxu0 %v2164
      %2184 = vmatprep.subr.bf16.mxu0 0
      %2185 = vmatpush1.bf16.msra.mxu0 %v2163
      %2186 = vmatprep.subr.bf16.mxu0 0
      %2187 = vmatpush1.bf16.msra.mxu0 %v2162
      %2188 = vmatprep.subr.bf16.mxu0 0
      %2189 = vmatpush1.bf16.msra.mxu0 %v2161
      %2190 = vmatprep.subr.bf16.mxu0 0
      %2191 = vmatpush1.bf16.msra.mxu0 %v2160
      %2192 = vmatprep.subr.bf16.mxu0 0
      %2193 = vmatpush2.bf16.msra.mxu0 0
      %2194 = vmatprep.subr.bf16.mxu0 0
      %2195 = vmatpush2.bf16.msra.mxu0 0
      %2196 = vmatprep.subr.bf16.mxu0 0
      %2197 = vmatpush2.bf16.msra.mxu0 0
      %2198 = vmatprep.subr.bf16.mxu0 0
      %2199 = vmatpush2.bf16.msra.mxu0 0
      %2200 = vmatprep.subr.bf16.mxu0 0
      %2201 = vmatpush2.bf16.msra.mxu0 0
      %2202 = vmatprep.subr.bf16.mxu0 0
      %2203 = vmatpush2.bf16.msra.mxu0 0
      %2204 = vmatprep.subr.bf16.mxu0 0
      %2205 = vmatpush2.bf16.msra.mxu0 0
      %2206 = vmatprep.subr.bf16.mxu0 0
      %2207 = vmatpush2.bf16.msra.mxu0 0
      %2208 = vmatprep.mubr.bf16.mxu0 0
      %2209 = vmatmul.mubr.bf16.gmra.mxu0 %v2121
      %v2210 = vpop.f32.mrf.mxu0
      %v2211 = vadd.f32 %v2126, %v2210
      %v2212 = vpop.f32.mrf.mxu0
      %v2213 = vpop.f32.mrf.mxu0
      %v2214 = vadd.f32 %v2126, %v2213
      %v2215 = vpop.f32.mrf.mxu0
      %2216 = vdwg.mxu0
      %v2217 = vadd.f32 %v2004, %v2211
      %v2218 = vadd.f32 %v2005, %v2214
      %2219 = vst.msk [vmem:[#allocation2] sm:$0xff] %vm880, %v2217
      %2220 = vst.msk [vmem:[#allocation2 + $0x8] sm:$0xff] %vm880, %v2218
      %p2221 = scmp.eq.s32.totalorder %s30, 1
      // Predicated region
      $region101: #{_lambda_.2} parent=95 // pred_check
        %p2222 = pneg %p2221
      $region102: #{_lambda_.2} parent=95 // pred_check_branch
        %2224 = sbr.rel (%p2222) target = $region104
      $region103: #{_lambda_.2} parent=95 // pred_region
        %v2225 = vld [vmem:[%s15] sm:$0x1]
        %v2226 = vld [vmem:[%s16] sm:$0x1]
        %v2227 = vsel %vm880, %v2217, 0.0
        %2228 = vadd.xlane.f32.xlu0 %v2227
        %v2229 = vpop.xlane.xlu0 %2228
        %v2230 = vsel %vm880, %v2218, 0.0
        %2231 = vadd.xlane.f32.xlu0 %v2230
        %v2232 = vpop.xlane.xlu0 %2231
        %v2233 = vmul.f32 %v2229, %v887
        %v2234 = vmul.f32 %v2232, %v887
        %v2235 = vsub.f32 %v2217, %v2233
        %v2236 = vsub.f32 %v2218, %v2234
        %v2237 = vmul.f32 %v2235, %v2235
        %v2238 = vmul.f32 %v2236, %v2236
        %v2239 = vsel %vm880, %v2237, 0.0
        %2240 = vadd.xlane.f32.xlu0 %v2239
        %v2241 = vpop.xlane.xlu0 %2240
        %v2242 = vsel %vm880, %v2238, 0.0
        %2243 = vadd.xlane.f32.xlu0 %v2242
        %v2244 = vpop.xlane.xlu0 %2243
        %v2245 = vmul.f32 %v2241, %v887
        %v2246 = vmul.f32 %v2244, %v887
        %v2247 = vadd.f32 %v2245, 1e-05
        %v2248 = vadd.f32 %v2246, 1e-05
        %v2249 = vrsqrt.pop %v2247
        %v2250 = vrsqrt.pop %v2248
        %v2251 = vmul.f32 %v2235, %v2249
        %v2252 = vmul.f32 %v2236, %v2250
        %v2254 = vlaneseq
        %v2255 = vshrl.u32 %v2254, 7
        %v2256 = vsub.s32 0, %v2255
        %v2257 = vrot.slane %v2225, %v2256
        %v2259 = vmul.f32 %v2251, %v2257
        %v2260 = vmul.f32 %v2252, %v2257
        %v2262 = vlaneseq
        %v2263 = vshrl.u32 %v2262, 7
        %v2264 = vsub.s32 0, %v2263
        %v2265 = vrot.slane %v2226, %v2264
        %v2267 = vadd.f32 %v2259, %v2265
        %v2268 = vadd.f32 %v2260, %v2265
        %v2269 = vpack.c.bf16 %v2268, %v2267
        %v2270 = vld [vmem:[%s17] sm:$0xf]
        %v2271 = vld [vmem:[%s17 + $0x4] sm:$0xf]
        %v2272 = vld [vmem:[%s17 + $0x8] sm:$0xf]
        %v2273 = vld [vmem:[%s17 + $0xc] sm:$0xf]
        %v2274 = vld [vmem:[%s18] sm:$0x1]
        %v2276 = vlaneseq
        %v2277 = vshrl.u32 %v2276, 7
        %v2278 = vsub.s32 0, %v2277
        %v2279 = vrot.slane %v2274, %v2278
        %v2285 = vunpack.c.l.b16 %v2270
        %v2286 = vunpack.c.l.b16 %v2271
        %v2287 = vunpack.c.l.b16 %v2272
        %v2288 = vunpack.c.l.b16 %v2273
        %v2289 = vpack.c.b16 %v2286, %v2285
        %v2290 = vpack.c.b16 %v2288, %v2287
        %v2294 = vsel %vm880, %v2269, 0
        %2296 = vmatprep.subr.bf16.mxu0 0
        %2297 = vmatpush1.bf16.msra.mxu0 0
        %2298 = vmatprep.subr.bf16.mxu0 0
        %2299 = vmatpush1.bf16.msra.mxu0 0
        %2300 = vmatprep.subr.bf16.mxu0 0
        %2301 = vmatpush1.bf16.msra.mxu0 0
        %2302 = vmatprep.subr.bf16.mxu0 0
        %2303 = vmatpush1.bf16.msra.mxu0 0
        %2304 = vmatprep.subr.bf16.mxu0 0
        %2305 = vmatpush1.bf16.msra.mxu0 0
        %2306 = vmatprep.subr.bf16.mxu0 0
        %2307 = vmatpush1.bf16.msra.mxu0 0
        %2308 = vmatprep.subr.bf16.mxu0 0
        %2309 = vmatpush1.bf16.msra.mxu0 %v2290
        %2310 = vmatprep.subr.bf16.mxu0 0
        %2311 = vmatpush1.bf16.msra.mxu0 %v2289
        %2312 = vmatprep.subr.bf16.mxu0 0
        %2313 = vmatpush2.bf16.msra.mxu0 0
        %2314 = vmatprep.subr.bf16.mxu0 0
        %2315 = vmatpush2.bf16.msra.mxu0 0
        %2316 = vmatprep.subr.bf16.mxu0 0
        %2317 = vmatpush2.bf16.msra.mxu0 0
        %2318 = vmatprep.subr.bf16.mxu0 0
        %2319 = vmatpush2.bf16.msra.mxu0 0
        %2320 = vmatprep.subr.bf16.mxu0 0
        %2321 = vmatpush2.bf16.msra.mxu0 0
        %2322 = vmatprep.subr.bf16.mxu0 0
        %2323 = vmatpush2.bf16.msra.mxu0 0
        %2324 = vmatprep.subr.bf16.mxu0 0
        %2325 = vmatpush2.bf16.msra.mxu0 0
        %2326 = vmatprep.subr.bf16.mxu0 0
        %2327 = vmatpush2.bf16.msra.mxu0 0
        %2328 = vmatprep.mubr.bf16.mxu0 0
        %2329 = vmatmul.mubr.bf16.gmra.mxu0 %v2294
        %v2330 = vpop.f32.mrf.mxu0
        %v2331 = vadd.f32 %v2279, %v2330
        %v2332 = vpop.f32.mrf.mxu0
        %v2333 = vpop.f32.mrf.mxu0
        %v2334 = vadd.f32 %v2279, %v2333
        %v2335 = vpop.f32.mrf.mxu0
        %2336 = vdwg.mxu0
        %2337 = vst [vmem:[%s19] sm:$0xff] %v2331
        %2338 = vst [vmem:[%s19 + $0x8] sm:$0xff] %v2334
      $region104: #{_lambda_.2} parent=95 // pred_fallthru
        _
      // Predicated region
      $region105: #{_lambda_.2} parent=95 // pred_check
        %p2339 = pneg %p502
      $region106: #{_lambda_.2} parent=95 // pred_check_branch
        %2341 = sbr.rel (%p2339) target = $region108
      $region107: #{_lambda_.2} parent=95 // pred_region
        _
      $region108: #{_lambda_.2} parent=95 // pred_fallthru
        _
      // Predicated region
      $region109: #{_lambda_.2} parent=95 // pred_check
        %p2342 = pneg %p502
      $region110: #{_lambda_.2} parent=95 // pred_check_branch
        %2344 = sbr.rel (%p2342) target = $region112
      $region111: #{_lambda_.2} parent=95 // pred_region
        _
      $region112: #{_lambda_.2} parent=95 // pred_fallthru
        _
    $region96: #{_lambda_.2} parent=5 // pred_fallthru
      _
    %p2345 = scmp.le.s32.totalorder 2, %s25
    // Predicated region
    $region113: #{_lambda_.2} parent=5 // pred_check
      %p2346 = pneg %p2345
    $region114: #{_lambda_.2} parent=5 // pred_check_branch
      %2348 = sbr.rel (%p2346) target = $region116
    $region115: #{_lambda_.2} parent=5 // pred_region
      %s2349 = ssub.s32 %s25, 2
    $region116: #{_lambda_.2} parent=5 // pred_fallthru
      _
  $region6: #{_lambda_.2} parent=0 // loop_footer
    %s29 = sadd.s32 1, %s25
  $region7: #{_lambda_.2} parent=0 // loop_footer_branch
    %24 = sbr.rel target = $region3
  $region8: #{_lambda_.2} parent=0 // loop_exit
    _

// kernel: _lambda_.3
$region0: #{_lambda_.3}
  #allocation0 [shape = 'u32[]', space=smem, size = 0x4, offset = 0x4, fixed_abs, tag = 'smem constant byte address 0x4 - core index']
  #allocation1 [shape = 'u32[144,128]{1,0:T(1,128)}', space=vmem, size = 0x12000, scoped, tag = 'internal scratch']
  #allocation2 [shape = 'f32[48,32]{1,0:T(8,128)}', space=vmem, size = 0x6000, scoped, tag = 'scratch operand']
  %s0 = inlined_call_operand.vmem [shape: f32[48,32], index: 0, kind: input, shape index: {}]
  %s1 = inlined_call_operand.vmem [shape: f32[48,128], index: 1, kind: input, shape index: {}]
  %s2 = inlined_call_operand.vmem [shape: f32[48,1], index: 2, kind: input, shape index: {}]
  %s3 = inlined_call_operand.vmem [shape: f32[2,1,32], index: 3, kind: input, shape index: {}]
  %s4 = inlined_call_operand.vmem [shape: f32[2,1,32], index: 4, kind: input, shape index: {}]
  %s5 = inlined_call_operand.vmem [shape: bf16[2,32,96], index: 5, kind: input, shape index: {}]
  %s6 = inlined_call_operand.vmem [shape: f32[2,1,96], index: 6, kind: input, shape index: {}]
  %s7 = inlined_call_operand.vmem [shape: bf16[2,32,32], index: 7, kind: input, shape index: {}]
  %s8 = inlined_call_operand.vmem [shape: f32[2,1,32], index: 8, kind: input, shape index: {}]
  %s9 = inlined_call_operand.vmem [shape: f32[2,1,32], index: 9, kind: input, shape index: {}]
  %s10 = inlined_call_operand.vmem [shape: f32[2,1,32], index: 10, kind: input, shape index: {}]
  %s11 = inlined_call_operand.vmem [shape: bf16[2,32,128], index: 11, kind: input, shape index: {}]
  %s12 = inlined_call_operand.vmem [shape: f32[2,1,128], index: 12, kind: input, shape index: {}]
  %s13 = inlined_call_operand.vmem [shape: bf16[2,128,32], index: 13, kind: input, shape index: {}]
  %s14 = inlined_call_operand.vmem [shape: f32[2,1,32], index: 14, kind: input, shape index: {}]
  %s15 = inlined_call_operand.vmem [shape: f32[1,32], index: 15, kind: input, shape index: {}]
  %s16 = inlined_call_operand.vmem [shape: f32[1,32], index: 16, kind: input, shape index: {}]
  %s17 = inlined_call_operand.vmem [shape: bf16[32,128], index: 17, kind: input, shape index: {}]
  %s18 = inlined_call_operand.vmem [shape: f32[1,128], index: 18, kind: input, shape index: {}]
  %s19 = inlined_call_operand.vmem [shape: f32[48,128], index: 19, kind: output, shape index: {0}]
  %s20 = inlined_call_operand.hbm [shape: f32[1,1], index: 20, kind: output, shape index: {1}]
  %21 = xla_tuple %s19, %s20
  %s22 = sld [smem:[#allocation0]]
  $region125: #{_lambda_.3} parent=0
    _
  %s24 = ssub.s32 1, %s22
  %s25 = scalar_select 0, %s24, %s22
  $region1: #{_lambda_.3} parent=0
    #allocation3 [shape = 'u8[512]{0}', space=smem, size = 0x200, scoped, tag = 'output window, operand 1, single buffered']
    #allocation4 [shape = 's32[2]{0}', space=sflag, size = 0x8, scoped, tag = 'scoped memory for _lambda_.3']
    %26 = vsyncpa [#allocation4], 0
    loop: start=0, step=1, limit=4
    $region2: #{_lambda_.3} parent=1 // loop_pre_header
      _
    $region3: #{_lambda_.3} parent=1 // loop_header
      %s28 = sphi 0, %s32
      %p29 = scmp.ge.s32.totalorder %s28, 4
      %s36 = sphi 0, %s36
      %s38 = sphi 0, %s36
      %s39 = sphi 0, %s38
      %s53 = sphi 0, %s39
      %s57 = sphi 0, %s57
      %s59 = sphi 0, %s57
      %s60 = sphi 0, %s59
      %s74 = sphi 0, %s60
      %s78 = sphi 0, %s78
      %s80 = sphi 0, %s78
      %s81 = sphi 0, %s80
      %s95 = sphi 0, %s81
      %s101 = sphi 0, %s103
      %s104 = sphi 0, %s101
      %s105 = sphi 0, %s104
      %s121 = sphi 0, %s105
      %s127 = sphi 0, %s129
      %s130 = sphi 0, %s127
      %s131 = sphi 0, %s130
      %s147 = sphi 0, %s131
      %s153 = sphi 0, %s155
      %s156 = sphi 0, %s153
      %s157 = sphi 0, %s156
      %s173 = sphi 0, %s157
      %s179 = sphi 0, %s181
      %s182 = sphi 0, %s179
      %s183 = sphi 0, %s182
      %s199 = sphi 0, %s183
      %s205 = sphi 0, %s207
      %s208 = sphi 0, %s205
      %s209 = sphi 0, %s208
      %s225 = sphi 0, %s209
      %s231 = sphi 0, %s233
      %s234 = sphi 0, %s231
      %s235 = sphi 0, %s234
      %s251 = sphi 0, %s235
      %s257 = sphi 0, %s259
      %s260 = sphi 0, %s257
      %s261 = sphi 0, %s260
      %s277 = sphi 0, %s261
      %s283 = sphi 0, %s285
      %s286 = sphi 0, %s283
      %s287 = sphi 0, %s286
      %s303 = sphi 0, %s287
      %s309 = sphi 0, %s311
      %s312 = sphi 0, %s309
      %s313 = sphi 0, %s312
      %s329 = sphi 0, %s313
      %s335 = sphi 0, %s337
      %s338 = sphi 0, %s335
      %s339 = sphi 0, %s338
      %s355 = sphi 0, %s339
      %s361 = sphi 0, %s363
      %s364 = sphi 0, %s361
      %s365 = sphi 0, %s364
      %s381 = sphi 0, %s365
      %s387 = sphi 0, %s389
      %s390 = sphi 0, %s387
      %s391 = sphi 0, %s390
      %s407 = sphi 0, %s391
      %s411 = sphi 0, %s411
      %s413 = sphi 0, %s411
      %s414 = sphi 0, %s413
      %s428 = sphi 0, %s414
      %s432 = sphi 0, %s432
      %s434 = sphi 0, %s432
      %s435 = sphi 0, %s434
      %s449 = sphi 0, %s435
      %s453 = sphi 0, %s453
      %s455 = sphi 0, %s453
      %s456 = sphi 0, %s455
      %s470 = sphi 0, %s456
      %s474 = sphi 0, %s474
      %s476 = sphi 0, %s474
      %s477 = sphi 0, %s476
      %s491 = sphi 0, %s477
      %s495 = sphi 0, %s495
      %s497 = sphi 0, %s495
      %s498 = sphi 0, %s497
      %s512 = sphi 0, %s498
      %s516 = sphi 0, %s516
      %s518 = sphi 0, %s516
      %s519 = sphi 0, %s518
      %s533 = sphi 0, %s519
    $region4: #{_lambda_.3} parent=1 // loop_header_branch
      %31 = sbr.rel (%p29) target = $region8
    $region5: #{_lambda_.3} parent=1 // loop_body
      %s33 = ssub.s32 %s28, 1
      %s34 = ssub.s32 %s28, 2
      %s35 = sadd.s32 %s28, 1
      %s37 = sadd.s32 %s36, 1
      %p40 = scmp.eq.s32.totalorder %s28, 1
      %p41 = scmp.ne.s32.totalorder %s36, %s38
      %p42 = scmp.eq.s32.totalorder %s28, 0
      %p43 = por %p41, %p42
      %p44 = scmp.ne.s32.totalorder %s36, %s38
      %p45 = scmp.eq.s32.totalorder %s33, 1
      %p46 = por %p44, %p45
      %p47 = scmp.ne.s32.totalorder %s38, %s39
      %p48 = scmp.eq.s32.totalorder %s33, 0
      %p49 = por %p47, %p48
      %p50 = scmp.ne.s32.totalorder %s38, %s39
      %p51 = scmp.eq.s32.totalorder %s34, 1
      %p52 = por %p50, %p51
      %p54 = scmp.ne.s32.totalorder %s39, %s53
      %p55 = scmp.eq.s32.totalorder %s34, 0
      %p56 = por %p54, %p55
      %s58 = sadd.s32 %s57, 1
      %p61 = scmp.eq.s32.totalorder %s28, 1
      %p62 = scmp.ne.s32.totalorder %s57, %s59
      %p63 = scmp.eq.s32.totalorder %s28, 0
      %p64 = por %p62, %p63
      %p65 = scmp.ne.s32.totalorder %s57, %s59
      %p66 = scmp.eq.s32.totalorder %s33, 1
      %p67 = por %p65, %p66
      %p68 = scmp.ne.s32.totalorder %s59, %s60
      %p69 = scmp.eq.s32.totalorder %s33, 0
      %p70 = por %p68, %p69
      %p71 = scmp.ne.s32.totalorder %s59, %s60
      %p72 = scmp.eq.s32.totalorder %s34, 1
      %p73 = por %p71, %p72
      %p75 = scmp.ne.s32.totalorder %s60, %s74
      %p76 = scmp.eq.s32.totalorder %s34, 0
      %p77 = por %p75, %p76
      %s79 = sadd.s32 %s78, 1
      %p82 = scmp.eq.s32.totalorder %s28, 1
      %p83 = scmp.ne.s32.totalorder %s78, %s80
      %p84 = scmp.eq.s32.totalorder %s28, 0
      %p85 = por %p83, %p84
      %p86 = scmp.ne.s32.totalorder %s78, %s80
      %p87 = scmp.eq.s32.totalorder %s33, 1
      %p88 = por %p86, %p87
      %p89 = scmp.ne.s32.totalorder %s80, %s81
      %p90 = scmp.eq.s32.totalorder %s33, 0
      %p91 = por %p89, %p90
      %p92 = scmp.ne.s32.totalorder %s80, %s81
      %p93 = scmp.eq.s32.totalorder %s34, 1
      %p94 = por %p92, %p93
      %p96 = scmp.ne.s32.totalorder %s81, %s95
      %p97 = scmp.eq.s32.totalorder %s34, 0
      %p98 = por %p96, %p97
      %s99 = ssub.s32 %s28, %s35
      %p100 = scmp.eq.s32.totalorder %s99, 0
      %s102 = sadd.s32 %s101, 1
      %s103 = scalar_select %p100, %s101, %s102
      %p106 = pneg %p100
      %p107 = scmp.eq.s32.totalorder %s28, 1
      %p108 = por %p106, %p107
      %p109 = scmp.ne.s32.totalorder %s101, %s104
      %p110 = scmp.eq.s32.totalorder %s28, 0
      %p111 = por %p109, %p110
      %p112 = scmp.ne.s32.totalorder %s101, %s104
      %p113 = scmp.eq.s32.totalorder %s33, 1
      %p114 = por %p112, %p113
      %p115 = scmp.ne.s32.totalorder %s104, %s105
      %p116 = scmp.eq.s32.totalorder %s33, 0
      %p117 = por %p115, %p116
      %p118 = scmp.ne.s32.totalorder %s104, %s105
      %p119 = scmp.eq.s32.totalorder %s34, 1
      %p120 = por %p118, %p119
      %p122 = scmp.ne.s32.totalorder %s105, %s121
      %p123 = scmp.eq.s32.totalorder %s34, 0
      %p124 = por %p122, %p123
      %s125 = ssub.s32 %s28, %s35
      %p126 = scmp.eq.s32.totalorder %s125, 0
      %s128 = sadd.s32 %s127, 1
      %s129 = scalar_select %p126, %s127, %s128
      %p132 = pneg %p126
      %p133 = scmp.eq.s32.totalorder %s28, 1
      %p134 = por %p132, %p133
      %p135 = scmp.ne.s32.totalorder %s127, %s130
      %p136 = scmp.eq.s32.totalorder %s28, 0
      %p137 = por %p135, %p136
      %p138 = scmp.ne.s32.totalorder %s127, %s130
      %p139 = scmp.eq.s32.totalorder %s33, 1
      %p140 = por %p138, %p139
      %p141 = scmp.ne.s32.totalorder %s130, %s131
      %p142 = scmp.eq.s32.totalorder %s33, 0
      %p143 = por %p141, %p142
      %p144 = scmp.ne.s32.totalorder %s130, %s131
      %p145 = scmp.eq.s32.totalorder %s34, 1
      %p146 = por %p144, %p145
      %p148 = scmp.ne.s32.totalorder %s131, %s147
      %p149 = scmp.eq.s32.totalorder %s34, 0
      %p150 = por %p148, %p149
      %s151 = ssub.s32 %s28, %s35
      %p152 = scmp.eq.s32.totalorder %s151, 0
      %s154 = sadd.s32 %s153, 1
      %s155 = scalar_select %p152, %s153, %s154
      %p158 = pneg %p152
      %p159 = scmp.eq.s32.totalorder %s28, 1
      %p160 = por %p158, %p159
      %p161 = scmp.ne.s32.totalorder %s153, %s156
      %p162 = scmp.eq.s32.totalorder %s28, 0
      %p163 = por %p161, %p162
      %p164 = scmp.ne.s32.totalorder %s153, %s156
      %p165 = scmp.eq.s32.totalorder %s33, 1
      %p166 = por %p164, %p165
      %p167 = scmp.ne.s32.totalorder %s156, %s157
      %p168 = scmp.eq.s32.totalorder %s33, 0
      %p169 = por %p167, %p168
      %p170 = scmp.ne.s32.totalorder %s156, %s157
      %p171 = scmp.eq.s32.totalorder %s34, 1
      %p172 = por %p170, %p171
      %p174 = scmp.ne.s32.totalorder %s157, %s173
      %p175 = scmp.eq.s32.totalorder %s34, 0
      %p176 = por %p174, %p175
      %s177 = ssub.s32 %s28, %s35
      %p178 = scmp.eq.s32.totalorder %s177, 0
      %s180 = sadd.s32 %s179, 1
      %s181 = scalar_select %p178, %s179, %s180
      %p184 = pneg %p178
      %p185 = scmp.eq.s32.totalorder %s28, 1
      %p186 = por %p184, %p185
      %p187 = scmp.ne.s32.totalorder %s179, %s182
      %p188 = scmp.eq.s32.totalorder %s28, 0
      %p189 = por %p187, %p188
      %p190 = scmp.ne.s32.totalorder %s179, %s182
      %p191 = scmp.eq.s32.totalorder %s33, 1
      %p192 = por %p190, %p191
      %p193 = scmp.ne.s32.totalorder %s182, %s183
      %p194 = scmp.eq.s32.totalorder %s33, 0
      %p195 = por %p193, %p194
      %p196 = scmp.ne.s32.totalorder %s182, %s183
      %p197 = scmp.eq.s32.totalorder %s34, 1
      %p198 = por %p196, %p197
      %p200 = scmp.ne.s32.totalorder %s183, %s199
      %p201 = scmp.eq.s32.totalorder %s34, 0
      %p202 = por %p200, %p201
      %s203 = ssub.s32 %s28, %s35
      %p204 = scmp.eq.s32.totalorder %s203, 0
      %s206 = sadd.s32 %s205, 1
      %s207 = scalar_select %p204, %s205, %s206
      %p210 = pneg %p204
      %p211 = scmp.eq.s32.totalorder %s28, 1
      %p212 = por %p210, %p211
      %p213 = scmp.ne.s32.totalorder %s205, %s208
      %p214 = scmp.eq.s32.totalorder %s28, 0
      %p215 = por %p213, %p214
      %p216 = scmp.ne.s32.totalorder %s205, %s208
      %p217 = scmp.eq.s32.totalorder %s33, 1
      %p218 = por %p216, %p217
      %p219 = scmp.ne.s32.totalorder %s208, %s209
      %p220 = scmp.eq.s32.totalorder %s33, 0
      %p221 = por %p219, %p220
      %p222 = scmp.ne.s32.totalorder %s208, %s209
      %p223 = scmp.eq.s32.totalorder %s34, 1
      %p224 = por %p222, %p223
      %p226 = scmp.ne.s32.totalorder %s209, %s225
      %p227 = scmp.eq.s32.totalorder %s34, 0
      %p228 = por %p226, %p227
      %s229 = ssub.s32 %s28, %s35
      %p230 = scmp.eq.s32.totalorder %s229, 0
      %s232 = sadd.s32 %s231, 1
      %s233 = scalar_select %p230, %s231, %s232
      %p236 = pneg %p230
      %p237 = scmp.eq.s32.totalorder %s28, 1
      %p238 = por %p236, %p237
      %p239 = scmp.ne.s32.totalorder %s231, %s234
      %p240 = scmp.eq.s32.totalorder %s28, 0
      %p241 = por %p239, %p240
      %p242 = scmp.ne.s32.totalorder %s231, %s234
      %p243 = scmp.eq.s32.totalorder %s33, 1
      %p244 = por %p242, %p243
      %p245 = scmp.ne.s32.totalorder %s234, %s235
      %p246 = scmp.eq.s32.totalorder %s33, 0
      %p247 = por %p245, %p246
      %p248 = scmp.ne.s32.totalorder %s234, %s235
      %p249 = scmp.eq.s32.totalorder %s34, 1
      %p250 = por %p248, %p249
      %p252 = scmp.ne.s32.totalorder %s235, %s251
      %p253 = scmp.eq.s32.totalorder %s34, 0
      %p254 = por %p252, %p253
      %s255 = ssub.s32 %s28, %s35
      %p256 = scmp.eq.s32.totalorder %s255, 0
      %s258 = sadd.s32 %s257, 1
      %s259 = scalar_select %p256, %s257, %s258
      %p262 = pneg %p256
      %p263 = scmp.eq.s32.totalorder %s28, 1
      %p264 = por %p262, %p263
      %p265 = scmp.ne.s32.totalorder %s257, %s260
      %p266 = scmp.eq.s32.totalorder %s28, 0
      %p267 = por %p265, %p266
      %p268 = scmp.ne.s32.totalorder %s257, %s260
      %p269 = scmp.eq.s32.totalorder %s33, 1
      %p270 = por %p268, %p269
      %p271 = scmp.ne.s32.totalorder %s260, %s261
      %p272 = scmp.eq.s32.totalorder %s33, 0
      %p273 = por %p271, %p272
      %p274 = scmp.ne.s32.totalorder %s260, %s261
      %p275 = scmp.eq.s32.totalorder %s34, 1
      %p276 = por %p274, %p275
      %p278 = scmp.ne.s32.totalorder %s261, %s277
      %p279 = scmp.eq.s32.totalorder %s34, 0
      %p280 = por %p278, %p279
      %s281 = ssub.s32 %s28, %s35
      %p282 = scmp.eq.s32.totalorder %s281, 0
      %s284 = sadd.s32 %s283, 1
      %s285 = scalar_select %p282, %s283, %s284
      %p288 = pneg %p282
      %p289 = scmp.eq.s32.totalorder %s28, 1
      %p290 = por %p288, %p289
      %p291 = scmp.ne.s32.totalorder %s283, %s286
      %p292 = scmp.eq.s32.totalorder %s28, 0
      %p293 = por %p291, %p292
      %p294 = scmp.ne.s32.totalorder %s283, %s286
      %p295 = scmp.eq.s32.totalorder %s33, 1
      %p296 = por %p294, %p295
      %p297 = scmp.ne.s32.totalorder %s286, %s287
      %p298 = scmp.eq.s32.totalorder %s33, 0
      %p299 = por %p297, %p298
      %p300 = scmp.ne.s32.totalorder %s286, %s287
      %p301 = scmp.eq.s32.totalorder %s34, 1
      %p302 = por %p300, %p301
      %p304 = scmp.ne.s32.totalorder %s287, %s303
      %p305 = scmp.eq.s32.totalorder %s34, 0
      %p306 = por %p304, %p305
      %s307 = ssub.s32 %s28, %s35
      %p308 = scmp.eq.s32.totalorder %s307, 0
      %s310 = sadd.s32 %s309, 1
      %s311 = scalar_select %p308, %s309, %s310
      %p314 = pneg %p308
      %p315 = scmp.eq.s32.totalorder %s28, 1
      %p316 = por %p314, %p315
      %p317 = scmp.ne.s32.totalorder %s309, %s312
      %p318 = scmp.eq.s32.totalorder %s28, 0
      %p319 = por %p317, %p318
      %p320 = scmp.ne.s32.totalorder %s309, %s312
      %p321 = scmp.eq.s32.totalorder %s33, 1
      %p322 = por %p320, %p321
      %p323 = scmp.ne.s32.totalorder %s312, %s313
      %p324 = scmp.eq.s32.totalorder %s33, 0
      %p325 = por %p323, %p324
      %p326 = scmp.ne.s32.totalorder %s312, %s313
      %p327 = scmp.eq.s32.totalorder %s34, 1
      %p328 = por %p326, %p327
      %p330 = scmp.ne.s32.totalorder %s313, %s329
      %p331 = scmp.eq.s32.totalorder %s34, 0
      %p332 = por %p330, %p331
      %s333 = ssub.s32 %s28, %s35
      %p334 = scmp.eq.s32.totalorder %s333, 0
      %s336 = sadd.s32 %s335, 1
      %s337 = scalar_select %p334, %s335, %s336
      %p340 = pneg %p334
      %p341 = scmp.eq.s32.totalorder %s28, 1
      %p342 = por %p340, %p341
      %p343 = scmp.ne.s32.totalorder %s335, %s338
      %p344 = scmp.eq.s32.totalorder %s28, 0
      %p345 = por %p343, %p344
      %p346 = scmp.ne.s32.totalorder %s335, %s338
      %p347 = scmp.eq.s32.totalorder %s33, 1
      %p348 = por %p346, %p347
      %p349 = scmp.ne.s32.totalorder %s338, %s339
      %p350 = scmp.eq.s32.totalorder %s33, 0
      %p351 = por %p349, %p350
      %p352 = scmp.ne.s32.totalorder %s338, %s339
      %p353 = scmp.eq.s32.totalorder %s34, 1
      %p354 = por %p352, %p353
      %p356 = scmp.ne.s32.totalorder %s339, %s355
      %p357 = scmp.eq.s32.totalorder %s34, 0
      %p358 = por %p356, %p357
      %s359 = ssub.s32 %s28, %s35
      %p360 = scmp.eq.s32.totalorder %s359, 0
      %s362 = sadd.s32 %s361, 1
      %s363 = scalar_select %p360, %s361, %s362
      %p366 = pneg %p360
      %p367 = scmp.eq.s32.totalorder %s28, 1
      %p368 = por %p366, %p367
      %p369 = scmp.ne.s32.totalorder %s361, %s364
      %p370 = scmp.eq.s32.totalorder %s28, 0
      %p371 = por %p369, %p370
      %p372 = scmp.ne.s32.totalorder %s361, %s364
      %p373 = scmp.eq.s32.totalorder %s33, 1
      %p374 = por %p372, %p373
      %p375 = scmp.ne.s32.totalorder %s364, %s365
      %p376 = scmp.eq.s32.totalorder %s33, 0
      %p377 = por %p375, %p376
      %p378 = scmp.ne.s32.totalorder %s364, %s365
      %p379 = scmp.eq.s32.totalorder %s34, 1
      %p380 = por %p378, %p379
      %p382 = scmp.ne.s32.totalorder %s365, %s381
      %p383 = scmp.eq.s32.totalorder %s34, 0
      %p384 = por %p382, %p383
      %s385 = ssub.s32 %s28, %s35
      %p386 = scmp.eq.s32.totalorder %s385, 0
      %s388 = sadd.s32 %s387, 1
      %s389 = scalar_select %p386, %s387, %s388
      %p392 = pneg %p386
      %p393 = scmp.eq.s32.totalorder %s28, 1
      %p394 = por %p392, %p393
      %p395 = scmp.ne.s32.totalorder %s387, %s390
      %p396 = scmp.eq.s32.totalorder %s28, 0
      %p397 = por %p395, %p396
      %p398 = scmp.ne.s32.totalorder %s387, %s390
      %p399 = scmp.eq.s32.totalorder %s33, 1
      %p400 = por %p398, %p399
      %p401 = scmp.ne.s32.totalorder %s390, %s391
      %p402 = scmp.eq.s32.totalorder %s33, 0
      %p403 = por %p401, %p402
      %p404 = scmp.ne.s32.totalorder %s390, %s391
      %p405 = scmp.eq.s32.totalorder %s34, 1
      %p406 = por %p404, %p405
      %p408 = scmp.ne.s32.totalorder %s391, %s407
      %p409 = scmp.eq.s32.totalorder %s34, 0
      %p410 = por %p408, %p409
      %s412 = sadd.s32 %s411, 1
      %p415 = scmp.eq.s32.totalorder %s28, 1
      %p416 = scmp.ne.s32.totalorder %s411, %s413
      %p417 = scmp.eq.s32.totalorder %s28, 0
      %p418 = por %p416, %p417
      %p419 = scmp.ne.s32.totalorder %s411, %s413
      %p420 = scmp.eq.s32.totalorder %s33, 1
      %p421 = por %p419, %p420
      %p422 = scmp.ne.s32.totalorder %s413, %s414
      %p423 = scmp.eq.s32.totalorder %s33, 0
      %p424 = por %p422, %p423
      %p425 = scmp.ne.s32.totalorder %s413, %s414
      %p426 = scmp.eq.s32.totalorder %s34, 1
      %p427 = por %p425, %p426
      %p429 = scmp.ne.s32.totalorder %s414, %s428
      %p430 = scmp.eq.s32.totalorder %s34, 0
      %p431 = por %p429, %p430
      %s433 = sadd.s32 %s432, 1
      %p436 = scmp.eq.s32.totalorder %s28, 1
      %p437 = scmp.ne.s32.totalorder %s432, %s434
      %p438 = scmp.eq.s32.totalorder %s28, 0
      %p439 = por %p437, %p438
      %p440 = scmp.ne.s32.totalorder %s432, %s434
      %p441 = scmp.eq.s32.totalorder %s33, 1
      %p442 = por %p440, %p441
      %p443 = scmp.ne.s32.totalorder %s434, %s435
      %p444 = scmp.eq.s32.totalorder %s33, 0
      %p445 = por %p443, %p444
      %p446 = scmp.ne.s32.totalorder %s434, %s435
      %p447 = scmp.eq.s32.totalorder %s34, 1
      %p448 = por %p446, %p447
      %p450 = scmp.ne.s32.totalorder %s435, %s449
      %p451 = scmp.eq.s32.totalorder %s34, 0
      %p452 = por %p450, %p451
      %s454 = sadd.s32 %s453, 1
      %p457 = scmp.eq.s32.totalorder %s28, 1
      %p458 = scmp.ne.s32.totalorder %s453, %s455
      %p459 = scmp.eq.s32.totalorder %s28, 0
      %p460 = por %p458, %p459
      %p461 = scmp.ne.s32.totalorder %s453, %s455
      %p462 = scmp.eq.s32.totalorder %s33, 1
      %p463 = por %p461, %p462
      %p464 = scmp.ne.s32.totalorder %s455, %s456
      %p465 = scmp.eq.s32.totalorder %s33, 0
      %p466 = por %p464, %p465
      %p467 = scmp.ne.s32.totalorder %s455, %s456
      %p468 = scmp.eq.s32.totalorder %s34, 1
      %p469 = por %p467, %p468
      %p471 = scmp.ne.s32.totalorder %s456, %s470
      %p472 = scmp.eq.s32.totalorder %s34, 0
      %p473 = por %p471, %p472
      %s475 = sadd.s32 %s474, 1
      %p478 = scmp.eq.s32.totalorder %s28, 1
      %p479 = scmp.ne.s32.totalorder %s474, %s476
      %p480 = scmp.eq.s32.totalorder %s28, 0
      %p481 = por %p479, %p480
      %p482 = scmp.ne.s32.totalorder %s474, %s476
      %p483 = scmp.eq.s32.totalorder %s33, 1
      %p484 = por %p482, %p483
      %p485 = scmp.ne.s32.totalorder %s476, %s477
      %p486 = scmp.eq.s32.totalorder %s33, 0
      %p487 = por %p485, %p486
      %p488 = scmp.ne.s32.totalorder %s476, %s477
      %p489 = scmp.eq.s32.totalorder %s34, 1
      %p490 = por %p488, %p489
      %p492 = scmp.ne.s32.totalorder %s477, %s491
      %p493 = scmp.eq.s32.totalorder %s34, 0
      %p494 = por %p492, %p493
      %s496 = sadd.s32 %s495, 1
      %p499 = scmp.eq.s32.totalorder %s28, 1
      %p500 = scmp.ne.s32.totalorder %s495, %s497
      %p501 = scmp.eq.s32.totalorder %s28, 0
      %p502 = por %p500, %p501
      %p503 = scmp.ne.s32.totalorder %s495, %s497
      %p504 = scmp.eq.s32.totalorder %s33, 1
      %p505 = por %p503, %p504
      %p506 = scmp.ne.s32.totalorder %s497, %s498
      %p507 = scmp.eq.s32.totalorder %s33, 0
      %p508 = por %p506, %p507
      %p509 = scmp.ne.s32.totalorder %s497, %s498
      %p510 = scmp.eq.s32.totalorder %s34, 1
      %p511 = por %p509, %p510
      %p513 = scmp.ne.s32.totalorder %s498, %s512
      %p514 = scmp.eq.s32.totalorder %s34, 0
      %p515 = por %p513, %p514
      %s517 = sadd.s32 %s516, 1
      %p520 = scmp.eq.s32.totalorder %s28, 1
      %p521 = scmp.ne.s32.totalorder %s516, %s518
      %p522 = scmp.eq.s32.totalorder %s28, 0
      %p523 = por %p521, %p522
      %p524 = scmp.ne.s32.totalorder %s516, %s518
      %p525 = scmp.eq.s32.totalorder %s33, 1
      %p526 = por %p524, %p525
      %p527 = scmp.ne.s32.totalorder %s518, %s519
      %p528 = scmp.eq.s32.totalorder %s33, 0
      %p529 = por %p527, %p528
      %p530 = scmp.ne.s32.totalorder %s518, %s519
      %p531 = scmp.eq.s32.totalorder %s34, 1
      %p532 = por %p530, %p531
      %p534 = scmp.ne.s32.totalorder %s519, %s533
      %p535 = scmp.eq.s32.totalorder %s34, 0
      %p536 = por %p534, %p535
      %p537 = scmp.le.s32.totalorder 1, %s28
      %p538 = scmp.lt.s32.totalorder %s28, 3
      %p539 = pnand %p537, %p538
      %p540 = pneg %p539
      // Predicated region
      $region9: #{_lambda_.3} parent=5 // pred_check
        _
      $region10: #{_lambda_.3} parent=5 // pred_check_branch
        %542 = sbr.rel (%p539) target = $region12
      $region11: #{_lambda_.3} parent=5 // pred_region
        %s543 = ssub.s32 %s28, 1
        // Predicated region
        $region13: #{_lambda_.3} parent=11 // pred_check
          %p544 = pneg %p49
        $region14: #{_lambda_.3} parent=11 // pred_check_branch
          %546 = sbr.rel (%p544) target = $region16
        $region15: #{_lambda_.3} parent=11 // pred_region
          _
        $region16: #{_lambda_.3} parent=11 // pred_fallthru
          _
        // Predicated region
        $region17: #{_lambda_.3} parent=11 // pred_check
          %p547 = pneg %p70
        $region18: #{_lambda_.3} parent=11 // pred_check_branch
          %549 = sbr.rel (%p547) target = $region20
        $region19: #{_lambda_.3} parent=11 // pred_region
          _
        $region20: #{_lambda_.3} parent=11 // pred_fallthru
          _
        // Predicated region
        $region21: #{_lambda_.3} parent=11 // pred_check
          %p550 = pneg %p91
        $region22: #{_lambda_.3} parent=11 // pred_check_branch
          %552 = sbr.rel (%p550) target = $region24
        $region23: #{_lambda_.3} parent=11 // pred_region
          _
        $region24: #{_lambda_.3} parent=11 // pred_fallthru
          _
        // Predicated region
        $region25: #{_lambda_.3} parent=11 // pred_check
          %p553 = pneg %p424
        $region26: #{_lambda_.3} parent=11 // pred_check_branch
          %555 = sbr.rel (%p553) target = $region28
        $region27: #{_lambda_.3} parent=11 // pred_region
          _
        $region28: #{_lambda_.3} parent=11 // pred_fallthru
          _
        // Predicated region
        $region29: #{_lambda_.3} parent=11 // pred_check
          %p556 = pneg %p445
        $region30: #{_lambda_.3} parent=11 // pred_check_branch
          %558 = sbr.rel (%p556) target = $region32
        $region31: #{_lambda_.3} parent=11 // pred_region
          _
        $region32: #{_lambda_.3} parent=11 // pred_fallthru
          _
        // Predicated region
        $region33: #{_lambda_.3} parent=11 // pred_check
          %p559 = pneg %p466
        $region34: #{_lambda_.3} parent=11 // pred_check_branch
          %561 = sbr.rel (%p559) target = $region36
        $region35: #{_lambda_.3} parent=11 // pred_region
          _
        $region36: #{_lambda_.3} parent=11 // pred_fallthru
          _
        // Predicated region
        $region37: #{_lambda_.3} parent=11 // pred_check
          %p562 = pneg %p487
        $region38: #{_lambda_.3} parent=11 // pred_check_branch
          %564 = sbr.rel (%p562) target = $region40
        $region39: #{_lambda_.3} parent=11 // pred_region
          _
        $region40: #{_lambda_.3} parent=11 // pred_fallthru
          _
      $region12: #{_lambda_.3} parent=5 // pred_fallthru
        _
      %p565 = scmp.lt.s32.totalorder %s28, 2
      // Predicated region
      $region41: #{_lambda_.3} parent=5 // pred_check
        %p566 = pneg %p565
      $region42: #{_lambda_.3} parent=5 // pred_check_branch
        %568 = sbr.rel (%p566) target = $region44
      $region43: #{_lambda_.3} parent=5 // pred_region
        // Predicated region
        $region45: #{_lambda_.3} parent=43 // pred_check
          %p569 = pneg %p111
        $region46: #{_lambda_.3} parent=43 // pred_check_branch
          %571 = sbr.rel (%p569) target = $region48
        $region47: #{_lambda_.3} parent=43 // pred_region
          %p572 = scmp.lt.s32.totalorder %s28, 1
          %s573 = scalar_select %p572, %s28, 1
          %s574 = scalar_lea.vmem %s3, %s573
        $region48: #{_lambda_.3} parent=43 // pred_fallthru
          _
        // Predicated region
        $region49: #{_lambda_.3} parent=43 // pred_check
          %p575 = pneg %p137
        $region50: #{_lambda_.3} parent=43 // pred_check_branch
          %577 = sbr.rel (%p575) target = $region52
        $region51: #{_lambda_.3} parent=43 // pred_region
          %p578 = scmp.lt.s32.totalorder %s28, 1
          %s579 = scalar_select %p578, %s28, 1
          %s580 = scalar_lea.vmem %s4, %s579
        $region52: #{_lambda_.3} parent=43 // pred_fallthru
          _
        // Predicated region
        $region53: #{_lambda_.3} parent=43 // pred_check
          %p581 = pneg %p163
        $region54: #{_lambda_.3} parent=43 // pred_check_branch
          %583 = sbr.rel (%p581) target = $region56
        $region55: #{_lambda_.3} parent=43 // pred_region
          %p584 = scmp.lt.s32.totalorder %s28, 1
          %s585 = scalar_select %p584, %s28, 1
          %s586 = smul.addr %s585, 4
          %s587 = smul.addr %s586, 4
          %s588 = scalar_lea.vmem %s5, %s587
        $region56: #{_lambda_.3} parent=43 // pred_fallthru
          _
        // Predicated region
        $region57: #{_lambda_.3} parent=43 // pred_check
          %p589 = pneg %p189
        $region58: #{_lambda_.3} parent=43 // pred_check_branch
          %591 = sbr.rel (%p589) target = $region60
        $region59: #{_lambda_.3} parent=43 // pred_region
          %p592 = scmp.lt.s32.totalorder %s28, 1
          %s593 = scalar_select %p592, %s28, 1
          %s594 = scalar_lea.vmem %s6, %s593
        $region60: #{_lambda_.3} parent=43 // pred_fallthru
          _
        // Predicated region
        $region61: #{_lambda_.3} parent=43 // pred_check
          %p595 = pneg %p215
        $region62: #{_lambda_.3} parent=43 // pred_check_branch
          %597 = sbr.rel (%p595) target = $region64
        $region63: #{_lambda_.3} parent=43 // pred_region
          %p598 = scmp.lt.s32.totalorder %s28, 1
          %s599 = scalar_select %p598, %s28, 1
          %s600 = smul.addr %s599, 4
          %s601 = smul.addr %s600, 4
          %s602 = scalar_lea.vmem %s7, %s601
        $region64: #{_lambda_.3} parent=43 // pred_fallthru
          _
        // Predicated region
        $region65: #{_lambda_.3} parent=43 // pred_check
          %p603 = pneg %p241
        $region66: #{_lambda_.3} parent=43 // pred_check_branch
          %605 = sbr.rel (%p603) target = $region68
        $region67: #{_lambda_.3} parent=43 // pred_region
          %p606 = scmp.lt.s32.totalorder %s28, 1
          %s607 = scalar_select %p606, %s28, 1
          %s608 = scalar_lea.vmem %s8, %s607
        $region68: #{_lambda_.3} parent=43 // pred_fallthru
          _
        // Predicated region
        $region69: #{_lambda_.3} parent=43 // pred_check
          %p609 = pneg %p267
        $region70: #{_lambda_.3} parent=43 // pred_check_branch
          %611 = sbr.rel (%p609) target = $region72
        $region71: #{_lambda_.3} parent=43 // pred_region
          %p612 = scmp.lt.s32.totalorder %s28, 1
          %s613 = scalar_select %p612, %s28, 1
          %s614 = scalar_lea.vmem %s9, %s613
        $region72: #{_lambda_.3} parent=43 // pred_fallthru
          _
        // Predicated region
        $region73: #{_lambda_.3} parent=43 // pred_check
          %p615 = pneg %p293
        $region74: #{_lambda_.3} parent=43 // pred_check_branch
          %617 = sbr.rel (%p615) target = $region76
        $region75: #{_lambda_.3} parent=43 // pred_region
          %p618 = scmp.lt.s32.totalorder %s28, 1
          %s619 = scalar_select %p618, %s28, 1
          %s620 = scalar_lea.vmem %s10, %s619
        $region76: #{_lambda_.3} parent=43 // pred_fallthru
          _
        // Predicated region
        $region77: #{_lambda_.3} parent=43 // pred_check
          %p621 = pneg %p319
        $region78: #{_lambda_.3} parent=43 // pred_check_branch
          %623 = sbr.rel (%p621) target = $region80
        $region79: #{_lambda_.3} parent=43 // pred_region
          %p624 = scmp.lt.s32.totalorder %s28, 1
          %s625 = scalar_select %p624, %s28, 1
          %s626 = smul.addr %s625, 4
          %s627 = smul.addr %s626, 4
          %s628 = scalar_lea.vmem %s11, %s627
        $region80: #{_lambda_.3} parent=43 // pred_fallthru
          _
        // Predicated region
        $region81: #{_lambda_.3} parent=43 // pred_check
          %p629 = pneg %p345
        $region82: #{_lambda_.3} parent=43 // pred_check_branch
          %631 = sbr.rel (%p629) target = $region84
        $region83: #{_lambda_.3} parent=43 // pred_region
          %p632 = scmp.lt.s32.totalorder %s28, 1
          %s633 = scalar_select %p632, %s28, 1
          %s634 = scalar_lea.vmem %s12, %s633
        $region84: #{_lambda_.3} parent=43 // pred_fallthru
          _
        // Predicated region
        $region85: #{_lambda_.3} parent=43 // pred_check
          %p635 = pneg %p371
        $region86: #{_lambda_.3} parent=43 // pred_check_branch
          %637 = sbr.rel (%p635) target = $region88
        $region87: #{_lambda_.3} parent=43 // pred_region
          %p638 = scmp.lt.s32.totalorder %s28, 1
          %s639 = scalar_select %p638, %s28, 1
          %s640 = smul.addr %s639, 16
          %s641 = smul.addr %s640, 4
          %s642 = scalar_lea.vmem %s13, %s641
        $region88: #{_lambda_.3} parent=43 // pred_fallthru
          _
        // Predicated region
        $region89: #{_lambda_.3} parent=43 // pred_check
          %p643 = pneg %p397
        $region90: #{_lambda_.3} parent=43 // pred_check_branch
          %645 = sbr.rel (%p643) target = $region92
        $region91: #{_lambda_.3} parent=43 // pred_region
          %p646 = scmp.lt.s32.totalorder %s28, 1
          %s647 = scalar_select %p646, %s28, 1
          %s648 = scalar_lea.vmem %s14, %s647
        $region92: #{_lambda_.3} parent=43 // pred_fallthru
          _
      $region44: #{_lambda_.3} parent=5 // pred_fallthru
        _
      %p649 = scmp.le.s32.totalorder 1, %s28
      %p650 = scmp.lt.s32.totalorder %s28, 3
      %p651 = pnand %p649, %p650
      %p652 = pneg %p651
      // Predicated region
      $region93: #{_lambda_.3} parent=5 // pred_check
        _
      $region94: #{_lambda_.3} parent=5 // pred_check_branch
        %654 = sbr.rel (%p651) target = $region96
      $region95: #{_lambda_.3} parent=5 // pred_region
        %s655 = ssub.s32 %s28, 1
        %p656 = pneg %p49
        %p657 = pneg %p46
        %p658 = pneg %p70
        %p659 = pneg %p67
        %p660 = pneg %p91
        %p661 = pneg %p88
        %p662 = scmp.lt.s32.totalorder %s33, 1
        %s663 = scalar_select %p662, %s33, 1
        %s664 = scalar_lea.vmem %s3, %s663
        %p665 = pneg %p117
        %p666 = pneg %p114
        %p667 = scmp.lt.s32.totalorder %s33, 1
        %s668 = scalar_select %p667, %s33, 1
        %s669 = scalar_lea.vmem %s4, %s668
        %p670 = pneg %p143
        %p671 = pneg %p140
        %p672 = scmp.lt.s32.totalorder %s33, 1
        %s673 = scalar_select %p672, %s33, 1
        %s674 = smul.addr %s673, 4
        %s675 = smul.addr %s674, 4
        %s676 = scalar_lea.vmem %s5, %s675
        %p677 = pneg %p169
        %p678 = pneg %p166
        %p679 = scmp.lt.s32.totalorder %s33, 1
        %s680 = scalar_select %p679, %s33, 1
        %s681 = scalar_lea.vmem %s6, %s680
        %p682 = pneg %p195
        %p683 = pneg %p192
        %p684 = scmp.lt.s32.totalorder %s33, 1
        %s685 = scalar_select %p684, %s33, 1
        %s686 = smul.addr %s685, 4
        %s687 = smul.addr %s686, 4
        %s688 = scalar_lea.vmem %s7, %s687
        %p689 = pneg %p221
        %p690 = pneg %p218
        %p691 = scmp.lt.s32.totalorder %s33, 1
        %s692 = scalar_select %p691, %s33, 1
        %s693 = scalar_lea.vmem %s8, %s692
        %p694 = pneg %p247
        %p695 = pneg %p244
        %p696 = scmp.lt.s32.totalorder %s33, 1
        %s697 = scalar_select %p696, %s33, 1
        %s698 = scalar_lea.vmem %s9, %s697
        %p699 = pneg %p273
        %p700 = pneg %p270
        %p701 = scmp.lt.s32.totalorder %s33, 1
        %s702 = scalar_select %p701, %s33, 1
        %s703 = scalar_lea.vmem %s10, %s702
        %p704 = pneg %p299
        %p705 = pneg %p296
        %p706 = scmp.lt.s32.totalorder %s33, 1
        %s707 = scalar_select %p706, %s33, 1
        %s708 = smul.addr %s707, 4
        %s709 = smul.addr %s708, 4
        %s710 = scalar_lea.vmem %s11, %s709
        %p711 = pneg %p325
        %p712 = pneg %p322
        %p713 = scmp.lt.s32.totalorder %s33, 1
        %s714 = scalar_select %p713, %s33, 1
        %s715 = scalar_lea.vmem %s12, %s714
        %p716 = pneg %p351
        %p717 = pneg %p348
        %p718 = scmp.lt.s32.totalorder %s33, 1
        %s719 = scalar_select %p718, %s33, 1
        %s720 = smul.addr %s719, 16
        %s721 = smul.addr %s720, 4
        %s722 = scalar_lea.vmem %s13, %s721
        %p723 = pneg %p377
        %p724 = pneg %p374
        %p725 = scmp.lt.s32.totalorder %s33, 1
        %s726 = scalar_select %p725, %s33, 1
        %s727 = scalar_lea.vmem %s14, %s726
        %p728 = pneg %p403
        %p729 = pneg %p400
        %p730 = pneg %p424
        %p731 = pneg %p421
        %p732 = pneg %p445
        %p733 = pneg %p442
        %p734 = pneg %p466
        %p735 = pneg %p463
        %p736 = pneg %p487
        %p737 = pneg %p484
        %p738 = pneg %p508
        %p739 = pneg %p505
        %p740 = pneg %p529
        %p741 = pneg %p526
        %p742 = scmp.lt.s32.totalorder %s33, 1
        %s743 = scalar_select %p742, %s33, 1
        %s744 = scalar_lea.vmem %s3, %s743
        %p745 = scmp.lt.s32.totalorder %s33, 1
        %s746 = scalar_select %p745, %s33, 1
        %s747 = scalar_lea.vmem %s4, %s746
        %p748 = scmp.lt.s32.totalorder %s33, 1
        %s749 = scalar_select %p748, %s33, 1
        %s750 = smul.addr %s749, 4
        %s751 = smul.addr %s750, 4
        %s752 = scalar_lea.vmem %s5, %s751
        %p753 = scmp.lt.s32.totalorder %s33, 1
        %s754 = scalar_select %p753, %s33, 1
        %s755 = scalar_lea.vmem %s6, %s754
        %p756 = scmp.lt.s32.totalorder %s33, 1
        %s757 = scalar_select %p756, %s33, 1
        %s758 = smul.addr %s757, 4
        %s759 = smul.addr %s758, 4
        %s760 = scalar_lea.vmem %s7, %s759
        %p761 = scmp.lt.s32.totalorder %s33, 1
        %s762 = scalar_select %p761, %s33, 1
        %s763 = scalar_lea.vmem %s8, %s762
        %p764 = scmp.lt.s32.totalorder %s33, 1
        %s765 = scalar_select %p764, %s33, 1
        %s766 = scalar_lea.vmem %s9, %s765
        %p767 = scmp.lt.s32.totalorder %s33, 1
        %s768 = scalar_select %p767, %s33, 1
        %s769 = scalar_lea.vmem %s10, %s768
        %p770 = scmp.lt.s32.totalorder %s33, 1
        %s771 = scalar_select %p770, %s33, 1
        %s772 = smul.addr %s771, 4
        %s773 = smul.addr %s772, 4
        %s774 = scalar_lea.vmem %s11, %s773
        %p775 = scmp.lt.s32.totalorder %s33, 1
        %s776 = scalar_select %p775, %s33, 1
        %s777 = scalar_lea.vmem %s12, %s776
        %p778 = scmp.lt.s32.totalorder %s33, 1
        %s779 = scalar_select %p778, %s33, 1
        %s780 = smul.addr %s779, 16
        %s781 = smul.addr %s780, 4
        %s782 = scalar_lea.vmem %s13, %s781
        %p783 = scmp.lt.s32.totalorder %s33, 1
        %s784 = scalar_select %p783, %s33, 1
        %s785 = scalar_lea.vmem %s14, %s784
        %p787 = scmp.eq.s32.totalorder %s33, 0
        // Predicated region
        $region97: #{_lambda_.3} parent=95 // pred_check
          %p788 = pneg %p787
        $region98: #{_lambda_.3} parent=95 // pred_check_branch
          %790 = sbr.rel (%p788) target = $region100
        $region99: #{_lambda_.3} parent=95 // pred_region
          %v791 = vld [vmem:[%s0] sm:$0xff]
          %v792 = vld [vmem:[%s0 + $0x8] sm:$0xff]
          %v793 = vld [vmem:[%s0 + $0x10] sm:$0xff]
          %v794 = vld [vmem:[%s0 + $0x18] sm:$0xff]
          %v795 = vld [vmem:[%s0 + $0x20] sm:$0xff]
          %v796 = vld [vmem:[%s0 + $0x28] sm:$0xff]
          %vm797 = vcmask 261120
          %798 = vst.msk [vmem:[#allocation2] sm:$0xff] %vm797, %v791
          %799 = vst.msk [vmem:[#allocation2 + $0x8] sm:$0xff] %vm797, %v792
          %800 = vst.msk [vmem:[#allocation2 + $0x10] sm:$0xff] %vm797, %v793
          %801 = vst.msk [vmem:[#allocation2 + $0x18] sm:$0xff] %vm797, %v794
          %802 = vst.msk [vmem:[#allocation2 + $0x20] sm:$0xff] %vm797, %v795
          %803 = vst.msk [vmem:[#allocation2 + $0x28] sm:$0xff] %vm797, %v796
        $region100: #{_lambda_.3} parent=95 // pred_fallthru
          _
        %v804 = vld [vmem:[#allocation2] sm:$0xff]
        %v805 = vld [vmem:[#allocation2 + $0x8] sm:$0xff]
        %v806 = vld [vmem:[#allocation2 + $0x10] sm:$0xff]
        %v807 = vld [vmem:[#allocation2 + $0x18] sm:$0xff]
        %v808 = vld [vmem:[#allocation2 + $0x20] sm:$0xff]
        %v809 = vld [vmem:[#allocation2 + $0x28] sm:$0xff]
        %v810 = vld [vmem:[%s744] sm:$0x1]
        %v811 = vld [vmem:[%s747] sm:$0x1]
        %v812 = vld [vmem:[%s752] sm:$0xf]
        %v813 = vld [vmem:[%s752 + $0x4] sm:$0xf]
        %v814 = vld [vmem:[%s752 + $0x8] sm:$0xf]
        %v815 = vld [vmem:[%s752 + $0xc] sm:$0xf]
        %v816 = vld [vmem:[%s755] sm:$0x1]
        %v817 = vld [vmem:[%s760] sm:$0xf]
        %v818 = vld [vmem:[%s760 + $0x4] sm:$0xf]
        %v819 = vld [vmem:[%s760 + $0x8] sm:$0xf]
        %v820 = vld [vmem:[%s760 + $0xc] sm:$0xf]
        %v821 = vld [vmem:[%s763] sm:$0x1]
        %v822 = vld [vmem:[%s766] sm:$0x1]
        %v823 = vld [vmem:[%s769] sm:$0x1]
        %v824 = vld [vmem:[%s774] sm:$0xf]
        %v825 = vld [vmem:[%s774 + $0x4] sm:$0xf]
        %v826 = vld [vmem:[%s774 + $0x8] sm:$0xf]
        %v827 = vld [vmem:[%s774 + $0xc] sm:$0xf]
        %v828 = vld [vmem:[%s777] sm:$0x1]
        %v829 = vld [vmem:[%s782] sm:$0xf]
        %v830 = vld [vmem:[%s782 + $0x4] sm:$0xf]
        %v831 = vld [vmem:[%s782 + $0x8] sm:$0xf]
        %v832 = vld [vmem:[%s782 + $0xc] sm:$0xf]
        %v833 = vld [vmem:[%s782 + $0x10] sm:$0xf]
        %v834 = vld [vmem:[%s782 + $0x14] sm:$0xf]
        %v835 = vld [vmem:[%s782 + $0x18] sm:$0xf]
        %v836 = vld [vmem:[%s782 + $0x1c] sm:$0xf]
        %v837 = vld [vmem:[%s782 + $0x20] sm:$0xf]
        %v838 = vld [vmem:[%s782 + $0x24] sm:$0xf]
        %v839 = vld [vmem:[%s782 + $0x28] sm:$0xf]
        %v840 = vld [vmem:[%s782 + $0x2c] sm:$0xf]
        %v841 = vld [vmem:[%s782 + $0x30] sm:$0xf]
        %v842 = vld [vmem:[%s782 + $0x34] sm:$0xf]
        %v843 = vld [vmem:[%s782 + $0x38] sm:$0xf]
        %v844 = vld [vmem:[%s782 + $0x3c] sm:$0xf]
        %v845 = vld [vmem:[%s785] sm:$0x1]
        %vm846 = vcmask 261120
        %v847 = vsel %vm846, %v804, 0.0
        %848 = vadd.xlane.f32.xlu0 %v847
        %v849 = vpop.xlane.xlu0 %848
        %v850 = vsel %vm846, %v805, 0.0
        %851 = vadd.xlane.f32.xlu0 %v850
        %v852 = vpop.xlane.xlu0 %851
        %v853 = vsel %vm846, %v806, 0.0
        %854 = vadd.xlane.f32.xlu0 %v853
        %v855 = vpop.xlane.xlu0 %854
        %v856 = vsel %vm846, %v807, 0.0
        %857 = vadd.xlane.f32.xlu0 %v856
        %v858 = vpop.xlane.xlu0 %857
        %v859 = vsel %vm846, %v808, 0.0
        %860 = vadd.xlane.f32.xlu0 %v859
        %v861 = vpop.xlane.xlu0 %860
        %v862 = vsel %vm846, %v809, 0.0
        %863 = vadd.xlane.f32.xlu0 %v862
        %v864 = vpop.xlane.xlu0 %863
        %v865 = vrcp.pop 32.0
        %v866 = vmul.f32 %v849, %v865
        %v867 = vmul.f32 %v852, %v865
        %v868 = vmul.f32 %v855, %v865
        %v869 = vmul.f32 %v858, %v865
        %v870 = vmul.f32 %v861, %v865
        %v871 = vmul.f32 %v864, %v865
        %v872 = vsub.f32 %v804, %v866
        %v873 = vsub.f32 %v805, %v867
        %v874 = vsub.f32 %v806, %v868
        %v875 = vsub.f32 %v807, %v869
        %v876 = vsub.f32 %v808, %v870
        %v877 = vsub.f32 %v809, %v871
        %v878 = vmul.f32 %v872, %v872
        %v879 = vmul.f32 %v873, %v873
        %v880 = vmul.f32 %v874, %v874
        %v881 = vmul.f32 %v875, %v875
        %v882 = vmul.f32 %v876, %v876
        %v883 = vmul.f32 %v877, %v877
        %v884 = vsel %vm846, %v878, 0.0
        %885 = vadd.xlane.f32.xlu0 %v884
        %v886 = vpop.xlane.xlu0 %885
        %v887 = vsel %vm846, %v879, 0.0
        %888 = vadd.xlane.f32.xlu0 %v887
        %v889 = vpop.xlane.xlu0 %888
        %v890 = vsel %vm846, %v880, 0.0
        %891 = vadd.xlane.f32.xlu0 %v890
        %v892 = vpop.xlane.xlu0 %891
        %v893 = vsel %vm846, %v881, 0.0
        %894 = vadd.xlane.f32.xlu0 %v893
        %v895 = vpop.xlane.xlu0 %894
        %v896 = vsel %vm846, %v882, 0.0
        %897 = vadd.xlane.f32.xlu0 %v896
        %v898 = vpop.xlane.xlu0 %897
        %v899 = vsel %vm846, %v883, 0.0
        %900 = vadd.xlane.f32.xlu0 %v899
        %v901 = vpop.xlane.xlu0 %900
        %v902 = vmul.f32 %v886, %v865
        %v903 = vmul.f32 %v889, %v865
        %v904 = vmul.f32 %v892, %v865
        %v905 = vmul.f32 %v895, %v865
        %v906 = vmul.f32 %v898, %v865
        %v907 = vmul.f32 %v901, %v865
        %v908 = vadd.f32 %v902, 1e-05
        %v909 = vadd.f32 %v903, 1e-05
        %v910 = vadd.f32 %v904, 1e-05
        %v911 = vadd.f32 %v905, 1e-05
        %v912 = vadd.f32 %v906, 1e-05
        %v913 = vadd.f32 %v907, 1e-05
        %v914 = vrsqrt.pop %v908
        %v915 = vrsqrt.pop %v909
        %v916 = vrsqrt.pop %v910
        %v917 = vrsqrt.pop %v911
        %v918 = vrsqrt.pop %v912
        %v919 = vrsqrt.pop %v913
        %v920 = vmul.f32 %v872, %v914
        %v921 = vmul.f32 %v873, %v915
        %v922 = vmul.f32 %v874, %v916
        %v923 = vmul.f32 %v875, %v917
        %v924 = vmul.f32 %v876, %v918
        %v925 = vmul.f32 %v877, %v919
        %v927 = vlaneseq
        %v928 = vshrl.u32 %v927, 7
        %v929 = vsub.s32 0, %v928
        %v930 = vrot.slane %v810, %v929
        %v932 = vmul.f32 %v920, %v930
        %v933 = vmul.f32 %v921, %v930
        %v934 = vmul.f32 %v922, %v930
        %v935 = vmul.f32 %v923, %v930
        %v936 = vmul.f32 %v924, %v930
        %v937 = vmul.f32 %v925, %v930
        %v939 = vlaneseq
        %v940 = vshrl.u32 %v939, 7
        %v941 = vsub.s32 0, %v940
        %v942 = vrot.slane %v811, %v941
        %v944 = vadd.f32 %v932, %v942
        %v945 = vadd.f32 %v933, %v942
        %v946 = vadd.f32 %v934, %v942
        %v947 = vadd.f32 %v935, %v942
        %v948 = vadd.f32 %v936, %v942
        %v949 = vadd.f32 %v937, %v942
        %v950 = vpack.c.bf16 %v945, %v944
        %v951 = vpack.c.bf16 %v947, %v946
        %v952 = vpack.c.bf16 %v949, %v948
        %v954 = vlaneseq
        %v955 = vshrl.u32 %v954, 7
        %v956 = vsub.s32 0, %v955
        %v957 = vrot.slane %v816, %v956
        %v963 = vunpack.c.l.b16 %v812
        %v964 = vunpack.c.l.b16 %v813
        %v965 = vunpack.c.l.b16 %v814
        %v966 = vunpack.c.l.b16 %v815
        %v967 = vpack.c.b16 %v964, %v963
        %v968 = vpack.c.b16 %v966, %v965
        %v972 = vsel %vm846, %v950, 0
        %v975 = vsel %vm846, %v951, 0
        %v978 = vsel %vm846, %v952, 0
        %980 = vmatprep.subr.bf16.mxu0 0
        %981 = vmatpush1.bf16.msra.mxu0 0
        %982 = vmatprep.subr.bf16.mxu0 0
        %983 = vmatpush1.bf16.msra.mxu0 0
        %984 = vmatprep.subr.bf16.mxu0 0
        %985 = vmatpush1.bf16.msra.mxu0 0
        %986 = vmatprep.subr.bf16.mxu0 0
        %987 = vmatpush1.bf16.msra.mxu0 0
        %988 = vmatprep.subr.bf16.mxu0 0
        %989 = vmatpush1.bf16.msra.mxu0 0
        %990 = vmatprep.subr.bf16.mxu0 0
        %991 = vmatpush1.bf16.msra.mxu0 0
        %992 = vmatprep.subr.bf16.mxu0 0
        %993 = vmatpush1.bf16.msra.mxu0 %v968
        %994 = vmatprep.subr.bf16.mxu0 0
        %995 = vmatpush1.bf16.msra.mxu0 %v967
        %996 = vmatprep.subr.bf16.mxu0 0
        %997 = vmatpush2.bf16.msra.mxu0 0
        %998 = vmatprep.subr.bf16.mxu0 0
        %999 = vmatpush2.bf16.msra.mxu0 0
        %1000 = vmatprep.subr.bf16.mxu0 0
        %1001 = vmatpush2.bf16.msra.mxu0 0
        %1002 = vmatprep.subr.bf16.mxu0 0
        %1003 = vmatpush2.bf16.msra.mxu0 0
        %1004 = vmatprep.subr.bf16.mxu0 0
        %1005 = vmatpush2.bf16.msra.mxu0 0
        %1006 = vmatprep.subr.bf16.mxu0 0
        %1007 = vmatpush2.bf16.msra.mxu0 0
        %1008 = vmatprep.subr.bf16.mxu0 0
        %1009 = vmatpush2.bf16.msra.mxu0 0
        %1010 = vmatprep.subr.bf16.mxu0 0
        %1011 = vmatpush2.bf16.msra.mxu0 0
        %1012 = vmatprep.mubr.bf16.mxu0 0
        %1013 = vmatmul.mubr.bf16.gmra.mxu0 %v972
        %v1014 = vpop.f32.mrf.mxu0
        %v1015 = vadd.f32 %v957, %v1014
        %v1016 = vpop.f32.mrf.mxu0
        %v1017 = vpop.f32.mrf.mxu0
        %v1018 = vadd.f32 %v957, %v1017
        %v1019 = vpop.f32.mrf.mxu0
        %1020 = vmatprep.mubr.bf16.mxu0 0
        %1021 = vmatmul.mubr.bf16.gmra.mxu0 %v975
        %v1022 = vpop.f32.mrf.mxu0
        %v1023 = vadd.f32 %v957, %v1022
        %v1024 = vpop.f32.mrf.mxu0
        %v1025 = vpop.f32.mrf.mxu0
        %v1026 = vadd.f32 %v957, %v1025
        %v1027 = vpop.f32.mrf.mxu0
        %1028 = vmatprep.mubr.bf16.mxu0 0
        %1029 = vmatmul.mubr.bf16.gmra.mxu0 %v978
        %v1030 = vpop.f32.mrf.mxu0
        %v1031 = vadd.f32 %v957, %v1030
        %v1032 = vpop.f32.mrf.mxu0
        %v1033 = vpop.f32.mrf.mxu0
        %v1034 = vadd.f32 %v957, %v1033
        %v1035 = vpop.f32.mrf.mxu0
        %1036 = vdwg.mxu0
        %1043 = vrot.lane.b32.xlu0 %v1015, 120
        %v1044 = vpop.permute.xlu0 %1043
        %1045 = vrot.lane.b32.xlu0 %v1018, 120
        %v1046 = vpop.permute.xlu0 %1045
        %1047 = vrot.lane.b32.xlu0 %v1023, 120
        %v1048 = vpop.permute.xlu0 %1047
        %1049 = vrot.lane.b32.xlu0 %v1026, 120
        %v1050 = vpop.permute.xlu0 %1049
        %1051 = vrot.lane.b32.xlu0 %v1031, 120
        %v1052 = vpop.permute.xlu0 %1051
        %1053 = vrot.lane.b32.xlu0 %v1034, 120
        %v1054 = vpop.permute.xlu0 %1053
        %1061 = vrot.lane.b32.xlu0 %v1015, 112
        %v1062 = vpop.permute.xlu0 %1061
        %1063 = vrot.lane.b32.xlu0 %v1018, 112
        %v1064 = vpop.permute.xlu0 %1063
        %1065 = vrot.lane.b32.xlu0 %v1023, 112
        %v1066 = vpop.permute.xlu0 %1065
        %1067 = vrot.lane.b32.xlu0 %v1026, 112
        %v1068 = vpop.permute.xlu0 %1067
        %1069 = vrot.lane.b32.xlu0 %v1031, 112
        %v1070 = vpop.permute.xlu0 %1069
        %1071 = vrot.lane.b32.xlu0 %v1034, 112
        %v1072 = vpop.permute.xlu0 %1071
        %1079 = vrot.lane.b32.xlu0 %v1015, 104
        %v1080 = vpop.permute.xlu0 %1079
        %1081 = vrot.lane.b32.xlu0 %v1018, 104
        %v1082 = vpop.permute.xlu0 %1081
        %1083 = vrot.lane.b32.xlu0 %v1023, 104
        %v1084 = vpop.permute.xlu0 %1083
        %1085 = vrot.lane.b32.xlu0 %v1026, 104
        %v1086 = vpop.permute.xlu0 %1085
        %1087 = vrot.lane.b32.xlu0 %v1031, 104
        %v1088 = vpop.permute.xlu0 %1087
        %1089 = vrot.lane.b32.xlu0 %v1034, 104
        %v1090 = vpop.permute.xlu0 %1089
        %v1097 = vpack.c.bf16 %v1018, %v1015
        %v1098 = vpack.c.bf16 %v1023, %v1023
        %v1099 = vpack.c.bf16 %v1031, %v1026
        %v1100 = vpack.c.bf16 %v1034, %v1034
        %v1101 = vpack.c.bf16 %v1046, %v1044
        %v1102 = vpack.c.bf16 %v1048, %v1048
        %v1103 = vpack.c.bf16 %v1052, %v1050
        %v1104 = vpack.c.bf16 %v1054, %v1054
        %v1105 = vpack.c.bf16 %v1064, %v1062
        %v1106 = vpack.c.bf16 %v1066, %v1066
        %v1107 = vpack.c.bf16 %v1070, %v1068
        %v1108 = vpack.c.bf16 %v1072, %v1072
        %v1109 = vpack.c.bf16 %v1082, %v1080
        %v1110 = vpack.c.bf16 %v1084, %v1084
        %v1111 = vpack.c.bf16 %v1088, %v1086
        %v1112 = vpack.c.bf16 %v1090, %v1090
        %1115 = vrot.lane.b32.xlu0 %v1097, 96
        %v1116 = vpop.permute.xlu0 %1115
        %1117 = vrot.lane.b32.xlu0 %v1098, 96
        %v1118 = vpop.permute.xlu0 %1117
        %vm1119 = vcmask 64512
        %v1121 = vsel %vm1119, %v1097, 0
        %v1124 = vsel %vm1119, %v1098, 0
        %v1127 = vsel %vm1119, %v1116, 0
        %v1130 = vsel %vm1119, %v1118, 0
        %1132 = vmatprep.subr.bf16.mxu0 0
        %1133 = vmatpush1.bf16.xpose.msra.mxu0 0
        %1134 = vmatprep.subr.bf16.mxu0 0
        %1135 = vmatpush1.bf16.xpose.msra.mxu0 0
        %1136 = vmatprep.subr.bf16.mxu0 0
        %1137 = vmatpush1.bf16.xpose.msra.mxu0 0
        %1138 = vmatprep.subr.bf16.mxu0 0
        %1139 = vmatpush1.bf16.xpose.msra.mxu0 0
        %1140 = vmatprep.subr.bf16.mxu0 0
        %1141 = vmatpush1.bf16.xpose.msra.mxu0 0
        %1142 = vmatprep.subr.bf16.mxu0 0
        %1143 = vmatpush1.bf16.xpose.msra.mxu0 0
        %1144 = vmatprep.subr.bf16.mxu0 0
        %1145 = vmatpush1.bf16.xpose.msra.mxu0 %v1130
        %1146 = vmatprep.subr.bf16.mxu0 0
        %1147 = vmatpush1.bf16.xpose.msra.mxu0 %v1127
        %1148 = vmatprep.subr.bf16.mxu0 0
        %1149 = vmatpush2.bf16.xpose.msra.mxu0 0
        %1150 = vmatprep.subr.bf16.mxu0 0
        %1151 = vmatpush2.bf16.xpose.msra.mxu0 0
        %1152 = vmatprep.subr.bf16.mxu0 0
        %1153 = vmatpush2.bf16.xpose.msra.mxu0 0
        %1154 = vmatprep.subr.bf16.mxu0 0
        %1155 = vmatpush2.bf16.xpose.msra.mxu0 0
        %1156 = vmatprep.subr.bf16.mxu0 0
        %1157 = vmatpush2.bf16.xpose.msra.mxu0 0
        %1158 = vmatprep.subr.bf16.mxu0 0
        %1159 = vmatpush2.bf16.xpose.msra.mxu0 0
        %1160 = vmatprep.subr.bf16.mxu0 0
        %1161 = vmatpush2.bf16.xpose.msra.mxu0 0
        %1162 = vmatprep.subr.bf16.mxu0 0
        %1163 = vmatpush2.bf16.xpose.msra.mxu0 0
        %1164 = vmatprep.mubr.bf16.mxu0 0
        %1165 = vmatmul.mubr.bf16.gmra.mxu0 %v1121
        %v1166 = vpop.f32.mrf.mxu0
        %v1167 = vadd.f32 0.0, %v1166
        %v1168 = vpop.f32.mrf.mxu0
        %v1169 = vpop.f32.mrf.mxu0
        %v1170 = vadd.f32 0.0, %v1169
        %v1171 = vpop.f32.mrf.mxu0
        %1172 = vmatprep.mubr.bf16.mxu0 0
        %1173 = vmatmul.mubr.bf16.gmra.mxu0 %v1124
        %v1174 = vpop.f32.mrf.mxu0
        %v1175 = vadd.f32 0.0, %v1174
        %v1176 = vpop.f32.mrf.mxu0
        %v1177 = vpop.f32.mrf.mxu0
        %v1178 = vpop.f32.mrf.mxu0
        %1179 = vdwg.mxu0
        %1182 = vrot.lane.b32.xlu0 %v1099, 96
        %v1183 = vpop.permute.xlu0 %1182
        %1184 = vrot.lane.b32.xlu0 %v1100, 96
        %v1185 = vpop.permute.xlu0 %1184
        %v1187 = vsel %vm1119, %v1099, 0
        %v1190 = vsel %vm1119, %v1100, 0
        %v1193 = vsel %vm1119, %v1183, 0
        %v1196 = vsel %vm1119, %v1185, 0
        %1198 = vmatprep.subr.bf16.mxu0 0
        %1199 = vmatpush1.bf16.xpose.msra.mxu0 0
        %1200 = vmatprep.subr.bf16.mxu0 0
        %1201 = vmatpush1.bf16.xpose.msra.mxu0 0
        %1202 = vmatprep.subr.bf16.mxu0 0
        %1203 = vmatpush1.bf16.xpose.msra.mxu0 0
        %1204 = vmatprep.subr.bf16.mxu0 0
        %1205 = vmatpush1.bf16.xpose.msra.mxu0 0
        %1206 = vmatprep.subr.bf16.mxu0 0
        %1207 = vmatpush1.bf16.xpose.msra.mxu0 0
        %1208 = vmatprep.subr.bf16.mxu0 0
        %1209 = vmatpush1.bf16.xpose.msra.mxu0 0
        %1210 = vmatprep.subr.bf16.mxu0 0
        %1211 = vmatpush1.bf16.xpose.msra.mxu0 %v1196
        %1212 = vmatprep.subr.bf16.mxu0 0
        %1213 = vmatpush1.bf16.xpose.msra.mxu0 %v1193
        %1214 = vmatprep.subr.bf16.mxu0 0
        %1215 = vmatpush2.bf16.xpose.msra.mxu0 0
        %1216 = vmatprep.subr.bf16.mxu0 0
        %1217 = vmatpush2.bf16.xpose.msra.mxu0 0
        %1218 = vmatprep.subr.bf16.mxu0 0
        %1219 = vmatpush2.bf16.xpose.msra.mxu0 0
        %1220 = vmatprep.subr.bf16.mxu0 0
        %1221 = vmatpush2.bf16.xpose.msra.mxu0 0
        %1222 = vmatprep.subr.bf16.mxu0 0
        %1223 = vmatpush2.bf16.xpose.msra.mxu0 0
        %1224 = vmatprep.subr.bf16.mxu0 0
        %1225 = vmatpush2.bf16.xpose.msra.mxu0 0
        %1226 = vmatprep.subr.bf16.mxu0 0
        %1227 = vmatpush2.bf16.xpose.msra.mxu0 0
        %1228 = vmatprep.subr.bf16.mxu0 0
        %1229 = vmatpush2.bf16.xpose.msra.mxu0 0
        %1230 = vmatprep.mubr.bf16.mxu0 0
        %1231 = vmatmul.mubr.bf16.gmra.mxu0 %v1187
        %v1232 = vpop.f32.mrf.mxu0
        %v1233 = vadd.f32 0.0, %v1232
        %v1234 = vpop.f32.mrf.mxu0
        %v1235 = vpop.f32.mrf.mxu0
        %v1236 = vadd.f32 0.0, %v1235
        %v1237 = vpop.f32.mrf.mxu0
        %1238 = vmatprep.mubr.bf16.mxu0 0
        %1239 = vmatmul.mubr.bf16.gmra.mxu0 %v1190
        %v1240 = vpop.f32.mrf.mxu0
        %v1241 = vadd.f32 0.0, %v1240
        %v1242 = vpop.f32.mrf.mxu0
        %v1243 = vpop.f32.mrf.mxu0
        %v1244 = vpop.f32.mrf.mxu0
        %1245 = vdwg.mxu0
        %1248 = vrot.lane.b32.xlu0 %v1101, 96
        %v1249 = vpop.permute.xlu0 %1248
        %1250 = vrot.lane.b32.xlu0 %v1102, 96
        %v1251 = vpop.permute.xlu0 %1250
        %v1253 = vsel %vm1119, %v1101, 0
        %v1256 = vsel %vm1119, %v1102, 0
        %v1259 = vsel %vm1119, %v1249, 0
        %v1262 = vsel %vm1119, %v1251, 0
        %1264 = vmatprep.subr.bf16.mxu0 0
        %1265 = vmatpush1.bf16.xpose.msra.mxu0 0
        %1266 = vmatprep.subr.bf16.mxu0 0
        %1267 = vmatpush1.bf16.xpose.msra.mxu0 0
        %1268 = vmatprep.subr.bf16.mxu0 0
        %1269 = vmatpush1.bf16.xpose.msra.mxu0 0
        %1270 = vmatprep.subr.bf16.mxu0 0
        %1271 = vmatpush1.bf16.xpose.msra.mxu0 0
        %1272 = vmatprep.subr.bf16.mxu0 0
        %1273 = vmatpush1.bf16.xpose.msra.mxu0 0
        %1274 = vmatprep.subr.bf16.mxu0 0
        %1275 = vmatpush1.bf16.xpose.msra.mxu0 0
        %1276 = vmatprep.subr.bf16.mxu0 0
        %1277 = vmatpush1.bf16.xpose.msra.mxu0 %v1262
        %1278 = vmatprep.subr.bf16.mxu0 0
        %1279 = vmatpush1.bf16.xpose.msra.mxu0 %v1259
        %1280 = vmatprep.subr.bf16.mxu0 0
        %1281 = vmatpush2.bf16.xpose.msra.mxu0 0
        %1282 = vmatprep.subr.bf16.mxu0 0
        %1283 = vmatpush2.bf16.xpose.msra.mxu0 0
        %1284 = vmatprep.subr.bf16.mxu0 0
        %1285 = vmatpush2.bf16.xpose.msra.mxu0 0
        %1286 = vmatprep.subr.bf16.mxu0 0
        %1287 = vmatpush2.bf16.xpose.msra.mxu0 0
        %1288 = vmatprep.subr.bf16.mxu0 0
        %1289 = vmatpush2.bf16.xpose.msra.mxu0 0
        %1290 = vmatprep.subr.bf16.mxu0 0
        %1291 = vmatpush2.bf16.xpose.msra.mxu0 0
        %1292 = vmatprep.subr.bf16.mxu0 0
        %1293 = vmatpush2.bf16.xpose.msra.mxu0 0
        %1294 = vmatprep.subr.bf16.mxu0 0
        %1295 = vmatpush2.bf16.xpose.msra.mxu0 0
        %1296 = vmatprep.mubr.bf16.mxu0 0
        %1297 = vmatmul.mubr.bf16.gmra.mxu0 %v1253
        %v1298 = vpop.f32.mrf.mxu0
        %v1299 = vadd.f32 0.0, %v1298
        %v1300 = vpop.f32.mrf.mxu0
        %v1301 = vpop.f32.mrf.mxu0
        %v1302 = vadd.f32 0.0, %v1301
        %v1303 = vpop.f32.mrf.mxu0
        %1304 = vmatprep.mubr.bf16.mxu0 0
        %1305 = vmatmul.mubr.bf16.gmra.mxu0 %v1256
        %v1306 = vpop.f32.mrf.mxu0
        %v1307 = vadd.f32 0.0, %v1306
        %v1308 = vpop.f32.mrf.mxu0
        %v1309 = vpop.f32.mrf.mxu0
        %v1310 = vpop.f32.mrf.mxu0
        %1311 = vdwg.mxu0
        %1314 = vrot.lane.b32.xlu0 %v1103, 96
        %v1315 = vpop.permute.xlu0 %1314
        %1316 = vrot.lane.b32.xlu0 %v1104, 96
        %v1317 = vpop.permute.xlu0 %1316
        %v1319 = vsel %vm1119, %v1103, 0
        %v1322 = vsel %vm1119, %v1104, 0
        %v1325 = vsel %vm1119, %v1315, 0
        %v1328 = vsel %vm1119, %v1317, 0
        %1330 = vmatprep.subr.bf16.mxu0 0
        %1331 = vmatpush1.bf16.xpose.msra.mxu0 0
        %1332 = vmatprep.subr.bf16.mxu0 0
        %1333 = vmatpush1.bf16.xpose.msra.mxu0 0
        %1334 = vmatprep.subr.bf16.mxu0 0
        %1335 = vmatpush1.bf16.xpose.msra.mxu0 0
        %1336 = vmatprep.subr.bf16.mxu0 0
        %1337 = vmatpush1.bf16.xpose.msra.mxu0 0
        %1338 = vmatprep.subr.bf16.mxu0 0
        %1339 = vmatpush1.bf16.xpose.msra.mxu0 0
        %1340 = vmatprep.subr.bf16.mxu0 0
        %1341 = vmatpush1.bf16.xpose.msra.mxu0 0
        %1342 = vmatprep.subr.bf16.mxu0 0
        %1343 = vmatpush1.bf16.xpose.msra.mxu0 %v1328
        %1344 = vmatprep.subr.bf16.mxu0 0
        %1345 = vmatpush1.bf16.xpose.msra.mxu0 %v1325
        %1346 = vmatprep.subr.bf16.mxu0 0
        %1347 = vmatpush2.bf16.xpose.msra.mxu0 0
        %1348 = vmatprep.subr.bf16.mxu0 0
        %1349 = vmatpush2.bf16.xpose.msra.mxu0 0
        %1350 = vmatprep.subr.bf16.mxu0 0
        %1351 = vmatpush2.bf16.xpose.msra.mxu0 0
        %1352 = vmatprep.subr.bf16.mxu0 0
        %1353 = vmatpush2.bf16.xpose.msra.mxu0 0
        %1354 = vmatprep.subr.bf16.mxu0 0
        %1355 = vmatpush2.bf16.xpose.msra.mxu0 0
        %1356 = vmatprep.subr.bf16.mxu0 0
        %1357 = vmatpush2.bf16.xpose.msra.mxu0 0
        %1358 = vmatprep.subr.bf16.mxu0 0
        %1359 = vmatpush2.bf16.xpose.msra.mxu0 0
        %1360 = vmatprep.subr.bf16.mxu0 0
        %1361 = vmatpush2.bf16.xpose.msra.mxu0 0
        %1362 = vmatprep.mubr.bf16.mxu0 0
        %1363 = vmatmul.mubr.bf16.gmra.mxu0 %v1319
        %v1364 = vpop.f32.mrf.mxu0
        %v1365 = vadd.f32 0.0, %v1364
        %v1366 = vpop.f32.mrf.mxu0
        %v1367 = vpop.f32.mrf.mxu0
        %v1368 = vadd.f32 0.0, %v1367
        %v1369 = vpop.f32.mrf.mxu0
        %1370 = vmatprep.mubr.bf16.mxu0 0
        %1371 = vmatmul.mubr.bf16.gmra.mxu0 %v1322
        %v1372 = vpop.f32.mrf.mxu0
        %v1373 = vadd.f32 0.0, %v1372
        %v1374 = vpop.f32.mrf.mxu0
        %v1375 = vpop.f32.mrf.mxu0
        %v1376 = vpop.f32.mrf.mxu0
        %1377 = vdwg.mxu0
        %1380 = vrot.lane.b32.xlu0 %v1105, 96
        %v1381 = vpop.permute.xlu0 %1380
        %1382 = vrot.lane.b32.xlu0 %v1106, 96
        %v1383 = vpop.permute.xlu0 %1382
        %v1385 = vsel %vm1119, %v1105, 0
        %v1388 = vsel %vm1119, %v1106, 0
        %v1391 = vsel %vm1119, %v1381, 0
        %v1394 = vsel %vm1119, %v1383, 0
        %1396 = vmatprep.subr.bf16.mxu0 0
        %1397 = vmatpush1.bf16.xpose.msra.mxu0 0
        %1398 = vmatprep.subr.bf16.mxu0 0
        %1399 = vmatpush1.bf16.xpose.msra.mxu0 0
        %1400 = vmatprep.subr.bf16.mxu0 0
        %1401 = vmatpush1.bf16.xpose.msra.mxu0 0
        %1402 = vmatprep.subr.bf16.mxu0 0
        %1403 = vmatpush1.bf16.xpose.msra.mxu0 0
        %1404 = vmatprep.subr.bf16.mxu0 0
        %1405 = vmatpush1.bf16.xpose.msra.mxu0 0
        %1406 = vmatprep.subr.bf16.mxu0 0
        %1407 = vmatpush1.bf16.xpose.msra.mxu0 0
        %1408 = vmatprep.subr.bf16.mxu0 0
        %1409 = vmatpush1.bf16.xpose.msra.mxu0 %v1394
        %1410 = vmatprep.subr.bf16.mxu0 0
        %1411 = vmatpush1.bf16.xpose.msra.mxu0 %v1391
        %1412 = vmatprep.subr.bf16.mxu0 0
        %1413 = vmatpush2.bf16.xpose.msra.mxu0 0
        %1414 = vmatprep.subr.bf16.mxu0 0
        %1415 = vmatpush2.bf16.xpose.msra.mxu0 0
        %1416 = vmatprep.subr.bf16.mxu0 0
        %1417 = vmatpush2.bf16.xpose.msra.mxu0 0
        %1418 = vmatprep.subr.bf16.mxu0 0
        %1419 = vmatpush2.bf16.xpose.msra.mxu0 0
        %1420 = vmatprep.subr.bf16.mxu0 0
        %1421 = vmatpush2.bf16.xpose.msra.mxu0 0
        %1422 = vmatprep.subr.bf16.mxu0 0
        %1423 = vmatpush2.bf16.xpose.msra.mxu0 0
        %1424 = vmatprep.subr.bf16.mxu0 0
        %1425 = vmatpush2.bf16.xpose.msra.mxu0 0
        %1426 = vmatprep.subr.bf16.mxu0 0
        %1427 = vmatpush2.bf16.xpose.msra.mxu0 0
        %1428 = vmatprep.mubr.bf16.mxu0 0
        %1429 = vmatmul.mubr.bf16.gmra.mxu0 %v1385
        %v1430 = vpop.f32.mrf.mxu0
        %v1431 = vadd.f32 0.0, %v1430
        %v1432 = vpop.f32.mrf.mxu0
        %v1433 = vpop.f32.mrf.mxu0
        %v1434 = vadd.f32 0.0, %v1433
        %v1435 = vpop.f32.mrf.mxu0
        %1436 = vmatprep.mubr.bf16.mxu0 0
        %1437 = vmatmul.mubr.bf16.gmra.mxu0 %v1388
        %v1438 = vpop.f32.mrf.mxu0
        %v1439 = vadd.f32 0.0, %v1438
        %v1440 = vpop.f32.mrf.mxu0
        %v1441 = vpop.f32.mrf.mxu0
        %v1442 = vpop.f32.mrf.mxu0
        %1443 = vdwg.mxu0
        %1446 = vrot.lane.b32.xlu0 %v1107, 96
        %v1447 = vpop.permute.xlu0 %1446
        %1448 = vrot.lane.b32.xlu0 %v1108, 96
        %v1449 = vpop.permute.xlu0 %1448
        %v1451 = vsel %vm1119, %v1107, 0
        %v1454 = vsel %vm1119, %v1108, 0
        %v1457 = vsel %vm1119, %v1447, 0
        %v1460 = vsel %vm1119, %v1449, 0
        %1462 = vmatprep.subr.bf16.mxu0 0
        %1463 = vmatpush1.bf16.xpose.msra.mxu0 0
        %1464 = vmatprep.subr.bf16.mxu0 0
        %1465 = vmatpush1.bf16.xpose.msra.mxu0 0
        %1466 = vmatprep.subr.bf16.mxu0 0
        %1467 = vmatpush1.bf16.xpose.msra.mxu0 0
        %1468 = vmatprep.subr.bf16.mxu0 0
        %1469 = vmatpush1.bf16.xpose.msra.mxu0 0
        %1470 = vmatprep.subr.bf16.mxu0 0
        %1471 = vmatpush1.bf16.xpose.msra.mxu0 0
        %1472 = vmatprep.subr.bf16.mxu0 0
        %1473 = vmatpush1.bf16.xpose.msra.mxu0 0
        %1474 = vmatprep.subr.bf16.mxu0 0
        %1475 = vmatpush1.bf16.xpose.msra.mxu0 %v1460
        %1476 = vmatprep.subr.bf16.mxu0 0
        %1477 = vmatpush1.bf16.xpose.msra.mxu0 %v1457
        %1478 = vmatprep.subr.bf16.mxu0 0
        %1479 = vmatpush2.bf16.xpose.msra.mxu0 0
        %1480 = vmatprep.subr.bf16.mxu0 0
        %1481 = vmatpush2.bf16.xpose.msra.mxu0 0
        %1482 = vmatprep.subr.bf16.mxu0 0
        %1483 = vmatpush2.bf16.xpose.msra.mxu0 0
        %1484 = vmatprep.subr.bf16.mxu0 0
        %1485 = vmatpush2.bf16.xpose.msra.mxu0 0
        %1486 = vmatprep.subr.bf16.mxu0 0
        %1487 = vmatpush2.bf16.xpose.msra.mxu0 0
        %1488 = vmatprep.subr.bf16.mxu0 0
        %1489 = vmatpush2.bf16.xpose.msra.mxu0 0
        %1490 = vmatprep.subr.bf16.mxu0 0
        %1491 = vmatpush2.bf16.xpose.msra.mxu0 0
        %1492 = vmatprep.subr.bf16.mxu0 0
        %1493 = vmatpush2.bf16.xpose.msra.mxu0 0
        %1494 = vmatprep.mubr.bf16.mxu0 0
        %1495 = vmatmul.mubr.bf16.gmra.mxu0 %v1451
        %v1496 = vpop.f32.mrf.mxu0
        %v1497 = vadd.f32 0.0, %v1496
        %v1498 = vpop.f32.mrf.mxu0
        %v1499 = vpop.f32.mrf.mxu0
        %v1500 = vadd.f32 0.0, %v1499
        %v1501 = vpop.f32.mrf.mxu0
        %1502 = vmatprep.mubr.bf16.mxu0 0
        %1503 = vmatmul.mubr.bf16.gmra.mxu0 %v1454
        %v1504 = vpop.f32.mrf.mxu0
        %v1505 = vadd.f32 0.0, %v1504
        %v1506 = vpop.f32.mrf.mxu0
        %v1507 = vpop.f32.mrf.mxu0
        %v1508 = vpop.f32.mrf.mxu0
        %1509 = vdwg.mxu0
        %1512 = vrot.lane.b32.xlu0 %v1109, 96
        %v1513 = vpop.permute.xlu0 %1512
        %1514 = vrot.lane.b32.xlu0 %v1110, 96
        %v1515 = vpop.permute.xlu0 %1514
        %v1517 = vsel %vm1119, %v1109, 0
        %v1520 = vsel %vm1119, %v1110, 0
        %v1523 = vsel %vm1119, %v1513, 0
        %v1526 = vsel %vm1119, %v1515, 0
        %1528 = vmatprep.subr.bf16.mxu0 0
        %1529 = vmatpush1.bf16.xpose.msra.mxu0 0
        %1530 = vmatprep.subr.bf16.mxu0 0
        %1531 = vmatpush1.bf16.xpose.msra.mxu0 0
        %1532 = vmatprep.subr.bf16.mxu0 0
        %1533 = vmatpush1.bf16.xpose.msra.mxu0 0
        %1534 = vmatprep.subr.bf16.mxu0 0
        %1535 = vmatpush1.bf16.xpose.msra.mxu0 0
        %1536 = vmatprep.subr.bf16.mxu0 0
        %1537 = vmatpush1.bf16.xpose.msra.mxu0 0
        %1538 = vmatprep.subr.bf16.mxu0 0
        %1539 = vmatpush1.bf16.xpose.msra.mxu0 0
        %1540 = vmatprep.subr.bf16.mxu0 0
        %1541 = vmatpush1.bf16.xpose.msra.mxu0 %v1526
        %1542 = vmatprep.subr.bf16.mxu0 0
        %1543 = vmatpush1.bf16.xpose.msra.mxu0 %v1523
        %1544 = vmatprep.subr.bf16.mxu0 0
        %1545 = vmatpush2.bf16.xpose.msra.mxu0 0
        %1546 = vmatprep.subr.bf16.mxu0 0
        %1547 = vmatpush2.bf16.xpose.msra.mxu0 0
        %1548 = vmatprep.subr.bf16.mxu0 0
        %1549 = vmatpush2.bf16.xpose.msra.mxu0 0
        %1550 = vmatprep.subr.bf16.mxu0 0
        %1551 = vmatpush2.bf16.xpose.msra.mxu0 0
        %1552 = vmatprep.subr.bf16.mxu0 0
        %1553 = vmatpush2.bf16.xpose.msra.mxu0 0
        %1554 = vmatprep.subr.bf16.mxu0 0
        %1555 = vmatpush2.bf16.xpose.msra.mxu0 0
        %1556 = vmatprep.subr.bf16.mxu0 0
        %1557 = vmatpush2.bf16.xpose.msra.mxu0 0
        %1558 = vmatprep.subr.bf16.mxu0 0
        %1559 = vmatpush2.bf16.xpose.msra.mxu0 0
        %1560 = vmatprep.mubr.bf16.mxu0 0
        %1561 = vmatmul.mubr.bf16.gmra.mxu0 %v1517
        %v1562 = vpop.f32.mrf.mxu0
        %v1563 = vadd.f32 0.0, %v1562
        %v1564 = vpop.f32.mrf.mxu0
        %v1565 = vpop.f32.mrf.mxu0
        %v1566 = vadd.f32 0.0, %v1565
        %v1567 = vpop.f32.mrf.mxu0
        %1568 = vmatprep.mubr.bf16.mxu0 0
        %1569 = vmatmul.mubr.bf16.gmra.mxu0 %v1520
        %v1570 = vpop.f32.mrf.mxu0
        %v1571 = vadd.f32 0.0, %v1570
        %v1572 = vpop.f32.mrf.mxu0
        %v1573 = vpop.f32.mrf.mxu0
        %v1574 = vpop.f32.mrf.mxu0
        %1575 = vdwg.mxu0
        %1578 = vrot.lane.b32.xlu0 %v1111, 96
        %v1579 = vpop.permute.xlu0 %1578
        %1580 = vrot.lane.b32.xlu0 %v1112, 96
        %v1581 = vpop.permute.xlu0 %1580
        %v1583 = vsel %vm1119, %v1111, 0
        %v1586 = vsel %vm1119, %v1112, 0
        %v1589 = vsel %vm1119, %v1579, 0
        %v1592 = vsel %vm1119, %v1581, 0
        %1594 = vmatprep.subr.bf16.mxu0 0
        %1595 = vmatpush1.bf16.xpose.msra.mxu0 0
        %1596 = vmatprep.subr.bf16.mxu0 0
        %1597 = vmatpush1.bf16.xpose.msra.mxu0 0
        %1598 = vmatprep.subr.bf16.mxu0 0
        %1599 = vmatpush1.bf16.xpose.msra.mxu0 0
        %1600 = vmatprep.subr.bf16.mxu0 0
        %1601 = vmatpush1.bf16.xpose.msra.mxu0 0
        %1602 = vmatprep.subr.bf16.mxu0 0
        %1603 = vmatpush1.bf16.xpose.msra.mxu0 0
        %1604 = vmatprep.subr.bf16.mxu0 0
        %1605 = vmatpush1.bf16.xpose.msra.mxu0 0
        %1606 = vmatprep.subr.bf16.mxu0 0
        %1607 = vmatpush1.bf16.xpose.msra.mxu0 %v1592
        %1608 = vmatprep.subr.bf16.mxu0 0
        %1609 = vmatpush1.bf16.xpose.msra.mxu0 %v1589
        %1610 = vmatprep.subr.bf16.mxu0 0
        %1611 = vmatpush2.bf16.xpose.msra.mxu0 0
        %1612 = vmatprep.subr.bf16.mxu0 0
        %1613 = vmatpush2.bf16.xpose.msra.mxu0 0
        %1614 = vmatprep.subr.bf16.mxu0 0
        %1615 = vmatpush2.bf16.xpose.msra.mxu0 0
        %1616 = vmatprep.subr.bf16.mxu0 0
        %1617 = vmatpush2.bf16.xpose.msra.mxu0 0
        %1618 = vmatprep.subr.bf16.mxu0 0
        %1619 = vmatpush2.bf16.xpose.msra.mxu0 0
        %1620 = vmatprep.subr.bf16.mxu0 0
        %1621 = vmatpush2.bf16.xpose.msra.mxu0 0
        %1622 = vmatprep.subr.bf16.mxu0 0
        %1623 = vmatpush2.bf16.xpose.msra.mxu0 0
        %1624 = vmatprep.subr.bf16.mxu0 0
        %1625 = vmatpush2.bf16.xpose.msra.mxu0 0
        %1626 = vmatprep.mubr.bf16.mxu0 0
        %1627 = vmatmul.mubr.bf16.gmra.mxu0 %v1583
        %v1628 = vpop.f32.mrf.mxu0
        %v1629 = vadd.f32 0.0, %v1628
        %v1630 = vpop.f32.mrf.mxu0
        %v1631 = vpop.f32.mrf.mxu0
        %v1632 = vadd.f32 0.0, %v1631
        %v1633 = vpop.f32.mrf.mxu0
        %1634 = vmatprep.mubr.bf16.mxu0 0
        %1635 = vmatmul.mubr.bf16.gmra.mxu0 %v1586
        %v1636 = vpop.f32.mrf.mxu0
        %v1637 = vadd.f32 0.0, %v1636
        %v1638 = vpop.f32.mrf.mxu0
        %v1639 = vpop.f32.mrf.mxu0
        %v1640 = vpop.f32.mrf.mxu0
        %1641 = vdwg.mxu0
        %v1642 = vmul.f32 %v1167, 0.35355338
        %v1643 = vmul.f32 %v1170, 0.35355338
        %v1644 = vmul.f32 %v1175, 0.35355338
        %v1645 = vmul.f32 %v1233, 0.35355338
        %v1646 = vmul.f32 %v1236, 0.35355338
        %v1647 = vmul.f32 %v1241, 0.35355338
        %v1648 = vmul.f32 %v1299, 0.35355338
        %v1649 = vmul.f32 %v1302, 0.35355338
        %v1650 = vmul.f32 %v1307, 0.35355338
        %v1651 = vmul.f32 %v1365, 0.35355338
        %v1652 = vmul.f32 %v1368, 0.35355338
        %v1653 = vmul.f32 %v1373, 0.35355338
        %v1654 = vmul.f32 %v1431, 0.35355338
        %v1655 = vmul.f32 %v1434, 0.35355338
        %v1656 = vmul.f32 %v1439, 0.35355338
        %v1657 = vmul.f32 %v1497, 0.35355338
        %v1658 = vmul.f32 %v1500, 0.35355338
        %v1659 = vmul.f32 %v1505, 0.35355338
        %v1660 = vmul.f32 %v1563, 0.35355338
        %v1661 = vmul.f32 %v1566, 0.35355338
        %v1662 = vmul.f32 %v1571, 0.35355338
        %v1663 = vmul.f32 %v1629, 0.35355338
        %v1664 = vmul.f32 %v1632, 0.35355338
        %v1665 = vmul.f32 %v1637, 0.35355338
        %v1666 = vlaneseq
        %v1667 = vand.u32 %v1666, 127
        %vm1668 = vcmp.lt.s32.totalorder %v1667, 17
        %v1669 = vsel %vm1668, 0.0, -1e+09
        %v1670 = vadd.f32 %v1642, %v1669
        %v1671 = vadd.f32 %v1643, %v1669
        %v1672 = vadd.f32 %v1644, %v1669
        %v1673 = vadd.f32 %v1645, %v1669
        %v1674 = vadd.f32 %v1646, %v1669
        %v1675 = vadd.f32 %v1647, %v1669
        %v1676 = vadd.f32 %v1648, %v1669
        %v1677 = vadd.f32 %v1649, %v1669
        %v1678 = vadd.f32 %v1650, %v1669
        %v1679 = vadd.f32 %v1651, %v1669
        %v1680 = vadd.f32 %v1652, %v1669
        %v1681 = vadd.f32 %v1653, %v1669
        %v1682 = vadd.f32 %v1654, %v1669
        %v1683 = vadd.f32 %v1655, %v1669
        %v1684 = vadd.f32 %v1656, %v1669
        %v1685 = vadd.f32 %v1657, %v1669
        %v1686 = vadd.f32 %v1658, %v1669
        %v1687 = vadd.f32 %v1659, %v1669
        %v1688 = vadd.f32 %v1660, %v1669
        %v1689 = vadd.f32 %v1661, %v1669
        %v1690 = vadd.f32 %v1662, %v1669
        %v1691 = vadd.f32 %v1663, %v1669
        %v1692 = vadd.f32 %v1664, %v1669
        %v1693 = vadd.f32 %v1665, %v1669
        %vm1694 = vcmask 195584
        %v1695 = vsel %vm1694, %v1670, -inf
        %1696 = vmax.xlane.f32.xlu0 %v1695
        %v1697 = vpop.xlane.xlu0 %1696
        %v1698 = vsel %vm1694, %v1671, -inf
        %1699 = vmax.xlane.f32.xlu0 %v1698
        %v1700 = vpop.xlane.xlu0 %1699
        %v1701 = vsel %vm1694, %v1672, -inf
        %1702 = vmax.xlane.f32.xlu0 %v1701
        %v1703 = vpop.xlane.xlu0 %1702
        %v1704 = vsel %vm1694, %v1673, -inf
        %1705 = vmax.xlane.f32.xlu0 %v1704
        %v1706 = vpop.xlane.xlu0 %1705
        %v1707 = vsel %vm1694, %v1674, -inf
        %1708 = vmax.xlane.f32.xlu0 %v1707
        %v1709 = vpop.xlane.xlu0 %1708
        %v1710 = vsel %vm1694, %v1675, -inf
        %1711 = vmax.xlane.f32.xlu0 %v1710
        %v1712 = vpop.xlane.xlu0 %1711
        %v1713 = vsel %vm1694, %v1676, -inf
        %1714 = vmax.xlane.f32.xlu0 %v1713
        %v1715 = vpop.xlane.xlu0 %1714
        %v1716 = vsel %vm1694, %v1677, -inf
        %1717 = vmax.xlane.f32.xlu0 %v1716
        %v1718 = vpop.xlane.xlu0 %1717
        %v1719 = vsel %vm1694, %v1678, -inf
        %1720 = vmax.xlane.f32.xlu0 %v1719
        %v1721 = vpop.xlane.xlu0 %1720
        %v1722 = vsel %vm1694, %v1679, -inf
        %1723 = vmax.xlane.f32.xlu0 %v1722
        %v1724 = vpop.xlane.xlu0 %1723
        %v1725 = vsel %vm1694, %v1680, -inf
        %1726 = vmax.xlane.f32.xlu0 %v1725
        %v1727 = vpop.xlane.xlu0 %1726
        %v1728 = vsel %vm1694, %v1681, -inf
        %1729 = vmax.xlane.f32.xlu0 %v1728
        %v1730 = vpop.xlane.xlu0 %1729
        %v1731 = vsel %vm1694, %v1682, -inf
        %1732 = vmax.xlane.f32.xlu0 %v1731
        %v1733 = vpop.xlane.xlu0 %1732
        %v1734 = vsel %vm1694, %v1683, -inf
        %1735 = vmax.xlane.f32.xlu0 %v1734
        %v1736 = vpop.xlane.xlu0 %1735
        %v1737 = vsel %vm1694, %v1684, -inf
        %1738 = vmax.xlane.f32.xlu0 %v1737
        %v1739 = vpop.xlane.xlu0 %1738
        %v1740 = vsel %vm1694, %v1685, -inf
        %1741 = vmax.xlane.f32.xlu0 %v1740
        %v1742 = vpop.xlane.xlu0 %1741
        %v1743 = vsel %vm1694, %v1686, -inf
        %1744 = vmax.xlane.f32.xlu0 %v1743
        %v1745 = vpop.xlane.xlu0 %1744
        %v1746 = vsel %vm1694, %v1687, -inf
        %1747 = vmax.xlane.f32.xlu0 %v1746
        %v1748 = vpop.xlane.xlu0 %1747
        %v1749 = vsel %vm1694, %v1688, -inf
        %1750 = vmax.xlane.f32.xlu0 %v1749
        %v1751 = vpop.xlane.xlu0 %1750
        %v1752 = vsel %vm1694, %v1689, -inf
        %1753 = vmax.xlane.f32.xlu0 %v1752
        %v1754 = vpop.xlane.xlu0 %1753
        %v1755 = vsel %vm1694, %v1690, -inf
        %1756 = vmax.xlane.f32.xlu0 %v1755
        %v1757 = vpop.xlane.xlu0 %1756
        %v1758 = vsel %vm1694, %v1691, -inf
        %1759 = vmax.xlane.f32.xlu0 %v1758
        %v1760 = vpop.xlane.xlu0 %1759
        %v1761 = vsel %vm1694, %v1692, -inf
        %1762 = vmax.xlane.f32.xlu0 %v1761
        %v1763 = vpop.xlane.xlu0 %1762
        %v1764 = vsel %vm1694, %v1693, -inf
        %1765 = vmax.xlane.f32.xlu0 %v1764
        %v1766 = vpop.xlane.xlu0 %1765
        %v1767 = vsub.f32 %v1670, %v1697
        %v1768 = vsub.f32 %v1671, %v1700
        %v1769 = vsub.f32 %v1672, %v1703
        %v1770 = vsub.f32 %v1673, %v1706
        %v1771 = vsub.f32 %v1674, %v1709
        %v1772 = vsub.f32 %v1675, %v1712
        %v1773 = vsub.f32 %v1676, %v1715
        %v1774 = vsub.f32 %v1677, %v1718
        %v1775 = vsub.f32 %v1678, %v1721
        %v1776 = vsub.f32 %v1679, %v1724
        %v1777 = vsub.f32 %v1680, %v1727
        %v1778 = vsub.f32 %v1681, %v1730
        %v1779 = vsub.f32 %v1682, %v1733
        %v1780 = vsub.f32 %v1683, %v1736
        %v1781 = vsub.f32 %v1684, %v1739
        %v1782 = vsub.f32 %v1685, %v1742
        %v1783 = vsub.f32 %v1686, %v1745
        %v1784 = vsub.f32 %v1687, %v1748
        %v1785 = vsub.f32 %v1688, %v1751
        %v1786 = vsub.f32 %v1689, %v1754
        %v1787 = vsub.f32 %v1690, %v1757
        %v1788 = vsub.f32 %v1691, %v1760
        %v1789 = vsub.f32 %v1692, %v1763
        %v1790 = vsub.f32 %v1693, %v1766
        %v1791 = vmul.f32 %v1767, 1.442695
        %v1792 = vpow.pop %v1791
        %v1793 = vmul.f32 %v1768, 1.442695
        %v1794 = vpow.pop %v1793
        %v1795 = vmul.f32 %v1769, 1.442695
        %v1796 = vpow.pop %v1795
        %v1797 = vmul.f32 %v1770, 1.442695
        %v1798 = vpow.pop %v1797
        %v1799 = vmul.f32 %v1771, 1.442695
        %v1800 = vpow.pop %v1799
        %v1801 = vmul.f32 %v1772, 1.442695
        %v1802 = vpow.pop %v1801
        %v1803 = vmul.f32 %v1773, 1.442695
        %v1804 = vpow.pop %v1803
        %v1805 = vmul.f32 %v1774, 1.442695
        %v1806 = vpow.pop %v1805
        %v1807 = vmul.f32 %v1775, 1.442695
        %v1808 = vpow.pop %v1807
        %v1809 = vmul.f32 %v1776, 1.442695
        %v1810 = vpow.pop %v1809
        %v1811 = vmul.f32 %v1777, 1.442695
        %v1812 = vpow.pop %v1811
        %v1813 = vmul.f32 %v1778, 1.442695
        %v1814 = vpow.pop %v1813
        %v1815 = vmul.f32 %v1779, 1.442695
        %v1816 = vpow.pop %v1815
        %v1817 = vmul.f32 %v1780, 1.442695
        %v1818 = vpow.pop %v1817
        %v1819 = vmul.f32 %v1781, 1.442695
        %v1820 = vpow.pop %v1819
        %v1821 = vmul.f32 %v1782, 1.442695
        %v1822 = vpow.pop %v1821
        %v1823 = vmul.f32 %v1783, 1.442695
        %v1824 = vpow.pop %v1823
        %v1825 = vmul.f32 %v1784, 1.442695
        %v1826 = vpow.pop %v1825
        %v1827 = vmul.f32 %v1785, 1.442695
        %v1828 = vpow.pop %v1827
        %v1829 = vmul.f32 %v1786, 1.442695
        %v1830 = vpow.pop %v1829
        %v1831 = vmul.f32 %v1787, 1.442695
        %v1832 = vpow.pop %v1831
        %v1833 = vmul.f32 %v1788, 1.442695
        %v1834 = vpow.pop %v1833
        %v1835 = vmul.f32 %v1789, 1.442695
        %v1836 = vpow.pop %v1835
        %v1837 = vmul.f32 %v1790, 1.442695
        %v1838 = vpow.pop %v1837
        %v1839 = vsel %vm1694, %v1792, 0.0
        %1840 = vadd.xlane.f32.xlu0 %v1839
        %v1841 = vpop.xlane.xlu0 %1840
        %v1842 = vsel %vm1694, %v1794, 0.0
        %1843 = vadd.xlane.f32.xlu0 %v1842
        %v1844 = vpop.xlane.xlu0 %1843
        %v1845 = vsel %vm1694, %v1796, 0.0
        %1846 = vadd.xlane.f32.xlu0 %v1845
        %v1847 = vpop.xlane.xlu0 %1846
        %v1848 = vsel %vm1694, %v1798, 0.0
        %1849 = vadd.xlane.f32.xlu0 %v1848
        %v1850 = vpop.xlane.xlu0 %1849
        %v1851 = vsel %vm1694, %v1800, 0.0
        %1852 = vadd.xlane.f32.xlu0 %v1851
        %v1853 = vpop.xlane.xlu0 %1852
        %v1854 = vsel %vm1694, %v1802, 0.0
        %1855 = vadd.xlane.f32.xlu0 %v1854
        %v1856 = vpop.xlane.xlu0 %1855
        %v1857 = vsel %vm1694, %v1804, 0.0
        %1858 = vadd.xlane.f32.xlu0 %v1857
        %v1859 = vpop.xlane.xlu0 %1858
        %v1860 = vsel %vm1694, %v1806, 0.0
        %1861 = vadd.xlane.f32.xlu0 %v1860
        %v1862 = vpop.xlane.xlu0 %1861
        %v1863 = vsel %vm1694, %v1808, 0.0
        %1864 = vadd.xlane.f32.xlu0 %v1863
        %v1865 = vpop.xlane.xlu0 %1864
        %v1866 = vsel %vm1694, %v1810, 0.0
        %1867 = vadd.xlane.f32.xlu0 %v1866
        %v1868 = vpop.xlane.xlu0 %1867
        %v1869 = vsel %vm1694, %v1812, 0.0
        %1870 = vadd.xlane.f32.xlu0 %v1869
        %v1871 = vpop.xlane.xlu0 %1870
        %v1872 = vsel %vm1694, %v1814, 0.0
        %1873 = vadd.xlane.f32.xlu0 %v1872
        %v1874 = vpop.xlane.xlu0 %1873
        %v1875 = vsel %vm1694, %v1816, 0.0
        %1876 = vadd.xlane.f32.xlu0 %v1875
        %v1877 = vpop.xlane.xlu0 %1876
        %v1878 = vsel %vm1694, %v1818, 0.0
        %1879 = vadd.xlane.f32.xlu0 %v1878
        %v1880 = vpop.xlane.xlu0 %1879
        %v1881 = vsel %vm1694, %v1820, 0.0
        %1882 = vadd.xlane.f32.xlu0 %v1881
        %v1883 = vpop.xlane.xlu0 %1882
        %v1884 = vsel %vm1694, %v1822, 0.0
        %1885 = vadd.xlane.f32.xlu0 %v1884
        %v1886 = vpop.xlane.xlu0 %1885
        %v1887 = vsel %vm1694, %v1824, 0.0
        %1888 = vadd.xlane.f32.xlu0 %v1887
        %v1889 = vpop.xlane.xlu0 %1888
        %v1890 = vsel %vm1694, %v1826, 0.0
        %1891 = vadd.xlane.f32.xlu0 %v1890
        %v1892 = vpop.xlane.xlu0 %1891
        %v1893 = vsel %vm1694, %v1828, 0.0
        %1894 = vadd.xlane.f32.xlu0 %v1893
        %v1895 = vpop.xlane.xlu0 %1894
        %v1896 = vsel %vm1694, %v1830, 0.0
        %1897 = vadd.xlane.f32.xlu0 %v1896
        %v1898 = vpop.xlane.xlu0 %1897
        %v1899 = vsel %vm1694, %v1832, 0.0
        %1900 = vadd.xlane.f32.xlu0 %v1899
        %v1901 = vpop.xlane.xlu0 %1900
        %v1902 = vsel %vm1694, %v1834, 0.0
        %1903 = vadd.xlane.f32.xlu0 %v1902
        %v1904 = vpop.xlane.xlu0 %1903
        %v1905 = vsel %vm1694, %v1836, 0.0
        %1906 = vadd.xlane.f32.xlu0 %v1905
        %v1907 = vpop.xlane.xlu0 %1906
        %v1908 = vsel %vm1694, %v1838, 0.0
        %1909 = vadd.xlane.f32.xlu0 %v1908
        %v1910 = vpop.xlane.xlu0 %1909
        %v1911 = vrcp.pop %v1841
        %v1912 = vrcp.pop %v1844
        %v1913 = vrcp.pop %v1847
        %v1914 = vrcp.pop %v1850
        %v1915 = vrcp.pop %v1853
        %v1916 = vrcp.pop %v1856
        %v1917 = vrcp.pop %v1859
        %v1918 = vrcp.pop %v1862
        %v1919 = vrcp.pop %v1865
        %v1920 = vrcp.pop %v1868
        %v1921 = vrcp.pop %v1871
        %v1922 = vrcp.pop %v1874
        %v1923 = vrcp.pop %v1877
        %v1924 = vrcp.pop %v1880
        %v1925 = vrcp.pop %v1883
        %v1926 = vrcp.pop %v1886
        %v1927 = vrcp.pop %v1889
        %v1928 = vrcp.pop %v1892
        %v1929 = vrcp.pop %v1895
        %v1930 = vrcp.pop %v1898
        %v1931 = vrcp.pop %v1901
        %v1932 = vrcp.pop %v1904
        %v1933 = vrcp.pop %v1907
        %v1934 = vrcp.pop %v1910
        %v1935 = vmul.f32 %v1792, %v1911
        %v1936 = vmul.f32 %v1794, %v1912
        %v1937 = vmul.f32 %v1796, %v1913
        %v1938 = vmul.f32 %v1798, %v1914
        %v1939 = vmul.f32 %v1800, %v1915
        %v1940 = vmul.f32 %v1802, %v1916
        %v1941 = vmul.f32 %v1804, %v1917
        %v1942 = vmul.f32 %v1806, %v1918
        %v1943 = vmul.f32 %v1808, %v1919
        %v1944 = vmul.f32 %v1810, %v1920
        %v1945 = vmul.f32 %v1812, %v1921
        %v1946 = vmul.f32 %v1814, %v1922
        %v1947 = vmul.f32 %v1816, %v1923
        %v1948 = vmul.f32 %v1818, %v1924
        %v1949 = vmul.f32 %v1820, %v1925
        %v1950 = vmul.f32 %v1822, %v1926
        %v1951 = vmul.f32 %v1824, %v1927
        %v1952 = vmul.f32 %v1826, %v1928
        %v1953 = vmul.f32 %v1828, %v1929
        %v1954 = vmul.f32 %v1830, %v1930
        %v1955 = vmul.f32 %v1832, %v1931
        %v1956 = vmul.f32 %v1834, %v1932
        %v1957 = vmul.f32 %v1836, %v1933
        %v1958 = vmul.f32 %v1838, %v1934
        %v1959 = vpack.c.bf16 %v1936, %v1935
        %v1960 = vpack.c.bf16 %v1937, %v1937
        %v1961 = vpack.c.bf16 %v1939, %v1938
        %v1962 = vpack.c.bf16 %v1940, %v1940
        %v1963 = vpack.c.bf16 %v1942, %v1941
        %v1964 = vpack.c.bf16 %v1943, %v1943
        %v1965 = vpack.c.bf16 %v1945, %v1944
        %v1966 = vpack.c.bf16 %v1946, %v1946
        %v1967 = vpack.c.bf16 %v1948, %v1947
        %v1968 = vpack.c.bf16 %v1949, %v1949
        %v1969 = vpack.c.bf16 %v1951, %v1950
        %v1970 = vpack.c.bf16 %v1952, %v1952
        %v1971 = vpack.c.bf16 %v1954, %v1953
        %v1972 = vpack.c.bf16 %v1955, %v1955
        %v1973 = vpack.c.bf16 %v1957, %v1956
        %v1974 = vpack.c.bf16 %v1958, %v1958
        %1975 = vrot.lane.b32.xlu0 %v1097, 64
        %v1976 = vpop.permute.xlu0 %1975
        %1977 = vrot.lane.b32.xlu0 %v1098, 64
        %v1978 = vpop.permute.xlu0 %1977
        %v1981 = vsel %vm1694, %v1959, 0
        %v1984 = vsel %vm1694, %v1960, 0
        %vm1986 = vcmask 1043456
        %v1988 = vsel %vm1986, %v1978, 0
        %1990 = vmatprep.subr.bf16.mxu0 0
        %1991 = vmatpush1.bf16.msra.mxu0 0
        %1992 = vmatprep.subr.bf16.mxu0 0
        %1993 = vmatpush1.bf16.msra.mxu0 0
        %1994 = vmatprep.subr.bf16.mxu0 0
        %1995 = vmatpush1.bf16.msra.mxu0 0
        %1996 = vmatprep.subr.bf16.mxu0 0
        %1997 = vmatpush1.bf16.msra.mxu0 0
        %1998 = vmatprep.subr.bf16.mxu0 0
        %1999 = vmatpush1.bf16.msra.mxu0 0
        %2000 = vmatprep.subr.bf16.mxu0 0
        %2001 = vmatpush1.bf16.msra.mxu0 0
        %2002 = vmatprep.subr.bf16.mxu0 0
        %2003 = vmatpush1.bf16.msra.mxu0 %v1988
        %2004 = vmatprep.subr.bf16.mxu0 0
        %2005 = vmatpush1.bf16.msra.mxu0 %v1976
        %2006 = vmatprep.subr.bf16.mxu0 0
        %2007 = vmatpush2.bf16.msra.mxu0 0
        %2008 = vmatprep.subr.bf16.mxu0 0
        %2009 = vmatpush2.bf16.msra.mxu0 0
        %2010 = vmatprep.subr.bf16.mxu0 0
        %2011 = vmatpush2.bf16.msra.mxu0 0
        %2012 = vmatprep.subr.bf16.mxu0 0
        %2013 = vmatpush2.bf16.msra.mxu0 0
        %2014 = vmatprep.subr.bf16.mxu0 0
        %2015 = vmatpush2.bf16.msra.mxu0 0
        %2016 = vmatprep.subr.bf16.mxu0 0
        %2017 = vmatpush2.bf16.msra.mxu0 0
        %2018 = vmatprep.subr.bf16.mxu0 0
        %2019 = vmatpush2.bf16.msra.mxu0 0
        %2020 = vmatprep.subr.bf16.mxu0 0
        %2021 = vmatpush2.bf16.msra.mxu0 0
        %2022 = vmatprep.mubr.bf16.mxu0 0
        %2023 = vmatmul.mubr.bf16.gmra.mxu0 %v1981
        %v2024 = vpop.f32.mrf.mxu0
        %v2025 = vadd.f32 0.0, %v2024
        %v2026 = vpop.f32.mrf.mxu0
        %v2027 = vpop.f32.mrf.mxu0
        %v2028 = vadd.f32 0.0, %v2027
        %v2029 = vpop.f32.mrf.mxu0
        %2030 = vmatprep.mubr.bf16.mxu0 0
        %2031 = vmatmul.mubr.bf16.gmra.mxu0 %v1984
        %v2032 = vpop.f32.mrf.mxu0
        %v2033 = vadd.f32 0.0, %v2032
        %v2034 = vpop.f32.mrf.mxu0
        %v2035 = vpop.f32.mrf.mxu0
        %v2036 = vpop.f32.mrf.mxu0
        %2037 = vdwg.mxu0
        %2038 = vrot.lane.b32.xlu0 %v1099, 64
        %v2039 = vpop.permute.xlu0 %2038
        %2040 = vrot.lane.b32.xlu0 %v1100, 64
        %v2041 = vpop.permute.xlu0 %2040
        %v2044 = vsel %vm1694, %v1961, 0
        %v2047 = vsel %vm1694, %v1962, 0
        %v2050 = vsel %vm1986, %v2041, 0
        %2052 = vmatprep.subr.bf16.mxu0 0
        %2053 = vmatpush1.bf16.msra.mxu0 0
        %2054 = vmatprep.subr.bf16.mxu0 0
        %2055 = vmatpush1.bf16.msra.mxu0 0
        %2056 = vmatprep.subr.bf16.mxu0 0
        %2057 = vmatpush1.bf16.msra.mxu0 0
        %2058 = vmatprep.subr.bf16.mxu0 0
        %2059 = vmatpush1.bf16.msra.mxu0 0
        %2060 = vmatprep.subr.bf16.mxu0 0
        %2061 = vmatpush1.bf16.msra.mxu0 0
        %2062 = vmatprep.subr.bf16.mxu0 0
        %2063 = vmatpush1.bf16.msra.mxu0 0
        %2064 = vmatprep.subr.bf16.mxu0 0
        %2065 = vmatpush1.bf16.msra.mxu0 %v2050
        %2066 = vmatprep.subr.bf16.mxu0 0
        %2067 = vmatpush1.bf16.msra.mxu0 %v2039
        %2068 = vmatprep.subr.bf16.mxu0 0
        %2069 = vmatpush2.bf16.msra.mxu0 0
        %2070 = vmatprep.subr.bf16.mxu0 0
        %2071 = vmatpush2.bf16.msra.mxu0 0
        %2072 = vmatprep.subr.bf16.mxu0 0
        %2073 = vmatpush2.bf16.msra.mxu0 0
        %2074 = vmatprep.subr.bf16.mxu0 0
        %2075 = vmatpush2.bf16.msra.mxu0 0
        %2076 = vmatprep.subr.bf16.mxu0 0
        %2077 = vmatpush2.bf16.msra.mxu0 0
        %2078 = vmatprep.subr.bf16.mxu0 0
        %2079 = vmatpush2.bf16.msra.mxu0 0
        %2080 = vmatprep.subr.bf16.mxu0 0
        %2081 = vmatpush2.bf16.msra.mxu0 0
        %2082 = vmatprep.subr.bf16.mxu0 0
        %2083 = vmatpush2.bf16.msra.mxu0 0
        %2084 = vmatprep.mubr.bf16.mxu0 0
        %2085 = vmatmul.mubr.bf16.gmra.mxu0 %v2044
        %v2086 = vpop.f32.mrf.mxu0
        %v2087 = vadd.f32 0.0, %v2086
        %v2088 = vpop.f32.mrf.mxu0
        %v2089 = vpop.f32.mrf.mxu0
        %v2090 = vadd.f32 0.0, %v2089
        %v2091 = vpop.f32.mrf.mxu0
        %2092 = vmatprep.mubr.bf16.mxu0 0
        %2093 = vmatmul.mubr.bf16.gmra.mxu0 %v2047
        %v2094 = vpop.f32.mrf.mxu0
        %v2095 = vadd.f32 0.0, %v2094
        %v2096 = vpop.f32.mrf.mxu0
        %v2097 = vpop.f32.mrf.mxu0
        %v2098 = vpop.f32.mrf.mxu0
        %2099 = vdwg.mxu0
        %2100 = vrot.lane.b32.xlu0 %v1101, 64
        %v2101 = vpop.permute.xlu0 %2100
        %2102 = vrot.lane.b32.xlu0 %v1102, 64
        %v2103 = vpop.permute.xlu0 %2102
        %v2106 = vsel %vm1694, %v1963, 0
        %v2109 = vsel %vm1694, %v1964, 0
        %v2112 = vsel %vm1986, %v2103, 0
        %2114 = vmatprep.subr.bf16.mxu0 0
        %2115 = vmatpush1.bf16.msra.mxu0 0
        %2116 = vmatprep.subr.bf16.mxu0 0
        %2117 = vmatpush1.bf16.msra.mxu0 0
        %2118 = vmatprep.subr.bf16.mxu0 0
        %2119 = vmatpush1.bf16.msra.mxu0 0
        %2120 = vmatprep.subr.bf16.mxu0 0
        %2121 = vmatpush1.bf16.msra.mxu0 0
        %2122 = vmatprep.subr.bf16.mxu0 0
        %2123 = vmatpush1.bf16.msra.mxu0 0
        %2124 = vmatprep.subr.bf16.mxu0 0
        %2125 = vmatpush1.bf16.msra.mxu0 0
        %2126 = vmatprep.subr.bf16.mxu0 0
        %2127 = vmatpush1.bf16.msra.mxu0 %v2112
        %2128 = vmatprep.subr.bf16.mxu0 0
        %2129 = vmatpush1.bf16.msra.mxu0 %v2101
        %2130 = vmatprep.subr.bf16.mxu0 0
        %2131 = vmatpush2.bf16.msra.mxu0 0
        %2132 = vmatprep.subr.bf16.mxu0 0
        %2133 = vmatpush2.bf16.msra.mxu0 0
        %2134 = vmatprep.subr.bf16.mxu0 0
        %2135 = vmatpush2.bf16.msra.mxu0 0
        %2136 = vmatprep.subr.bf16.mxu0 0
        %2137 = vmatpush2.bf16.msra.mxu0 0
        %2138 = vmatprep.subr.bf16.mxu0 0
        %2139 = vmatpush2.bf16.msra.mxu0 0
        %2140 = vmatprep.subr.bf16.mxu0 0
        %2141 = vmatpush2.bf16.msra.mxu0 0
        %2142 = vmatprep.subr.bf16.mxu0 0
        %2143 = vmatpush2.bf16.msra.mxu0 0
        %2144 = vmatprep.subr.bf16.mxu0 0
        %2145 = vmatpush2.bf16.msra.mxu0 0
        %2146 = vmatprep.mubr.bf16.mxu0 0
        %2147 = vmatmul.mubr.bf16.gmra.mxu0 %v2106
        %v2148 = vpop.f32.mrf.mxu0
        %v2149 = vadd.f32 0.0, %v2148
        %v2150 = vpop.f32.mrf.mxu0
        %v2151 = vpop.f32.mrf.mxu0
        %v2152 = vadd.f32 0.0, %v2151
        %v2153 = vpop.f32.mrf.mxu0
        %2154 = vmatprep.mubr.bf16.mxu0 0
        %2155 = vmatmul.mubr.bf16.gmra.mxu0 %v2109
        %v2156 = vpop.f32.mrf.mxu0
        %v2157 = vadd.f32 0.0, %v2156
        %v2158 = vpop.f32.mrf.mxu0
        %v2159 = vpop.f32.mrf.mxu0
        %v2160 = vpop.f32.mrf.mxu0
        %2161 = vdwg.mxu0
        %2162 = vrot.lane.b32.xlu0 %v1103, 64
        %v2163 = vpop.permute.xlu0 %2162
        %2164 = vrot.lane.b32.xlu0 %v1104, 64
        %v2165 = vpop.permute.xlu0 %2164
        %v2168 = vsel %vm1694, %v1965, 0
        %v2171 = vsel %vm1694, %v1966, 0
        %v2174 = vsel %vm1986, %v2165, 0
        %2176 = vmatprep.subr.bf16.mxu0 0
        %2177 = vmatpush1.bf16.msra.mxu0 0
        %2178 = vmatprep.subr.bf16.mxu0 0
        %2179 = vmatpush1.bf16.msra.mxu0 0
        %2180 = vmatprep.subr.bf16.mxu0 0
        %2181 = vmatpush1.bf16.msra.mxu0 0
        %2182 = vmatprep.subr.bf16.mxu0 0
        %2183 = vmatpush1.bf16.msra.mxu0 0
        %2184 = vmatprep.subr.bf16.mxu0 0
        %2185 = vmatpush1.bf16.msra.mxu0 0
        %2186 = vmatprep.subr.bf16.mxu0 0
        %2187 = vmatpush1.bf16.msra.mxu0 0
        %2188 = vmatprep.subr.bf16.mxu0 0
        %2189 = vmatpush1.bf16.msra.mxu0 %v2174
        %2190 = vmatprep.subr.bf16.mxu0 0
        %2191 = vmatpush1.bf16.msra.mxu0 %v2163
        %2192 = vmatprep.subr.bf16.mxu0 0
        %2193 = vmatpush2.bf16.msra.mxu0 0
        %2194 = vmatprep.subr.bf16.mxu0 0
        %2195 = vmatpush2.bf16.msra.mxu0 0
        %2196 = vmatprep.subr.bf16.mxu0 0
        %2197 = vmatpush2.bf16.msra.mxu0 0
        %2198 = vmatprep.subr.bf16.mxu0 0
        %2199 = vmatpush2.bf16.msra.mxu0 0
        %2200 = vmatprep.subr.bf16.mxu0 0
        %2201 = vmatpush2.bf16.msra.mxu0 0
        %2202 = vmatprep.subr.bf16.mxu0 0
        %2203 = vmatpush2.bf16.msra.mxu0 0
        %2204 = vmatprep.subr.bf16.mxu0 0
        %2205 = vmatpush2.bf16.msra.mxu0 0
        %2206 = vmatprep.subr.bf16.mxu0 0
        %2207 = vmatpush2.bf16.msra.mxu0 0
        %2208 = vmatprep.mubr.bf16.mxu0 0
        %2209 = vmatmul.mubr.bf16.gmra.mxu0 %v2168
        %v2210 = vpop.f32.mrf.mxu0
        %v2211 = vadd.f32 0.0, %v2210
        %v2212 = vpop.f32.mrf.mxu0
        %v2213 = vpop.f32.mrf.mxu0
        %v2214 = vadd.f32 0.0, %v2213
        %v2215 = vpop.f32.mrf.mxu0
        %2216 = vmatprep.mubr.bf16.mxu0 0
        %2217 = vmatmul.mubr.bf16.gmra.mxu0 %v2171
        %v2218 = vpop.f32.mrf.mxu0
        %v2219 = vadd.f32 0.0, %v2218
        %v2220 = vpop.f32.mrf.mxu0
        %v2221 = vpop.f32.mrf.mxu0
        %v2222 = vpop.f32.mrf.mxu0
        %2223 = vdwg.mxu0
        %2224 = vrot.lane.b32.xlu0 %v1105, 64
        %v2225 = vpop.permute.xlu0 %2224
        %2226 = vrot.lane.b32.xlu0 %v1106, 64
        %v2227 = vpop.permute.xlu0 %2226
        %v2230 = vsel %vm1694, %v1967, 0
        %v2233 = vsel %vm1694, %v1968, 0
        %v2236 = vsel %vm1986, %v2227, 0
        %2238 = vmatprep.subr.bf16.mxu0 0
        %2239 = vmatpush1.bf16.msra.mxu0 0
        %2240 = vmatprep.subr.bf16.mxu0 0
        %2241 = vmatpush1.bf16.msra.mxu0 0
        %2242 = vmatprep.subr.bf16.mxu0 0
        %2243 = vmatpush1.bf16.msra.mxu0 0
        %2244 = vmatprep.subr.bf16.mxu0 0
        %2245 = vmatpush1.bf16.msra.mxu0 0
        %2246 = vmatprep.subr.bf16.mxu0 0
        %2247 = vmatpush1.bf16.msra.mxu0 0
        %2248 = vmatprep.subr.bf16.mxu0 0
        %2249 = vmatpush1.bf16.msra.mxu0 0
        %2250 = vmatprep.subr.bf16.mxu0 0
        %2251 = vmatpush1.bf16.msra.mxu0 %v2236
        %2252 = vmatprep.subr.bf16.mxu0 0
        %2253 = vmatpush1.bf16.msra.mxu0 %v2225
        %2254 = vmatprep.subr.bf16.mxu0 0
        %2255 = vmatpush2.bf16.msra.mxu0 0
        %2256 = vmatprep.subr.bf16.mxu0 0
        %2257 = vmatpush2.bf16.msra.mxu0 0
        %2258 = vmatprep.subr.bf16.mxu0 0
        %2259 = vmatpush2.bf16.msra.mxu0 0
        %2260 = vmatprep.subr.bf16.mxu0 0
        %2261 = vmatpush2.bf16.msra.mxu0 0
        %2262 = vmatprep.subr.bf16.mxu0 0
        %2263 = vmatpush2.bf16.msra.mxu0 0
        %2264 = vmatprep.subr.bf16.mxu0 0
        %2265 = vmatpush2.bf16.msra.mxu0 0
        %2266 = vmatprep.subr.bf16.mxu0 0
        %2267 = vmatpush2.bf16.msra.mxu0 0
        %2268 = vmatprep.subr.bf16.mxu0 0
        %2269 = vmatpush2.bf16.msra.mxu0 0
        %2270 = vmatprep.mubr.bf16.mxu0 0
        %2271 = vmatmul.mubr.bf16.gmra.mxu0 %v2230
        %v2272 = vpop.f32.mrf.mxu0
        %v2273 = vadd.f32 0.0, %v2272
        %v2274 = vpop.f32.mrf.mxu0
        %v2275 = vpop.f32.mrf.mxu0
        %v2276 = vadd.f32 0.0, %v2275
        %v2277 = vpop.f32.mrf.mxu0
        %2278 = vmatprep.mubr.bf16.mxu0 0
        %2279 = vmatmul.mubr.bf16.gmra.mxu0 %v2233
        %v2280 = vpop.f32.mrf.mxu0
        %v2281 = vadd.f32 0.0, %v2280
        %v2282 = vpop.f32.mrf.mxu0
        %v2283 = vpop.f32.mrf.mxu0
        %v2284 = vpop.f32.mrf.mxu0
        %2285 = vdwg.mxu0
        %2286 = vrot.lane.b32.xlu0 %v1107, 64
        %v2287 = vpop.permute.xlu0 %2286
        %2288 = vrot.lane.b32.xlu0 %v1108, 64
        %v2289 = vpop.permute.xlu0 %2288
        %v2292 = vsel %vm1694, %v1969, 0
        %v2295 = vsel %vm1694, %v1970, 0
        %v2298 = vsel %vm1986, %v2289, 0
        %2300 = vmatprep.subr.bf16.mxu0 0
        %2301 = vmatpush1.bf16.msra.mxu0 0
        %2302 = vmatprep.subr.bf16.mxu0 0
        %2303 = vmatpush1.bf16.msra.mxu0 0
        %2304 = vmatprep.subr.bf16.mxu0 0
        %2305 = vmatpush1.bf16.msra.mxu0 0
        %2306 = vmatprep.subr.bf16.mxu0 0
        %2307 = vmatpush1.bf16.msra.mxu0 0
        %2308 = vmatprep.subr.bf16.mxu0 0
        %2309 = vmatpush1.bf16.msra.mxu0 0
        %2310 = vmatprep.subr.bf16.mxu0 0
        %2311 = vmatpush1.bf16.msra.mxu0 0
        %2312 = vmatprep.subr.bf16.mxu0 0
        %2313 = vmatpush1.bf16.msra.mxu0 %v2298
        %2314 = vmatprep.subr.bf16.mxu0 0
        %2315 = vmatpush1.bf16.msra.mxu0 %v2287
        %2316 = vmatprep.subr.bf16.mxu0 0
        %2317 = vmatpush2.bf16.msra.mxu0 0
        %2318 = vmatprep.subr.bf16.mxu0 0
        %2319 = vmatpush2.bf16.msra.mxu0 0
        %2320 = vmatprep.subr.bf16.mxu0 0
        %2321 = vmatpush2.bf16.msra.mxu0 0
        %2322 = vmatprep.subr.bf16.mxu0 0
        %2323 = vmatpush2.bf16.msra.mxu0 0
        %2324 = vmatprep.subr.bf16.mxu0 0
        %2325 = vmatpush2.bf16.msra.mxu0 0
        %2326 = vmatprep.subr.bf16.mxu0 0
        %2327 = vmatpush2.bf16.msra.mxu0 0
        %2328 = vmatprep.subr.bf16.mxu0 0
        %2329 = vmatpush2.bf16.msra.mxu0 0
        %2330 = vmatprep.subr.bf16.mxu0 0
        %2331 = vmatpush2.bf16.msra.mxu0 0
        %2332 = vmatprep.mubr.bf16.mxu0 0
        %2333 = vmatmul.mubr.bf16.gmra.mxu0 %v2292
        %v2334 = vpop.f32.mrf.mxu0
        %v2335 = vadd.f32 0.0, %v2334
        %v2336 = vpop.f32.mrf.mxu0
        %v2337 = vpop.f32.mrf.mxu0
        %v2338 = vadd.f32 0.0, %v2337
        %v2339 = vpop.f32.mrf.mxu0
        %2340 = vmatprep.mubr.bf16.mxu0 0
        %2341 = vmatmul.mubr.bf16.gmra.mxu0 %v2295
        %v2342 = vpop.f32.mrf.mxu0
        %v2343 = vadd.f32 0.0, %v2342
        %v2344 = vpop.f32.mrf.mxu0
        %v2345 = vpop.f32.mrf.mxu0
        %v2346 = vpop.f32.mrf.mxu0
        %2347 = vdwg.mxu0
        %2348 = vrot.lane.b32.xlu0 %v1109, 64
        %v2349 = vpop.permute.xlu0 %2348
        %2350 = vrot.lane.b32.xlu0 %v1110, 64
        %v2351 = vpop.permute.xlu0 %2350
        %v2354 = vsel %vm1694, %v1971, 0
        %v2357 = vsel %vm1694, %v1972, 0
        %v2360 = vsel %vm1986, %v2351, 0
        %2362 = vmatprep.subr.bf16.mxu0 0
        %2363 = vmatpush1.bf16.msra.mxu0 0
        %2364 = vmatprep.subr.bf16.mxu0 0
        %2365 = vmatpush1.bf16.msra.mxu0 0
        %2366 = vmatprep.subr.bf16.mxu0 0
        %2367 = vmatpush1.bf16.msra.mxu0 0
        %2368 = vmatprep.subr.bf16.mxu0 0
        %2369 = vmatpush1.bf16.msra.mxu0 0
        %2370 = vmatprep.subr.bf16.mxu0 0
        %2371 = vmatpush1.bf16.msra.mxu0 0
        %2372 = vmatprep.subr.bf16.mxu0 0
        %2373 = vmatpush1.bf16.msra.mxu0 0
        %2374 = vmatprep.subr.bf16.mxu0 0
        %2375 = vmatpush1.bf16.msra.mxu0 %v2360
        %2376 = vmatprep.subr.bf16.mxu0 0
        %2377 = vmatpush1.bf16.msra.mxu0 %v2349
        %2378 = vmatprep.subr.bf16.mxu0 0
        %2379 = vmatpush2.bf16.msra.mxu0 0
        %2380 = vmatprep.subr.bf16.mxu0 0
        %2381 = vmatpush2.bf16.msra.mxu0 0
        %2382 = vmatprep.subr.bf16.mxu0 0
        %2383 = vmatpush2.bf16.msra.mxu0 0
        %2384 = vmatprep.subr.bf16.mxu0 0
        %2385 = vmatpush2.bf16.msra.mxu0 0
        %2386 = vmatprep.subr.bf16.mxu0 0
        %2387 = vmatpush2.bf16.msra.mxu0 0
        %2388 = vmatprep.subr.bf16.mxu0 0
        %2389 = vmatpush2.bf16.msra.mxu0 0
        %2390 = vmatprep.subr.bf16.mxu0 0
        %2391 = vmatpush2.bf16.msra.mxu0 0
        %2392 = vmatprep.subr.bf16.mxu0 0
        %2393 = vmatpush2.bf16.msra.mxu0 0
        %2394 = vmatprep.mubr.bf16.mxu0 0
        %2395 = vmatmul.mubr.bf16.gmra.mxu0 %v2354
        %v2396 = vpop.f32.mrf.mxu0
        %v2397 = vadd.f32 0.0, %v2396
        %v2398 = vpop.f32.mrf.mxu0
        %v2399 = vpop.f32.mrf.mxu0
        %v2400 = vadd.f32 0.0, %v2399
        %v2401 = vpop.f32.mrf.mxu0
        %2402 = vmatprep.mubr.bf16.mxu0 0
        %2403 = vmatmul.mubr.bf16.gmra.mxu0 %v2357
        %v2404 = vpop.f32.mrf.mxu0
        %v2405 = vadd.f32 0.0, %v2404
        %v2406 = vpop.f32.mrf.mxu0
        %v2407 = vpop.f32.mrf.mxu0
        %v2408 = vpop.f32.mrf.mxu0
        %2409 = vdwg.mxu0
        %2410 = vrot.lane.b32.xlu0 %v1111, 64
        %v2411 = vpop.permute.xlu0 %2410
        %2412 = vrot.lane.b32.xlu0 %v1112, 64
        %v2413 = vpop.permute.xlu0 %2412
        %v2416 = vsel %vm1694, %v1973, 0
        %v2419 = vsel %vm1694, %v1974, 0
        %v2422 = vsel %vm1986, %v2413, 0
        %2424 = vmatprep.subr.bf16.mxu0 0
        %2425 = vmatpush1.bf16.msra.mxu0 0
        %2426 = vmatprep.subr.bf16.mxu0 0
        %2427 = vmatpush1.bf16.msra.mxu0 0
        %2428 = vmatprep.subr.bf16.mxu0 0
        %2429 = vmatpush1.bf16.msra.mxu0 0
        %2430 = vmatprep.subr.bf16.mxu0 0
        %2431 = vmatpush1.bf16.msra.mxu0 0
        %2432 = vmatprep.subr.bf16.mxu0 0
        %2433 = vmatpush1.bf16.msra.mxu0 0
        %2434 = vmatprep.subr.bf16.mxu0 0
        %2435 = vmatpush1.bf16.msra.mxu0 0
        %2436 = vmatprep.subr.bf16.mxu0 0
        %2437 = vmatpush1.bf16.msra.mxu0 %v2422
        %2438 = vmatprep.subr.bf16.mxu0 0
        %2439 = vmatpush1.bf16.msra.mxu0 %v2411
        %2440 = vmatprep.subr.bf16.mxu0 0
        %2441 = vmatpush2.bf16.msra.mxu0 0
        %2442 = vmatprep.subr.bf16.mxu0 0
        %2443 = vmatpush2.bf16.msra.mxu0 0
        %2444 = vmatprep.subr.bf16.mxu0 0
        %2445 = vmatpush2.bf16.msra.mxu0 0
        %2446 = vmatprep.subr.bf16.mxu0 0
        %2447 = vmatpush2.bf16.msra.mxu0 0
        %2448 = vmatprep.subr.bf16.mxu0 0
        %2449 = vmatpush2.bf16.msra.mxu0 0
        %2450 = vmatprep.subr.bf16.mxu0 0
        %2451 = vmatpush2.bf16.msra.mxu0 0
        %2452 = vmatprep.subr.bf16.mxu0 0
        %2453 = vmatpush2.bf16.msra.mxu0 0
        %2454 = vmatprep.subr.bf16.mxu0 0
        %2455 = vmatpush2.bf16.msra.mxu0 0
        %2456 = vmatprep.mubr.bf16.mxu0 0
        %2457 = vmatmul.mubr.bf16.gmra.mxu0 %v2416
        %v2458 = vpop.f32.mrf.mxu0
        %v2459 = vadd.f32 0.0, %v2458
        %v2460 = vpop.f32.mrf.mxu0
        %v2461 = vpop.f32.mrf.mxu0
        %v2462 = vadd.f32 0.0, %v2461
        %v2463 = vpop.f32.mrf.mxu0
        %2464 = vmatprep.mubr.bf16.mxu0 0
        %2465 = vmatmul.mubr.bf16.gmra.mxu0 %v2419
        %v2466 = vpop.f32.mrf.mxu0
        %v2467 = vadd.f32 0.0, %v2466
        %v2468 = vpop.f32.mrf.mxu0
        %v2469 = vpop.f32.mrf.mxu0
        %v2470 = vpop.f32.mrf.mxu0
        %2471 = vdwg.mxu0
        %2478 = vrot.lane.b32.xlu0 %v2149, 8
        %v2479 = vpop.permute.xlu0 %2478
        %2480 = vrot.lane.b32.xlu0 %v2152, 8
        %v2481 = vpop.permute.xlu0 %2480
        %2482 = vrot.lane.b32.xlu0 %v2157, 8
        %v2483 = vpop.permute.xlu0 %2482
        %2484 = vrot.lane.b32.xlu0 %v2211, 8
        %v2485 = vpop.permute.xlu0 %2484
        %2486 = vrot.lane.b32.xlu0 %v2214, 8
        %v2487 = vpop.permute.xlu0 %2486
        %2488 = vrot.lane.b32.xlu0 %v2219, 8
        %v2489 = vpop.permute.xlu0 %2488
        %2502 = vrot.lane.b32.xlu0 %v2273, 16
        %v2503 = vpop.permute.xlu0 %2502
        %2504 = vrot.lane.b32.xlu0 %v2276, 16
        %v2505 = vpop.permute.xlu0 %2504
        %2506 = vrot.lane.b32.xlu0 %v2281, 16
        %v2507 = vpop.permute.xlu0 %2506
        %2508 = vrot.lane.b32.xlu0 %v2335, 16
        %v2509 = vpop.permute.xlu0 %2508
        %2510 = vrot.lane.b32.xlu0 %v2338, 16
        %v2511 = vpop.permute.xlu0 %2510
        %2512 = vrot.lane.b32.xlu0 %v2343, 16
        %v2513 = vpop.permute.xlu0 %2512
        %2526 = vrot.lane.b32.xlu0 %v2397, 24
        %v2527 = vpop.permute.xlu0 %2526
        %2528 = vrot.lane.b32.xlu0 %v2400, 24
        %v2529 = vpop.permute.xlu0 %2528
        %2530 = vrot.lane.b32.xlu0 %v2405, 24
        %v2531 = vpop.permute.xlu0 %2530
        %2532 = vrot.lane.b32.xlu0 %v2459, 24
        %v2533 = vpop.permute.xlu0 %2532
        %2534 = vrot.lane.b32.xlu0 %v2462, 24
        %v2535 = vpop.permute.xlu0 %2534
        %2536 = vrot.lane.b32.xlu0 %v2467, 24
        %v2537 = vpop.permute.xlu0 %2536
        %v2544 = vsel %vm1119, %v2025, %v2479
        %v2545 = vsel %vm1119, %v2028, %v2481
        %v2546 = vsel %vm1119, %v2033, %v2483
        %v2547 = vsel %vm1119, %v2087, %v2485
        %v2548 = vsel %vm1119, %v2090, %v2487
        %v2549 = vsel %vm1119, %v2095, %v2489
        %vm2550 = vcmask 130048
        %v2551 = vsel %vm2550, %v2544, %v2503
        %v2552 = vsel %vm2550, %v2545, %v2505
        %v2553 = vsel %vm2550, %v2546, %v2507
        %v2554 = vsel %vm2550, %v2547, %v2509
        %v2555 = vsel %vm2550, %v2548, %v2511
        %v2556 = vsel %vm2550, %v2549, %v2513
        %v2557 = vsel %vm1694, %v2551, %v2527
        %v2558 = vsel %vm1694, %v2552, %v2529
        %v2559 = vsel %vm1694, %v2553, %v2531
        %v2560 = vsel %vm1694, %v2554, %v2533
        %v2561 = vsel %vm1694, %v2555, %v2535
        %v2562 = vsel %vm1694, %v2556, %v2537
        %v2563 = vpack.c.bf16 %v2558, %v2557
        %v2564 = vpack.c.bf16 %v2560, %v2559
        %v2565 = vpack.c.bf16 %v2562, %v2561
        %v2567 = vlaneseq
        %v2568 = vshrl.u32 %v2567, 7
        %v2569 = vsub.s32 0, %v2568
        %v2570 = vrot.slane %v821, %v2569
        %v2576 = vunpack.c.l.b16 %v817
        %v2577 = vunpack.c.l.b16 %v818
        %v2578 = vunpack.c.l.b16 %v819
        %v2579 = vunpack.c.l.b16 %v820
        %v2580 = vpack.c.b16 %v2577, %v2576
        %v2581 = vpack.c.b16 %v2579, %v2578
        %v2585 = vsel %vm846, %v2563, 0
        %v2588 = vsel %vm846, %v2564, 0
        %v2591 = vsel %vm846, %v2565, 0
        %2593 = vmatprep.subr.bf16.mxu0 0
        %2594 = vmatpush1.bf16.msra.mxu0 0
        %2595 = vmatprep.subr.bf16.mxu0 0
        %2596 = vmatpush1.bf16.msra.mxu0 0
        %2597 = vmatprep.subr.bf16.mxu0 0
        %2598 = vmatpush1.bf16.msra.mxu0 0
        %2599 = vmatprep.subr.bf16.mxu0 0
        %2600 = vmatpush1.bf16.msra.mxu0 0
        %2601 = vmatprep.subr.bf16.mxu0 0
        %2602 = vmatpush1.bf16.msra.mxu0 0
        %2603 = vmatprep.subr.bf16.mxu0 0
        %2604 = vmatpush1.bf16.msra.mxu0 0
        %2605 = vmatprep.subr.bf16.mxu0 0
        %2606 = vmatpush1.bf16.msra.mxu0 %v2581
        %2607 = vmatprep.subr.bf16.mxu0 0
        %2608 = vmatpush1.bf16.msra.mxu0 %v2580
        %2609 = vmatprep.subr.bf16.mxu0 0
        %2610 = vmatpush2.bf16.msra.mxu0 0
        %2611 = vmatprep.subr.bf16.mxu0 0
        %2612 = vmatpush2.bf16.msra.mxu0 0
        %2613 = vmatprep.subr.bf16.mxu0 0
        %2614 = vmatpush2.bf16.msra.mxu0 0
        %2615 = vmatprep.subr.bf16.mxu0 0
        %2616 = vmatpush2.bf16.msra.mxu0 0
        %2617 = vmatprep.subr.bf16.mxu0 0
        %2618 = vmatpush2.bf16.msra.mxu0 0
        %2619 = vmatprep.subr.bf16.mxu0 0
        %2620 = vmatpush2.bf16.msra.mxu0 0
        %2621 = vmatprep.subr.bf16.mxu0 0
        %2622 = vmatpush2.bf16.msra.mxu0 0
        %2623 = vmatprep.subr.bf16.mxu0 0
        %2624 = vmatpush2.bf16.msra.mxu0 0
        %2625 = vmatprep.mubr.bf16.mxu0 0
        %2626 = vmatmul.mubr.bf16.gmra.mxu0 %v2585
        %v2627 = vpop.f32.mrf.mxu0
        %v2628 = vadd.f32 %v2570, %v2627
        %v2629 = vpop.f32.mrf.mxu0
        %v2630 = vpop.f32.mrf.mxu0
        %v2631 = vadd.f32 %v2570, %v2630
        %v2632 = vpop.f32.mrf.mxu0
        %2633 = vmatprep.mubr.bf16.mxu0 0
        %2634 = vmatmul.mubr.bf16.gmra.mxu0 %v2588
        %v2635 = vpop.f32.mrf.mxu0
        %v2636 = vadd.f32 %v2570, %v2635
        %v2637 = vpop.f32.mrf.mxu0
        %v2638 = vpop.f32.mrf.mxu0
        %v2639 = vadd.f32 %v2570, %v2638
        %v2640 = vpop.f32.mrf.mxu0
        %2641 = vmatprep.mubr.bf16.mxu0 0
        %2642 = vmatmul.mubr.bf16.gmra.mxu0 %v2591
        %v2643 = vpop.f32.mrf.mxu0
        %v2644 = vadd.f32 %v2570, %v2643
        %v2645 = vpop.f32.mrf.mxu0
        %v2646 = vpop.f32.mrf.mxu0
        %v2647 = vadd.f32 %v2570, %v2646
        %v2648 = vpop.f32.mrf.mxu0
        %2649 = vdwg.mxu0
        %v2650 = vadd.f32 %v804, %v2628
        %v2651 = vadd.f32 %v805, %v2631
        %v2652 = vadd.f32 %v806, %v2636
        %v2653 = vadd.f32 %v807, %v2639
        %v2654 = vadd.f32 %v808, %v2644
        %v2655 = vadd.f32 %v809, %v2647
        %v2656 = vsel %vm846, %v2650, 0.0
        %2657 = vadd.xlane.f32.xlu0 %v2656
        %v2658 = vpop.xlane.xlu0 %2657
        %v2659 = vsel %vm846, %v2651, 0.0
        %2660 = vadd.xlane.f32.xlu0 %v2659
        %v2661 = vpop.xlane.xlu0 %2660
        %v2662 = vsel %vm846, %v2652, 0.0
        %2663 = vadd.xlane.f32.xlu0 %v2662
        %v2664 = vpop.xlane.xlu0 %2663
        %v2665 = vsel %vm846, %v2653, 0.0
        %2666 = vadd.xlane.f32.xlu0 %v2665
        %v2667 = vpop.xlane.xlu0 %2666
        %v2668 = vsel %vm846, %v2654, 0.0
        %2669 = vadd.xlane.f32.xlu0 %v2668
        %v2670 = vpop.xlane.xlu0 %2669
        %v2671 = vsel %vm846, %v2655, 0.0
        %2672 = vadd.xlane.f32.xlu0 %v2671
        %v2673 = vpop.xlane.xlu0 %2672
        %v2674 = vmul.f32 %v2658, %v865
        %v2675 = vmul.f32 %v2661, %v865
        %v2676 = vmul.f32 %v2664, %v865
        %v2677 = vmul.f32 %v2667, %v865
        %v2678 = vmul.f32 %v2670, %v865
        %v2679 = vmul.f32 %v2673, %v865
        %v2680 = vsub.f32 %v2650, %v2674
        %v2681 = vsub.f32 %v2651, %v2675
        %v2682 = vsub.f32 %v2652, %v2676
        %v2683 = vsub.f32 %v2653, %v2677
        %v2684 = vsub.f32 %v2654, %v2678
        %v2685 = vsub.f32 %v2655, %v2679
        %v2686 = vmul.f32 %v2680, %v2680
        %v2687 = vmul.f32 %v2681, %v2681
        %v2688 = vmul.f32 %v2682, %v2682
        %v2689 = vmul.f32 %v2683, %v2683
        %v2690 = vmul.f32 %v2684, %v2684
        %v2691 = vmul.f32 %v2685, %v2685
        %v2692 = vsel %vm846, %v2686, 0.0
        %2693 = vadd.xlane.f32.xlu0 %v2692
        %v2694 = vpop.xlane.xlu0 %2693
        %v2695 = vsel %vm846, %v2687, 0.0
        %2696 = vadd.xlane.f32.xlu0 %v2695
        %v2697 = vpop.xlane.xlu0 %2696
        %v2698 = vsel %vm846, %v2688, 0.0
        %2699 = vadd.xlane.f32.xlu0 %v2698
        %v2700 = vpop.xlane.xlu0 %2699
        %v2701 = vsel %vm846, %v2689, 0.0
        %2702 = vadd.xlane.f32.xlu0 %v2701
        %v2703 = vpop.xlane.xlu0 %2702
        %v2704 = vsel %vm846, %v2690, 0.0
        %2705 = vadd.xlane.f32.xlu0 %v2704
        %v2706 = vpop.xlane.xlu0 %2705
        %v2707 = vsel %vm846, %v2691, 0.0
        %2708 = vadd.xlane.f32.xlu0 %v2707
        %v2709 = vpop.xlane.xlu0 %2708
        %v2710 = vmul.f32 %v2694, %v865
        %v2711 = vmul.f32 %v2697, %v865
        %v2712 = vmul.f32 %v2700, %v865
        %v2713 = vmul.f32 %v2703, %v865
        %v2714 = vmul.f32 %v2706, %v865
        %v2715 = vmul.f32 %v2709, %v865
        %v2716 = vadd.f32 %v2710, 1e-05
        %v2717 = vadd.f32 %v2711, 1e-05
        %v2718 = vadd.f32 %v2712, 1e-05
        %v2719 = vadd.f32 %v2713, 1e-05
        %v2720 = vadd.f32 %v2714, 1e-05
        %v2721 = vadd.f32 %v2715, 1e-05
        %v2722 = vrsqrt.pop %v2716
        %v2723 = vrsqrt.pop %v2717
        %v2724 = vrsqrt.pop %v2718
        %v2725 = vrsqrt.pop %v2719
        %v2726 = vrsqrt.pop %v2720
        %v2727 = vrsqrt.pop %v2721
        %v2728 = vmul.f32 %v2680, %v2722
        %v2729 = vmul.f32 %v2681, %v2723
        %v2730 = vmul.f32 %v2682, %v2724
        %v2731 = vmul.f32 %v2683, %v2725
        %v2732 = vmul.f32 %v2684, %v2726
        %v2733 = vmul.f32 %v2685, %v2727
        %v2735 = vlaneseq
        %v2736 = vshrl.u32 %v2735, 7
        %v2737 = vsub.s32 0, %v2736
        %v2738 = vrot.slane %v822, %v2737
        %v2740 = vmul.f32 %v2728, %v2738
        %v2741 = vmul.f32 %v2729, %v2738
        %v2742 = vmul.f32 %v2730, %v2738
        %v2743 = vmul.f32 %v2731, %v2738
        %v2744 = vmul.f32 %v2732, %v2738
        %v2745 = vmul.f32 %v2733, %v2738
        %v2747 = vlaneseq
        %v2748 = vshrl.u32 %v2747, 7
        %v2749 = vsub.s32 0, %v2748
        %v2750 = vrot.slane %v823, %v2749
        %v2752 = vadd.f32 %v2740, %v2750
        %v2753 = vadd.f32 %v2741, %v2750
        %v2754 = vadd.f32 %v2742, %v2750
        %v2755 = vadd.f32 %v2743, %v2750
        %v2756 = vadd.f32 %v2744, %v2750
        %v2757 = vadd.f32 %v2745, %v2750
        %v2758 = vpack.c.bf16 %v2753, %v2752
        %v2759 = vpack.c.bf16 %v2755, %v2754
        %v2760 = vpack.c.bf16 %v2757, %v2756
        %v2762 = vlaneseq
        %v2763 = vshrl.u32 %v2762, 7
        %v2764 = vsub.s32 0, %v2763
        %v2765 = vrot.slane %v828, %v2764
        %v2771 = vunpack.c.l.b16 %v824
        %v2772 = vunpack.c.l.b16 %v825
        %v2773 = vunpack.c.l.b16 %v826
        %v2774 = vunpack.c.l.b16 %v827
        %v2775 = vpack.c.b16 %v2772, %v2771
        %v2776 = vpack.c.b16 %v2774, %v2773
        %v2780 = vsel %vm846, %v2758, 0
        %v2783 = vsel %vm846, %v2759, 0
        %v2786 = vsel %vm846, %v2760, 0
        %2788 = vmatprep.subr.bf16.mxu0 0
        %2789 = vmatpush1.bf16.msra.mxu0 0
        %2790 = vmatprep.subr.bf16.mxu0 0
        %2791 = vmatpush1.bf16.msra.mxu0 0
        %2792 = vmatprep.subr.bf16.mxu0 0
        %2793 = vmatpush1.bf16.msra.mxu0 0
        %2794 = vmatprep.subr.bf16.mxu0 0
        %2795 = vmatpush1.bf16.msra.mxu0 0
        %2796 = vmatprep.subr.bf16.mxu0 0
        %2797 = vmatpush1.bf16.msra.mxu0 0
        %2798 = vmatprep.subr.bf16.mxu0 0
        %2799 = vmatpush1.bf16.msra.mxu0 0
        %2800 = vmatprep.subr.bf16.mxu0 0
        %2801 = vmatpush1.bf16.msra.mxu0 %v2776
        %2802 = vmatprep.subr.bf16.mxu0 0
        %2803 = vmatpush1.bf16.msra.mxu0 %v2775
        %2804 = vmatprep.subr.bf16.mxu0 0
        %2805 = vmatpush2.bf16.msra.mxu0 0
        %2806 = vmatprep.subr.bf16.mxu0 0
        %2807 = vmatpush2.bf16.msra.mxu0 0
        %2808 = vmatprep.subr.bf16.mxu0 0
        %2809 = vmatpush2.bf16.msra.mxu0 0
        %2810 = vmatprep.subr.bf16.mxu0 0
        %2811 = vmatpush2.bf16.msra.mxu0 0
        %2812 = vmatprep.subr.bf16.mxu0 0
        %2813 = vmatpush2.bf16.msra.mxu0 0
        %2814 = vmatprep.subr.bf16.mxu0 0
        %2815 = vmatpush2.bf16.msra.mxu0 0
        %2816 = vmatprep.subr.bf16.mxu0 0
        %2817 = vmatpush2.bf16.msra.mxu0 0
        %2818 = vmatprep.subr.bf16.mxu0 0
        %2819 = vmatpush2.bf16.msra.mxu0 0
        %2820 = vmatprep.mubr.bf16.mxu0 0
        %2821 = vmatmul.mubr.bf16.gmra.mxu0 %v2780
        %v2822 = vpop.f32.mrf.mxu0
        %v2823 = vadd.f32 %v2765, %v2822
        %v2824 = vpop.f32.mrf.mxu0
        %v2825 = vpop.f32.mrf.mxu0
        %v2826 = vadd.f32 %v2765, %v2825
        %v2827 = vpop.f32.mrf.mxu0
        %2828 = vmatprep.mubr.bf16.mxu0 0
        %2829 = vmatmul.mubr.bf16.gmra.mxu0 %v2783
        %v2830 = vpop.f32.mrf.mxu0
        %v2831 = vadd.f32 %v2765, %v2830
        %v2832 = vpop.f32.mrf.mxu0
        %v2833 = vpop.f32.mrf.mxu0
        %v2834 = vadd.f32 %v2765, %v2833
        %v2835 = vpop.f32.mrf.mxu0
        %2836 = vmatprep.mubr.bf16.mxu0 0
        %2837 = vmatmul.mubr.bf16.gmra.mxu0 %v2786
        %v2838 = vpop.f32.mrf.mxu0
        %v2839 = vadd.f32 %v2765, %v2838
        %v2840 = vpop.f32.mrf.mxu0
        %v2841 = vpop.f32.mrf.mxu0
        %v2842 = vadd.f32 %v2765, %v2841
        %v2843 = vpop.f32.mrf.mxu0
        %2844 = vdwg.mxu0
        %v2845 = vmul.f32 %v2823, 0.5
        %v2846 = vmul.f32 %v2826, 0.5
        %v2847 = vmul.f32 %v2831, 0.5
        %v2848 = vmul.f32 %v2834, 0.5
        %v2849 = vmul.f32 %v2839, 0.5
        %v2850 = vmul.f32 %v2842, 0.5
        %v2851 = vmul.f32 %v2823, 0.70710677
        %v2852 = vmul.f32 %v2826, 0.70710677
        %v2853 = vmul.f32 %v2831, 0.70710677
        %v2854 = vmul.f32 %v2834, 0.70710677
        %v2855 = vmul.f32 %v2839, 0.70710677
        %v2856 = vmul.f32 %v2842, 0.70710677
        %v2857 = verf.f32.pop %v2851
        %v2858 = verf.f32.pop %v2852
        %v2859 = verf.f32.pop %v2853
        %v2860 = verf.f32.pop %v2854
        %v2861 = verf.f32.pop %v2855
        %v2862 = verf.f32.pop %v2856
        %v2863 = vadd.f32 %v2857, 1.0
        %v2864 = vadd.f32 %v2858, 1.0
        %v2865 = vadd.f32 %v2859, 1.0
        %v2866 = vadd.f32 %v2860, 1.0
        %v2867 = vadd.f32 %v2861, 1.0
        %v2868 = vadd.f32 %v2862, 1.0
        %v2869 = vmul.f32 %v2845, %v2863
        %v2870 = vmul.f32 %v2846, %v2864
        %v2871 = vmul.f32 %v2847, %v2865
        %v2872 = vmul.f32 %v2848, %v2866
        %v2873 = vmul.f32 %v2849, %v2867
        %v2874 = vmul.f32 %v2850, %v2868
        %v2875 = vpack.c.bf16 %v2870, %v2869
        %v2876 = vpack.c.bf16 %v2872, %v2871
        %v2877 = vpack.c.bf16 %v2874, %v2873
        %v2879 = vlaneseq
        %v2880 = vshrl.u32 %v2879, 7
        %v2881 = vsub.s32 0, %v2880
        %v2882 = vrot.slane %v845, %v2881
        %v2900 = vunpack.c.l.b16 %v829
        %v2901 = vunpack.c.l.b16 %v830
        %v2902 = vunpack.c.l.b16 %v831
        %v2903 = vunpack.c.l.b16 %v832
        %v2904 = vunpack.c.l.b16 %v833
        %v2905 = vunpack.c.l.b16 %v834
        %v2906 = vunpack.c.l.b16 %v835
        %v2907 = vunpack.c.l.b16 %v836
        %v2908 = vunpack.c.l.b16 %v837
        %v2909 = vunpack.c.l.b16 %v838
        %v2910 = vunpack.c.l.b16 %v839
        %v2911 = vunpack.c.l.b16 %v840
        %v2912 = vunpack.c.l.b16 %v841
        %v2913 = vunpack.c.l.b16 %v842
        %v2914 = vunpack.c.l.b16 %v843
        %v2915 = vunpack.c.l.b16 %v844
        %v2916 = vpack.c.b16 %v2901, %v2900
        %v2917 = vpack.c.b16 %v2903, %v2902
        %v2918 = vpack.c.b16 %v2905, %v2904
        %v2919 = vpack.c.b16 %v2907, %v2906
        %v2920 = vpack.c.b16 %v2909, %v2908
        %v2921 = vpack.c.b16 %v2911, %v2910
        %v2922 = vpack.c.b16 %v2913, %v2912
        %v2923 = vpack.c.b16 %v2915, %v2914
        %2932 = vmatprep.subr.bf16.mxu0 0
        %2933 = vmatpush1.bf16.msra.mxu0 %v2923
        %2934 = vmatprep.subr.bf16.mxu0 0
        %2935 = vmatpush1.bf16.msra.mxu0 %v2922
        %2936 = vmatprep.subr.bf16.mxu0 0
        %2937 = vmatpush1.bf16.msra.mxu0 %v2921
        %2938 = vmatprep.subr.bf16.mxu0 0
        %2939 = vmatpush1.bf16.msra.mxu0 %v2920
        %2940 = vmatprep.subr.bf16.mxu0 0
        %2941 = vmatpush1.bf16.msra.mxu0 %v2919
        %2942 = vmatprep.subr.bf16.mxu0 0
        %2943 = vmatpush1.bf16.msra.mxu0 %v2918
        %2944 = vmatprep.subr.bf16.mxu0 0
        %2945 = vmatpush1.bf16.msra.mxu0 %v2917
        %2946 = vmatprep.subr.bf16.mxu0 0
        %2947 = vmatpush1.bf16.msra.mxu0 %v2916
        %2948 = vmatprep.subr.bf16.mxu0 0
        %2949 = vmatpush2.bf16.msra.mxu0 0
        %2950 = vmatprep.subr.bf16.mxu0 0
        %2951 = vmatpush2.bf16.msra.mxu0 0
        %2952 = vmatprep.subr.bf16.mxu0 0
        %2953 = vmatpush2.bf16.msra.mxu0 0
        %2954 = vmatprep.subr.bf16.mxu0 0
        %2955 = vmatpush2.bf16.msra.mxu0 0
        %2956 = vmatprep.subr.bf16.mxu0 0
        %2957 = vmatpush2.bf16.msra.mxu0 0
        %2958 = vmatprep.subr.bf16.mxu0 0
        %2959 = vmatpush2.bf16.msra.mxu0 0
        %2960 = vmatprep.subr.bf16.mxu0 0
        %2961 = vmatpush2.bf16.msra.mxu0 0
        %2962 = vmatprep.subr.bf16.mxu0 0
        %2963 = vmatpush2.bf16.msra.mxu0 0
        %2964 = vmatprep.mubr.bf16.mxu0 0
        %2965 = vmatmul.mubr.bf16.gmra.mxu0 %v2875
        %v2966 = vpop.f32.mrf.mxu0
        %v2967 = vadd.f32 %v2882, %v2966
        %v2968 = vpop.f32.mrf.mxu0
        %v2969 = vpop.f32.mrf.mxu0
        %v2970 = vadd.f32 %v2882, %v2969
        %v2971 = vpop.f32.mrf.mxu0
        %2972 = vmatprep.mubr.bf16.mxu0 0
        %2973 = vmatmul.mubr.bf16.gmra.mxu0 %v2876
        %v2974 = vpop.f32.mrf.mxu0
        %v2975 = vadd.f32 %v2882, %v2974
        %v2976 = vpop.f32.mrf.mxu0
        %v2977 = vpop.f32.mrf.mxu0
        %v2978 = vadd.f32 %v2882, %v2977
        %v2979 = vpop.f32.mrf.mxu0
        %2980 = vmatprep.mubr.bf16.mxu0 0
        %2981 = vmatmul.mubr.bf16.gmra.mxu0 %v2877
        %v2982 = vpop.f32.mrf.mxu0
        %v2983 = vadd.f32 %v2882, %v2982
        %v2984 = vpop.f32.mrf.mxu0
        %v2985 = vpop.f32.mrf.mxu0
        %v2986 = vadd.f32 %v2882, %v2985
        %v2987 = vpop.f32.mrf.mxu0
        %2988 = vdwg.mxu0
        %v2989 = vadd.f32 %v2650, %v2967
        %v2990 = vadd.f32 %v2651, %v2970
        %v2991 = vadd.f32 %v2652, %v2975
        %v2992 = vadd.f32 %v2653, %v2978
        %v2993 = vadd.f32 %v2654, %v2983
        %v2994 = vadd.f32 %v2655, %v2986
        %2995 = vst.msk [vmem:[#allocation2] sm:$0xff] %vm846, %v2989
        %2996 = vst.msk [vmem:[#allocation2 + $0x8] sm:$0xff] %vm846, %v2990
        %2997 = vst.msk [vmem:[#allocation2 + $0x10] sm:$0xff] %vm846, %v2991
        %2998 = vst.msk [vmem:[#allocation2 + $0x18] sm:$0xff] %vm846, %v2992
        %2999 = vst.msk [vmem:[#allocation2 + $0x20] sm:$0xff] %vm846, %v2993
        %3000 = vst.msk [vmem:[#allocation2 + $0x28] sm:$0xff] %vm846, %v2994
        %p3001 = scmp.eq.s32.totalorder %s33, 1
        // Predicated region
        $region101: #{_lambda_.3} parent=95 // pred_check
          %p3002 = pneg %p3001
        $region102: #{_lambda_.3} parent=95 // pred_check_branch
          %3004 = sbr.rel (%p3002) target = $region104
        $region103: #{_lambda_.3} parent=95 // pred_region
          %v3005 = vld [vmem:[%s15] sm:$0x1]
          %v3006 = vld [vmem:[%s16] sm:$0x1]
          %v3007 = vsel %vm846, %v2989, 0.0
          %3008 = vadd.xlane.f32.xlu0 %v3007
          %v3009 = vpop.xlane.xlu0 %3008
          %v3010 = vsel %vm846, %v2990, 0.0
          %3011 = vadd.xlane.f32.xlu0 %v3010
          %v3012 = vpop.xlane.xlu0 %3011
          %v3013 = vsel %vm846, %v2991, 0.0
          %3014 = vadd.xlane.f32.xlu0 %v3013
          %v3015 = vpop.xlane.xlu0 %3014
          %v3016 = vsel %vm846, %v2992, 0.0
          %3017 = vadd.xlane.f32.xlu0 %v3016
          %v3018 = vpop.xlane.xlu0 %3017
          %v3019 = vsel %vm846, %v2993, 0.0
          %3020 = vadd.xlane.f32.xlu0 %v3019
          %v3021 = vpop.xlane.xlu0 %3020
          %v3022 = vsel %vm846, %v2994, 0.0
          %3023 = vadd.xlane.f32.xlu0 %v3022
          %v3024 = vpop.xlane.xlu0 %3023
          %v3025 = vmul.f32 %v3009, %v865
          %v3026 = vmul.f32 %v3012, %v865
          %v3027 = vmul.f32 %v3015, %v865
          %v3028 = vmul.f32 %v3018, %v865
          %v3029 = vmul.f32 %v3021, %v865
          %v3030 = vmul.f32 %v3024, %v865
          %v3031 = vsub.f32 %v2989, %v3025
          %v3032 = vsub.f32 %v2990, %v3026
          %v3033 = vsub.f32 %v2991, %v3027
          %v3034 = vsub.f32 %v2992, %v3028
          %v3035 = vsub.f32 %v2993, %v3029
          %v3036 = vsub.f32 %v2994, %v3030
          %v3037 = vmul.f32 %v3031, %v3031
          %v3038 = vmul.f32 %v3032, %v3032
          %v3039 = vmul.f32 %v3033, %v3033
          %v3040 = vmul.f32 %v3034, %v3034
          %v3041 = vmul.f32 %v3035, %v3035
          %v3042 = vmul.f32 %v3036, %v3036
          %v3043 = vsel %vm846, %v3037, 0.0
          %3044 = vadd.xlane.f32.xlu0 %v3043
          %v3045 = vpop.xlane.xlu0 %3044
          %v3046 = vsel %vm846, %v3038, 0.0
          %3047 = vadd.xlane.f32.xlu0 %v3046
          %v3048 = vpop.xlane.xlu0 %3047
          %v3049 = vsel %vm846, %v3039, 0.0
          %3050 = vadd.xlane.f32.xlu0 %v3049
          %v3051 = vpop.xlane.xlu0 %3050
          %v3052 = vsel %vm846, %v3040, 0.0
          %3053 = vadd.xlane.f32.xlu0 %v3052
          %v3054 = vpop.xlane.xlu0 %3053
          %v3055 = vsel %vm846, %v3041, 0.0
          %3056 = vadd.xlane.f32.xlu0 %v3055
          %v3057 = vpop.xlane.xlu0 %3056
          %v3058 = vsel %vm846, %v3042, 0.0
          %3059 = vadd.xlane.f32.xlu0 %v3058
          %v3060 = vpop.xlane.xlu0 %3059
          %v3061 = vmul.f32 %v3045, %v865
          %v3062 = vmul.f32 %v3048, %v865
          %v3063 = vmul.f32 %v3051, %v865
          %v3064 = vmul.f32 %v3054, %v865
          %v3065 = vmul.f32 %v3057, %v865
          %v3066 = vmul.f32 %v3060, %v865
          %v3067 = vadd.f32 %v3061, 1e-05
          %v3068 = vadd.f32 %v3062, 1e-05
          %v3069 = vadd.f32 %v3063, 1e-05
          %v3070 = vadd.f32 %v3064, 1e-05
          %v3071 = vadd.f32 %v3065, 1e-05
          %v3072 = vadd.f32 %v3066, 1e-05
          %v3073 = vrsqrt.pop %v3067
          %v3074 = vrsqrt.pop %v3068
          %v3075 = vrsqrt.pop %v3069
          %v3076 = vrsqrt.pop %v3070
          %v3077 = vrsqrt.pop %v3071
          %v3078 = vrsqrt.pop %v3072
          %v3079 = vmul.f32 %v3031, %v3073
          %v3080 = vmul.f32 %v3032, %v3074
          %v3081 = vmul.f32 %v3033, %v3075
          %v3082 = vmul.f32 %v3034, %v3076
          %v3083 = vmul.f32 %v3035, %v3077
          %v3084 = vmul.f32 %v3036, %v3078
          %v3086 = vlaneseq
          %v3087 = vshrl.u32 %v3086, 7
          %v3088 = vsub.s32 0, %v3087
          %v3089 = vrot.slane %v3005, %v3088
          %v3091 = vmul.f32 %v3079, %v3089
          %v3092 = vmul.f32 %v3080, %v3089
          %v3093 = vmul.f32 %v3081, %v3089
          %v3094 = vmul.f32 %v3082, %v3089
          %v3095 = vmul.f32 %v3083, %v3089
          %v3096 = vmul.f32 %v3084, %v3089
          %v3098 = vlaneseq
          %v3099 = vshrl.u32 %v3098, 7
          %v3100 = vsub.s32 0, %v3099
          %v3101 = vrot.slane %v3006, %v3100
          %v3103 = vadd.f32 %v3091, %v3101
          %v3104 = vadd.f32 %v3092, %v3101
          %v3105 = vadd.f32 %v3093, %v3101
          %v3106 = vadd.f32 %v3094, %v3101
          %v3107 = vadd.f32 %v3095, %v3101
          %v3108 = vadd.f32 %v3096, %v3101
          %v3109 = vpack.c.bf16 %v3104, %v3103
          %v3110 = vpack.c.bf16 %v3106, %v3105
          %v3111 = vpack.c.bf16 %v3108, %v3107
          %v3112 = vld [vmem:[%s17] sm:$0xf]
          %v3113 = vld [vmem:[%s17 + $0x4] sm:$0xf]
          %v3114 = vld [vmem:[%s17 + $0x8] sm:$0xf]
          %v3115 = vld [vmem:[%s17 + $0xc] sm:$0xf]
          %v3116 = vld [vmem:[%s18] sm:$0x1]
          %v3118 = vlaneseq
          %v3119 = vshrl.u32 %v3118, 7
          %v3120 = vsub.s32 0, %v3119
          %v3121 = vrot.slane %v3116, %v3120
          %v3127 = vunpack.c.l.b16 %v3112
          %v3128 = vunpack.c.l.b16 %v3113
          %v3129 = vunpack.c.l.b16 %v3114
          %v3130 = vunpack.c.l.b16 %v3115
          %v3131 = vpack.c.b16 %v3128, %v3127
          %v3132 = vpack.c.b16 %v3130, %v3129
          %v3136 = vsel %vm846, %v3109, 0
          %v3139 = vsel %vm846, %v3110, 0
          %v3142 = vsel %vm846, %v3111, 0
          %3144 = vmatprep.subr.bf16.mxu0 0
          %3145 = vmatpush1.bf16.msra.mxu0 0
          %3146 = vmatprep.subr.bf16.mxu0 0
          %3147 = vmatpush1.bf16.msra.mxu0 0
          %3148 = vmatprep.subr.bf16.mxu0 0
          %3149 = vmatpush1.bf16.msra.mxu0 0
          %3150 = vmatprep.subr.bf16.mxu0 0
          %3151 = vmatpush1.bf16.msra.mxu0 0
          %3152 = vmatprep.subr.bf16.mxu0 0
          %3153 = vmatpush1.bf16.msra.mxu0 0
          %3154 = vmatprep.subr.bf16.mxu0 0
          %3155 = vmatpush1.bf16.msra.mxu0 0
          %3156 = vmatprep.subr.bf16.mxu0 0
          %3157 = vmatpush1.bf16.msra.mxu0 %v3132
          %3158 = vmatprep.subr.bf16.mxu0 0
          %3159 = vmatpush1.bf16.msra.mxu0 %v3131
          %3160 = vmatprep.subr.bf16.mxu0 0
          %3161 = vmatpush2.bf16.msra.mxu0 0
          %3162 = vmatprep.subr.bf16.mxu0 0
          %3163 = vmatpush2.bf16.msra.mxu0 0
          %3164 = vmatprep.subr.bf16.mxu0 0
          %3165 = vmatpush2.bf16.msra.mxu0 0
          %3166 = vmatprep.subr.bf16.mxu0 0
          %3167 = vmatpush2.bf16.msra.mxu0 0
          %3168 = vmatprep.subr.bf16.mxu0 0
          %3169 = vmatpush2.bf16.msra.mxu0 0
          %3170 = vmatprep.subr.bf16.mxu0 0
          %3171 = vmatpush2.bf16.msra.mxu0 0
          %3172 = vmatprep.subr.bf16.mxu0 0
          %3173 = vmatpush2.bf16.msra.mxu0 0
          %3174 = vmatprep.subr.bf16.mxu0 0
          %3175 = vmatpush2.bf16.msra.mxu0 0
          %3176 = vmatprep.mubr.bf16.mxu0 0
          %3177 = vmatmul.mubr.bf16.gmra.mxu0 %v3136
          %v3178 = vpop.f32.mrf.mxu0
          %v3179 = vadd.f32 %v3121, %v3178
          %v3180 = vpop.f32.mrf.mxu0
          %v3181 = vpop.f32.mrf.mxu0
          %v3182 = vadd.f32 %v3121, %v3181
          %v3183 = vpop.f32.mrf.mxu0
          %3184 = vmatprep.mubr.bf16.mxu0 0
          %3185 = vmatmul.mubr.bf16.gmra.mxu0 %v3139
          %v3186 = vpop.f32.mrf.mxu0
          %v3187 = vadd.f32 %v3121, %v3186
          %v3188 = vpop.f32.mrf.mxu0
          %v3189 = vpop.f32.mrf.mxu0
          %v3190 = vadd.f32 %v3121, %v3189
          %v3191 = vpop.f32.mrf.mxu0
          %3192 = vmatprep.mubr.bf16.mxu0 0
          %3193 = vmatmul.mubr.bf16.gmra.mxu0 %v3142
          %v3194 = vpop.f32.mrf.mxu0
          %v3195 = vadd.f32 %v3121, %v3194
          %v3196 = vpop.f32.mrf.mxu0
          %v3197 = vpop.f32.mrf.mxu0
          %v3198 = vadd.f32 %v3121, %v3197
          %v3199 = vpop.f32.mrf.mxu0
          %3200 = vdwg.mxu0
          %3201 = vst [vmem:[%s19] sm:$0xff] %v3179
          %3202 = vst [vmem:[%s19 + $0x8] sm:$0xff] %v3182
          %3203 = vst [vmem:[%s19 + $0x10] sm:$0xff] %v3187
          %3204 = vst [vmem:[%s19 + $0x18] sm:$0xff] %v3190
          %3205 = vst [vmem:[%s19 + $0x20] sm:$0xff] %v3195
          %3206 = vst [vmem:[%s19 + $0x28] sm:$0xff] %v3198
          %v3207 = vld [vmem:[%s1] sm:$0xff]
          %v3208 = vld [vmem:[%s1 + $0x8] sm:$0xff]
          %v3209 = vld [vmem:[%s1 + $0x10] sm:$0xff]
          %v3210 = vld [vmem:[%s1 + $0x18] sm:$0xff]
          %v3211 = vld [vmem:[%s1 + $0x20] sm:$0xff]
          %v3212 = vld [vmem:[%s1 + $0x28] sm:$0xff]
          %v3213 = vsub.f32 %v3179, %v3207
          %v3214 = vsub.f32 %v3182, %v3208
          %v3215 = vsub.f32 %v3187, %v3209
          %v3216 = vsub.f32 %v3190, %v3210
          %v3217 = vsub.f32 %v3195, %v3211
          %v3218 = vsub.f32 %v3198, %v3212
          %v3219 = vmul.f32 %v3213, %v3213
          %v3220 = vmul.f32 %v3214, %v3214
          %v3221 = vmul.f32 %v3215, %v3215
          %v3222 = vmul.f32 %v3216, %v3216
          %v3223 = vmul.f32 %v3217, %v3217
          %v3224 = vmul.f32 %v3218, %v3218
          %3225 = vadd.xlane.f32.xlu0 %v3219
          %v3226 = vpop.xlane.xlu0 %3225
          %3227 = vadd.xlane.f32.xlu0 %v3220
          %v3228 = vpop.xlane.xlu0 %3227
          %3229 = vadd.xlane.f32.xlu0 %v3221
          %v3230 = vpop.xlane.xlu0 %3229
          %3231 = vadd.xlane.f32.xlu0 %v3222
          %v3232 = vpop.xlane.xlu0 %3231
          %3233 = vadd.xlane.f32.xlu0 %v3223
          %v3234 = vpop.xlane.xlu0 %3233
          %3235 = vadd.xlane.f32.xlu0 %v3224
          %v3236 = vpop.xlane.xlu0 %3235
          %v3237 = vmul.f32 %v3226, 0.020833334
          %v3238 = vmul.f32 %v3228, 0.020833334
          %v3239 = vmul.f32 %v3230, 0.020833334
          %v3240 = vmul.f32 %v3232, 0.020833334
          %v3241 = vmul.f32 %v3234, 0.020833334
          %v3242 = vmul.f32 %v3236, 0.020833334
          %v3243 = vld [vmem:[%s2] sm:$0xff]
          %v3244 = vld [vmem:[%s2 + $0x8] sm:$0xff]
          %v3245 = vld [vmem:[%s2 + $0x10] sm:$0xff]
          %v3246 = vld [vmem:[%s2 + $0x18] sm:$0xff]
          %v3247 = vld [vmem:[%s2 + $0x20] sm:$0xff]
          %v3248 = vld [vmem:[%s2 + $0x28] sm:$0xff]
          %v3249 = vmul.f32 %v3237, %v3243
          %v3250 = vmul.f32 %v3238, %v3244
          %v3251 = vmul.f32 %v3239, %v3245
          %v3252 = vmul.f32 %v3240, %v3246
          %v3253 = vmul.f32 %v3241, %v3247
          %v3254 = vmul.f32 %v3242, %v3248
          %vm3255 = vcmask 7168
          %v3256 = vsel %vm3255, %v3249, 0.0
          %v3257 = vsel %vm3255, %v3250, 0.0
          %v3258 = vadd.f32 %v3256, %v3257
          %v3259 = vsel %vm3255, %v3251, 0.0
          %v3260 = vadd.f32 %v3258, %v3259
          %v3261 = vsel %vm3255, %v3252, 0.0
          %v3262 = vadd.f32 %v3260, %v3261
          %v3263 = vsel %vm3255, %v3253, 0.0
          %v3264 = vadd.f32 %v3262, %v3263
          %v3265 = vsel %vm3255, %v3254, 0.0
          %v3266 = vadd.f32 %v3264, %v3265
          %3267 = vadd.xlane.f32.xlu0 %v3266
          %v3268 = vpop.xlane.xlu0 %3267
          %v3269 = vrot.slane %v3268, 4
          %v3270 = vadd.f32 %v3268, %v3269
          %v3271 = vrot.slane %v3270, 2
          %v3272 = vadd.f32 %v3270, %v3271
          %v3273 = vrot.slane %v3272, 1
          %v3274 = vadd.f32 %v3272, %v3273
          %s3275 = vtos %v3274
          %v3276 = vsel %vm3255, %v3243, 0.0
          %v3277 = vsel %vm3255, %v3244, 0.0
          %v3278 = vadd.f32 %v3276, %v3277
          %v3279 = vsel %vm3255, %v3245, 0.0
          %v3280 = vadd.f32 %v3278, %v3279
          %v3281 = vsel %vm3255, %v3246, 0.0
          %v3282 = vadd.f32 %v3280, %v3281
          %v3283 = vsel %vm3255, %v3247, 0.0
          %v3284 = vadd.f32 %v3282, %v3283
          %v3285 = vsel %vm3255, %v3248, 0.0
          %v3286 = vadd.f32 %v3284, %v3285
          %3287 = vadd.xlane.f32.xlu0 %v3286
          %v3288 = vpop.xlane.xlu0 %3287
          %v3289 = vrot.slane %v3288, 4
          %v3290 = vadd.f32 %v3288, %v3289
          %v3291 = vrot.slane %v3290, 2
          %v3292 = vadd.f32 %v3290, %v3291
          %v3293 = vrot.slane %v3292, 1
          %v3294 = vadd.f32 %v3292, %v3293
          %s3295 = vtos %v3294
          %v3296 = vstv %s3295
          %v3297 = vrcp.pop %v3296
          %s3298 = vtos %v3297
          %s3299 = smul.f32 %s3275, %s3298
          %s3300 = scalar_lea.smem [#allocation3], 0
          %3301 = sst [smem:[%s3300]] %s3299
        $region104: #{_lambda_.3} parent=95 // pred_fallthru
          _
        // Predicated region
        $region105: #{_lambda_.3} parent=95 // pred_check
          %p3302 = pneg %p505
        $region106: #{_lambda_.3} parent=95 // pred_check_branch
          %3304 = sbr.rel (%p3302) target = $region108
        $region107: #{_lambda_.3} parent=95 // pred_region
          _
        $region108: #{_lambda_.3} parent=95 // pred_fallthru
          _
        // Predicated region
        $region109: #{_lambda_.3} parent=95 // pred_check
          %p3305 = pneg %p526
        $region110: #{_lambda_.3} parent=95 // pred_check_branch
          %3307 = sbr.rel (%p3305) target = $region112
        $region111: #{_lambda_.3} parent=95 // pred_region
          %s3309 = ssub.s32 16, 16
          %3310 = vsyncadd [#allocation4], %s3309
          %3313 = dma.smem_to_hbm [#allocation3], 16, %s20, [#allocation4]
        $region112: #{_lambda_.3} parent=95 // pred_fallthru
          _
        // Predicated region
        $region113: #{_lambda_.3} parent=95 // pred_check
          %p3314 = pneg %p505
        $region114: #{_lambda_.3} parent=95 // pred_check_branch
          %3316 = sbr.rel (%p3314) target = $region116
        $region115: #{_lambda_.3} parent=95 // pred_region
          _
        $region116: #{_lambda_.3} parent=95 // pred_fallthru
          _
        // Predicated region
        $region117: #{_lambda_.3} parent=95 // pred_check
          %p3317 = pneg %p526
        $region118: #{_lambda_.3} parent=95 // pred_check_branch
          %3319 = sbr.rel (%p3317) target = $region120
        $region119: #{_lambda_.3} parent=95 // pred_region
          %3320 = dma.done [#allocation4], 16
        $region120: #{_lambda_.3} parent=95 // pred_fallthru
          _
        %3321 = sfence
      $region96: #{_lambda_.3} parent=5 // pred_fallthru
        _
      %p3322 = scmp.le.s32.totalorder 2, %s28
      // Predicated region
      $region121: #{_lambda_.3} parent=5 // pred_check
        %p3323 = pneg %p3322
      $region122: #{_lambda_.3} parent=5 // pred_check_branch
        %3325 = sbr.rel (%p3323) target = $region124
      $region123: #{_lambda_.3} parent=5 // pred_region
        %s3326 = ssub.s32 %s28, 2
      $region124: #{_lambda_.3} parent=5 // pred_fallthru
        _
    $region6: #{_lambda_.3} parent=1 // loop_footer
      %s32 = sadd.s32 1, %s28
    $region7: #{_lambda_.3} parent=1 // loop_footer_branch
      %27 = sbr.rel target = $region3
    $region8: #{_lambda_.3} parent=1 // loop_exit
      _
    %3327 = vsyncpa [#allocation4], 1
    %s3328 = scalar_lea.sflag [#allocation4], 1
    %3329 = vsyncpa %s3328, 1

</llo_original>
